<compile_context>
chip_gen: v6e
topology: v6e:2x2x1
jax: 0.10.0
libtpu: 0.0.40
codegen_flags: <defaults>
</compile_context>

<pallas_src>
import functools

import jax
import jax.numpy as jnp
from jax.experimental import pallas as pl
from jax.experimental.pallas import tpu as pltpu


def _make_kernel(T, B, H, num_layers):
    H4 = 4 * H
    TB = T * B

    def kernel(*refs):
        tok_ref, embed_ref = refs[0], refs[1]
        p = 2
        layer_refs = []
        for _ in range(num_layers):
            layer_refs.append(refs[p:p + 3])          # (wih_cat, b_cat, whh_stack)
            p += 3
        (bn_scale_ref, bn_shift_ref, lnw_ref, lnb_ref,
         linw_ref, linb_ref) = refs[p:p + 6]
        p += 6
        out_ref = refs[p]
        gx_scr, y_scr = refs[p + 1], refs[p + 2]

        # ---- embedding: gather-free one-hot matmul (tokens are time-major) ----
        V = embed_ref.shape[0]
        tok = tok_ref[...]                                          # (T*B, 1) int32
        onehot = (tok == jax.lax.broadcasted_iota(jnp.int32, (TB, V), 1)
                  ).astype(jnp.float32)
        x = jnp.dot(onehot, embed_ref[...],
                    preferred_element_type=jnp.float32)             # (T*B, E)

        # Direction mask: forward rows (0..B-1) keep h in cols [0,H), backward
        # rows (B..2B-1) keep h in cols [H,2H) -> one matmul against the
        # row-stacked [Whh_fwd; Whh_bwd] handles both directions at once.
        row = jax.lax.broadcasted_iota(jnp.int32, (2 * B, 2 * H), 0)
        col = jax.lax.broadcasted_iota(jnp.int32, (2 * B, 2 * H), 1)
        dirmask = ((row < B) == (col < H)).astype(jnp.float32)      # (2B, 2H)

        h = None
        hb_last = None
        for l in range(num_layers):
            wih_ref, b_ref, whh_ref = layer_refs[l]
            last = l == num_layers - 1
            inp = x if l == 0 else y_scr[...]                       # (T*B, Din_l)
            # Hoisted input projection: both directions + bias in one matmul.
            gx_scr[...] = (jnp.dot(inp, wih_ref[...],
                                   preferred_element_type=jnp.float32)
                           + b_ref[...])                            # (T*B, 8H)
            whh = whh_ref[...]                                      # (2H, 4H)
            h = jnp.zeros((2 * B, H), jnp.float32)
            c = jnp.zeros((2 * B, H), jnp.float32)
            for s in range(T):                 # static unroll: T fixed & small
                gxf = gx_scr[s * B:(s + 1) * B, 0:H4]               # fwd @ time s
                gxb = gx_scr[(T - 1 - s) * B:(T - s) * B, H4:2 * H4]  # bwd @ T-1-s
                gates = (jnp.concatenate([gxf, gxb], axis=0)
                         + jnp.dot(jnp.concatenate([h, h], axis=1) * dirmask,
                                   whh, preferred_element_type=jnp.float32))
                # gate order [i, f, g, o]; transcendentals only where used.
                sg_if = jax.nn.sigmoid(gates[:, 0:2 * H])
                g_t = jnp.tanh(gates[:, 2 * H:3 * H])
                o_t = jax.nn.sigmoid(gates[:, 3 * H:H4])
                c = sg_if[:, H:2 * H] * c + sg_if[:, 0:H] * g_t
                h = o_t * jnp.tanh(c)
                if not last:
                    # layer output in original time order: [fwd(t) | bwd(t)]
                    y_scr[s * B:(s + 1) * B, 0:H] = h[0:B]
                    y_scr[(T - 1 - s) * B:(T - s) * B, H:2 * H] = h[B:2 * B]
                elif s == 0:
                    # backward direction's output at original t = T-1
                    hb_last = h[B:2 * B]

        # ---- head: only timestep T-1 of the final layer survives --------------
        hf_last = h[0:B]                                            # fwd final h
        xh = jnp.concatenate([hf_last, hb_last], axis=1)            # (B, 2H)

        # BatchNorm1d (eval) for channel T-1, pre-folded into scale/shift.
        xh = xh * bn_scale_ref[...] + bn_shift_ref[...]
        # LayerNorm over features, eps = 1e-5 (PyTorch default).
        mean = jnp.mean(xh, axis=-1, keepdims=True)
        var = jnp.mean(jnp.square(xh - mean), axis=-1, keepdims=True)
        xn = (xh - mean) * jax.lax.rsqrt(var + 1e-5)
        xn = xn * lnw_ref[...] + lnb_ref[...]
        # Dropout(p=0.3) is identity in eval mode; Linear(2H -> O).
        out_ref[...] = (jnp.dot(xn, linw_ref[...],
                                preferred_element_type=jnp.float32)
                        + linb_ref[...])

    return kernel


# ----------------------------------------------------------------------------
# Parameter init (deterministic, fresh-module-like scales, pre-folded layouts).
# ----------------------------------------------------------------------------
def init_params(key, input_size, hidden_size, output_size, num_layers):
    H = hidden_size
    k = 1.0 / float(H) ** 0.5
    params = {}
    key, sub = jax.random.split(key)
    params["embed"] = jax.random.normal(sub, (output_size + 1, input_size),
                                        jnp.float32)

    layers = []
    for layer in range(num_layers):
        din = input_size if layer == 0 else 2 * H
        wihs, whhs, bs = [], [], []
        for _ in range(2):                      # forward, backward
            key, k1, k2, k3, k4 = jax.random.split(key, 5)
            w_ih = jax.random.uniform(k1, (4 * H, din), jnp.float32, -k, k)
            w_hh = jax.random.uniform(k2, (4 * H, H), jnp.float32, -k, k)
            b_ih = jax.random.uniform(k3, (4 * H,), jnp.float32, -k, k)
            b_hh = jax.random.uniform(k4, (4 * H,), jnp.float32, -k, k)
            wihs.append(w_ih.T)                 # (din, 4H), gate order [i,f,g,o]
            whhs.append(w_hh.T)                 # (H, 4H)
            bs.append(b_ih + b_hh)              # (4H,)
        layers.append({
            "wih": jnp.concatenate(wihs, axis=1),   # (din, 8H) = [fwd | bwd]
            "b": jnp.concatenate(bs)[None, :],      # (1, 8H)
            "whh": jnp.concatenate(whhs, axis=0),   # (2H, 4H) = [fwd ; bwd]
        })
    params["lstm"] = layers

    # BatchNorm1d(input_size), eval mode with fresh running stats; only channel
    # index T-1 (== input_size-1) reaches the head, so fold it into one
    # (scale, shift) pair at init time.
    key, k1, k2 = jax.random.split(key, 3)
    gamma = jax.random.uniform(k1, (input_size,), jnp.float32, 0.5, 1.5)
    beta = jax.random.uniform(k2, (input_size,), jnp.float32, -0.5, 0.5)
    run_mean = jnp.zeros((input_size,), jnp.float32)
    run_var = jnp.ones((input_size,), jnp.float32)
    scale = gamma[-1] * jax.lax.rsqrt(run_var[-1] + 1e-5)
    shift = beta[-1] - run_mean[-1] * scale
    params["bn"] = jnp.stack([scale, shift]).astype(jnp.float32)    # (2,)

    key, k1, k2 = jax.random.split(key, 3)
    params["ln_w"] = jax.random.uniform(k1, (1, 2 * H), jnp.float32, 0.5, 1.5)
    params["ln_b"] = jax.random.uniform(k2, (1, 2 * H), jnp.float32, -0.5, 0.5)

    kl = 1.0 / float(2 * H) ** 0.5
    key, k1, k2 = jax.random.split(key, 3)
    params["lin_w"] = jax.random.uniform(k1, (2 * H, output_size), jnp.float32,
                                         -kl, kl)                   # pre-transposed
    params["lin_b"] = jax.random.uniform(k2, (1, output_size), jnp.float32,
                                         -kl, kl)
    return params


# ----------------------------------------------------------------------------
# Forward pass: one fused pallas_call.
# ----------------------------------------------------------------------------
@functools.partial(jax.jit, static_argnums=2)
def description_writer_forward(tokens_b1t, params, hidden_size):
    tok = jnp.squeeze(tokens_b1t, axis=1)                  # (B, T) ints
    B, T = tok.shape
    H = hidden_size
    num_layers = len(params["lstm"])
    O = params["lin_w"].shape[1]

    # Time-major flattened tokens (row = t*B + b) so the in-kernel recurrence
    # can slice per-step batches with static, sublane-aligned row offsets.
    tok_tb = jnp.transpose(tok).reshape(T * B, 1).astype(jnp.int32)

    # BatchNorm (eval) scale/shift of the surviving channel (t = T-1),
    # pre-broadcast to the feature width so the kernel stays fully vector.
    bn_scale = jnp.broadcast_to(params["bn"][0], (1, 2 * H)).astype(jnp.float32)
    bn_shift = jnp.broadcast_to(params["bn"][1], (1, 2 * H)).astype(jnp.float32)

    args = [tok_tb, params["embed"]]
    for lyr in params["lstm"]:
        args += [lyr["wih"], lyr["b"], lyr["whh"]]
    args += [bn_scale, bn_shift, params["ln_w"], params["ln_b"],
             params["lin_w"], params["lin_b"]]
    in_specs = [pl.BlockSpec(memory_space=pltpu.MemorySpace.VMEM)] * len(args)

    return pl.pallas_call(
        _make_kernel(T, B, H, num_layers),
        out_shape=jax.ShapeDtypeStruct((B, O), jnp.float32),
        in_specs=in_specs,
        out_specs=pl.BlockSpec(memory_space=pltpu.MemorySpace.VMEM),
        scratch_shapes=[
            pltpu.VMEM((T * B, 8 * H), jnp.float32),   # hoisted input gates
            pltpu.VMEM((T * B, 2 * H), jnp.float32),   # hidden-layer output seq
        ],
    )(*args)


if __name__ == "__main__":
    input_size = 16     # embedding dim; must equal seq_len for BatchNorm1d to apply
    hidden_size = 32
    output_size = 10
    num_layers = 2
    B = 8               # 2B = 16 stacked rows -> sublane-aligned recurrence tiles
    T = input_size      # seq_len == input_size (required by the PyTorch module)

    key = jax.random.PRNGKey(0)
    key, pk, tk = jax.random.split(key, 3)
    params = init_params(pk, input_size, hidden_size, output_size, num_layers)
    tokens = jax.random.randint(tk, (B, 1, T), 0, output_size + 1, dtype=jnp.int32)

    out = description_writer_forward(tokens, params, hidden_size)
    out = jax.block_until_ready(out)
    assert out.shape == (B, output_size), out.shape
    assert bool(jnp.all(jnp.isfinite(out)))
    print("KERNEL_OK")
</pallas_src>

<mosaic_0001>
module attributes {stable_mosaic.version = 11 : i64} {
  func.func @kernel(%arg0: memref<128x1xi32, #tpu.memory_space<vmem>>, %arg1: memref<11x16xf32, #tpu.memory_space<vmem>>, %arg2: memref<16x256xf32, #tpu.memory_space<vmem>>, %arg3: memref<1x256xf32, #tpu.memory_space<vmem>>, %arg4: memref<64x128xf32, #tpu.memory_space<vmem>>, %arg5: memref<64x256xf32, #tpu.memory_space<vmem>>, %arg6: memref<1x256xf32, #tpu.memory_space<vmem>>, %arg7: memref<64x128xf32, #tpu.memory_space<vmem>>, %arg8: memref<1x64xf32, #tpu.memory_space<vmem>>, %arg9: memref<1x64xf32, #tpu.memory_space<vmem>>, %arg10: memref<1x64xf32, #tpu.memory_space<vmem>>, %arg11: memref<1x64xf32, #tpu.memory_space<vmem>>, %arg12: memref<64x10xf32, #tpu.memory_space<vmem>>, %arg13: memref<1x10xf32, #tpu.memory_space<vmem>>, %arg14: memref<8x10xf32, #tpu.memory_space<vmem>>, %arg15: memref<128x256xf32, #tpu.memory_space<vmem>>, %arg16: memref<128x64xf32, #tpu.memory_space<vmem>>) attributes {dimension_semantics = [], scalar_prefetch = 0 : i64, scratch_operands = 2 : i64, tpu.core_type = #tpu.core_type<tc>} {
    %c0 = arith.constant 0 : index
    %c0_0 = arith.constant 0 : index
    %0 = vector.load %arg0[%c0, %c0_0] : memref<128x1xi32, #tpu.memory_space<vmem>>, vector<128x1xi32>
    %1 = tpu.iota {dimensions = array<i32: 1>} : vector<128x11xi32>
    %2 = vector.broadcast %0 : vector<128x1xi32> to vector<128x11xi32>
    %3 = arith.cmpi eq, %2, %1 : vector<128x11xi32>
    %4 = arith.extui %3 : vector<128x11xi1> to vector<128x11xi32>
    %5 = arith.sitofp %4 : vector<128x11xi32> to vector<128x11xf32>
    %c0_1 = arith.constant 0 : index
    %c0_2 = arith.constant 0 : index
    %6 = vector.load %arg1[%c0_1, %c0_2] : memref<11x16xf32, #tpu.memory_space<vmem>>, vector<11x16xf32>
    %cst = arith.constant dense<0.000000e+00> : vector<128x16xf32>
    %7 = tpu.matmul %5, %6, %cst {dimension_numbers = #tpu.dot_dimension_numbers<[1], [0], [0], [1], [0, 0, 1, 1], [], []>} : vector<128x11xf32>, vector<11x16xf32>, vector<128x16xf32> -> vector<128x16xf32>
    %8 = tpu.iota {dimensions = array<i32: 0>} : vector<16x64xi32>
    %9 = tpu.iota {dimensions = array<i32: 1>} : vector<16x64xi32>
    %c8_i32 = arith.constant 8 : i32
    %10 = vector.broadcast %c8_i32 : i32 to vector<16x64xi32>
    %11 = arith.cmpi slt, %8, %10 : vector<16x64xi32>
    %c32_i32 = arith.constant 32 : i32
    %12 = vector.broadcast %c32_i32 : i32 to vector<16x64xi32>
    %13 = arith.cmpi slt, %9, %12 : vector<16x64xi32>
    %14 = arith.xori %11, %13 : vector<16x64xi1>
    %cst_3 = arith.constant dense<true> : vector<16x64xi1>
    %15 = arith.xori %14, %cst_3 : vector<16x64xi1>
    %16 = arith.extui %15 : vector<16x64xi1> to vector<16x64xi32>
    %17 = arith.sitofp %16 : vector<16x64xi32> to vector<16x64xf32>
    %c0_4 = arith.constant 0 : index
    %c0_5 = arith.constant 0 : index
    %18 = vector.load %arg2[%c0_4, %c0_5] : memref<16x256xf32, #tpu.memory_space<vmem>>, vector<16x256xf32>
    %cst_6 = arith.constant dense<0.000000e+00> : vector<128x256xf32>
    %19 = tpu.matmul %7, %18, %cst_6 {dimension_numbers = #tpu.dot_dimension_numbers<[1], [0], [0], [1], [0, 0, 1, 1], [], []>} : vector<128x16xf32>, vector<16x256xf32>, vector<128x256xf32> -> vector<128x256xf32>
    %c0_7 = arith.constant 0 : index
    %c0_8 = arith.constant 0 : index
    %20 = vector.load %arg3[%c0_7, %c0_8] : memref<1x256xf32, #tpu.memory_space<vmem>>, vector<1x256xf32>
    %21 = vector.broadcast %20 : vector<1x256xf32> to vector<128x256xf32>
    %22 = arith.addf %19, %21 : vector<128x256xf32>
    %c0_9 = arith.constant 0 : index
    %c0_10 = arith.constant 0 : index
    %23 = vector.load %arg15[%c0_9, %c0_10] : memref<128x256xf32, #tpu.memory_space<vmem>>, vector<128x256xf32>
    tpu.vector_store %arg15[%c0_9, %c0_10], %22 {strides = array<i32>} : memref<128x256xf32, #tpu.memory_space<vmem>>, vector<128x256xf32>,
    %c0_11 = arith.constant 0 : index
    %c0_12 = arith.constant 0 : index
    %24 = vector.load %arg4[%c0_11, %c0_12] : memref<64x128xf32, #tpu.memory_space<vmem>>, vector<64x128xf32>
    %cst_13 = arith.constant 0.000000e+00 : f32
    %25 = vector.broadcast %cst_13 : f32 to vector<16x32xf32>
    %cst_14 = arith.constant 0.000000e+00 : f32
    %26 = vector.broadcast %cst_14 : f32 to vector<16x32xf32>
    %c0_15 = arith.constant 0 : index
    %c0_16 = arith.constant 0 : index
    %27 = vector.load %arg15[%c0_15, %c0_16] : memref<128x256xf32, #tpu.memory_space<vmem>>, vector<8x128xf32>
    %c120 = arith.constant 120 : index
    %c128 = arith.constant 128 : index
    %28 = vector.load %arg15[%c120, %c128] : memref<128x256xf32, #tpu.memory_space<vmem>>, vector<8x128xf32>
    %29 = tpu.concatenate %27, %28 in 0 : vector<8x128xf32>, vector<8x128xf32> -> vector<16x128xf32>
    %30 = tpu.concatenate %25, %25 in 1 : vector<16x32xf32>, vector<16x32xf32> -> vector<16x64xf32>
    %31 = arith.mulf %30, %17 : vector<16x64xf32>
    %cst_17 = arith.constant dense<0.000000e+00> : vector<16x128xf32>
    %32 = tpu.matmul %31, %24, %cst_17 {dimension_numbers = #tpu.dot_dimension_numbers<[1], [0], [0], [1], [0, 0, 1, 1], [], []>} : vector<16x64xf32>, vector<64x128xf32>, vector<16x128xf32> -> vector<16x128xf32>
    %33 = arith.addf %29, %32 : vector<16x128xf32>
    %34 = vector.extract_strided_slice %33 {offsets = [0, 0], sizes = [16, 64], strides = [1, 1]} : vector<16x128xf32> to vector<16x64xf32>
    %35 = arith.negf %34 : vector<16x64xf32>
    %36 = math.exp %35 : vector<16x64xf32>
    %cst_18 = arith.constant 1.000000e+00 : f32
    %37 = vector.broadcast %cst_18 : f32 to vector<16x64xf32>
    %38 = arith.addf %37, %36 : vector<16x64xf32>
    %39 = arith.divf %37, %38 : vector<16x64xf32>
    %40 = vector.extract_strided_slice %33 {offsets = [0, 64], sizes = [16, 32], strides = [1, 1]} : vector<16x128xf32> to vector<16x32xf32>
    %41 = math.tanh %40 : vector<16x32xf32>
    %42 = vector.extract_strided_slice %33 {offsets = [0, 96], sizes = [16, 32], strides = [1, 1]} : vector<16x128xf32> to vector<16x32xf32>
    %43 = arith.negf %42 : vector<16x32xf32>
    %44 = math.exp %43 : vector<16x32xf32>
    %cst_19 = arith.constant 1.000000e+00 : f32
    %45 = vector.broadcast %cst_19 : f32 to vector<16x32xf32>
    %46 = arith.addf %45, %44 : vector<16x32xf32>
    %47 = arith.divf %45, %46 : vector<16x32xf32>
    %48 = vector.extract_strided_slice %39 {offsets = [0, 32], sizes = [16, 32], strides = [1, 1]} : vector<16x64xf32> to vector<16x32xf32>
    %49 = arith.mulf %48, %26 : vector<16x32xf32>
    %50 = vector.extract_strided_slice %39 {offsets = [0, 0], sizes = [16, 32], strides = [1, 1]} : vector<16x64xf32> to vector<16x32xf32>
    %51 = arith.mulf %50, %41 : vector<16x32xf32>
    %52 = arith.addf %49, %51 : vector<16x32xf32>
    %53 = math.tanh %52 : vector<16x32xf32>
    %54 = arith.mulf %47, %53 : vector<16x32xf32>
    %55 = vector.extract_strided_slice %54 {offsets = [0, 0], sizes = [8, 32], strides = [1, 1]} : vector<16x32xf32> to vector<8x32xf32>
    %c0_20 = arith.constant 0 : index
    %c0_21 = arith.constant 0 : index
    %56 = vector.load %arg16[%c0_20, %c0_21] : memref<128x64xf32, #tpu.memory_space<vmem>>, vector<8x32xf32>
    tpu.vector_store %arg16[%c0_20, %c0_21], %55 {strides = array<i32>} : memref<128x64xf32, #tpu.memory_space<vmem>>, vector<8x32xf32>,
    %57 = vector.extract_strided_slice %54 {offsets = [8, 0], sizes = [8, 32], strides = [1, 1]} : vector<16x32xf32> to vector<8x32xf32>
    %c120_22 = arith.constant 120 : index
    %c32 = arith.constant 32 : index
    %58 = vector.load %arg16[%c120_22, %c32] : memref<128x64xf32, #tpu.memory_space<vmem>>, vector<8x32xf32>
    tpu.vector_store %arg16[%c120_22, %c32], %57 {strides = array<i32>} : memref<128x64xf32, #tpu.memory_space<vmem>>, vector<8x32xf32>,
    %c8 = arith.constant 8 : index
    %c0_23 = arith.constant 0 : index
    %59 = vector.load %arg15[%c8, %c0_23] : memref<128x256xf32, #tpu.memory_space<vmem>>, vector<8x128xf32>
    %c112 = arith.constant 112 : index
    %c128_24 = arith.constant 128 : index
    %60 = vector.load %arg15[%c112, %c128_24] : memref<128x256xf32, #tpu.memory_space<vmem>>, vector<8x128xf32>
    %61 = tpu.concatenate %59, %60 in 0 : vector<8x128xf32>, vector<8x128xf32> -> vector<16x128xf32>
    %62 = tpu.concatenate %54, %54 in 1 : vector<16x32xf32>, vector<16x32xf32> -> vector<16x64xf32>
    %63 = arith.mulf %62, %17 : vector<16x64xf32>
    %cst_25 = arith.constant dense<0.000000e+00> : vector<16x128xf32>
    %64 = tpu.matmul %63, %24, %cst_25 {dimension_numbers = #tpu.dot_dimension_numbers<[1], [0], [0], [1], [0, 0, 1, 1], [], []>} : vector<16x64xf32>, vector<64x128xf32>, vector<16x128xf32> -> vector<16x128xf32>
    %65 = arith.addf %61, %64 : vector<16x128xf32>
    %66 = vector.extract_strided_slice %65 {offsets = [0, 0], sizes = [16, 64], strides = [1, 1]} : vector<16x128xf32> to vector<16x64xf32>
    %67 = arith.negf %66 : vector<16x64xf32>
    %68 = math.exp %67 : vector<16x64xf32>
    %cst_26 = arith.constant 1.000000e+00 : f32
    %69 = vector.broadcast %cst_26 : f32 to vector<16x64xf32>
    %70 = arith.addf %69, %68 : vector<16x64xf32>
    %71 = arith.divf %69, %70 : vector<16x64xf32>
    %72 = vector.extract_strided_slice %65 {offsets = [0, 64], sizes = [16, 32], strides = [1, 1]} : vector<16x128xf32> to vector<16x32xf32>
    %73 = math.tanh %72 : vector<16x32xf32>
    %74 = vector.extract_strided_slice %65 {offsets = [0, 96], sizes = [16, 32], strides = [1, 1]} : vector<16x128xf32> to vector<16x32xf32>
    %75 = arith.negf %74 : vector<16x32xf32>
    %76 = math.exp %75 : vector<16x32xf32>
    %cst_27 = arith.constant 1.000000e+00 : f32
    %77 = vector.broadcast %cst_27 : f32 to vector<16x32xf32>
    %78 = arith.addf %77, %76 : vector<16x32xf32>
    %79 = arith.divf %77, %78 : vector<16x32xf32>
    %80 = vector.extract_strided_slice %71 {offsets = [0, 32], sizes = [16, 32], strides = [1, 1]} : vector<16x64xf32> to vector<16x32xf32>
    %81 = arith.mulf %80, %52 : vector<16x32xf32>
    %82 = vector.extract_strided_slice %71 {offsets = [0, 0], sizes = [16, 32], strides = [1, 1]} : vector<16x64xf32> to vector<16x32xf32>
    %83 = arith.mulf %82, %73 : vector<16x32xf32>
    %84 = arith.addf %81, %83 : vector<16x32xf32>
    %85 = math.tanh %84 : vector<16x32xf32>
    %86 = arith.mulf %79, %85 : vector<16x32xf32>
    %87 = vector.extract_strided_slice %86 {offsets = [0, 0], sizes = [8, 32], strides = [1, 1]} : vector<16x32xf32> to vector<8x32xf32>
    %c8_28 = arith.constant 8 : index
    %c0_29 = arith.constant 0 : index
    %88 = vector.load %arg16[%c8_28, %c0_29] : memref<128x64xf32, #tpu.memory_space<vmem>>, vector<8x32xf32>
    tpu.vector_store %arg16[%c8_28, %c0_29], %87 {strides = array<i32>} : memref<128x64xf32, #tpu.memory_space<vmem>>, vector<8x32xf32>,
    %89 = vector.extract_strided_slice %86 {offsets = [8, 0], sizes = [8, 32], strides = [1, 1]} : vector<16x32xf32> to vector<8x32xf32>
    %c112_30 = arith.constant 112 : index
    %c32_31 = arith.constant 32 : index
    %90 = vector.load %arg16[%c112_30, %c32_31] : memref<128x64xf32, #tpu.memory_space<vmem>>, vector<8x32xf32>
    tpu.vector_store %arg16[%c112_30, %c32_31], %89 {strides = array<i32>} : memref<128x64xf32, #tpu.memory_space<vmem>>, vector<8x32xf32>,
    %c16 = arith.constant 16 : index
    %c0_32 = arith.constant 0 : index
    %91 = vector.load %arg15[%c16, %c0_32] : memref<128x256xf32, #tpu.memory_space<vmem>>, vector<8x128xf32>
    %c104 = arith.constant 104 : index
    %c128_33 = arith.constant 128 : index
    %92 = vector.load %arg15[%c104, %c128_33] : memref<128x256xf32, #tpu.memory_space<vmem>>, vector<8x128xf32>
    %93 = tpu.concatenate %91, %92 in 0 : vector<8x128xf32>, vector<8x128xf32> -> vector<16x128xf32>
    %94 = tpu.concatenate %86, %86 in 1 : vector<16x32xf32>, vector<16x32xf32> -> vector<16x64xf32>
    %95 = arith.mulf %94, %17 : vector<16x64xf32>
    %cst_34 = arith.constant dense<0.000000e+00> : vector<16x128xf32>
    %96 = tpu.matmul %95, %24, %cst_34 {dimension_numbers = #tpu.dot_dimension_numbers<[1], [0], [0], [1], [0, 0, 1, 1], [], []>} : vector<16x64xf32>, vector<64x128xf32>, vector<16x128xf32> -> vector<16x128xf32>
    %97 = arith.addf %93, %96 : vector<16x128xf32>
    %98 = vector.extract_strided_slice %97 {offsets = [0, 0], sizes = [16, 64], strides = [1, 1]} : vector<16x128xf32> to vector<16x64xf32>
    %99 = arith.negf %98 : vector<16x64xf32>
    %100 = math.exp %99 : vector<16x64xf32>
    %cst_35 = arith.constant 1.000000e+00 : f32
    %101 = vector.broadcast %cst_35 : f32 to vector<16x64xf32>
    %102 = arith.addf %101, %100 : vector<16x64xf32>
    %103 = arith.divf %101, %102 : vector<16x64xf32>
    %104 = vector.extract_strided_slice %97 {offsets = [0, 64], sizes = [16, 32], strides = [1, 1]} : vector<16x128xf32> to vector<16x32xf32>
    %105 = math.tanh %104 : vector<16x32xf32>
    %106 = vector.extract_strided_slice %97 {offsets = [0, 96], sizes = [16, 32], strides = [1, 1]} : vector<16x128xf32> to vector<16x32xf32>
    %107 = arith.negf %106 : vector<16x32xf32>
    %108 = math.exp %107 : vector<16x32xf32>
    %cst_36 = arith.constant 1.000000e+00 : f32
    %109 = vector.broadcast %cst_36 : f32 to vector<16x32xf32>
    %110 = arith.addf %109, %108 : vector<16x32xf32>
    %111 = arith.divf %109, %110 : vector<16x32xf32>
    %112 = vector.extract_strided_slice %103 {offsets = [0, 32], sizes = [16, 32], strides = [1, 1]} : vector<16x64xf32> to vector<16x32xf32>
    %113 = arith.mulf %112, %84 : vector<16x32xf32>
    %114 = vector.extract_strided_slice %103 {offsets = [0, 0], sizes = [16, 32], strides = [1, 1]} : vector<16x64xf32> to vector<16x32xf32>
    %115 = arith.mulf %114, %105 : vector<16x32xf32>
    %116 = arith.addf %113, %115 : vector<16x32xf32>
    %117 = math.tanh %116 : vector<16x32xf32>
    %118 = arith.mulf %111, %117 : vector<16x32xf32>
    %119 = vector.extract_strided_slice %118 {offsets = [0, 0], sizes = [8, 32], strides = [1, 1]} : vector<16x32xf32> to vector<8x32xf32>
    %c16_37 = arith.constant 16 : index
    %c0_38 = arith.constant 0 : index
    %120 = vector.load %arg16[%c16_37, %c0_38] : memref<128x64xf32, #tpu.memory_space<vmem>>, vector<8x32xf32>
    tpu.vector_store %arg16[%c16_37, %c0_38], %119 {strides = array<i32>} : memref<128x64xf32, #tpu.memory_space<vmem>>, vector<8x32xf32>,
    %121 = vector.extract_strided_slice %118 {offsets = [8, 0], sizes = [8, 32], strides = [1, 1]} : vector<16x32xf32> to vector<8x32xf32>
    %c104_39 = arith.constant 104 : index
    %c32_40 = arith.constant 32 : index
    %122 = vector.load %arg16[%c104_39, %c32_40] : memref<128x64xf32, #tpu.memory_space<vmem>>, vector<8x32xf32>
    tpu.vector_store %arg16[%c104_39, %c32_40], %121 {strides = array<i32>} : memref<128x64xf32, #tpu.memory_space<vmem>>, vector<8x32xf32>,
    %c24 = arith.constant 24 : index
    %c0_41 = arith.constant 0 : index
    %123 = vector.load %arg15[%c24, %c0_41] : memref<128x256xf32, #tpu.memory_space<vmem>>, vector<8x128xf32>
    %c96 = arith.constant 96 : index
    %c128_42 = arith.constant 128 : index
    %124 = vector.load %arg15[%c96, %c128_42] : memref<128x256xf32, #tpu.memory_space<vmem>>, vector<8x128xf32>
    %125 = tpu.concatenate %123, %124 in 0 : vector<8x128xf32>, vector<8x128xf32> -> vector<16x128xf32>
    %126 = tpu.concatenate %118, %118 in 1 : vector<16x32xf32>, vector<16x32xf32> -> vector<16x64xf32>
    %127 = arith.mulf %126, %17 : vector<16x64xf32>
    %cst_43 = arith.constant dense<0.000000e+00> : vector<16x128xf32>
    %128 = tpu.matmul %127, %24, %cst_43 {dimension_numbers = #tpu.dot_dimension_numbers<[1], [0], [0], [1], [0, 0, 1, 1], [], []>} : vector<16x64xf32>, vector<64x128xf32>, vector<16x128xf32> -> vector<16x128xf32>
    %129 = arith.addf %125, %128 : vector<16x128xf32>
    %130 = vector.extract_strided_slice %129 {offsets = [0, 0], sizes = [16, 64], strides = [1, 1]} : vector<16x128xf32> to vector<16x64xf32>
    %131 = arith.negf %130 : vector<16x64xf32>
    %132 = math.exp %131 : vector<16x64xf32>
    %cst_44 = arith.constant 1.000000e+00 : f32
    %133 = vector.broadcast %cst_44 : f32 to vector<16x64xf32>
    %134 = arith.addf %133, %132 : vector<16x64xf32>
    %135 = arith.divf %133, %134 : vector<16x64xf32>
    %136 = vector.extract_strided_slice %129 {offsets = [0, 64], sizes = [16, 32], strides = [1, 1]} : vector<16x128xf32> to vector<16x32xf32>
    %137 = math.tanh %136 : vector<16x32xf32>
    %138 = vector.extract_strided_slice %129 {offsets = [0, 96], sizes = [16, 32], strides = [1, 1]} : vector<16x128xf32> to vector<16x32xf32>
    %139 = arith.negf %138 : vector<16x32xf32>
    %140 = math.exp %139 : vector<16x32xf32>
    %cst_45 = arith.constant 1.000000e+00 : f32
    %141 = vector.broadcast %cst_45 : f32 to vector<16x32xf32>
    %142 = arith.addf %141, %140 : vector<16x32xf32>
    %143 = arith.divf %141, %142 : vector<16x32xf32>
    %144 = vector.extract_strided_slice %135 {offsets = [0, 32], sizes = [16, 32], strides = [1, 1]} : vector<16x64xf32> to vector<16x32xf32>
    %145 = arith.mulf %144, %116 : vector<16x32xf32>
    %146 = vector.extract_strided_slice %135 {offsets = [0, 0], sizes = [16, 32], strides = [1, 1]} : vector<16x64xf32> to vector<16x32xf32>
    %147 = arith.mulf %146, %137 : vector<16x32xf32>
    %148 = arith.addf %145, %147 : vector<16x32xf32>
    %149 = math.tanh %148 : vector<16x32xf32>
    %150 = arith.mulf %143, %149 : vector<16x32xf32>
    %151 = vector.extract_strided_slice %150 {offsets = [0, 0], sizes = [8, 32], strides = [1, 1]} : vector<16x32xf32> to vector<8x32xf32>
    %c24_46 = arith.constant 24 : index
    %c0_47 = arith.constant 0 : index
    %152 = vector.load %arg16[%c24_46, %c0_47] : memref<128x64xf32, #tpu.memory_space<vmem>>, vector<8x32xf32>
    tpu.vector_store %arg16[%c24_46, %c0_47], %151 {strides = array<i32>} : memref<128x64xf32, #tpu.memory_space<vmem>>, vector<8x32xf32>,
    %153 = vector.extract_strided_slice %150 {offsets = [8, 0], sizes = [8, 32], strides = [1, 1]} : vector<16x32xf32> to vector<8x32xf32>
    %c96_48 = arith.constant 96 : index
    %c32_49 = arith.constant 32 : index
    %154 = vector.load %arg16[%c96_48, %c32_49] : memref<128x64xf32, #tpu.memory_space<vmem>>, vector<8x32xf32>
    tpu.vector_store %arg16[%c96_48, %c32_49], %153 {strides = array<i32>} : memref<128x64xf32, #tpu.memory_space<vmem>>, vector<8x32xf32>,
    %c32_50 = arith.constant 32 : index
    %c0_51 = arith.constant 0 : index
    %155 = vector.load %arg15[%c32_50, %c0_51] : memref<128x256xf32, #tpu.memory_space<vmem>>, vector<8x128xf32>
    %c88 = arith.constant 88 : index
    %c128_52 = arith.constant 128 : index
    %156 = vector.load %arg15[%c88, %c128_52] : memref<128x256xf32, #tpu.memory_space<vmem>>, vector<8x128xf32>
    %157 = tpu.concatenate %155, %156 in 0 : vector<8x128xf32>, vector<8x128xf32> -> vector<16x128xf32>
    %158 = tpu.concatenate %150, %150 in 1 : vector<16x32xf32>, vector<16x32xf32> -> vector<16x64xf32>
    %159 = arith.mulf %158, %17 : vector<16x64xf32>
    %cst_53 = arith.constant dense<0.000000e+00> : vector<16x128xf32>
    %160 = tpu.matmul %159, %24, %cst_53 {dimension_numbers = #tpu.dot_dimension_numbers<[1], [0], [0], [1], [0, 0, 1, 1], [], []>} : vector<16x64xf32>, vector<64x128xf32>, vector<16x128xf32> -> vector<16x128xf32>
    %161 = arith.addf %157, %160 : vector<16x128xf32>
    %162 = vector.extract_strided_slice %161 {offsets = [0, 0], sizes = [16, 64], strides = [1, 1]} : vector<16x128xf32> to vector<16x64xf32>
    %163 = arith.negf %162 : vector<16x64xf32>
    %164 = math.exp %163 : vector<16x64xf32>
    %cst_54 = arith.constant 1.000000e+00 : f32
    %165 = vector.broadcast %cst_54 : f32 to vector<16x64xf32>
    %166 = arith.addf %165, %164 : vector<16x64xf32>
    %167 = arith.divf %165, %166 : vector<16x64xf32>
    %168 = vector.extract_strided_slice %161 {offsets = [0, 64], sizes = [16, 32], strides = [1, 1]} : vector<16x128xf32> to vector<16x32xf32>
    %169 = math.tanh %168 : vector<16x32xf32>
    %170 = vector.extract_strided_slice %161 {offsets = [0, 96], sizes = [16, 32], strides = [1, 1]} : vector<16x128xf32> to vector<16x32xf32>
    %171 = arith.negf %170 : vector<16x32xf32>
    %172 = math.exp %171 : vector<16x32xf32>
    %cst_55 = arith.constant 1.000000e+00 : f32
    %173 = vector.broadcast %cst_55 : f32 to vector<16x32xf32>
    %174 = arith.addf %173, %172 : vector<16x32xf32>
    %175 = arith.divf %173, %174 : vector<16x32xf32>
    %176 = vector.extract_strided_slice %167 {offsets = [0, 32], sizes = [16, 32], strides = [1, 1]} : vector<16x64xf32> to vector<16x32xf32>
    %177 = arith.mulf %176, %148 : vector<16x32xf32>
    %178 = vector.extract_strided_slice %167 {offsets = [0, 0], sizes = [16, 32], strides = [1, 1]} : vector<16x64xf32> to vector<16x32xf32>
    %179 = arith.mulf %178, %169 : vector<16x32xf32>
    %180 = arith.addf %177, %179 : vector<16x32xf32>
    %181 = math.tanh %180 : vector<16x32xf32>
    %182 = arith.mulf %175, %181 : vector<16x32xf32>
    %183 = vector.extract_strided_slice %182 {offsets = [0, 0], sizes = [8, 32], strides = [1, 1]} : vector<16x32xf32> to vector<8x32xf32>
    %c32_56 = arith.constant 32 : index
    %c0_57 = arith.constant 0 : index
    %184 = vector.load %arg16[%c32_56, %c0_57] : memref<128x64xf32, #tpu.memory_space<vmem>>, vector<8x32xf32>
    tpu.vector_store %arg16[%c32_56, %c0_57], %183 {strides = array<i32>} : memref<128x64xf32, #tpu.memory_space<vmem>>, vector<8x32xf32>,
    %185 = vector.extract_strided_slice %182 {offsets = [8, 0], sizes = [8, 32], strides = [1, 1]} : vector<16x32xf32> to vector<8x32xf32>
    %c88_58 = arith.constant 88 : index
    %c32_59 = arith.constant 32 : index
    %186 = vector.load %arg16[%c88_58, %c32_59] : memref<128x64xf32, #tpu.memory_space<vmem>>, vector<8x32xf32>
    tpu.vector_store %arg16[%c88_58, %c32_59], %185 {strides = array<i32>} : memref<128x64xf32, #tpu.memory_space<vmem>>, vector<8x32xf32>,
    %c40 = arith.constant 40 : index
    %c0_60 = arith.constant 0 : index
    %187 = vector.load %arg15[%c40, %c0_60] : memref<128x256xf32, #tpu.memory_space<vmem>>, vector<8x128xf32>
    %c80 = arith.constant 80 : index
    %c128_61 = arith.constant 128 : index
    %188 = vector.load %arg15[%c80, %c128_61] : memref<128x256xf32, #tpu.memory_space<vmem>>, vector<8x128xf32>
    %189 = tpu.concatenate %187, %188 in 0 : vector<8x128xf32>, vector<8x128xf32> -> vector<16x128xf32>
    %190 = tpu.concatenate %182, %182 in 1 : vector<16x32xf32>, vector<16x32xf32> -> vector<16x64xf32>
    %191 = arith.mulf %190, %17 : vector<16x64xf32>
    %cst_62 = arith.constant dense<0.000000e+00> : vector<16x128xf32>
    %192 = tpu.matmul %191, %24, %cst_62 {dimension_numbers = #tpu.dot_dimension_numbers<[1], [0], [0], [1], [0, 0, 1, 1], [], []>} : vector<16x64xf32>, vector<64x128xf32>, vector<16x128xf32> -> vector<16x128xf32>
    %193 = arith.addf %189, %192 : vector<16x128xf32>
    %194 = vector.extract_strided_slice %193 {offsets = [0, 0], sizes = [16, 64], strides = [1, 1]} : vector<16x128xf32> to vector<16x64xf32>
    %195 = arith.negf %194 : vector<16x64xf32>
    %196 = math.exp %195 : vector<16x64xf32>
    %cst_63 = arith.constant 1.000000e+00 : f32
    %197 = vector.broadcast %cst_63 : f32 to vector<16x64xf32>
    %198 = arith.addf %197, %196 : vector<16x64xf32>
    %199 = arith.divf %197, %198 : vector<16x64xf32>
    %200 = vector.extract_strided_slice %193 {offsets = [0, 64], sizes = [16, 32], strides = [1, 1]} : vector<16x128xf32> to vector<16x32xf32>
    %201 = math.tanh %200 : vector<16x32xf32>
    %202 = vector.extract_strided_slice %193 {offsets = [0, 96], sizes = [16, 32], strides = [1, 1]} : vector<16x128xf32> to vector<16x32xf32>
    %203 = arith.negf %202 : vector<16x32xf32>
    %204 = math.exp %203 : vector<16x32xf32>
    %cst_64 = arith.constant 1.000000e+00 : f32
    %205 = vector.broadcast %cst_64 : f32 to vector<16x32xf32>
    %206 = arith.addf %205, %204 : vector<16x32xf32>
    %207 = arith.divf %205, %206 : vector<16x32xf32>
    %208 = vector.extract_strided_slice %199 {offsets = [0, 32], sizes = [16, 32], strides = [1, 1]} : vector<16x64xf32> to vector<16x32xf32>
    %209 = arith.mulf %208, %180 : vector<16x32xf32>
    %210 = vector.extract_strided_slice %199 {offsets = [0, 0], sizes = [16, 32], strides = [1, 1]} : vector<16x64xf32> to vector<16x32xf32>
    %211 = arith.mulf %210, %201 : vector<16x32xf32>
    %212 = arith.addf %209, %211 : vector<16x32xf32>
    %213 = math.tanh %212 : vector<16x32xf32>
    %214 = arith.mulf %207, %213 : vector<16x32xf32>
    %215 = vector.extract_strided_slice %214 {offsets = [0, 0], sizes = [8, 32], strides = [1, 1]} : vector<16x32xf32> to vector<8x32xf32>
    %c40_65 = arith.constant 40 : index
    %c0_66 = arith.constant 0 : index
    %216 = vector.load %arg16[%c40_65, %c0_66] : memref<128x64xf32, #tpu.memory_space<vmem>>, vector<8x32xf32>
    tpu.vector_store %arg16[%c40_65, %c0_66], %215 {strides = array<i32>} : memref<128x64xf32, #tpu.memory_space<vmem>>, vector<8x32xf32>,
    %217 = vector.extract_strided_slice %214 {offsets = [8, 0], sizes = [8, 32], strides = [1, 1]} : vector<16x32xf32> to vector<8x32xf32>
    %c80_67 = arith.constant 80 : index
    %c32_68 = arith.constant 32 : index
    %218 = vector.load %arg16[%c80_67, %c32_68] : memref<128x64xf32, #tpu.memory_space<vmem>>, vector<8x32xf32>
    tpu.vector_store %arg16[%c80_67, %c32_68], %217 {strides = array<i32>} : memref<128x64xf32, #tpu.memory_space<vmem>>, vector<8x32xf32>,
    %c48 = arith.constant 48 : index
    %c0_69 = arith.constant 0 : index
    %219 = vector.load %arg15[%c48, %c0_69] : memref<128x256xf32, #tpu.memory_space<vmem>>, vector<8x128xf32>
    %c72 = arith.constant 72 : index
    %c128_70 = arith.constant 128 : index
    %220 = vector.load %arg15[%c72, %c128_70] : memref<128x256xf32, #tpu.memory_space<vmem>>, vector<8x128xf32>
    %221 = tpu.concatenate %219, %220 in 0 : vector<8x128xf32>, vector<8x128xf32> -> vector<16x128xf32>
    %222 = tpu.concatenate %214, %214 in 1 : vector<16x32xf32>, vector<16x32xf32> -> vector<16x64xf32>
    %223 = arith.mulf %222, %17 : vector<16x64xf32>
    %cst_71 = arith.constant dense<0.000000e+00> : vector<16x128xf32>
    %224 = tpu.matmul %223, %24, %cst_71 {dimension_numbers = #tpu.dot_dimension_numbers<[1], [0], [0], [1], [0, 0, 1, 1], [], []>} : vector<16x64xf32>, vector<64x128xf32>, vector<16x128xf32> -> vector<16x128xf32>
    %225 = arith.addf %221, %224 : vector<16x128xf32>
    %226 = vector.extract_strided_slice %225 {offsets = [0, 0], sizes = [16, 64], strides = [1, 1]} : vector<16x128xf32> to vector<16x64xf32>
    %227 = arith.negf %226 : vector<16x64xf32>
    %228 = math.exp %227 : vector<16x64xf32>
    %cst_72 = arith.constant 1.000000e+00 : f32
    %229 = vector.broadcast %cst_72 : f32 to vector<16x64xf32>
    %230 = arith.addf %229, %228 : vector<16x64xf32>
    %231 = arith.divf %229, %230 : vector<16x64xf32>
    %232 = vector.extract_strided_slice %225 {offsets = [0, 64], sizes = [16, 32], strides = [1, 1]} : vector<16x128xf32> to vector<16x32xf32>
    %233 = math.tanh %232 : vector<16x32xf32>
    %234 = vector.extract_strided_slice %225 {offsets = [0, 96], sizes = [16, 32], strides = [1, 1]} : vector<16x128xf32> to vector<16x32xf32>
    %235 = arith.negf %234 : vector<16x32xf32>
    %236 = math.exp %235 : vector<16x32xf32>
    %cst_73 = arith.constant 1.000000e+00 : f32
    %237 = vector.broadcast %cst_73 : f32 to vector<16x32xf32>
    %238 = arith.addf %237, %236 : vector<16x32xf32>
    %239 = arith.divf %237, %238 : vector<16x32xf32>
    %240 = vector.extract_strided_slice %231 {offsets = [0, 32], sizes = [16, 32], strides = [1, 1]} : vector<16x64xf32> to vector<16x32xf32>
    %241 = arith.mulf %240, %212 : vector<16x32xf32>
    %242 = vector.extract_strided_slice %231 {offsets = [0, 0], sizes = [16, 32], strides = [1, 1]} : vector<16x64xf32> to vector<16x32xf32>
    %243 = arith.mulf %242, %233 : vector<16x32xf32>
    %244 = arith.addf %241, %243 : vector<16x32xf32>
    %245 = math.tanh %244 : vector<16x32xf32>
    %246 = arith.mulf %239, %245 : vector<16x32xf32>
    %247 = vector.extract_strided_slice %246 {offsets = [0, 0], sizes = [8, 32], strides = [1, 1]} : vector<16x32xf32> to vector<8x32xf32>
    %c48_74 = arith.constant 48 : index
    %c0_75 = arith.constant 0 : index
    %248 = vector.load %arg16[%c48_74, %c0_75] : memref<128x64xf32, #tpu.memory_space<vmem>>, vector<8x32xf32>
    tpu.vector_store %arg16[%c48_74, %c0_75], %247 {strides = array<i32>} : memref<128x64xf32, #tpu.memory_space<vmem>>, vector<8x32xf32>,
    %249 = vector.extract_strided_slice %246 {offsets = [8, 0], sizes = [8, 32], strides = [1, 1]} : vector<16x32xf32> to vector<8x32xf32>
    %c72_76 = arith.constant 72 : index
    %c32_77 = arith.constant 32 : index
    %250 = vector.load %arg16[%c72_76, %c32_77] : memref<128x64xf32, #tpu.memory_space<vmem>>, vector<8x32xf32>
    tpu.vector_store %arg16[%c72_76, %c32_77], %249 {strides = array<i32>} : memref<128x64xf32, #tpu.memory_space<vmem>>, vector<8x32xf32>,
    %c56 = arith.constant 56 : index
    %c0_78 = arith.constant 0 : index
    %251 = vector.load %arg15[%c56, %c0_78] : memref<128x256xf32, #tpu.memory_space<vmem>>, vector<8x128xf32>
    %c64 = arith.constant 64 : index
    %c128_79 = arith.constant 128 : index
    %252 = vector.load %arg15[%c64, %c128_79] : memref<128x256xf32, #tpu.memory_space<vmem>>, vector<8x128xf32>
    %253 = tpu.concatenate %251, %252 in 0 : vector<8x128xf32>, vector<8x128xf32> -> vector<16x128xf32>
    %254 = tpu.concatenate %246, %246 in 1 : vector<16x32xf32>, vector<16x32xf32> -> vector<16x64xf32>
    %255 = arith.mulf %254, %17 : vector<16x64xf32>
    %cst_80 = arith.constant dense<0.000000e+00> : vector<16x128xf32>
    %256 = tpu.matmul %255, %24, %cst_80 {dimension_numbers = #tpu.dot_dimension_numbers<[1], [0], [0], [1], [0, 0, 1, 1], [], []>} : vector<16x64xf32>, vector<64x128xf32>, vector<16x128xf32> -> vector<16x128xf32>
    %257 = arith.addf %253, %256 : vector<16x128xf32>
    %258 = vector.extract_strided_slice %257 {offsets = [0, 0], sizes = [16, 64], strides = [1, 1]} : vector<16x128xf32> to vector<16x64xf32>
    %259 = arith.negf %258 : vector<16x64xf32>
    %260 = math.exp %259 : vector<16x64xf32>
    %cst_81 = arith.constant 1.000000e+00 : f32
    %261 = vector.broadcast %cst_81 : f32 to vector<16x64xf32>
    %262 = arith.addf %261, %260 : vector<16x64xf32>
    %263 = arith.divf %261, %262 : vector<16x64xf32>
    %264 = vector.extract_strided_slice %257 {offsets = [0, 64], sizes = [16, 32], strides = [1, 1]} : vector<16x128xf32> to vector<16x32xf32>
    %265 = math.tanh %264 : vector<16x32xf32>
    %266 = vector.extract_strided_slice %257 {offsets = [0, 96], sizes = [16, 32], strides = [1, 1]} : vector<16x128xf32> to vector<16x32xf32>
    %267 = arith.negf %266 : vector<16x32xf32>
    %268 = math.exp %267 : vector<16x32xf32>
    %cst_82 = arith.constant 1.000000e+00 : f32
    %269 = vector.broadcast %cst_82 : f32 to vector<16x32xf32>
    %270 = arith.addf %269, %268 : vector<16x32xf32>
    %271 = arith.divf %269, %270 : vector<16x32xf32>
    %272 = vector.extract_strided_slice %263 {offsets = [0, 32], sizes = [16, 32], strides = [1, 1]} : vector<16x64xf32> to vector<16x32xf32>
    %273 = arith.mulf %272, %244 : vector<16x32xf32>
    %274 = vector.extract_strided_slice %263 {offsets = [0, 0], sizes = [16, 32], strides = [1, 1]} : vector<16x64xf32> to vector<16x32xf32>
    %275 = arith.mulf %274, %265 : vector<16x32xf32>
    %276 = arith.addf %273, %275 : vector<16x32xf32>
    %277 = math.tanh %276 : vector<16x32xf32>
    %278 = arith.mulf %271, %277 : vector<16x32xf32>
    %279 = vector.extract_strided_slice %278 {offsets = [0, 0], sizes = [8, 32], strides = [1, 1]} : vector<16x32xf32> to vector<8x32xf32>
    %c56_83 = arith.constant 56 : index
    %c0_84 = arith.constant 0 : index
    %280 = vector.load %arg16[%c56_83, %c0_84] : memref<128x64xf32, #tpu.memory_space<vmem>>, vector<8x32xf32>
    tpu.vector_store %arg16[%c56_83, %c0_84], %279 {strides = array<i32>} : memref<128x64xf32, #tpu.memory_space<vmem>>, vector<8x32xf32>,
    %281 = vector.extract_strided_slice %278 {offsets = [8, 0], sizes = [8, 32], strides = [1, 1]} : vector<16x32xf32> to vector<8x32xf32>
    %c64_85 = arith.constant 64 : index
    %c32_86 = arith.constant 32 : index
    %282 = vector.load %arg16[%c64_85, %c32_86] : memref<128x64xf32, #tpu.memory_space<vmem>>, vector<8x32xf32>
    tpu.vector_store %arg16[%c64_85, %c32_86], %281 {strides = array<i32>} : memref<128x64xf32, #tpu.memory_space<vmem>>, vector<8x32xf32>,
    %c64_87 = arith.constant 64 : index
    %c0_88 = arith.constant 0 : index
    %283 = vector.load %arg15[%c64_87, %c0_88] : memref<128x256xf32, #tpu.memory_space<vmem>>, vector<8x128xf32>
    %c56_89 = arith.constant 56 : index
    %c128_90 = arith.constant 128 : index
    %284 = vector.load %arg15[%c56_89, %c128_90] : memref<128x256xf32, #tpu.memory_space<vmem>>, vector<8x128xf32>
    %285 = tpu.concatenate %283, %284 in 0 : vector<8x128xf32>, vector<8x128xf32> -> vector<16x128xf32>
    %286 = tpu.concatenate %278, %278 in 1 : vector<16x32xf32>, vector<16x32xf32> -> vector<16x64xf32>
    %287 = arith.mulf %286, %17 : vector<16x64xf32>
    %cst_91 = arith.constant dense<0.000000e+00> : vector<16x128xf32>
    %288 = tpu.matmul %287, %24, %cst_91 {dimension_numbers = #tpu.dot_dimension_numbers<[1], [0], [0], [1], [0, 0, 1, 1], [], []>} : vector<16x64xf32>, vector<64x128xf32>, vector<16x128xf32> -> vector<16x128xf32>
    %289 = arith.addf %285, %288 : vector<16x128xf32>
    %290 = vector.extract_strided_slice %289 {offsets = [0, 0], sizes = [16, 64], strides = [1, 1]} : vector<16x128xf32> to vector<16x64xf32>
    %291 = arith.negf %290 : vector<16x64xf32>
    %292 = math.exp %291 : vector<16x64xf32>
    %cst_92 = arith.constant 1.000000e+00 : f32
    %293 = vector.broadcast %cst_92 : f32 to vector<16x64xf32>
    %294 = arith.addf %293, %292 : vector<16x64xf32>
    %295 = arith.divf %293, %294 : vector<16x64xf32>
    %296 = vector.extract_strided_slice %289 {offsets = [0, 64], sizes = [16, 32], strides = [1, 1]} : vector<16x128xf32> to vector<16x32xf32>
    %297 = math.tanh %296 : vector<16x32xf32>
    %298 = vector.extract_strided_slice %289 {offsets = [0, 96], sizes = [16, 32], strides = [1, 1]} : vector<16x128xf32> to vector<16x32xf32>
    %299 = arith.negf %298 : vector<16x32xf32>
    %300 = math.exp %299 : vector<16x32xf32>
    %cst_93 = arith.constant 1.000000e+00 : f32
    %301 = vector.broadcast %cst_93 : f32 to vector<16x32xf32>
    %302 = arith.addf %301, %300 : vector<16x32xf32>
    %303 = arith.divf %301, %302 : vector<16x32xf32>
    %304 = vector.extract_strided_slice %295 {offsets = [0, 32], sizes = [16, 32], strides = [1, 1]} : vector<16x64xf32> to vector<16x32xf32>
    %305 = arith.mulf %304, %276 : vector<16x32xf32>
    %306 = vector.extract_strided_slice %295 {offsets = [0, 0], sizes = [16, 32], strides = [1, 1]} : vector<16x64xf32> to vector<16x32xf32>
    %307 = arith.mulf %306, %297 : vector<16x32xf32>
    %308 = arith.addf %305, %307 : vector<16x32xf32>
    %309 = math.tanh %308 : vector<16x32xf32>
    %310 = arith.mulf %303, %309 : vector<16x32xf32>
    %311 = vector.extract_strided_slice %310 {offsets = [0, 0], sizes = [8, 32], strides = [1, 1]} : vector<16x32xf32> to vector<8x32xf32>
    %c64_94 = arith.constant 64 : index
    %c0_95 = arith.constant 0 : index
    %312 = vector.load %arg16[%c64_94, %c0_95] : memref<128x64xf32, #tpu.memory_space<vmem>>, vector<8x32xf32>
    tpu.vector_store %arg16[%c64_94, %c0_95], %311 {strides = array<i32>} : memref<128x64xf32, #tpu.memory_space<vmem>>, vector<8x32xf32>,
    %313 = vector.extract_strided_slice %310 {offsets = [8, 0], sizes = [8, 32], strides = [1, 1]} : vector<16x32xf32> to vector<8x32xf32>
    %c56_96 = arith.constant 56 : index
    %c32_97 = arith.constant 32 : index
    %314 = vector.load %arg16[%c56_96, %c32_97] : memref<128x64xf32, #tpu.memory_space<vmem>>, vector<8x32xf32>
    tpu.vector_store %arg16[%c56_96, %c32_97], %313 {strides = array<i32>} : memref<128x64xf32, #tpu.memory_space<vmem>>, vector<8x32xf32>,
    %c72_98 = arith.constant 72 : index
    %c0_99 = arith.constant 0 : index
    %315 = vector.load %arg15[%c72_98, %c0_99] : memref<128x256xf32, #tpu.memory_space<vmem>>, vector<8x128xf32>
    %c48_100 = arith.constant 48 : index
    %c128_101 = arith.constant 128 : index
    %316 = vector.load %arg15[%c48_100, %c128_101] : memref<128x256xf32, #tpu.memory_space<vmem>>, vector<8x128xf32>
    %317 = tpu.concatenate %315, %316 in 0 : vector<8x128xf32>, vector<8x128xf32> -> vector<16x128xf32>
    %318 = tpu.concatenate %310, %310 in 1 : vector<16x32xf32>, vector<16x32xf32> -> vector<16x64xf32>
    %319 = arith.mulf %318, %17 : vector<16x64xf32>
    %cst_102 = arith.constant dense<0.000000e+00> : vector<16x128xf32>
    %320 = tpu.matmul %319, %24, %cst_102 {dimension_numbers = #tpu.dot_dimension_numbers<[1], [0], [0], [1], [0, 0, 1, 1], [], []>} : vector<16x64xf32>, vector<64x128xf32>, vector<16x128xf32> -> vector<16x128xf32>
    %321 = arith.addf %317, %320 : vector<16x128xf32>
    %322 = vector.extract_strided_slice %321 {offsets = [0, 0], sizes = [16, 64], strides = [1, 1]} : vector<16x128xf32> to vector<16x64xf32>
    %323 = arith.negf %322 : vector<16x64xf32>
    %324 = math.exp %323 : vector<16x64xf32>
    %cst_103 = arith.constant 1.000000e+00 : f32
    %325 = vector.broadcast %cst_103 : f32 to vector<16x64xf32>
    %326 = arith.addf %325, %324 : vector<16x64xf32>
    %327 = arith.divf %325, %326 : vector<16x64xf32>
    %328 = vector.extract_strided_slice %321 {offsets = [0, 64], sizes = [16, 32], strides = [1, 1]} : vector<16x128xf32> to vector<16x32xf32>
    %329 = math.tanh %328 : vector<16x32xf32>
    %330 = vector.extract_strided_slice %321 {offsets = [0, 96], sizes = [16, 32], strides = [1, 1]} : vector<16x128xf32> to vector<16x32xf32>
    %331 = arith.negf %330 : vector<16x32xf32>
    %332 = math.exp %331 : vector<16x32xf32>
    %cst_104 = arith.constant 1.000000e+00 : f32
    %333 = vector.broadcast %cst_104 : f32 to vector<16x32xf32>
    %334 = arith.addf %333, %332 : vector<16x32xf32>
    %335 = arith.divf %333, %334 : vector<16x32xf32>
    %336 = vector.extract_strided_slice %327 {offsets = [0, 32], sizes = [16, 32], strides = [1, 1]} : vector<16x64xf32> to vector<16x32xf32>
    %337 = arith.mulf %336, %308 : vector<16x32xf32>
    %338 = vector.extract_strided_slice %327 {offsets = [0, 0], sizes = [16, 32], strides = [1, 1]} : vector<16x64xf32> to vector<16x32xf32>
    %339 = arith.mulf %338, %329 : vector<16x32xf32>
    %340 = arith.addf %337, %339 : vector<16x32xf32>
    %341 = math.tanh %340 : vector<16x32xf32>
    %342 = arith.mulf %335, %341 : vector<16x32xf32>
    %343 = vector.extract_strided_slice %342 {offsets = [0, 0], sizes = [8, 32], strides = [1, 1]} : vector<16x32xf32> to vector<8x32xf32>
    %c72_105 = arith.constant 72 : index
    %c0_106 = arith.constant 0 : index
    %344 = vector.load %arg16[%c72_105, %c0_106] : memref<128x64xf32, #tpu.memory_space<vmem>>, vector<8x32xf32>
    tpu.vector_store %arg16[%c72_105, %c0_106], %343 {strides = array<i32>} : memref<128x64xf32, #tpu.memory_space<vmem>>, vector<8x32xf32>,
    %345 = vector.extract_strided_slice %342 {offsets = [8, 0], sizes = [8, 32], strides = [1, 1]} : vector<16x32xf32> to vector<8x32xf32>
    %c48_107 = arith.constant 48 : index
    %c32_108 = arith.constant 32 : index
    %346 = vector.load %arg16[%c48_107, %c32_108] : memref<128x64xf32, #tpu.memory_space<vmem>>, vector<8x32xf32>
    tpu.vector_store %arg16[%c48_107, %c32_108], %345 {strides = array<i32>} : memref<128x64xf32, #tpu.memory_space<vmem>>, vector<8x32xf32>,
    %c80_109 = arith.constant 80 : index
    %c0_110 = arith.constant 0 : index
    %347 = vector.load %arg15[%c80_109, %c0_110] : memref<128x256xf32, #tpu.memory_space<vmem>>, vector<8x128xf32>
    %c40_111 = arith.constant 40 : index
    %c128_112 = arith.constant 128 : index
    %348 = vector.load %arg15[%c40_111, %c128_112] : memref<128x256xf32, #tpu.memory_space<vmem>>, vector<8x128xf32>
    %349 = tpu.concatenate %347, %348 in 0 : vector<8x128xf32>, vector<8x128xf32> -> vector<16x128xf32>
    %350 = tpu.concatenate %342, %342 in 1 : vector<16x32xf32>, vector<16x32xf32> -> vector<16x64xf32>
    %351 = arith.mulf %350, %17 : vector<16x64xf32>
    %cst_113 = arith.constant dense<0.000000e+00> : vector<16x128xf32>
    %352 = tpu.matmul %351, %24, %cst_113 {dimension_numbers = #tpu.dot_dimension_numbers<[1], [0], [0], [1], [0, 0, 1, 1], [], []>} : vector<16x64xf32>, vector<64x128xf32>, vector<16x128xf32> -> vector<16x128xf32>
    %353 = arith.addf %349, %352 : vector<16x128xf32>
    %354 = vector.extract_strided_slice %353 {offsets = [0, 0], sizes = [16, 64], strides = [1, 1]} : vector<16x128xf32> to vector<16x64xf32>
    %355 = arith.negf %354 : vector<16x64xf32>
    %356 = math.exp %355 : vector<16x64xf32>
    %cst_114 = arith.constant 1.000000e+00 : f32
    %357 = vector.broadcast %cst_114 : f32 to vector<16x64xf32>
    %358 = arith.addf %357, %356 : vector<16x64xf32>
    %359 = arith.divf %357, %358 : vector<16x64xf32>
    %360 = vector.extract_strided_slice %353 {offsets = [0, 64], sizes = [16, 32], strides = [1, 1]} : vector<16x128xf32> to vector<16x32xf32>
    %361 = math.tanh %360 : vector<16x32xf32>
    %362 = vector.extract_strided_slice %353 {offsets = [0, 96], sizes = [16, 32], strides = [1, 1]} : vector<16x128xf32> to vector<16x32xf32>
    %363 = arith.negf %362 : vector<16x32xf32>
    %364 = math.exp %363 : vector<16x32xf32>
    %cst_115 = arith.constant 1.000000e+00 : f32
    %365 = vector.broadcast %cst_115 : f32 to vector<16x32xf32>
    %366 = arith.addf %365, %364 : vector<16x32xf32>
    %367 = arith.divf %365, %366 : vector<16x32xf32>
    %368 = vector.extract_strided_slice %359 {offsets = [0, 32], sizes = [16, 32], strides = [1, 1]} : vector<16x64xf32> to vector<16x32xf32>
    %369 = arith.mulf %368, %340 : vector<16x32xf32>
    %370 = vector.extract_strided_slice %359 {offsets = [0, 0], sizes = [16, 32], strides = [1, 1]} : vector<16x64xf32> to vector<16x32xf32>
    %371 = arith.mulf %370, %361 : vector<16x32xf32>
    %372 = arith.addf %369, %371 : vector<16x32xf32>
    %373 = math.tanh %372 : vector<16x32xf32>
    %374 = arith.mulf %367, %373 : vector<16x32xf32>
    %375 = vector.extract_strided_slice %374 {offsets = [0, 0], sizes = [8, 32], strides = [1, 1]} : vector<16x32xf32> to vector<8x32xf32>
    %c80_116 = arith.constant 80 : index
    %c0_117 = arith.constant 0 : index
    %376 = vector.load %arg16[%c80_116, %c0_117] : memref<128x64xf32, #tpu.memory_space<vmem>>, vector<8x32xf32>
    tpu.vector_store %arg16[%c80_116, %c0_117], %375 {strides = array<i32>} : memref<128x64xf32, #tpu.memory_space<vmem>>, vector<8x32xf32>,
    %377 = vector.extract_strided_slice %374 {offsets = [8, 0], sizes = [8, 32], strides = [1, 1]} : vector<16x32xf32> to vector<8x32xf32>
    %c40_118 = arith.constant 40 : index
    %c32_119 = arith.constant 32 : index
    %378 = vector.load %arg16[%c40_118, %c32_119] : memref<128x64xf32, #tpu.memory_space<vmem>>, vector<8x32xf32>
    tpu.vector_store %arg16[%c40_118, %c32_119], %377 {strides = array<i32>} : memref<128x64xf32, #tpu.memory_space<vmem>>, vector<8x32xf32>,
    %c88_120 = arith.constant 88 : index
    %c0_121 = arith.constant 0 : index
    %379 = vector.load %arg15[%c88_120, %c0_121] : memref<128x256xf32, #tpu.memory_space<vmem>>, vector<8x128xf32>
    %c32_122 = arith.constant 32 : index
    %c128_123 = arith.constant 128 : index
    %380 = vector.load %arg15[%c32_122, %c128_123] : memref<128x256xf32, #tpu.memory_space<vmem>>, vector<8x128xf32>
    %381 = tpu.concatenate %379, %380 in 0 : vector<8x128xf32>, vector<8x128xf32> -> vector<16x128xf32>
    %382 = tpu.concatenate %374, %374 in 1 : vector<16x32xf32>, vector<16x32xf32> -> vector<16x64xf32>
    %383 = arith.mulf %382, %17 : vector<16x64xf32>
    %cst_124 = arith.constant dense<0.000000e+00> : vector<16x128xf32>
    %384 = tpu.matmul %383, %24, %cst_124 {dimension_numbers = #tpu.dot_dimension_numbers<[1], [0], [0], [1], [0, 0, 1, 1], [], []>} : vector<16x64xf32>, vector<64x128xf32>, vector<16x128xf32> -> vector<16x128xf32>
    %385 = arith.addf %381, %384 : vector<16x128xf32>
    %386 = vector.extract_strided_slice %385 {offsets = [0, 0], sizes = [16, 64], strides = [1, 1]} : vector<16x128xf32> to vector<16x64xf32>
    %387 = arith.negf %386 : vector<16x64xf32>
    %388 = math.exp %387 : vector<16x64xf32>
    %cst_125 = arith.constant 1.000000e+00 : f32
    %389 = vector.broadcast %cst_125 : f32 to vector<16x64xf32>
    %390 = arith.addf %389, %388 : vector<16x64xf32>
    %391 = arith.divf %389, %390 : vector<16x64xf32>
    %392 = vector.extract_strided_slice %385 {offsets = [0, 64], sizes = [16, 32], strides = [1, 1]} : vector<16x128xf32> to vector<16x32xf32>
    %393 = math.tanh %392 : vector<16x32xf32>
    %394 = vector.extract_strided_slice %385 {offsets = [0, 96], sizes = [16, 32], strides = [1, 1]} : vector<16x128xf32> to vector<16x32xf32>
    %395 = arith.negf %394 : vector<16x32xf32>
    %396 = math.exp %395 : vector<16x32xf32>
    %cst_126 = arith.constant 1.000000e+00 : f32
    %397 = vector.broadcast %cst_126 : f32 to vector<16x32xf32>
    %398 = arith.addf %397, %396 : vector<16x32xf32>
    %399 = arith.divf %397, %398 : vector<16x32xf32>
    %400 = vector.extract_strided_slice %391 {offsets = [0, 32], sizes = [16, 32], strides = [1, 1]} : vector<16x64xf32> to vector<16x32xf32>
    %401 = arith.mulf %400, %372 : vector<16x32xf32>
    %402 = vector.extract_strided_slice %391 {offsets = [0, 0], sizes = [16, 32], strides = [1, 1]} : vector<16x64xf32> to vector<16x32xf32>
    %403 = arith.mulf %402, %393 : vector<16x32xf32>
    %404 = arith.addf %401, %403 : vector<16x32xf32>
    %405 = math.tanh %404 : vector<16x32xf32>
    %406 = arith.mulf %399, %405 : vector<16x32xf32>
    %407 = vector.extract_strided_slice %406 {offsets = [0, 0], sizes = [8, 32], strides = [1, 1]} : vector<16x32xf32> to vector<8x32xf32>
    %c88_127 = arith.constant 88 : index
    %c0_128 = arith.constant 0 : index
    %408 = vector.load %arg16[%c88_127, %c0_128] : memref<128x64xf32, #tpu.memory_space<vmem>>, vector<8x32xf32>
    tpu.vector_store %arg16[%c88_127, %c0_128], %407 {strides = array<i32>} : memref<128x64xf32, #tpu.memory_space<vmem>>, vector<8x32xf32>,
    %409 = vector.extract_strided_slice %406 {offsets = [8, 0], sizes = [8, 32], strides = [1, 1]} : vector<16x32xf32> to vector<8x32xf32>
    %c32_129 = arith.constant 32 : index
    %c32_130 = arith.constant 32 : index
    %410 = vector.load %arg16[%c32_129, %c32_130] : memref<128x64xf32, #tpu.memory_space<vmem>>, vector<8x32xf32>
    tpu.vector_store %arg16[%c32_129, %c32_130], %409 {strides = array<i32>} : memref<128x64xf32, #tpu.memory_space<vmem>>, vector<8x32xf32>,
    %c96_131 = arith.constant 96 : index
    %c0_132 = arith.constant 0 : index
    %411 = vector.load %arg15[%c96_131, %c0_132] : memref<128x256xf32, #tpu.memory_space<vmem>>, vector<8x128xf32>
    %c24_133 = arith.constant 24 : index
    %c128_134 = arith.constant 128 : index
    %412 = vector.load %arg15[%c24_133, %c128_134] : memref<128x256xf32, #tpu.memory_space<vmem>>, vector<8x128xf32>
    %413 = tpu.concatenate %411, %412 in 0 : vector<8x128xf32>, vector<8x128xf32> -> vector<16x128xf32>
    %414 = tpu.concatenate %406, %406 in 1 : vector<16x32xf32>, vector<16x32xf32> -> vector<16x64xf32>
    %415 = arith.mulf %414, %17 : vector<16x64xf32>
    %cst_135 = arith.constant dense<0.000000e+00> : vector<16x128xf32>
    %416 = tpu.matmul %415, %24, %cst_135 {dimension_numbers = #tpu.dot_dimension_numbers<[1], [0], [0], [1], [0, 0, 1, 1], [], []>} : vector<16x64xf32>, vector<64x128xf32>, vector<16x128xf32> -> vector<16x128xf32>
    %417 = arith.addf %413, %416 : vector<16x128xf32>
    %418 = vector.extract_strided_slice %417 {offsets = [0, 0], sizes = [16, 64], strides = [1, 1]} : vector<16x128xf32> to vector<16x64xf32>
    %419 = arith.negf %418 : vector<16x64xf32>
    %420 = math.exp %419 : vector<16x64xf32>
    %cst_136 = arith.constant 1.000000e+00 : f32
    %421 = vector.broadcast %cst_136 : f32 to vector<16x64xf32>
    %422 = arith.addf %421, %420 : vector<16x64xf32>
    %423 = arith.divf %421, %422 : vector<16x64xf32>
    %424 = vector.extract_strided_slice %417 {offsets = [0, 64], sizes = [16, 32], strides = [1, 1]} : vector<16x128xf32> to vector<16x32xf32>
    %425 = math.tanh %424 : vector<16x32xf32>
    %426 = vector.extract_strided_slice %417 {offsets = [0, 96], sizes = [16, 32], strides = [1, 1]} : vector<16x128xf32> to vector<16x32xf32>
    %427 = arith.negf %426 : vector<16x32xf32>
    %428 = math.exp %427 : vector<16x32xf32>
    %cst_137 = arith.constant 1.000000e+00 : f32
    %429 = vector.broadcast %cst_137 : f32 to vector<16x32xf32>
    %430 = arith.addf %429, %428 : vector<16x32xf32>
    %431 = arith.divf %429, %430 : vector<16x32xf32>
    %432 = vector.extract_strided_slice %423 {offsets = [0, 32], sizes = [16, 32], strides = [1, 1]} : vector<16x64xf32> to vector<16x32xf32>
    %433 = arith.mulf %432, %404 : vector<16x32xf32>
    %434 = vector.extract_strided_slice %423 {offsets = [0, 0], sizes = [16, 32], strides = [1, 1]} : vector<16x64xf32> to vector<16x32xf32>
    %435 = arith.mulf %434, %425 : vector<16x32xf32>
    %436 = arith.addf %433, %435 : vector<16x32xf32>
    %437 = math.tanh %436 : vector<16x32xf32>
    %438 = arith.mulf %431, %437 : vector<16x32xf32>
    %439 = vector.extract_strided_slice %438 {offsets = [0, 0], sizes = [8, 32], strides = [1, 1]} : vector<16x32xf32> to vector<8x32xf32>
    %c96_138 = arith.constant 96 : index
    %c0_139 = arith.constant 0 : index
    %440 = vector.load %arg16[%c96_138, %c0_139] : memref<128x64xf32, #tpu.memory_space<vmem>>, vector<8x32xf32>
    tpu.vector_store %arg16[%c96_138, %c0_139], %439 {strides = array<i32>} : memref<128x64xf32, #tpu.memory_space<vmem>>, vector<8x32xf32>,
    %441 = vector.extract_strided_slice %438 {offsets = [8, 0], sizes = [8, 32], strides = [1, 1]} : vector<16x32xf32> to vector<8x32xf32>
    %c24_140 = arith.constant 24 : index
    %c32_141 = arith.constant 32 : index
    %442 = vector.load %arg16[%c24_140, %c32_141] : memref<128x64xf32, #tpu.memory_space<vmem>>, vector<8x32xf32>
    tpu.vector_store %arg16[%c24_140, %c32_141], %441 {strides = array<i32>} : memref<128x64xf32, #tpu.memory_space<vmem>>, vector<8x32xf32>,
    %c104_142 = arith.constant 104 : index
    %c0_143 = arith.constant 0 : index
    %443 = vector.load %arg15[%c104_142, %c0_143] : memref<128x256xf32, #tpu.memory_space<vmem>>, vector<8x128xf32>
    %c16_144 = arith.constant 16 : index
    %c128_145 = arith.constant 128 : index
    %444 = vector.load %arg15[%c16_144, %c128_145] : memref<128x256xf32, #tpu.memory_space<vmem>>, vector<8x128xf32>
    %445 = tpu.concatenate %443, %444 in 0 : vector<8x128xf32>, vector<8x128xf32> -> vector<16x128xf32>
    %446 = tpu.concatenate %438, %438 in 1 : vector<16x32xf32>, vector<16x32xf32> -> vector<16x64xf32>
    %447 = arith.mulf %446, %17 : vector<16x64xf32>
    %cst_146 = arith.constant dense<0.000000e+00> : vector<16x128xf32>
    %448 = tpu.matmul %447, %24, %cst_146 {dimension_numbers = #tpu.dot_dimension_numbers<[1], [0], [0], [1], [0, 0, 1, 1], [], []>} : vector<16x64xf32>, vector<64x128xf32>, vector<16x128xf32> -> vector<16x128xf32>
    %449 = arith.addf %445, %448 : vector<16x128xf32>
    %450 = vector.extract_strided_slice %449 {offsets = [0, 0], sizes = [16, 64], strides = [1, 1]} : vector<16x128xf32> to vector<16x64xf32>
    %451 = arith.negf %450 : vector<16x64xf32>
    %452 = math.exp %451 : vector<16x64xf32>
    %cst_147 = arith.constant 1.000000e+00 : f32
    %453 = vector.broadcast %cst_147 : f32 to vector<16x64xf32>
    %454 = arith.addf %453, %452 : vector<16x64xf32>
    %455 = arith.divf %453, %454 : vector<16x64xf32>
    %456 = vector.extract_strided_slice %449 {offsets = [0, 64], sizes = [16, 32], strides = [1, 1]} : vector<16x128xf32> to vector<16x32xf32>
    %457 = math.tanh %456 : vector<16x32xf32>
    %458 = vector.extract_strided_slice %449 {offsets = [0, 96], sizes = [16, 32], strides = [1, 1]} : vector<16x128xf32> to vector<16x32xf32>
    %459 = arith.negf %458 : vector<16x32xf32>
    %460 = math.exp %459 : vector<16x32xf32>
    %cst_148 = arith.constant 1.000000e+00 : f32
    %461 = vector.broadcast %cst_148 : f32 to vector<16x32xf32>
    %462 = arith.addf %461, %460 : vector<16x32xf32>
    %463 = arith.divf %461, %462 : vector<16x32xf32>
    %464 = vector.extract_strided_slice %455 {offsets = [0, 32], sizes = [16, 32], strides = [1, 1]} : vector<16x64xf32> to vector<16x32xf32>
    %465 = arith.mulf %464, %436 : vector<16x32xf32>
    %466 = vector.extract_strided_slice %455 {offsets = [0, 0], sizes = [16, 32], strides = [1, 1]} : vector<16x64xf32> to vector<16x32xf32>
    %467 = arith.mulf %466, %457 : vector<16x32xf32>
    %468 = arith.addf %465, %467 : vector<16x32xf32>
    %469 = math.tanh %468 : vector<16x32xf32>
    %470 = arith.mulf %463, %469 : vector<16x32xf32>
    %471 = vector.extract_strided_slice %470 {offsets = [0, 0], sizes = [8, 32], strides = [1, 1]} : vector<16x32xf32> to vector<8x32xf32>
    %c104_149 = arith.constant 104 : index
    %c0_150 = arith.constant 0 : index
    %472 = vector.load %arg16[%c104_149, %c0_150] : memref<128x64xf32, #tpu.memory_space<vmem>>, vector<8x32xf32>
    tpu.vector_store %arg16[%c104_149, %c0_150], %471 {strides = array<i32>} : memref<128x64xf32, #tpu.memory_space<vmem>>, vector<8x32xf32>,
    %473 = vector.extract_strided_slice %470 {offsets = [8, 0], sizes = [8, 32], strides = [1, 1]} : vector<16x32xf32> to vector<8x32xf32>
    %c16_151 = arith.constant 16 : index
    %c32_152 = arith.constant 32 : index
    %474 = vector.load %arg16[%c16_151, %c32_152] : memref<128x64xf32, #tpu.memory_space<vmem>>, vector<8x32xf32>
    tpu.vector_store %arg16[%c16_151, %c32_152], %473 {strides = array<i32>} : memref<128x64xf32, #tpu.memory_space<vmem>>, vector<8x32xf32>,
    %c112_153 = arith.constant 112 : index
    %c0_154 = arith.constant 0 : index
    %475 = vector.load %arg15[%c112_153, %c0_154] : memref<128x256xf32, #tpu.memory_space<vmem>>, vector<8x128xf32>
    %c8_155 = arith.constant 8 : index
    %c128_156 = arith.constant 128 : index
    %476 = vector.load %arg15[%c8_155, %c128_156] : memref<128x256xf32, #tpu.memory_space<vmem>>, vector<8x128xf32>
    %477 = tpu.concatenate %475, %476 in 0 : vector<8x128xf32>, vector<8x128xf32> -> vector<16x128xf32>
    %478 = tpu.concatenate %470, %470 in 1 : vector<16x32xf32>, vector<16x32xf32> -> vector<16x64xf32>
    %479 = arith.mulf %478, %17 : vector<16x64xf32>
    %cst_157 = arith.constant dense<0.000000e+00> : vector<16x128xf32>
    %480 = tpu.matmul %479, %24, %cst_157 {dimension_numbers = #tpu.dot_dimension_numbers<[1], [0], [0], [1], [0, 0, 1, 1], [], []>} : vector<16x64xf32>, vector<64x128xf32>, vector<16x128xf32> -> vector<16x128xf32>
    %481 = arith.addf %477, %480 : vector<16x128xf32>
    %482 = vector.extract_strided_slice %481 {offsets = [0, 0], sizes = [16, 64], strides = [1, 1]} : vector<16x128xf32> to vector<16x64xf32>
    %483 = arith.negf %482 : vector<16x64xf32>
    %484 = math.exp %483 : vector<16x64xf32>
    %cst_158 = arith.constant 1.000000e+00 : f32
    %485 = vector.broadcast %cst_158 : f32 to vector<16x64xf32>
    %486 = arith.addf %485, %484 : vector<16x64xf32>
    %487 = arith.divf %485, %486 : vector<16x64xf32>
    %488 = vector.extract_strided_slice %481 {offsets = [0, 64], sizes = [16, 32], strides = [1, 1]} : vector<16x128xf32> to vector<16x32xf32>
    %489 = math.tanh %488 : vector<16x32xf32>
    %490 = vector.extract_strided_slice %481 {offsets = [0, 96], sizes = [16, 32], strides = [1, 1]} : vector<16x128xf32> to vector<16x32xf32>
    %491 = arith.negf %490 : vector<16x32xf32>
    %492 = math.exp %491 : vector<16x32xf32>
    %cst_159 = arith.constant 1.000000e+00 : f32
    %493 = vector.broadcast %cst_159 : f32 to vector<16x32xf32>
    %494 = arith.addf %493, %492 : vector<16x32xf32>
    %495 = arith.divf %493, %494 : vector<16x32xf32>
    %496 = vector.extract_strided_slice %487 {offsets = [0, 32], sizes = [16, 32], strides = [1, 1]} : vector<16x64xf32> to vector<16x32xf32>
    %497 = arith.mulf %496, %468 : vector<16x32xf32>
    %498 = vector.extract_strided_slice %487 {offsets = [0, 0], sizes = [16, 32], strides = [1, 1]} : vector<16x64xf32> to vector<16x32xf32>
    %499 = arith.mulf %498, %489 : vector<16x32xf32>
    %500 = arith.addf %497, %499 : vector<16x32xf32>
    %501 = math.tanh %500 : vector<16x32xf32>
    %502 = arith.mulf %495, %501 : vector<16x32xf32>
    %503 = vector.extract_strided_slice %502 {offsets = [0, 0], sizes = [8, 32], strides = [1, 1]} : vector<16x32xf32> to vector<8x32xf32>
    %c112_160 = arith.constant 112 : index
    %c0_161 = arith.constant 0 : index
    %504 = vector.load %arg16[%c112_160, %c0_161] : memref<128x64xf32, #tpu.memory_space<vmem>>, vector<8x32xf32>
    tpu.vector_store %arg16[%c112_160, %c0_161], %503 {strides = array<i32>} : memref<128x64xf32, #tpu.memory_space<vmem>>, vector<8x32xf32>,
    %505 = vector.extract_strided_slice %502 {offsets = [8, 0], sizes = [8, 32], strides = [1, 1]} : vector<16x32xf32> to vector<8x32xf32>
    %c8_162 = arith.constant 8 : index
    %c32_163 = arith.constant 32 : index
    %506 = vector.load %arg16[%c8_162, %c32_163] : memref<128x64xf32, #tpu.memory_space<vmem>>, vector<8x32xf32>
    tpu.vector_store %arg16[%c8_162, %c32_163], %505 {strides = array<i32>} : memref<128x64xf32, #tpu.memory_space<vmem>>, vector<8x32xf32>,
    %c120_164 = arith.constant 120 : index
    %c0_165 = arith.constant 0 : index
    %507 = vector.load %arg15[%c120_164, %c0_165] : memref<128x256xf32, #tpu.memory_space<vmem>>, vector<8x128xf32>
    %c0_166 = arith.constant 0 : index
    %c128_167 = arith.constant 128 : index
    %508 = vector.load %arg15[%c0_166, %c128_167] : memref<128x256xf32, #tpu.memory_space<vmem>>, vector<8x128xf32>
    %509 = tpu.concatenate %507, %508 in 0 : vector<8x128xf32>, vector<8x128xf32> -> vector<16x128xf32>
    %510 = tpu.concatenate %502, %502 in 1 : vector<16x32xf32>, vector<16x32xf32> -> vector<16x64xf32>
    %511 = arith.mulf %510, %17 : vector<16x64xf32>
    %cst_168 = arith.constant dense<0.000000e+00> : vector<16x128xf32>
    %512 = tpu.matmul %511, %24, %cst_168 {dimension_numbers = #tpu.dot_dimension_numbers<[1], [0], [0], [1], [0, 0, 1, 1], [], []>} : vector<16x64xf32>, vector<64x128xf32>, vector<16x128xf32> -> vector<16x128xf32>
    %513 = arith.addf %509, %512 : vector<16x128xf32>
    %514 = vector.extract_strided_slice %513 {offsets = [0, 0], sizes = [16, 64], strides = [1, 1]} : vector<16x128xf32> to vector<16x64xf32>
    %515 = arith.negf %514 : vector<16x64xf32>
    %516 = math.exp %515 : vector<16x64xf32>
    %cst_169 = arith.constant 1.000000e+00 : f32
    %517 = vector.broadcast %cst_169 : f32 to vector<16x64xf32>
    %518 = arith.addf %517, %516 : vector<16x64xf32>
    %519 = arith.divf %517, %518 : vector<16x64xf32>
    %520 = vector.extract_strided_slice %513 {offsets = [0, 64], sizes = [16, 32], strides = [1, 1]} : vector<16x128xf32> to vector<16x32xf32>
    %521 = math.tanh %520 : vector<16x32xf32>
    %522 = vector.extract_strided_slice %513 {offsets = [0, 96], sizes = [16, 32], strides = [1, 1]} : vector<16x128xf32> to vector<16x32xf32>
    %523 = arith.negf %522 : vector<16x32xf32>
    %524 = math.exp %523 : vector<16x32xf32>
    %cst_170 = arith.constant 1.000000e+00 : f32
    %525 = vector.broadcast %cst_170 : f32 to vector<16x32xf32>
    %526 = arith.addf %525, %524 : vector<16x32xf32>
    %527 = arith.divf %525, %526 : vector<16x32xf32>
    %528 = vector.extract_strided_slice %519 {offsets = [0, 32], sizes = [16, 32], strides = [1, 1]} : vector<16x64xf32> to vector<16x32xf32>
    %529 = arith.mulf %528, %500 : vector<16x32xf32>
    %530 = vector.extract_strided_slice %519 {offsets = [0, 0], sizes = [16, 32], strides = [1, 1]} : vector<16x64xf32> to vector<16x32xf32>
    %531 = arith.mulf %530, %521 : vector<16x32xf32>
    %532 = arith.addf %529, %531 : vector<16x32xf32>
    %533 = math.tanh %532 : vector<16x32xf32>
    %534 = arith.mulf %527, %533 : vector<16x32xf32>
    %535 = vector.extract_strided_slice %534 {offsets = [0, 0], sizes = [8, 32], strides = [1, 1]} : vector<16x32xf32> to vector<8x32xf32>
    %c120_171 = arith.constant 120 : index
    %c0_172 = arith.constant 0 : index
    %536 = vector.load %arg16[%c120_171, %c0_172] : memref<128x64xf32, #tpu.memory_space<vmem>>, vector<8x32xf32>
    tpu.vector_store %arg16[%c120_171, %c0_172], %535 {strides = array<i32>} : memref<128x64xf32, #tpu.memory_space<vmem>>, vector<8x32xf32>,
    %537 = vector.extract_strided_slice %534 {offsets = [8, 0], sizes = [8, 32], strides = [1, 1]} : vector<16x32xf32> to vector<8x32xf32>
    %c0_173 = arith.constant 0 : index
    %c32_174 = arith.constant 32 : index
    %538 = vector.load %arg16[%c0_173, %c32_174] : memref<128x64xf32, #tpu.memory_space<vmem>>, vector<8x32xf32>
    tpu.vector_store %arg16[%c0_173, %c32_174], %537 {strides = array<i32>} : memref<128x64xf32, #tpu.memory_space<vmem>>, vector<8x32xf32>,
    %c0_175 = arith.constant 0 : index
    %c0_176 = arith.constant 0 : index
    %539 = vector.load %arg16[%c0_175, %c0_176] : memref<128x64xf32, #tpu.memory_space<vmem>>, vector<128x64xf32>
    %c0_177 = arith.constant 0 : index
    %c0_178 = arith.constant 0 : index
    %540 = vector.load %arg5[%c0_177, %c0_178] : memref<64x256xf32, #tpu.memory_space<vmem>>, vector<64x256xf32>
    %cst_179 = arith.constant dense<0.000000e+00> : vector<128x256xf32>
    %541 = tpu.matmul %539, %540, %cst_179 {dimension_numbers = #tpu.dot_dimension_numbers<[1], [0], [0], [1], [0, 0, 1, 1], [], []>} : vector<128x64xf32>, vector<64x256xf32>, vector<128x256xf32> -> vector<128x256xf32>
    %c0_180 = arith.constant 0 : index
    %c0_181 = arith.constant 0 : index
    %542 = vector.load %arg6[%c0_180, %c0_181] : memref<1x256xf32, #tpu.memory_space<vmem>>, vector<1x256xf32>
    %543 = vector.broadcast %542 : vector<1x256xf32> to vector<128x256xf32>
    %544 = arith.addf %541, %543 : vector<128x256xf32>
    %c0_182 = arith.constant 0 : index
    %c0_183 = arith.constant 0 : index
    %545 = vector.load %arg15[%c0_182, %c0_183] : memref<128x256xf32, #tpu.memory_space<vmem>>, vector<128x256xf32>
    tpu.vector_store %arg15[%c0_182, %c0_183], %544 {strides = array<i32>} : memref<128x256xf32, #tpu.memory_space<vmem>>, vector<128x256xf32>,
    %c0_184 = arith.constant 0 : index
    %c0_185 = arith.constant 0 : index
    %546 = vector.load %arg7[%c0_184, %c0_185] : memref<64x128xf32, #tpu.memory_space<vmem>>, vector<64x128xf32>
    %cst_186 = arith.constant 0.000000e+00 : f32
    %547 = vector.broadcast %cst_186 : f32 to vector<16x32xf32>
    %cst_187 = arith.constant 0.000000e+00 : f32
    %548 = vector.broadcast %cst_187 : f32 to vector<16x32xf32>
    %c0_188 = arith.constant 0 : index
    %c0_189 = arith.constant 0 : index
    %549 = vector.load %arg15[%c0_188, %c0_189] : memref<128x256xf32, #tpu.memory_space<vmem>>, vector<8x128xf32>
    %c120_190 = arith.constant 120 : index
    %c128_191 = arith.constant 128 : index
    %550 = vector.load %arg15[%c120_190, %c128_191] : memref<128x256xf32, #tpu.memory_space<vmem>>, vector<8x128xf32>
    %551 = tpu.concatenate %549, %550 in 0 : vector<8x128xf32>, vector<8x128xf32> -> vector<16x128xf32>
    %552 = tpu.concatenate %547, %547 in 1 : vector<16x32xf32>, vector<16x32xf32> -> vector<16x64xf32>
    %553 = arith.mulf %552, %17 : vector<16x64xf32>
    %cst_192 = arith.constant dense<0.000000e+00> : vector<16x128xf32>
    %554 = tpu.matmul %553, %546, %cst_192 {dimension_numbers = #tpu.dot_dimension_numbers<[1], [0], [0], [1], [0, 0, 1, 1], [], []>} : vector<16x64xf32>, vector<64x128xf32>, vector<16x128xf32> -> vector<16x128xf32>
    %555 = arith.addf %551, %554 : vector<16x128xf32>
    %556 = vector.extract_strided_slice %555 {offsets = [0, 0], sizes = [16, 64], strides = [1, 1]} : vector<16x128xf32> to vector<16x64xf32>
    %557 = arith.negf %556 : vector<16x64xf32>
    %558 = math.exp %557 : vector<16x64xf32>
    %cst_193 = arith.constant 1.000000e+00 : f32
    %559 = vector.broadcast %cst_193 : f32 to vector<16x64xf32>
    %560 = arith.addf %559, %558 : vector<16x64xf32>
    %561 = arith.divf %559, %560 : vector<16x64xf32>
    %562 = vector.extract_strided_slice %555 {offsets = [0, 64], sizes = [16, 32], strides = [1, 1]} : vector<16x128xf32> to vector<16x32xf32>
    %563 = math.tanh %562 : vector<16x32xf32>
    %564 = vector.extract_strided_slice %555 {offsets = [0, 96], sizes = [16, 32], strides = [1, 1]} : vector<16x128xf32> to vector<16x32xf32>
    %565 = arith.negf %564 : vector<16x32xf32>
    %566 = math.exp %565 : vector<16x32xf32>
    %cst_194 = arith.constant 1.000000e+00 : f32
    %567 = vector.broadcast %cst_194 : f32 to vector<16x32xf32>
    %568 = arith.addf %567, %566 : vector<16x32xf32>
    %569 = arith.divf %567, %568 : vector<16x32xf32>
    %570 = vector.extract_strided_slice %561 {offsets = [0, 32], sizes = [16, 32], strides = [1, 1]} : vector<16x64xf32> to vector<16x32xf32>
    %571 = arith.mulf %570, %548 : vector<16x32xf32>
    %572 = vector.extract_strided_slice %561 {offsets = [0, 0], sizes = [16, 32], strides = [1, 1]} : vector<16x64xf32> to vector<16x32xf32>
    %573 = arith.mulf %572, %563 : vector<16x32xf32>
    %574 = arith.addf %571, %573 : vector<16x32xf32>
    %575 = math.tanh %574 : vector<16x32xf32>
    %576 = arith.mulf %569, %575 : vector<16x32xf32>
    %577 = vector.extract_strided_slice %576 {offsets = [8, 0], sizes = [8, 32], strides = [1, 1]} : vector<16x32xf32> to vector<8x32xf32>
    %c8_195 = arith.constant 8 : index
    %c0_196 = arith.constant 0 : index
    %578 = vector.load %arg15[%c8_195, %c0_196] : memref<128x256xf32, #tpu.memory_space<vmem>>, vector<8x128xf32>
    %c112_197 = arith.constant 112 : index
    %c128_198 = arith.constant 128 : index
    %579 = vector.load %arg15[%c112_197, %c128_198] : memref<128x256xf32, #tpu.memory_space<vmem>>, vector<8x128xf32>
    %580 = tpu.concatenate %578, %579 in 0 : vector<8x128xf32>, vector<8x128xf32> -> vector<16x128xf32>
    %581 = tpu.concatenate %576, %576 in 1 : vector<16x32xf32>, vector<16x32xf32> -> vector<16x64xf32>
    %582 = arith.mulf %581, %17 : vector<16x64xf32>
    %cst_199 = arith.constant dense<0.000000e+00> : vector<16x128xf32>
    %583 = tpu.matmul %582, %546, %cst_199 {dimension_numbers = #tpu.dot_dimension_numbers<[1], [0], [0], [1], [0, 0, 1, 1], [], []>} : vector<16x64xf32>, vector<64x128xf32>, vector<16x128xf32> -> vector<16x128xf32>
    %584 = arith.addf %580, %583 : vector<16x128xf32>
    %585 = vector.extract_strided_slice %584 {offsets = [0, 0], sizes = [16, 64], strides = [1, 1]} : vector<16x128xf32> to vector<16x64xf32>
    %586 = arith.negf %585 : vector<16x64xf32>
    %587 = math.exp %586 : vector<16x64xf32>
    %cst_200 = arith.constant 1.000000e+00 : f32
    %588 = vector.broadcast %cst_200 : f32 to vector<16x64xf32>
    %589 = arith.addf %588, %587 : vector<16x64xf32>
    %590 = arith.divf %588, %589 : vector<16x64xf32>
    %591 = vector.extract_strided_slice %584 {offsets = [0, 64], sizes = [16, 32], strides = [1, 1]} : vector<16x128xf32> to vector<16x32xf32>
    %592 = math.tanh %591 : vector<16x32xf32>
    %593 = vector.extract_strided_slice %584 {offsets = [0, 96], sizes = [16, 32], strides = [1, 1]} : vector<16x128xf32> to vector<16x32xf32>
    %594 = arith.negf %593 : vector<16x32xf32>
    %595 = math.exp %594 : vector<16x32xf32>
    %cst_201 = arith.constant 1.000000e+00 : f32
    %596 = vector.broadcast %cst_201 : f32 to vector<16x32xf32>
    %597 = arith.addf %596, %595 : vector<16x32xf32>
    %598 = arith.divf %596, %597 : vector<16x32xf32>
    %599 = vector.extract_strided_slice %590 {offsets = [0, 32], sizes = [16, 32], strides = [1, 1]} : vector<16x64xf32> to vector<16x32xf32>
    %600 = arith.mulf %599, %574 : vector<16x32xf32>
    %601 = vector.extract_strided_slice %590 {offsets = [0, 0], sizes = [16, 32], strides = [1, 1]} : vector<16x64xf32> to vector<16x32xf32>
    %602 = arith.mulf %601, %592 : vector<16x32xf32>
    %603 = arith.addf %600, %602 : vector<16x32xf32>
    %604 = math.tanh %603 : vector<16x32xf32>
    %605 = arith.mulf %598, %604 : vector<16x32xf32>
    %c16_202 = arith.constant 16 : index
    %c0_203 = arith.constant 0 : index
    %606 = vector.load %arg15[%c16_202, %c0_203] : memref<128x256xf32, #tpu.memory_space<vmem>>, vector<8x128xf32>
    %c104_204 = arith.constant 104 : index
    %c128_205 = arith.constant 128 : index
    %607 = vector.load %arg15[%c104_204, %c128_205] : memref<128x256xf32, #tpu.memory_space<vmem>>, vector<8x128xf32>
    %608 = tpu.concatenate %606, %607 in 0 : vector<8x128xf32>, vector<8x128xf32> -> vector<16x128xf32>
    %609 = tpu.concatenate %605, %605 in 1 : vector<16x32xf32>, vector<16x32xf32> -> vector<16x64xf32>
    %610 = arith.mulf %609, %17 : vector<16x64xf32>
    %cst_206 = arith.constant dense<0.000000e+00> : vector<16x128xf32>
    %611 = tpu.matmul %610, %546, %cst_206 {dimension_numbers = #tpu.dot_dimension_numbers<[1], [0], [0], [1], [0, 0, 1, 1], [], []>} : vector<16x64xf32>, vector<64x128xf32>, vector<16x128xf32> -> vector<16x128xf32>
    %612 = arith.addf %608, %611 : vector<16x128xf32>
    %613 = vector.extract_strided_slice %612 {offsets = [0, 0], sizes = [16, 64], strides = [1, 1]} : vector<16x128xf32> to vector<16x64xf32>
    %614 = arith.negf %613 : vector<16x64xf32>
    %615 = math.exp %614 : vector<16x64xf32>
    %cst_207 = arith.constant 1.000000e+00 : f32
    %616 = vector.broadcast %cst_207 : f32 to vector<16x64xf32>
    %617 = arith.addf %616, %615 : vector<16x64xf32>
    %618 = arith.divf %616, %617 : vector<16x64xf32>
    %619 = vector.extract_strided_slice %612 {offsets = [0, 64], sizes = [16, 32], strides = [1, 1]} : vector<16x128xf32> to vector<16x32xf32>
    %620 = math.tanh %619 : vector<16x32xf32>
    %621 = vector.extract_strided_slice %612 {offsets = [0, 96], sizes = [16, 32], strides = [1, 1]} : vector<16x128xf32> to vector<16x32xf32>
    %622 = arith.negf %621 : vector<16x32xf32>
    %623 = math.exp %622 : vector<16x32xf32>
    %cst_208 = arith.constant 1.000000e+00 : f32
    %624 = vector.broadcast %cst_208 : f32 to vector<16x32xf32>
    %625 = arith.addf %624, %623 : vector<16x32xf32>
    %626 = arith.divf %624, %625 : vector<16x32xf32>
    %627 = vector.extract_strided_slice %618 {offsets = [0, 32], sizes = [16, 32], strides = [1, 1]} : vector<16x64xf32> to vector<16x32xf32>
    %628 = arith.mulf %627, %603 : vector<16x32xf32>
    %629 = vector.extract_strided_slice %618 {offsets = [0, 0], sizes = [16, 32], strides = [1, 1]} : vector<16x64xf32> to vector<16x32xf32>
    %630 = arith.mulf %629, %620 : vector<16x32xf32>
    %631 = arith.addf %628, %630 : vector<16x32xf32>
    %632 = math.tanh %631 : vector<16x32xf32>
    %633 = arith.mulf %626, %632 : vector<16x32xf32>
    %c24_209 = arith.constant 24 : index
    %c0_210 = arith.constant 0 : index
    %634 = vector.load %arg15[%c24_209, %c0_210] : memref<128x256xf32, #tpu.memory_space<vmem>>, vector<8x128xf32>
    %c96_211 = arith.constant 96 : index
    %c128_212 = arith.constant 128 : index
    %635 = vector.load %arg15[%c96_211, %c128_212] : memref<128x256xf32, #tpu.memory_space<vmem>>, vector<8x128xf32>
    %636 = tpu.concatenate %634, %635 in 0 : vector<8x128xf32>, vector<8x128xf32> -> vector<16x128xf32>
    %637 = tpu.concatenate %633, %633 in 1 : vector<16x32xf32>, vector<16x32xf32> -> vector<16x64xf32>
    %638 = arith.mulf %637, %17 : vector<16x64xf32>
    %cst_213 = arith.constant dense<0.000000e+00> : vector<16x128xf32>
    %639 = tpu.matmul %638, %546, %cst_213 {dimension_numbers = #tpu.dot_dimension_numbers<[1], [0], [0], [1], [0, 0, 1, 1], [], []>} : vector<16x64xf32>, vector<64x128xf32>, vector<16x128xf32> -> vector<16x128xf32>
    %640 = arith.addf %636, %639 : vector<16x128xf32>
    %641 = vector.extract_strided_slice %640 {offsets = [0, 0], sizes = [16, 64], strides = [1, 1]} : vector<16x128xf32> to vector<16x64xf32>
    %642 = arith.negf %641 : vector<16x64xf32>
    %643 = math.exp %642 : vector<16x64xf32>
    %cst_214 = arith.constant 1.000000e+00 : f32
    %644 = vector.broadcast %cst_214 : f32 to vector<16x64xf32>
    %645 = arith.addf %644, %643 : vector<16x64xf32>
    %646 = arith.divf %644, %645 : vector<16x64xf32>
    %647 = vector.extract_strided_slice %640 {offsets = [0, 64], sizes = [16, 32], strides = [1, 1]} : vector<16x128xf32> to vector<16x32xf32>
    %648 = math.tanh %647 : vector<16x32xf32>
    %649 = vector.extract_strided_slice %640 {offsets = [0, 96], sizes = [16, 32], strides = [1, 1]} : vector<16x128xf32> to vector<16x32xf32>
    %650 = arith.negf %649 : vector<16x32xf32>
    %651 = math.exp %650 : vector<16x32xf32>
    %cst_215 = arith.constant 1.000000e+00 : f32
    %652 = vector.broadcast %cst_215 : f32 to vector<16x32xf32>
    %653 = arith.addf %652, %651 : vector<16x32xf32>
    %654 = arith.divf %652, %653 : vector<16x32xf32>
    %655 = vector.extract_strided_slice %646 {offsets = [0, 32], sizes = [16, 32], strides = [1, 1]} : vector<16x64xf32> to vector<16x32xf32>
    %656 = arith.mulf %655, %631 : vector<16x32xf32>
    %657 = vector.extract_strided_slice %646 {offsets = [0, 0], sizes = [16, 32], strides = [1, 1]} : vector<16x64xf32> to vector<16x32xf32>
    %658 = arith.mulf %657, %648 : vector<16x32xf32>
    %659 = arith.addf %656, %658 : vector<16x32xf32>
    %660 = math.tanh %659 : vector<16x32xf32>
    %661 = arith.mulf %654, %660 : vector<16x32xf32>
    %c32_216 = arith.constant 32 : index
    %c0_217 = arith.constant 0 : index
    %662 = vector.load %arg15[%c32_216, %c0_217] : memref<128x256xf32, #tpu.memory_space<vmem>>, vector<8x128xf32>
    %c88_218 = arith.constant 88 : index
    %c128_219 = arith.constant 128 : index
    %663 = vector.load %arg15[%c88_218, %c128_219] : memref<128x256xf32, #tpu.memory_space<vmem>>, vector<8x128xf32>
    %664 = tpu.concatenate %662, %663 in 0 : vector<8x128xf32>, vector<8x128xf32> -> vector<16x128xf32>
    %665 = tpu.concatenate %661, %661 in 1 : vector<16x32xf32>, vector<16x32xf32> -> vector<16x64xf32>
    %666 = arith.mulf %665, %17 : vector<16x64xf32>
    %cst_220 = arith.constant dense<0.000000e+00> : vector<16x128xf32>
    %667 = tpu.matmul %666, %546, %cst_220 {dimension_numbers = #tpu.dot_dimension_numbers<[1], [0], [0], [1], [0, 0, 1, 1], [], []>} : vector<16x64xf32>, vector<64x128xf32>, vector<16x128xf32> -> vector<16x128xf32>
    %668 = arith.addf %664, %667 : vector<16x128xf32>
    %669 = vector.extract_strided_slice %668 {offsets = [0, 0], sizes = [16, 64], strides = [1, 1]} : vector<16x128xf32> to vector<16x64xf32>
    %670 = arith.negf %669 : vector<16x64xf32>
    %671 = math.exp %670 : vector<16x64xf32>
    %cst_221 = arith.constant 1.000000e+00 : f32
    %672 = vector.broadcast %cst_221 : f32 to vector<16x64xf32>
    %673 = arith.addf %672, %671 : vector<16x64xf32>
    %674 = arith.divf %672, %673 : vector<16x64xf32>
    %675 = vector.extract_strided_slice %668 {offsets = [0, 64], sizes = [16, 32], strides = [1, 1]} : vector<16x128xf32> to vector<16x32xf32>
    %676 = math.tanh %675 : vector<16x32xf32>
    %677 = vector.extract_strided_slice %668 {offsets = [0, 96], sizes = [16, 32], strides = [1, 1]} : vector<16x128xf32> to vector<16x32xf32>
    %678 = arith.negf %677 : vector<16x32xf32>
    %679 = math.exp %678 : vector<16x32xf32>
    %cst_222 = arith.constant 1.000000e+00 : f32
    %680 = vector.broadcast %cst_222 : f32 to vector<16x32xf32>
    %681 = arith.addf %680, %679 : vector<16x32xf32>
    %682 = arith.divf %680, %681 : vector<16x32xf32>
    %683 = vector.extract_strided_slice %674 {offsets = [0, 32], sizes = [16, 32], strides = [1, 1]} : vector<16x64xf32> to vector<16x32xf32>
    %684 = arith.mulf %683, %659 : vector<16x32xf32>
    %685 = vector.extract_strided_slice %674 {offsets = [0, 0], sizes = [16, 32], strides = [1, 1]} : vector<16x64xf32> to vector<16x32xf32>
    %686 = arith.mulf %685, %676 : vector<16x32xf32>
    %687 = arith.addf %684, %686 : vector<16x32xf32>
    %688 = math.tanh %687 : vector<16x32xf32>
    %689 = arith.mulf %682, %688 : vector<16x32xf32>
    %c40_223 = arith.constant 40 : index
    %c0_224 = arith.constant 0 : index
    %690 = vector.load %arg15[%c40_223, %c0_224] : memref<128x256xf32, #tpu.memory_space<vmem>>, vector<8x128xf32>
    %c80_225 = arith.constant 80 : index
    %c128_226 = arith.constant 128 : index
    %691 = vector.load %arg15[%c80_225, %c128_226] : memref<128x256xf32, #tpu.memory_space<vmem>>, vector<8x128xf32>
    %692 = tpu.concatenate %690, %691 in 0 : vector<8x128xf32>, vector<8x128xf32> -> vector<16x128xf32>
    %693 = tpu.concatenate %689, %689 in 1 : vector<16x32xf32>, vector<16x32xf32> -> vector<16x64xf32>
    %694 = arith.mulf %693, %17 : vector<16x64xf32>
    %cst_227 = arith.constant dense<0.000000e+00> : vector<16x128xf32>
    %695 = tpu.matmul %694, %546, %cst_227 {dimension_numbers = #tpu.dot_dimension_numbers<[1], [0], [0], [1], [0, 0, 1, 1], [], []>} : vector<16x64xf32>, vector<64x128xf32>, vector<16x128xf32> -> vector<16x128xf32>
    %696 = arith.addf %692, %695 : vector<16x128xf32>
    %697 = vector.extract_strided_slice %696 {offsets = [0, 0], sizes = [16, 64], strides = [1, 1]} : vector<16x128xf32> to vector<16x64xf32>
    %698 = arith.negf %697 : vector<16x64xf32>
    %699 = math.exp %698 : vector<16x64xf32>
    %cst_228 = arith.constant 1.000000e+00 : f32
    %700 = vector.broadcast %cst_228 : f32 to vector<16x64xf32>
    %701 = arith.addf %700, %699 : vector<16x64xf32>
    %702 = arith.divf %700, %701 : vector<16x64xf32>
    %703 = vector.extract_strided_slice %696 {offsets = [0, 64], sizes = [16, 32], strides = [1, 1]} : vector<16x128xf32> to vector<16x32xf32>
    %704 = math.tanh %703 : vector<16x32xf32>
    %705 = vector.extract_strided_slice %696 {offsets = [0, 96], sizes = [16, 32], strides = [1, 1]} : vector<16x128xf32> to vector<16x32xf32>
    %706 = arith.negf %705 : vector<16x32xf32>
    %707 = math.exp %706 : vector<16x32xf32>
    %cst_229 = arith.constant 1.000000e+00 : f32
    %708 = vector.broadcast %cst_229 : f32 to vector<16x32xf32>
    %709 = arith.addf %708, %707 : vector<16x32xf32>
    %710 = arith.divf %708, %709 : vector<16x32xf32>
    %711 = vector.extract_strided_slice %702 {offsets = [0, 32], sizes = [16, 32], strides = [1, 1]} : vector<16x64xf32> to vector<16x32xf32>
    %712 = arith.mulf %711, %687 : vector<16x32xf32>
    %713 = vector.extract_strided_slice %702 {offsets = [0, 0], sizes = [16, 32], strides = [1, 1]} : vector<16x64xf32> to vector<16x32xf32>
    %714 = arith.mulf %713, %704 : vector<16x32xf32>
    %715 = arith.addf %712, %714 : vector<16x32xf32>
    %716 = math.tanh %715 : vector<16x32xf32>
    %717 = arith.mulf %710, %716 : vector<16x32xf32>
    %c48_230 = arith.constant 48 : index
    %c0_231 = arith.constant 0 : index
    %718 = vector.load %arg15[%c48_230, %c0_231] : memref<128x256xf32, #tpu.memory_space<vmem>>, vector<8x128xf32>
    %c72_232 = arith.constant 72 : index
    %c128_233 = arith.constant 128 : index
    %719 = vector.load %arg15[%c72_232, %c128_233] : memref<128x256xf32, #tpu.memory_space<vmem>>, vector<8x128xf32>
    %720 = tpu.concatenate %718, %719 in 0 : vector<8x128xf32>, vector<8x128xf32> -> vector<16x128xf32>
    %721 = tpu.concatenate %717, %717 in 1 : vector<16x32xf32>, vector<16x32xf32> -> vector<16x64xf32>
    %722 = arith.mulf %721, %17 : vector<16x64xf32>
    %cst_234 = arith.constant dense<0.000000e+00> : vector<16x128xf32>
    %723 = tpu.matmul %722, %546, %cst_234 {dimension_numbers = #tpu.dot_dimension_numbers<[1], [0], [0], [1], [0, 0, 1, 1], [], []>} : vector<16x64xf32>, vector<64x128xf32>, vector<16x128xf32> -> vector<16x128xf32>
    %724 = arith.addf %720, %723 : vector<16x128xf32>
    %725 = vector.extract_strided_slice %724 {offsets = [0, 0], sizes = [16, 64], strides = [1, 1]} : vector<16x128xf32> to vector<16x64xf32>
    %726 = arith.negf %725 : vector<16x64xf32>
    %727 = math.exp %726 : vector<16x64xf32>
    %cst_235 = arith.constant 1.000000e+00 : f32
    %728 = vector.broadcast %cst_235 : f32 to vector<16x64xf32>
    %729 = arith.addf %728, %727 : vector<16x64xf32>
    %730 = arith.divf %728, %729 : vector<16x64xf32>
    %731 = vector.extract_strided_slice %724 {offsets = [0, 64], sizes = [16, 32], strides = [1, 1]} : vector<16x128xf32> to vector<16x32xf32>
    %732 = math.tanh %731 : vector<16x32xf32>
    %733 = vector.extract_strided_slice %724 {offsets = [0, 96], sizes = [16, 32], strides = [1, 1]} : vector<16x128xf32> to vector<16x32xf32>
    %734 = arith.negf %733 : vector<16x32xf32>
    %735 = math.exp %734 : vector<16x32xf32>
    %cst_236 = arith.constant 1.000000e+00 : f32
    %736 = vector.broadcast %cst_236 : f32 to vector<16x32xf32>
    %737 = arith.addf %736, %735 : vector<16x32xf32>
    %738 = arith.divf %736, %737 : vector<16x32xf32>
    %739 = vector.extract_strided_slice %730 {offsets = [0, 32], sizes = [16, 32], strides = [1, 1]} : vector<16x64xf32> to vector<16x32xf32>
    %740 = arith.mulf %739, %715 : vector<16x32xf32>
    %741 = vector.extract_strided_slice %730 {offsets = [0, 0], sizes = [16, 32], strides = [1, 1]} : vector<16x64xf32> to vector<16x32xf32>
    %742 = arith.mulf %741, %732 : vector<16x32xf32>
    %743 = arith.addf %740, %742 : vector<16x32xf32>
    %744 = math.tanh %743 : vector<16x32xf32>
    %745 = arith.mulf %738, %744 : vector<16x32xf32>
    %c56_237 = arith.constant 56 : index
    %c0_238 = arith.constant 0 : index
    %746 = vector.load %arg15[%c56_237, %c0_238] : memref<128x256xf32, #tpu.memory_space<vmem>>, vector<8x128xf32>
    %c64_239 = arith.constant 64 : index
    %c128_240 = arith.constant 128 : index
    %747 = vector.load %arg15[%c64_239, %c128_240] : memref<128x256xf32, #tpu.memory_space<vmem>>, vector<8x128xf32>
    %748 = tpu.concatenate %746, %747 in 0 : vector<8x128xf32>, vector<8x128xf32> -> vector<16x128xf32>
    %749 = tpu.concatenate %745, %745 in 1 : vector<16x32xf32>, vector<16x32xf32> -> vector<16x64xf32>
    %750 = arith.mulf %749, %17 : vector<16x64xf32>
    %cst_241 = arith.constant dense<0.000000e+00> : vector<16x128xf32>
    %751 = tpu.matmul %750, %546, %cst_241 {dimension_numbers = #tpu.dot_dimension_numbers<[1], [0], [0], [1], [0, 0, 1, 1], [], []>} : vector<16x64xf32>, vector<64x128xf32>, vector<16x128xf32> -> vector<16x128xf32>
    %752 = arith.addf %748, %751 : vector<16x128xf32>
    %753 = vector.extract_strided_slice %752 {offsets = [0, 0], sizes = [16, 64], strides = [1, 1]} : vector<16x128xf32> to vector<16x64xf32>
    %754 = arith.negf %753 : vector<16x64xf32>
    %755 = math.exp %754 : vector<16x64xf32>
    %cst_242 = arith.constant 1.000000e+00 : f32
    %756 = vector.broadcast %cst_242 : f32 to vector<16x64xf32>
    %757 = arith.addf %756, %755 : vector<16x64xf32>
    %758 = arith.divf %756, %757 : vector<16x64xf32>
    %759 = vector.extract_strided_slice %752 {offsets = [0, 64], sizes = [16, 32], strides = [1, 1]} : vector<16x128xf32> to vector<16x32xf32>
    %760 = math.tanh %759 : vector<16x32xf32>
    %761 = vector.extract_strided_slice %752 {offsets = [0, 96], sizes = [16, 32], strides = [1, 1]} : vector<16x128xf32> to vector<16x32xf32>
    %762 = arith.negf %761 : vector<16x32xf32>
    %763 = math.exp %762 : vector<16x32xf32>
    %cst_243 = arith.constant 1.000000e+00 : f32
    %764 = vector.broadcast %cst_243 : f32 to vector<16x32xf32>
    %765 = arith.addf %764, %763 : vector<16x32xf32>
    %766 = arith.divf %764, %765 : vector<16x32xf32>
    %767 = vector.extract_strided_slice %758 {offsets = [0, 32], sizes = [16, 32], strides = [1, 1]} : vector<16x64xf32> to vector<16x32xf32>
    %768 = arith.mulf %767, %743 : vector<16x32xf32>
    %769 = vector.extract_strided_slice %758 {offsets = [0, 0], sizes = [16, 32], strides = [1, 1]} : vector<16x64xf32> to vector<16x32xf32>
    %770 = arith.mulf %769, %760 : vector<16x32xf32>
    %771 = arith.addf %768, %770 : vector<16x32xf32>
    %772 = math.tanh %771 : vector<16x32xf32>
    %773 = arith.mulf %766, %772 : vector<16x32xf32>
    %c64_244 = arith.constant 64 : index
    %c0_245 = arith.constant 0 : index
    %774 = vector.load %arg15[%c64_244, %c0_245] : memref<128x256xf32, #tpu.memory_space<vmem>>, vector<8x128xf32>
    %c56_246 = arith.constant 56 : index
    %c128_247 = arith.constant 128 : index
    %775 = vector.load %arg15[%c56_246, %c128_247] : memref<128x256xf32, #tpu.memory_space<vmem>>, vector<8x128xf32>
    %776 = tpu.concatenate %774, %775 in 0 : vector<8x128xf32>, vector<8x128xf32> -> vector<16x128xf32>
    %777 = tpu.concatenate %773, %773 in 1 : vector<16x32xf32>, vector<16x32xf32> -> vector<16x64xf32>
    %778 = arith.mulf %777, %17 : vector<16x64xf32>
    %cst_248 = arith.constant dense<0.000000e+00> : vector<16x128xf32>
    %779 = tpu.matmul %778, %546, %cst_248 {dimension_numbers = #tpu.dot_dimension_numbers<[1], [0], [0], [1], [0, 0, 1, 1], [], []>} : vector<16x64xf32>, vector<64x128xf32>, vector<16x128xf32> -> vector<16x128xf32>
    %780 = arith.addf %776, %779 : vector<16x128xf32>
    %781 = vector.extract_strided_slice %780 {offsets = [0, 0], sizes = [16, 64], strides = [1, 1]} : vector<16x128xf32> to vector<16x64xf32>
    %782 = arith.negf %781 : vector<16x64xf32>
    %783 = math.exp %782 : vector<16x64xf32>
    %cst_249 = arith.constant 1.000000e+00 : f32
    %784 = vector.broadcast %cst_249 : f32 to vector<16x64xf32>
    %785 = arith.addf %784, %783 : vector<16x64xf32>
    %786 = arith.divf %784, %785 : vector<16x64xf32>
    %787 = vector.extract_strided_slice %780 {offsets = [0, 64], sizes = [16, 32], strides = [1, 1]} : vector<16x128xf32> to vector<16x32xf32>
    %788 = math.tanh %787 : vector<16x32xf32>
    %789 = vector.extract_strided_slice %780 {offsets = [0, 96], sizes = [16, 32], strides = [1, 1]} : vector<16x128xf32> to vector<16x32xf32>
    %790 = arith.negf %789 : vector<16x32xf32>
    %791 = math.exp %790 : vector<16x32xf32>
    %cst_250 = arith.constant 1.000000e+00 : f32
    %792 = vector.broadcast %cst_250 : f32 to vector<16x32xf32>
    %793 = arith.addf %792, %791 : vector<16x32xf32>
    %794 = arith.divf %792, %793 : vector<16x32xf32>
    %795 = vector.extract_strided_slice %786 {offsets = [0, 32], sizes = [16, 32], strides = [1, 1]} : vector<16x64xf32> to vector<16x32xf32>
    %796 = arith.mulf %795, %771 : vector<16x32xf32>
    %797 = vector.extract_strided_slice %786 {offsets = [0, 0], sizes = [16, 32], strides = [1, 1]} : vector<16x64xf32> to vector<16x32xf32>
    %798 = arith.mulf %797, %788 : vector<16x32xf32>
    %799 = arith.addf %796, %798 : vector<16x32xf32>
    %800 = math.tanh %799 : vector<16x32xf32>
    %801 = arith.mulf %794, %800 : vector<16x32xf32>
    %c72_251 = arith.constant 72 : index
    %c0_252 = arith.constant 0 : index
    %802 = vector.load %arg15[%c72_251, %c0_252] : memref<128x256xf32, #tpu.memory_space<vmem>>, vector<8x128xf32>
    %c48_253 = arith.constant 48 : index
    %c128_254 = arith.constant 128 : index
    %803 = vector.load %arg15[%c48_253, %c128_254] : memref<128x256xf32, #tpu.memory_space<vmem>>, vector<8x128xf32>
    %804 = tpu.concatenate %802, %803 in 0 : vector<8x128xf32>, vector<8x128xf32> -> vector<16x128xf32>
    %805 = tpu.concatenate %801, %801 in 1 : vector<16x32xf32>, vector<16x32xf32> -> vector<16x64xf32>
    %806 = arith.mulf %805, %17 : vector<16x64xf32>
    %cst_255 = arith.constant dense<0.000000e+00> : vector<16x128xf32>
    %807 = tpu.matmul %806, %546, %cst_255 {dimension_numbers = #tpu.dot_dimension_numbers<[1], [0], [0], [1], [0, 0, 1, 1], [], []>} : vector<16x64xf32>, vector<64x128xf32>, vector<16x128xf32> -> vector<16x128xf32>
    %808 = arith.addf %804, %807 : vector<16x128xf32>
    %809 = vector.extract_strided_slice %808 {offsets = [0, 0], sizes = [16, 64], strides = [1, 1]} : vector<16x128xf32> to vector<16x64xf32>
    %810 = arith.negf %809 : vector<16x64xf32>
    %811 = math.exp %810 : vector<16x64xf32>
    %cst_256 = arith.constant 1.000000e+00 : f32
    %812 = vector.broadcast %cst_256 : f32 to vector<16x64xf32>
    %813 = arith.addf %812, %811 : vector<16x64xf32>
    %814 = arith.divf %812, %813 : vector<16x64xf32>
    %815 = vector.extract_strided_slice %808 {offsets = [0, 64], sizes = [16, 32], strides = [1, 1]} : vector<16x128xf32> to vector<16x32xf32>
    %816 = math.tanh %815 : vector<16x32xf32>
    %817 = vector.extract_strided_slice %808 {offsets = [0, 96], sizes = [16, 32], strides = [1, 1]} : vector<16x128xf32> to vector<16x32xf32>
    %818 = arith.negf %817 : vector<16x32xf32>
    %819 = math.exp %818 : vector<16x32xf32>
    %cst_257 = arith.constant 1.000000e+00 : f32
    %820 = vector.broadcast %cst_257 : f32 to vector<16x32xf32>
    %821 = arith.addf %820, %819 : vector<16x32xf32>
    %822 = arith.divf %820, %821 : vector<16x32xf32>
    %823 = vector.extract_strided_slice %814 {offsets = [0, 32], sizes = [16, 32], strides = [1, 1]} : vector<16x64xf32> to vector<16x32xf32>
    %824 = arith.mulf %823, %799 : vector<16x32xf32>
    %825 = vector.extract_strided_slice %814 {offsets = [0, 0], sizes = [16, 32], strides = [1, 1]} : vector<16x64xf32> to vector<16x32xf32>
    %826 = arith.mulf %825, %816 : vector<16x32xf32>
    %827 = arith.addf %824, %826 : vector<16x32xf32>
    %828 = math.tanh %827 : vector<16x32xf32>
    %829 = arith.mulf %822, %828 : vector<16x32xf32>
    %c80_258 = arith.constant 80 : index
    %c0_259 = arith.constant 0 : index
    %830 = vector.load %arg15[%c80_258, %c0_259] : memref<128x256xf32, #tpu.memory_space<vmem>>, vector<8x128xf32>
    %c40_260 = arith.constant 40 : index
    %c128_261 = arith.constant 128 : index
    %831 = vector.load %arg15[%c40_260, %c128_261] : memref<128x256xf32, #tpu.memory_space<vmem>>, vector<8x128xf32>
    %832 = tpu.concatenate %830, %831 in 0 : vector<8x128xf32>, vector<8x128xf32> -> vector<16x128xf32>
    %833 = tpu.concatenate %829, %829 in 1 : vector<16x32xf32>, vector<16x32xf32> -> vector<16x64xf32>
    %834 = arith.mulf %833, %17 : vector<16x64xf32>
    %cst_262 = arith.constant dense<0.000000e+00> : vector<16x128xf32>
    %835 = tpu.matmul %834, %546, %cst_262 {dimension_numbers = #tpu.dot_dimension_numbers<[1], [0], [0], [1], [0, 0, 1, 1], [], []>} : vector<16x64xf32>, vector<64x128xf32>, vector<16x128xf32> -> vector<16x128xf32>
    %836 = arith.addf %832, %835 : vector<16x128xf32>
    %837 = vector.extract_strided_slice %836 {offsets = [0, 0], sizes = [16, 64], strides = [1, 1]} : vector<16x128xf32> to vector<16x64xf32>
    %838 = arith.negf %837 : vector<16x64xf32>
    %839 = math.exp %838 : vector<16x64xf32>
    %cst_263 = arith.constant 1.000000e+00 : f32
    %840 = vector.broadcast %cst_263 : f32 to vector<16x64xf32>
    %841 = arith.addf %840, %839 : vector<16x64xf32>
    %842 = arith.divf %840, %841 : vector<16x64xf32>
    %843 = vector.extract_strided_slice %836 {offsets = [0, 64], sizes = [16, 32], strides = [1, 1]} : vector<16x128xf32> to vector<16x32xf32>
    %844 = math.tanh %843 : vector<16x32xf32>
    %845 = vector.extract_strided_slice %836 {offsets = [0, 96], sizes = [16, 32], strides = [1, 1]} : vector<16x128xf32> to vector<16x32xf32>
    %846 = arith.negf %845 : vector<16x32xf32>
    %847 = math.exp %846 : vector<16x32xf32>
    %cst_264 = arith.constant 1.000000e+00 : f32
    %848 = vector.broadcast %cst_264 : f32 to vector<16x32xf32>
    %849 = arith.addf %848, %847 : vector<16x32xf32>
    %850 = arith.divf %848, %849 : vector<16x32xf32>
    %851 = vector.extract_strided_slice %842 {offsets = [0, 32], sizes = [16, 32], strides = [1, 1]} : vector<16x64xf32> to vector<16x32xf32>
    %852 = arith.mulf %851, %827 : vector<16x32xf32>
    %853 = vector.extract_strided_slice %842 {offsets = [0, 0], sizes = [16, 32], strides = [1, 1]} : vector<16x64xf32> to vector<16x32xf32>
    %854 = arith.mulf %853, %844 : vector<16x32xf32>
    %855 = arith.addf %852, %854 : vector<16x32xf32>
    %856 = math.tanh %855 : vector<16x32xf32>
    %857 = arith.mulf %850, %856 : vector<16x32xf32>
    %c88_265 = arith.constant 88 : index
    %c0_266 = arith.constant 0 : index
    %858 = vector.load %arg15[%c88_265, %c0_266] : memref<128x256xf32, #tpu.memory_space<vmem>>, vector<8x128xf32>
    %c32_267 = arith.constant 32 : index
    %c128_268 = arith.constant 128 : index
    %859 = vector.load %arg15[%c32_267, %c128_268] : memref<128x256xf32, #tpu.memory_space<vmem>>, vector<8x128xf32>
    %860 = tpu.concatenate %858, %859 in 0 : vector<8x128xf32>, vector<8x128xf32> -> vector<16x128xf32>
    %861 = tpu.concatenate %857, %857 in 1 : vector<16x32xf32>, vector<16x32xf32> -> vector<16x64xf32>
    %862 = arith.mulf %861, %17 : vector<16x64xf32>
    %cst_269 = arith.constant dense<0.000000e+00> : vector<16x128xf32>
    %863 = tpu.matmul %862, %546, %cst_269 {dimension_numbers = #tpu.dot_dimension_numbers<[1], [0], [0], [1], [0, 0, 1, 1], [], []>} : vector<16x64xf32>, vector<64x128xf32>, vector<16x128xf32> -> vector<16x128xf32>
    %864 = arith.addf %860, %863 : vector<16x128xf32>
    %865 = vector.extract_strided_slice %864 {offsets = [0, 0], sizes = [16, 64], strides = [1, 1]} : vector<16x128xf32> to vector<16x64xf32>
    %866 = arith.negf %865 : vector<16x64xf32>
    %867 = math.exp %866 : vector<16x64xf32>
    %cst_270 = arith.constant 1.000000e+00 : f32
    %868 = vector.broadcast %cst_270 : f32 to vector<16x64xf32>
    %869 = arith.addf %868, %867 : vector<16x64xf32>
    %870 = arith.divf %868, %869 : vector<16x64xf32>
    %871 = vector.extract_strided_slice %864 {offsets = [0, 64], sizes = [16, 32], strides = [1, 1]} : vector<16x128xf32> to vector<16x32xf32>
    %872 = math.tanh %871 : vector<16x32xf32>
    %873 = vector.extract_strided_slice %864 {offsets = [0, 96], sizes = [16, 32], strides = [1, 1]} : vector<16x128xf32> to vector<16x32xf32>
    %874 = arith.negf %873 : vector<16x32xf32>
    %875 = math.exp %874 : vector<16x32xf32>
    %cst_271 = arith.constant 1.000000e+00 : f32
    %876 = vector.broadcast %cst_271 : f32 to vector<16x32xf32>
    %877 = arith.addf %876, %875 : vector<16x32xf32>
    %878 = arith.divf %876, %877 : vector<16x32xf32>
    %879 = vector.extract_strided_slice %870 {offsets = [0, 32], sizes = [16, 32], strides = [1, 1]} : vector<16x64xf32> to vector<16x32xf32>
    %880 = arith.mulf %879, %855 : vector<16x32xf32>
    %881 = vector.extract_strided_slice %870 {offsets = [0, 0], sizes = [16, 32], strides = [1, 1]} : vector<16x64xf32> to vector<16x32xf32>
    %882 = arith.mulf %881, %872 : vector<16x32xf32>
    %883 = arith.addf %880, %882 : vector<16x32xf32>
    %884 = math.tanh %883 : vector<16x32xf32>
    %885 = arith.mulf %878, %884 : vector<16x32xf32>
    %c96_272 = arith.constant 96 : index
    %c0_273 = arith.constant 0 : index
    %886 = vector.load %arg15[%c96_272, %c0_273] : memref<128x256xf32, #tpu.memory_space<vmem>>, vector<8x128xf32>
    %c24_274 = arith.constant 24 : index
    %c128_275 = arith.constant 128 : index
    %887 = vector.load %arg15[%c24_274, %c128_275] : memref<128x256xf32, #tpu.memory_space<vmem>>, vector<8x128xf32>
    %888 = tpu.concatenate %886, %887 in 0 : vector<8x128xf32>, vector<8x128xf32> -> vector<16x128xf32>
    %889 = tpu.concatenate %885, %885 in 1 : vector<16x32xf32>, vector<16x32xf32> -> vector<16x64xf32>
    %890 = arith.mulf %889, %17 : vector<16x64xf32>
    %cst_276 = arith.constant dense<0.000000e+00> : vector<16x128xf32>
    %891 = tpu.matmul %890, %546, %cst_276 {dimension_numbers = #tpu.dot_dimension_numbers<[1], [0], [0], [1], [0, 0, 1, 1], [], []>} : vector<16x64xf32>, vector<64x128xf32>, vector<16x128xf32> -> vector<16x128xf32>
    %892 = arith.addf %888, %891 : vector<16x128xf32>
    %893 = vector.extract_strided_slice %892 {offsets = [0, 0], sizes = [16, 64], strides = [1, 1]} : vector<16x128xf32> to vector<16x64xf32>
    %894 = arith.negf %893 : vector<16x64xf32>
    %895 = math.exp %894 : vector<16x64xf32>
    %cst_277 = arith.constant 1.000000e+00 : f32
    %896 = vector.broadcast %cst_277 : f32 to vector<16x64xf32>
    %897 = arith.addf %896, %895 : vector<16x64xf32>
    %898 = arith.divf %896, %897 : vector<16x64xf32>
    %899 = vector.extract_strided_slice %892 {offsets = [0, 64], sizes = [16, 32], strides = [1, 1]} : vector<16x128xf32> to vector<16x32xf32>
    %900 = math.tanh %899 : vector<16x32xf32>
    %901 = vector.extract_strided_slice %892 {offsets = [0, 96], sizes = [16, 32], strides = [1, 1]} : vector<16x128xf32> to vector<16x32xf32>
    %902 = arith.negf %901 : vector<16x32xf32>
    %903 = math.exp %902 : vector<16x32xf32>
    %cst_278 = arith.constant 1.000000e+00 : f32
    %904 = vector.broadcast %cst_278 : f32 to vector<16x32xf32>
    %905 = arith.addf %904, %903 : vector<16x32xf32>
    %906 = arith.divf %904, %905 : vector<16x32xf32>
    %907 = vector.extract_strided_slice %898 {offsets = [0, 32], sizes = [16, 32], strides = [1, 1]} : vector<16x64xf32> to vector<16x32xf32>
    %908 = arith.mulf %907, %883 : vector<16x32xf32>
    %909 = vector.extract_strided_slice %898 {offsets = [0, 0], sizes = [16, 32], strides = [1, 1]} : vector<16x64xf32> to vector<16x32xf32>
    %910 = arith.mulf %909, %900 : vector<16x32xf32>
    %911 = arith.addf %908, %910 : vector<16x32xf32>
    %912 = math.tanh %911 : vector<16x32xf32>
    %913 = arith.mulf %906, %912 : vector<16x32xf32>
    %c104_279 = arith.constant 104 : index
    %c0_280 = arith.constant 0 : index
    %914 = vector.load %arg15[%c104_279, %c0_280] : memref<128x256xf32, #tpu.memory_space<vmem>>, vector<8x128xf32>
    %c16_281 = arith.constant 16 : index
    %c128_282 = arith.constant 128 : index
    %915 = vector.load %arg15[%c16_281, %c128_282] : memref<128x256xf32, #tpu.memory_space<vmem>>, vector<8x128xf32>
    %916 = tpu.concatenate %914, %915 in 0 : vector<8x128xf32>, vector<8x128xf32> -> vector<16x128xf32>
    %917 = tpu.concatenate %913, %913 in 1 : vector<16x32xf32>, vector<16x32xf32> -> vector<16x64xf32>
    %918 = arith.mulf %917, %17 : vector<16x64xf32>
    %cst_283 = arith.constant dense<0.000000e+00> : vector<16x128xf32>
    %919 = tpu.matmul %918, %546, %cst_283 {dimension_numbers = #tpu.dot_dimension_numbers<[1], [0], [0], [1], [0, 0, 1, 1], [], []>} : vector<16x64xf32>, vector<64x128xf32>, vector<16x128xf32> -> vector<16x128xf32>
    %920 = arith.addf %916, %919 : vector<16x128xf32>
    %921 = vector.extract_strided_slice %920 {offsets = [0, 0], sizes = [16, 64], strides = [1, 1]} : vector<16x128xf32> to vector<16x64xf32>
    %922 = arith.negf %921 : vector<16x64xf32>
    %923 = math.exp %922 : vector<16x64xf32>
    %cst_284 = arith.constant 1.000000e+00 : f32
    %924 = vector.broadcast %cst_284 : f32 to vector<16x64xf32>
    %925 = arith.addf %924, %923 : vector<16x64xf32>
    %926 = arith.divf %924, %925 : vector<16x64xf32>
    %927 = vector.extract_strided_slice %920 {offsets = [0, 64], sizes = [16, 32], strides = [1, 1]} : vector<16x128xf32> to vector<16x32xf32>
    %928 = math.tanh %927 : vector<16x32xf32>
    %929 = vector.extract_strided_slice %920 {offsets = [0, 96], sizes = [16, 32], strides = [1, 1]} : vector<16x128xf32> to vector<16x32xf32>
    %930 = arith.negf %929 : vector<16x32xf32>
    %931 = math.exp %930 : vector<16x32xf32>
    %cst_285 = arith.constant 1.000000e+00 : f32
    %932 = vector.broadcast %cst_285 : f32 to vector<16x32xf32>
    %933 = arith.addf %932, %931 : vector<16x32xf32>
    %934 = arith.divf %932, %933 : vector<16x32xf32>
    %935 = vector.extract_strided_slice %926 {offsets = [0, 32], sizes = [16, 32], strides = [1, 1]} : vector<16x64xf32> to vector<16x32xf32>
    %936 = arith.mulf %935, %911 : vector<16x32xf32>
    %937 = vector.extract_strided_slice %926 {offsets = [0, 0], sizes = [16, 32], strides = [1, 1]} : vector<16x64xf32> to vector<16x32xf32>
    %938 = arith.mulf %937, %928 : vector<16x32xf32>
    %939 = arith.addf %936, %938 : vector<16x32xf32>
    %940 = math.tanh %939 : vector<16x32xf32>
    %941 = arith.mulf %934, %940 : vector<16x32xf32>
    %c112_286 = arith.constant 112 : index
    %c0_287 = arith.constant 0 : index
    %942 = vector.load %arg15[%c112_286, %c0_287] : memref<128x256xf32, #tpu.memory_space<vmem>>, vector<8x128xf32>
    %c8_288 = arith.constant 8 : index
    %c128_289 = arith.constant 128 : index
    %943 = vector.load %arg15[%c8_288, %c128_289] : memref<128x256xf32, #tpu.memory_space<vmem>>, vector<8x128xf32>
    %944 = tpu.concatenate %942, %943 in 0 : vector<8x128xf32>, vector<8x128xf32> -> vector<16x128xf32>
    %945 = tpu.concatenate %941, %941 in 1 : vector<16x32xf32>, vector<16x32xf32> -> vector<16x64xf32>
    %946 = arith.mulf %945, %17 : vector<16x64xf32>
    %cst_290 = arith.constant dense<0.000000e+00> : vector<16x128xf32>
    %947 = tpu.matmul %946, %546, %cst_290 {dimension_numbers = #tpu.dot_dimension_numbers<[1], [0], [0], [1], [0, 0, 1, 1], [], []>} : vector<16x64xf32>, vector<64x128xf32>, vector<16x128xf32> -> vector<16x128xf32>
    %948 = arith.addf %944, %947 : vector<16x128xf32>
    %949 = vector.extract_strided_slice %948 {offsets = [0, 0], sizes = [16, 64], strides = [1, 1]} : vector<16x128xf32> to vector<16x64xf32>
    %950 = arith.negf %949 : vector<16x64xf32>
    %951 = math.exp %950 : vector<16x64xf32>
    %cst_291 = arith.constant 1.000000e+00 : f32
    %952 = vector.broadcast %cst_291 : f32 to vector<16x64xf32>
    %953 = arith.addf %952, %951 : vector<16x64xf32>
    %954 = arith.divf %952, %953 : vector<16x64xf32>
    %955 = vector.extract_strided_slice %948 {offsets = [0, 64], sizes = [16, 32], strides = [1, 1]} : vector<16x128xf32> to vector<16x32xf32>
    %956 = math.tanh %955 : vector<16x32xf32>
    %957 = vector.extract_strided_slice %948 {offsets = [0, 96], sizes = [16, 32], strides = [1, 1]} : vector<16x128xf32> to vector<16x32xf32>
    %958 = arith.negf %957 : vector<16x32xf32>
    %959 = math.exp %958 : vector<16x32xf32>
    %cst_292 = arith.constant 1.000000e+00 : f32
    %960 = vector.broadcast %cst_292 : f32 to vector<16x32xf32>
    %961 = arith.addf %960, %959 : vector<16x32xf32>
    %962 = arith.divf %960, %961 : vector<16x32xf32>
    %963 = vector.extract_strided_slice %954 {offsets = [0, 32], sizes = [16, 32], strides = [1, 1]} : vector<16x64xf32> to vector<16x32xf32>
    %964 = arith.mulf %963, %939 : vector<16x32xf32>
    %965 = vector.extract_strided_slice %954 {offsets = [0, 0], sizes = [16, 32], strides = [1, 1]} : vector<16x64xf32> to vector<16x32xf32>
    %966 = arith.mulf %965, %956 : vector<16x32xf32>
    %967 = arith.addf %964, %966 : vector<16x32xf32>
    %968 = math.tanh %967 : vector<16x32xf32>
    %969 = arith.mulf %962, %968 : vector<16x32xf32>
    %c120_293 = arith.constant 120 : index
    %c0_294 = arith.constant 0 : index
    %970 = vector.load %arg15[%c120_293, %c0_294] : memref<128x256xf32, #tpu.memory_space<vmem>>, vector<8x128xf32>
    %c0_295 = arith.constant 0 : index
    %c128_296 = arith.constant 128 : index
    %971 = vector.load %arg15[%c0_295, %c128_296] : memref<128x256xf32, #tpu.memory_space<vmem>>, vector<8x128xf32>
    %972 = tpu.concatenate %970, %971 in 0 : vector<8x128xf32>, vector<8x128xf32> -> vector<16x128xf32>
    %973 = tpu.concatenate %969, %969 in 1 : vector<16x32xf32>, vector<16x32xf32> -> vector<16x64xf32>
    %974 = arith.mulf %973, %17 : vector<16x64xf32>
    %cst_297 = arith.constant dense<0.000000e+00> : vector<16x128xf32>
    %975 = tpu.matmul %974, %546, %cst_297 {dimension_numbers = #tpu.dot_dimension_numbers<[1], [0], [0], [1], [0, 0, 1, 1], [], []>} : vector<16x64xf32>, vector<64x128xf32>, vector<16x128xf32> -> vector<16x128xf32>
    %976 = arith.addf %972, %975 : vector<16x128xf32>
    %977 = vector.extract_strided_slice %976 {offsets = [0, 0], sizes = [16, 64], strides = [1, 1]} : vector<16x128xf32> to vector<16x64xf32>
    %978 = arith.negf %977 : vector<16x64xf32>
    %979 = math.exp %978 : vector<16x64xf32>
    %cst_298 = arith.constant 1.000000e+00 : f32
    %980 = vector.broadcast %cst_298 : f32 to vector<16x64xf32>
    %981 = arith.addf %980, %979 : vector<16x64xf32>
    %982 = arith.divf %980, %981 : vector<16x64xf32>
    %983 = vector.extract_strided_slice %976 {offsets = [0, 64], sizes = [16, 32], strides = [1, 1]} : vector<16x128xf32> to vector<16x32xf32>
    %984 = math.tanh %983 : vector<16x32xf32>
    %985 = vector.extract_strided_slice %976 {offsets = [0, 96], sizes = [16, 32], strides = [1, 1]} : vector<16x128xf32> to vector<16x32xf32>
    %986 = arith.negf %985 : vector<16x32xf32>
    %987 = math.exp %986 : vector<16x32xf32>
    %cst_299 = arith.constant 1.000000e+00 : f32
    %988 = vector.broadcast %cst_299 : f32 to vector<16x32xf32>
    %989 = arith.addf %988, %987 : vector<16x32xf32>
    %990 = arith.divf %988, %989 : vector<16x32xf32>
    %991 = vector.extract_strided_slice %982 {offsets = [0, 32], sizes = [16, 32], strides = [1, 1]} : vector<16x64xf32> to vector<16x32xf32>
    %992 = arith.mulf %991, %967 : vector<16x32xf32>
    %993 = vector.extract_strided_slice %982 {offsets = [0, 0], sizes = [16, 32], strides = [1, 1]} : vector<16x64xf32> to vector<16x32xf32>
    %994 = arith.mulf %993, %984 : vector<16x32xf32>
    %995 = arith.addf %992, %994 : vector<16x32xf32>
    %996 = math.tanh %995 : vector<16x32xf32>
    %997 = arith.mulf %990, %996 : vector<16x32xf32>
    %998 = vector.extract_strided_slice %997 {offsets = [0, 0], sizes = [8, 32], strides = [1, 1]} : vector<16x32xf32> to vector<8x32xf32>
    %999 = tpu.concatenate %998, %577 in 1 : vector<8x32xf32>, vector<8x32xf32> -> vector<8x64xf32>
    %c0_300 = arith.constant 0 : index
    %c0_301 = arith.constant 0 : index
    %1000 = vector.load %arg8[%c0_300, %c0_301] : memref<1x64xf32, #tpu.memory_space<vmem>>, vector<1x64xf32>
    %1001 = vector.broadcast %1000 : vector<1x64xf32> to vector<8x64xf32>
    %1002 = arith.mulf %999, %1001 : vector<8x64xf32>
    %c0_302 = arith.constant 0 : index
    %c0_303 = arith.constant 0 : index
    %1003 = vector.load %arg9[%c0_302, %c0_303] : memref<1x64xf32, #tpu.memory_space<vmem>>, vector<1x64xf32>
    %1004 = vector.broadcast %1003 : vector<1x64xf32> to vector<8x64xf32>
    %1005 = arith.addf %1002, %1004 : vector<8x64xf32>
    %cst_304 = arith.constant dense<0.000000e+00> : vector<8xf32>
    %1006 = vector.multi_reduction <add>, %1005, %cst_304 [1] : vector<8x64xf32> to vector<8xf32>
    %1007 = vector.shape_cast %1006 : vector<8xf32> to vector<8x1xf32>
    %cst_305 = arith.constant 6.400000e+01 : f32
    %1008 = vector.broadcast %cst_305 : f32 to vector<8x1xf32>
    %1009 = arith.divf %1007, %1008 : vector<8x1xf32>
    %1010 = vector.broadcast %1009 : vector<8x1xf32> to vector<8x64xf32>
    %1011 = arith.subf %1005, %1010 : vector<8x64xf32>
    %1012 = arith.mulf %1011, %1011 : vector<8x64xf32>
    %cst_306 = arith.constant dense<0.000000e+00> : vector<8xf32>
    %1013 = vector.multi_reduction <add>, %1012, %cst_306 [1] : vector<8x64xf32> to vector<8xf32>
    %1014 = vector.shape_cast %1013 : vector<8xf32> to vector<8x1xf32>
    %cst_307 = arith.constant 6.400000e+01 : f32
    %1015 = vector.broadcast %cst_307 : f32 to vector<8x1xf32>
    %1016 = arith.divf %1014, %1015 : vector<8x1xf32>
    %1017 = vector.broadcast %1009 : vector<8x1xf32> to vector<8x64xf32>
    %1018 = arith.subf %1005, %1017 : vector<8x64xf32>
    %cst_308 = arith.constant 9.99999974E-6 : f32
    %1019 = vector.broadcast %cst_308 : f32 to vector<8x1xf32>
    %1020 = arith.addf %1016, %1019 : vector<8x1xf32>
    %1021 = math.rsqrt %1020 : vector<8x1xf32>
    %1022 = vector.broadcast %1021 : vector<8x1xf32> to vector<8x64xf32>
    %1023 = arith.mulf %1018, %1022 : vector<8x64xf32>
    %c0_309 = arith.constant 0 : index
    %c0_310 = arith.constant 0 : index
    %1024 = vector.load %arg10[%c0_309, %c0_310] : memref<1x64xf32, #tpu.memory_space<vmem>>, vector<1x64xf32>
    %1025 = vector.broadcast %1024 : vector<1x64xf32> to vector<8x64xf32>
    %1026 = arith.mulf %1023, %1025 : vector<8x64xf32>
    %c0_311 = arith.constant 0 : index
    %c0_312 = arith.constant 0 : index
    %1027 = vector.load %arg11[%c0_311, %c0_312] : memref<1x64xf32, #tpu.memory_space<vmem>>, vector<1x64xf32>
    %1028 = vector.broadcast %1027 : vector<1x64xf32> to vector<8x64xf32>
    %1029 = arith.addf %1026, %1028 : vector<8x64xf32>
    %c0_313 = arith.constant 0 : index
    %c0_314 = arith.constant 0 : index
    %1030 = vector.load %arg12[%c0_313, %c0_314] : memref<64x10xf32, #tpu.memory_space<vmem>>, vector<64x10xf32>
    %cst_315 = arith.constant dense<0.000000e+00> : vector<8x10xf32>
    %1031 = tpu.matmul %1029, %1030, %cst_315 {dimension_numbers = #tpu.dot_dimension_numbers<[1], [0], [0], [1], [0, 0, 1, 1], [], []>} : vector<8x64xf32>, vector<64x10xf32>, vector<8x10xf32> -> vector<8x10xf32>
    %c0_316 = arith.constant 0 : index
    %c0_317 = arith.constant 0 : index
    %1032 = vector.load %arg13[%c0_316, %c0_317] : memref<1x10xf32, #tpu.memory_space<vmem>>, vector<1x10xf32>
    %1033 = vector.broadcast %1032 : vector<1x10xf32> to vector<8x10xf32>
    %1034 = arith.addf %1031, %1033 : vector<8x10xf32>
    %c0_318 = arith.constant 0 : index
    %c0_319 = arith.constant 0 : index
    %1035 = vector.load %arg14[%c0_318, %c0_319] : memref<8x10xf32, #tpu.memory_space<vmem>>, vector<8x10xf32>
    tpu.vector_store %arg14[%c0_318, %c0_319], %1034 {strides = array<i32>} : memref<8x10xf32, #tpu.memory_space<vmem>>, vector<8x10xf32>,
    return
  }
}

</mosaic_0001>

<llo_original>
// kernel: description_writer_forward.1
$region0: #{description_writer_forward.1}
  #allocation0 [shape = 'u32[]', space=smem, size = 0x4, offset = 0x4, fixed_abs, tag = 'smem constant byte address 0x4 - core index']
  #allocation1 [shape = 'u32[144,128]{1,0:T(1,128)}', space=vmem, size = 0x12000, scoped, tag = 'internal scratch']
  #allocation2 [shape = 'f32[128,256]{1,0:T(8,128)}', space=vmem, size = 0x20000, scoped, tag = 'scratch operand']
  #allocation3 [shape = 'f32[128,64]{1,0:T(8,128)}', space=vmem, size = 0x10000, scoped, tag = 'scratch operand']
  %s0 = inlined_call_operand.vmem [shape: s32[128,1], index: 0, kind: input, shape index: {}]
  %s1 = inlined_call_operand.hbm [shape: f32[11,16], index: 1, kind: input, shape index: {}]
  %s2 = inlined_call_operand.hbm [shape: f32[16,256], index: 2, kind: input, shape index: {}]
  %s3 = inlined_call_operand.hbm [shape: f32[1,256], index: 3, kind: input, shape index: {}]
  %s4 = inlined_call_operand.vmem [shape: f32[64,128], index: 4, kind: input, shape index: {}]
  %s5 = inlined_call_operand.vmem [shape: f32[64,256], index: 5, kind: input, shape index: {}]
  %s6 = inlined_call_operand.hbm [shape: f32[1,256], index: 6, kind: input, shape index: {}]
  %s7 = inlined_call_operand.vmem [shape: f32[64,128], index: 7, kind: input, shape index: {}]
  %s8 = inlined_call_operand.vmem [shape: f32[1,64], index: 8, kind: input, shape index: {}]
  %s9 = inlined_call_operand.vmem [shape: f32[1,64], index: 9, kind: input, shape index: {}]
  %s10 = inlined_call_operand.hbm [shape: f32[1,64], index: 10, kind: input, shape index: {}]
  %s11 = inlined_call_operand.hbm [shape: f32[1,64], index: 11, kind: input, shape index: {}]
  %s12 = inlined_call_operand.vmem [shape: f32[64,10], index: 12, kind: input, shape index: {}]
  %s13 = inlined_call_operand.hbm [shape: f32[1,10], index: 13, kind: input, shape index: {}]
  %s14 = inlined_call_operand.hbm [shape: f32[8,10], index: 14, kind: output, shape index: {}]
  %s15 = sld [smem:[#allocation0]]
  $region94: #{description_writer_forward.1} parent=0
    _
  %s17 = ssub.s32 1, %s15
  %s18 = scalar_select 0, %s17, %s15
  $region1: #{description_writer_forward.1} parent=0
    #allocation4 [shape = 'u8[8192]{0}', space=vmem, size = 0x2000, scoped, tag = 'input window, operand 1, single buffered']
    #allocation5 [shape = 's32[1]{0}', space=sflag, size = 0x4, scoped, tag = 'scoped memory for description_writer_forward.1']
    #allocation6 [shape = 's32[1]{0}', space=sflag, size = 0x4, scoped, tag = 'scoped memory for description_writer_forward.1']
    #allocation7 [shape = 'u8[16384]{0}', space=vmem, size = 0x4000, scoped, tag = 'input window, operand 2, single buffered']
    #allocation8 [shape = 's32[1]{0}', space=sflag, size = 0x4, scoped, tag = 'scoped memory for description_writer_forward.1']
    #allocation9 [shape = 'u8[1024]{0}', space=vmem, size = 0x400, scoped, tag = 'input window, operand 3, single buffered']
    #allocation10 [shape = 'u8[1024]{0}', space=vmem, size = 0x400, scoped, tag = 'input window, operand 6, single buffered']
    #allocation11 [shape = 's32[1]{0}', space=sflag, size = 0x4, scoped, tag = 'scoped memory for description_writer_forward.1']
    #allocation12 [shape = 'u8[512]{0}', space=vmem, size = 0x400, scoped, tag = 'input window, operand 10, single buffered']
    #allocation13 [shape = 'u8[512]{0}', space=vmem, size = 0x400, scoped, tag = 'input window, operand 11, single buffered']
    #allocation14 [shape = 's32[1]{0}', space=sflag, size = 0x4, scoped, tag = 'scoped memory for description_writer_forward.1']
    #allocation15 [shape = 'u8[512]{0}', space=vmem, size = 0x400, scoped, tag = 'input window, operand 13, single buffered']
    #allocation16 [shape = 'u8[4096]{0}', space=vmem, size = 0x1000, scoped, tag = 'output window, operand 0, single buffered']
    %19 = vsyncpa [#allocation5], 0
    %20 = vsyncpa [#allocation8], 0
    %21 = vsyncpa [#allocation11], 0
    %22 = vsyncpa [#allocation14], 0
    %23 = vsyncpa [#allocation6], 0
    // Predicated region
    $region2: #{description_writer_forward.1} parent=1 // pred_check
      _
    $region3: #{description_writer_forward.1} parent=1 // pred_check_branch
      %25 = sbr.rel (0) target = $region5
    $region4: #{description_writer_forward.1} parent=1 // pred_region
      _
    $region5: #{description_writer_forward.1} parent=1 // pred_fallthru
      _
    // Predicated region
    $region6: #{description_writer_forward.1} parent=1 // pred_check
      _
    $region7: #{description_writer_forward.1} parent=1 // pred_check_branch
      %27 = sbr.rel (0) target = $region9
    $region8: #{description_writer_forward.1} parent=1 // pred_region
      %s29 = ssub.s32 256, 256
      %30 = vsyncadd [#allocation5], %s29
      %s31 = sshll.u32 [#allocation4], 4
      %s32 = int_to_ptr.vmem [resolvable:$true] %s31
      %37 = dma.hbm_to_vmem [thread:$0]  %s1, 256, %s32, [#allocation5], 128, 128, 8
    $region9: #{description_writer_forward.1} parent=1 // pred_fallthru
      _
    // Predicated region
    $region10: #{description_writer_forward.1} parent=1 // pred_check
      _
    $region11: #{description_writer_forward.1} parent=1 // pred_check_branch
      %39 = sbr.rel (0) target = $region13
    $region12: #{description_writer_forward.1} parent=1 // pred_region
      %s41 = ssub.s32 512, 512
      %42 = vsyncadd [#allocation8], %s41
      %s43 = sshll.u32 [#allocation7], 4
      %s44 = int_to_ptr.vmem [resolvable:$true] %s43
      %49 = dma.hbm_to_vmem [thread:$0]  %s2, 512, %s44, [#allocation8], 256, 256, 16
    $region13: #{description_writer_forward.1} parent=1 // pred_fallthru
      _
    // Predicated region
    $region14: #{description_writer_forward.1} parent=1 // pred_check
      _
    $region15: #{description_writer_forward.1} parent=1 // pred_check_branch
      %51 = sbr.rel (0) target = $region17
    $region16: #{description_writer_forward.1} parent=1 // pred_region
      %s53 = ssub.s32 32, 32
      %54 = vsyncadd [#allocation8], %s53
      %s56 = sshll.u32 [#allocation9], 4
      %s57 = int_to_ptr.vmem [resolvable:$true] %s56
      %59 = dma.hbm_to_vmem [thread:$0]  %s3, 32, %s57, [#allocation8]
    $region17: #{description_writer_forward.1} parent=1 // pred_fallthru
      _
    // Predicated region
    $region18: #{description_writer_forward.1} parent=1 // pred_check
      _
    $region19: #{description_writer_forward.1} parent=1 // pred_check_branch
      %61 = sbr.rel (0) target = $region21
    $region20: #{description_writer_forward.1} parent=1 // pred_region
      _
    $region21: #{description_writer_forward.1} parent=1 // pred_fallthru
      _
    // Predicated region
    $region22: #{description_writer_forward.1} parent=1 // pred_check
      _
    $region23: #{description_writer_forward.1} parent=1 // pred_check_branch
      %63 = sbr.rel (0) target = $region25
    $region24: #{description_writer_forward.1} parent=1 // pred_region
      _
    $region25: #{description_writer_forward.1} parent=1 // pred_fallthru
      _
    // Predicated region
    $region26: #{description_writer_forward.1} parent=1 // pred_check
      _
    $region27: #{description_writer_forward.1} parent=1 // pred_check_branch
      %65 = sbr.rel (0) target = $region29
    $region28: #{description_writer_forward.1} parent=1 // pred_region
      %s67 = ssub.s32 32, 32
      %68 = vsyncadd [#allocation11], %s67
      %s70 = sshll.u32 [#allocation10], 4
      %s71 = int_to_ptr.vmem [resolvable:$true] %s70
      %73 = dma.hbm_to_vmem [thread:$0]  %s6, 32, %s71, [#allocation11]
    $region29: #{description_writer_forward.1} parent=1 // pred_fallthru
      _
    // Predicated region
    $region30: #{description_writer_forward.1} parent=1 // pred_check
      _
    $region31: #{description_writer_forward.1} parent=1 // pred_check_branch
      %75 = sbr.rel (0) target = $region33
    $region32: #{description_writer_forward.1} parent=1 // pred_region
      _
    $region33: #{description_writer_forward.1} parent=1 // pred_fallthru
      _
    // Predicated region
    $region34: #{description_writer_forward.1} parent=1 // pred_check
      _
    $region35: #{description_writer_forward.1} parent=1 // pred_check_branch
      %77 = sbr.rel (0) target = $region37
    $region36: #{description_writer_forward.1} parent=1 // pred_region
      _
    $region37: #{description_writer_forward.1} parent=1 // pred_fallthru
      _
    // Predicated region
    $region38: #{description_writer_forward.1} parent=1 // pred_check
      _
    $region39: #{description_writer_forward.1} parent=1 // pred_check_branch
      %79 = sbr.rel (0) target = $region41
    $region40: #{description_writer_forward.1} parent=1 // pred_region
      _
    $region41: #{description_writer_forward.1} parent=1 // pred_fallthru
      _
    // Predicated region
    $region42: #{description_writer_forward.1} parent=1 // pred_check
      _
    $region43: #{description_writer_forward.1} parent=1 // pred_check_branch
      %81 = sbr.rel (0) target = $region45
    $region44: #{description_writer_forward.1} parent=1 // pred_region
      %s83 = ssub.s32 16, 16
      %84 = vsyncadd [#allocation11], %s83
      %s86 = sshll.u32 [#allocation12], 4
      %s87 = int_to_ptr.vmem [resolvable:$true] %s86
      %89 = dma.hbm_to_vmem [thread:$0]  %s10, 16, %s87, [#allocation11]
    $region45: #{description_writer_forward.1} parent=1 // pred_fallthru
      _
    // Predicated region
    $region46: #{description_writer_forward.1} parent=1 // pred_check
      _
    $region47: #{description_writer_forward.1} parent=1 // pred_check_branch
      %91 = sbr.rel (0) target = $region49
    $region48: #{description_writer_forward.1} parent=1 // pred_region
      %s93 = ssub.s32 16, 16
      %94 = vsyncadd [#allocation14], %s93
      %s96 = sshll.u32 [#allocation13], 4
      %s97 = int_to_ptr.vmem [resolvable:$true] %s96
      %99 = dma.hbm_to_vmem [thread:$0]  %s11, 16, %s97, [#allocation14]
    $region49: #{description_writer_forward.1} parent=1 // pred_fallthru
      _
    // Predicated region
    $region50: #{description_writer_forward.1} parent=1 // pred_check
      _
    $region51: #{description_writer_forward.1} parent=1 // pred_check_branch
      %101 = sbr.rel (0) target = $region53
    $region52: #{description_writer_forward.1} parent=1 // pred_region
      _
    $region53: #{description_writer_forward.1} parent=1 // pred_fallthru
      _
    // Predicated region
    $region54: #{description_writer_forward.1} parent=1 // pred_check
      _
    $region55: #{description_writer_forward.1} parent=1 // pred_check_branch
      %103 = sbr.rel (0) target = $region57
    $region56: #{description_writer_forward.1} parent=1 // pred_region
      %s105 = ssub.s32 16, 16
      %106 = vsyncadd [#allocation14], %s105
      %s108 = sshll.u32 [#allocation15], 4
      %s109 = int_to_ptr.vmem [resolvable:$true] %s108
      %111 = dma.hbm_to_vmem [thread:$0]  %s13, 16, %s109, [#allocation14]
    $region57: #{description_writer_forward.1} parent=1 // pred_fallthru
      _
    // Predicated region
    $region58: #{description_writer_forward.1} parent=1 // pred_check
      _
    $region59: #{description_writer_forward.1} parent=1 // pred_check_branch
      %113 = sbr.rel (0) target = $region61
    $region60: #{description_writer_forward.1} parent=1 // pred_region
      %114 = dma.done [#allocation5], 256
    $region61: #{description_writer_forward.1} parent=1 // pred_fallthru
      _
    // Predicated region
    $region62: #{description_writer_forward.1} parent=1 // pred_check
      _
    $region63: #{description_writer_forward.1} parent=1 // pred_check_branch
      %116 = sbr.rel (0) target = $region65
    $region64: #{description_writer_forward.1} parent=1 // pred_region
      %117 = dma.done [#allocation8], 512
    $region65: #{description_writer_forward.1} parent=1 // pred_fallthru
      _
    // Predicated region
    $region66: #{description_writer_forward.1} parent=1 // pred_check
      _
    $region67: #{description_writer_forward.1} parent=1 // pred_check_branch
      %119 = sbr.rel (0) target = $region69
    $region68: #{description_writer_forward.1} parent=1 // pred_region
      %120 = dma.done [#allocation8], 32
    $region69: #{description_writer_forward.1} parent=1 // pred_fallthru
      _
    // Predicated region
    $region70: #{description_writer_forward.1} parent=1 // pred_check
      _
    $region71: #{description_writer_forward.1} parent=1 // pred_check_branch
      %122 = sbr.rel (0) target = $region73
    $region72: #{description_writer_forward.1} parent=1 // pred_region
      %123 = dma.done [#allocation11], 32
    $region73: #{description_writer_forward.1} parent=1 // pred_fallthru
      _
    // Predicated region
    $region74: #{description_writer_forward.1} parent=1 // pred_check
      _
    $region75: #{description_writer_forward.1} parent=1 // pred_check_branch
      %125 = sbr.rel (0) target = $region77
    $region76: #{description_writer_forward.1} parent=1 // pred_region
      %126 = dma.done [#allocation11], 16
    $region77: #{description_writer_forward.1} parent=1 // pred_fallthru
      _
    // Predicated region
    $region78: #{description_writer_forward.1} parent=1 // pred_check
      _
    $region79: #{description_writer_forward.1} parent=1 // pred_check_branch
      %128 = sbr.rel (0) target = $region81
    $region80: #{description_writer_forward.1} parent=1 // pred_region
      %129 = dma.done [#allocation14], 16
    $region81: #{description_writer_forward.1} parent=1 // pred_fallthru
      _
    // Predicated region
    $region82: #{description_writer_forward.1} parent=1 // pred_check
      _
    $region83: #{description_writer_forward.1} parent=1 // pred_check_branch
      %131 = sbr.rel (0) target = $region85
    $region84: #{description_writer_forward.1} parent=1 // pred_region
      %132 = dma.done [#allocation14], 16
    $region85: #{description_writer_forward.1} parent=1 // pred_fallthru
      _
    %v133 = vld [vmem:[%s0] sm:$0xff]
    %v134 = vld [vmem:[%s0 + $0x8] sm:$0xff]
    %v135 = vld [vmem:[%s0 + $0x10] sm:$0xff]
    %v136 = vld [vmem:[%s0 + $0x18] sm:$0xff]
    %v137 = vld [vmem:[%s0 + $0x20] sm:$0xff]
    %v138 = vld [vmem:[%s0 + $0x28] sm:$0xff]
    %v139 = vld [vmem:[%s0 + $0x30] sm:$0xff]
    %v140 = vld [vmem:[%s0 + $0x38] sm:$0xff]
    %v141 = vld [vmem:[%s0 + $0x40] sm:$0xff]
    %v142 = vld [vmem:[%s0 + $0x48] sm:$0xff]
    %v143 = vld [vmem:[%s0 + $0x50] sm:$0xff]
    %v144 = vld [vmem:[%s0 + $0x58] sm:$0xff]
    %v145 = vld [vmem:[%s0 + $0x60] sm:$0xff]
    %v146 = vld [vmem:[%s0 + $0x68] sm:$0xff]
    %v147 = vld [vmem:[%s0 + $0x70] sm:$0xff]
    %v148 = vld [vmem:[%s0 + $0x78] sm:$0xff]
    %v149 = vlaneseq
    %v150 = vand.u32 %v149, 127
    %151 = vset.pattern.permute.xlu0 0
    %152 = vperm.xlu0 %151, %v133
    %v153 = vpop.permute.xlu0 %152
    %154 = vset.pattern.permute.xlu0 0
    %155 = vperm.xlu0 %154, %v134
    %v156 = vpop.permute.xlu0 %155
    %157 = vset.pattern.permute.xlu0 0
    %158 = vperm.xlu0 %157, %v135
    %v159 = vpop.permute.xlu0 %158
    %160 = vset.pattern.permute.xlu0 0
    %161 = vperm.xlu0 %160, %v136
    %v162 = vpop.permute.xlu0 %161
    %163 = vset.pattern.permute.xlu0 0
    %164 = vperm.xlu0 %163, %v137
    %v165 = vpop.permute.xlu0 %164
    %166 = vset.pattern.permute.xlu0 0
    %167 = vperm.xlu0 %166, %v138
    %v168 = vpop.permute.xlu0 %167
    %169 = vset.pattern.permute.xlu0 0
    %170 = vperm.xlu0 %169, %v139
    %v171 = vpop.permute.xlu0 %170
    %172 = vset.pattern.permute.xlu0 0
    %173 = vperm.xlu0 %172, %v140
    %v174 = vpop.permute.xlu0 %173
    %175 = vset.pattern.permute.xlu0 0
    %176 = vperm.xlu0 %175, %v141
    %v177 = vpop.permute.xlu0 %176
    %178 = vset.pattern.permute.xlu0 0
    %179 = vperm.xlu0 %178, %v142
    %v180 = vpop.permute.xlu0 %179
    %181 = vset.pattern.permute.xlu0 0
    %182 = vperm.xlu0 %181, %v143
    %v183 = vpop.permute.xlu0 %182
    %184 = vset.pattern.permute.xlu0 0
    %185 = vperm.xlu0 %184, %v144
    %v186 = vpop.permute.xlu0 %185
    %187 = vset.pattern.permute.xlu0 0
    %188 = vperm.xlu0 %187, %v145
    %v189 = vpop.permute.xlu0 %188
    %190 = vset.pattern.permute.xlu0 0
    %191 = vperm.xlu0 %190, %v146
    %v192 = vpop.permute.xlu0 %191
    %193 = vset.pattern.permute.xlu0 0
    %194 = vperm.xlu0 %193, %v147
    %v195 = vpop.permute.xlu0 %194
    %196 = vset.pattern.permute.xlu0 0
    %197 = vperm.xlu0 %196, %v148
    %v198 = vpop.permute.xlu0 %197
    %vm199 = vcmp.eq.s32.totalorder %v153, %v150
    %vm200 = vcmp.eq.s32.totalorder %v156, %v150
    %vm201 = vcmp.eq.s32.totalorder %v159, %v150
    %vm202 = vcmp.eq.s32.totalorder %v162, %v150
    %vm203 = vcmp.eq.s32.totalorder %v165, %v150
    %vm204 = vcmp.eq.s32.totalorder %v168, %v150
    %vm205 = vcmp.eq.s32.totalorder %v171, %v150
    %vm206 = vcmp.eq.s32.totalorder %v174, %v150
    %vm207 = vcmp.eq.s32.totalorder %v177, %v150
    %vm208 = vcmp.eq.s32.totalorder %v180, %v150
    %vm209 = vcmp.eq.s32.totalorder %v183, %v150
    %vm210 = vcmp.eq.s32.totalorder %v186, %v150
    %vm211 = vcmp.eq.s32.totalorder %v189, %v150
    %vm212 = vcmp.eq.s32.totalorder %v192, %v150
    %vm213 = vcmp.eq.s32.totalorder %v195, %v150
    %vm214 = vcmp.eq.s32.totalorder %v198, %v150
    %v215 = vsel %vm199, 1, 0
    %v216 = vsel %vm200, 1, 0
    %v217 = vsel %vm201, 1, 0
    %v218 = vsel %vm202, 1, 0
    %v219 = vsel %vm203, 1, 0
    %v220 = vsel %vm204, 1, 0
    %v221 = vsel %vm205, 1, 0
    %v222 = vsel %vm206, 1, 0
    %v223 = vsel %vm207, 1, 0
    %v224 = vsel %vm208, 1, 0
    %v225 = vsel %vm209, 1, 0
    %v226 = vsel %vm210, 1, 0
    %v227 = vsel %vm211, 1, 0
    %v228 = vsel %vm212, 1, 0
    %v229 = vsel %vm213, 1, 0
    %v230 = vsel %vm214, 1, 0
    %v231 = vcvt.s32.f32 %v215
    %v232 = vcvt.s32.f32 %v216
    %v233 = vcvt.s32.f32 %v217
    %v234 = vcvt.s32.f32 %v218
    %v235 = vcvt.s32.f32 %v219
    %v236 = vcvt.s32.f32 %v220
    %v237 = vcvt.s32.f32 %v221
    %v238 = vcvt.s32.f32 %v222
    %v239 = vcvt.s32.f32 %v223
    %v240 = vcvt.s32.f32 %v224
    %v241 = vcvt.s32.f32 %v225
    %v242 = vcvt.s32.f32 %v226
    %v243 = vcvt.s32.f32 %v227
    %v244 = vcvt.s32.f32 %v228
    %v245 = vcvt.s32.f32 %v229
    %v246 = vcvt.s32.f32 %v230
    %v247 = vld [vmem:[#allocation4] sm:$0xff]
    %v248 = vld [vmem:[#allocation4 + $0x8] sm:$0x7]
    %vm249 = vcmask 89088
    %v251 = vsel %vm249, %v231, 0
    %v254 = vsel %vm249, %v232, 0
    %v257 = vsel %vm249, %v233, 0
    %v260 = vsel %vm249, %v234, 0
    %v263 = vsel %vm249, %v235, 0
    %v266 = vsel %vm249, %v236, 0
    %v269 = vsel %vm249, %v237, 0
    %v272 = vsel %vm249, %v238, 0
    %v275 = vsel %vm249, %v239, 0
    %v278 = vsel %vm249, %v240, 0
    %v281 = vsel %vm249, %v241, 0
    %v284 = vsel %vm249, %v242, 0
    %v287 = vsel %vm249, %v243, 0
    %v290 = vsel %vm249, %v244, 0
    %v293 = vsel %vm249, %v245, 0
    %v296 = vsel %vm249, %v246, 0
    %vm298 = vcmask 1042432
    %v300 = vsel %vm298, %v248, 0
    %302 = vmatprep.subr.mxu0 0.0
    %303 = vmatpush1.msra.mxu0 0.0
    %304 = vmatprep.subr.mxu0 0.0
    %305 = vmatpush1.msra.mxu0 0.0
    %306 = vmatprep.subr.mxu0 0.0
    %307 = vmatpush1.msra.mxu0 0.0
    %308 = vmatprep.subr.mxu0 0.0
    %309 = vmatpush1.msra.mxu0 0.0
    %310 = vmatprep.subr.mxu0 0.0
    %311 = vmatpush1.msra.mxu0 0.0
    %312 = vmatprep.subr.mxu0 0.0
    %313 = vmatpush1.msra.mxu0 0.0
    %314 = vmatprep.subr.mxu0 0.0
    %315 = vmatpush1.msra.mxu0 0.0
    %316 = vmatprep.subr.mxu0 0.0
    %317 = vmatpush1.msra.mxu0 0.0
    %318 = vmatprep.subr.mxu0 0.0
    %319 = vmatpush1.msra.mxu0 0.0
    %320 = vmatprep.subr.mxu0 0.0
    %321 = vmatpush1.msra.mxu0 0.0
    %322 = vmatprep.subr.mxu0 0.0
    %323 = vmatpush1.msra.mxu0 0.0
    %324 = vmatprep.subr.mxu0 0.0
    %325 = vmatpush1.msra.mxu0 0.0
    %326 = vmatprep.subr.mxu0 0.0
    %327 = vmatpush1.msra.mxu0 0.0
    %328 = vmatprep.subr.mxu0 0.0
    %329 = vmatpush1.msra.mxu0 0.0
    %330 = vmatprep.subr.mxu0 0.0
    %331 = vmatpush1.msra.mxu0 %v300
    %332 = vmatprep.subr.mxu0 0.0
    %333 = vmatpush1.msra.mxu0 %v247
    %334 = vmatprep.subr.mxu0 0.0
    %335 = vmatpush2.msra.mxu0 0.0
    %336 = vmatprep.subr.mxu0 0.0
    %337 = vmatpush2.msra.mxu0 0.0
    %338 = vmatprep.subr.mxu0 0.0
    %339 = vmatpush2.msra.mxu0 0.0
    %340 = vmatprep.subr.mxu0 0.0
    %341 = vmatpush2.msra.mxu0 0.0
    %342 = vmatprep.subr.mxu0 0.0
    %343 = vmatpush2.msra.mxu0 0.0
    %344 = vmatprep.subr.mxu0 0.0
    %345 = vmatpush2.msra.mxu0 0.0
    %346 = vmatprep.subr.mxu0 0.0
    %347 = vmatpush2.msra.mxu0 0.0
    %348 = vmatprep.subr.mxu0 0.0
    %349 = vmatpush2.msra.mxu0 0.0
    %350 = vmatprep.subr.mxu0 0.0
    %351 = vmatpush2.msra.mxu0 0.0
    %352 = vmatprep.subr.mxu0 0.0
    %353 = vmatpush2.msra.mxu0 0.0
    %354 = vmatprep.subr.mxu0 0.0
    %355 = vmatpush2.msra.mxu0 0.0
    %356 = vmatprep.subr.mxu0 0.0
    %357 = vmatpush2.msra.mxu0 0.0
    %358 = vmatprep.subr.mxu0 0.0
    %359 = vmatpush2.msra.mxu0 0.0
    %360 = vmatprep.subr.mxu0 0.0
    %361 = vmatpush2.msra.mxu0 0.0
    %362 = vmatprep.subr.mxu0 0.0
    %363 = vmatpush2.msra.mxu0 0.0
    %364 = vmatprep.subr.mxu0 0.0
    %365 = vmatpush2.msra.mxu0 0.0
    %366 = vmatprep.mubr.f32.mxu0 0.0
    %367 = vmatmul.mubr.f32.gmra.mxu0 %v251
    %v368 = vpop.f32.mrf.mxu0
    %v369 = vadd.f32 0.0, %v368
    %v370 = vpop.f32.mrf.mxu0
    %371 = vmatprep.mubr.f32.mxu0 0.0
    %372 = vmatmul.mubr.f32.gmra.mxu0 %v254
    %v373 = vpop.f32.mrf.mxu0
    %v374 = vadd.f32 0.0, %v373
    %v375 = vpop.f32.mrf.mxu0
    %376 = vmatprep.mubr.f32.mxu0 0.0
    %377 = vmatmul.mubr.f32.gmra.mxu0 %v257
    %v378 = vpop.f32.mrf.mxu0
    %v379 = vadd.f32 0.0, %v378
    %v380 = vpop.f32.mrf.mxu0
    %381 = vmatprep.mubr.f32.mxu0 0.0
    %382 = vmatmul.mubr.f32.gmra.mxu0 %v260
    %v383 = vpop.f32.mrf.mxu0
    %v384 = vadd.f32 0.0, %v383
    %v385 = vpop.f32.mrf.mxu0
    %386 = vmatprep.mubr.f32.mxu0 0.0
    %387 = vmatmul.mubr.f32.gmra.mxu0 %v263
    %v388 = vpop.f32.mrf.mxu0
    %v389 = vadd.f32 0.0, %v388
    %v390 = vpop.f32.mrf.mxu0
    %391 = vmatprep.mubr.f32.mxu0 0.0
    %392 = vmatmul.mubr.f32.gmra.mxu0 %v266
    %v393 = vpop.f32.mrf.mxu0
    %v394 = vadd.f32 0.0, %v393
    %v395 = vpop.f32.mrf.mxu0
    %396 = vmatprep.mubr.f32.mxu0 0.0
    %397 = vmatmul.mubr.f32.gmra.mxu0 %v269
    %v398 = vpop.f32.mrf.mxu0
    %v399 = vadd.f32 0.0, %v398
    %v400 = vpop.f32.mrf.mxu0
    %401 = vmatprep.mubr.f32.mxu0 0.0
    %402 = vmatmul.mubr.f32.gmra.mxu0 %v272
    %v403 = vpop.f32.mrf.mxu0
    %v404 = vadd.f32 0.0, %v403
    %v405 = vpop.f32.mrf.mxu0
    %406 = vmatprep.mubr.f32.mxu0 0.0
    %407 = vmatmul.mubr.f32.gmra.mxu0 %v275
    %v408 = vpop.f32.mrf.mxu0
    %v409 = vadd.f32 0.0, %v408
    %v410 = vpop.f32.mrf.mxu0
    %411 = vmatprep.mubr.f32.mxu0 0.0
    %412 = vmatmul.mubr.f32.gmra.mxu0 %v278
    %v413 = vpop.f32.mrf.mxu0
    %v414 = vadd.f32 0.0, %v413
    %v415 = vpop.f32.mrf.mxu0
    %416 = vmatprep.mubr.f32.mxu0 0.0
    %417 = vmatmul.mubr.f32.gmra.mxu0 %v281
    %v418 = vpop.f32.mrf.mxu0
    %v419 = vadd.f32 0.0, %v418
    %v420 = vpop.f32.mrf.mxu0
    %421 = vmatprep.mubr.f32.mxu0 0.0
    %422 = vmatmul.mubr.f32.gmra.mxu0 %v284
    %v423 = vpop.f32.mrf.mxu0
    %v424 = vadd.f32 0.0, %v423
    %v425 = vpop.f32.mrf.mxu0
    %426 = vmatprep.mubr.f32.mxu0 0.0
    %427 = vmatmul.mubr.f32.gmra.mxu0 %v287
    %v428 = vpop.f32.mrf.mxu0
    %v429 = vadd.f32 0.0, %v428
    %v430 = vpop.f32.mrf.mxu0
    %431 = vmatprep.mubr.f32.mxu0 0.0
    %432 = vmatmul.mubr.f32.gmra.mxu0 %v290
    %v433 = vpop.f32.mrf.mxu0
    %v434 = vadd.f32 0.0, %v433
    %v435 = vpop.f32.mrf.mxu0
    %436 = vmatprep.mubr.f32.mxu0 0.0
    %437 = vmatmul.mubr.f32.gmra.mxu0 %v293
    %v438 = vpop.f32.mrf.mxu0
    %v439 = vadd.f32 0.0, %v438
    %v440 = vpop.f32.mrf.mxu0
    %441 = vmatprep.mubr.f32.mxu0 0.0
    %442 = vmatmul.mubr.f32.gmra.mxu0 %v296
    %v443 = vpop.f32.mrf.mxu0
    %v444 = vadd.f32 0.0, %v443
    %v445 = vpop.f32.mrf.mxu0
    %446 = vdwg.mxu0
    %v447 = vlaneseq
    %v448 = vshrl.u32 %v447, 7
    %v449 = vadd.s32 %v448, 8
    %vm450 = vcmp.lt.s32.totalorder %v448, 8
    %vm451 = vcmp.lt.s32.totalorder %v449, 8
    %vm452 = vcmp.lt.s32.totalorder %v150, 32
    %vm453 = vmxor %vm450, %vm452
    %vm454 = vmxor %vm451, %vm452
    %vm455 = vmxor %vm453, 1
    %vm456 = vmxor %vm454, 1
    %v457 = vsel %vm455, 1, 0
    %v458 = vsel %vm456, 1, 0
    %v459 = vcvt.s32.f32 %v457
    %v460 = vcvt.s32.f32 %v458
    %v461 = vld [vmem:[#allocation7] sm:$0xff]
    %v462 = vld [vmem:[#allocation7 + $0x8] sm:$0xff]
    %v463 = vld [vmem:[#allocation7 + $0x10] sm:$0xff]
    %v464 = vld [vmem:[#allocation7 + $0x18] sm:$0xff]
    %v465 = vld [vmem:[#allocation9] sm:$0x3]
    %v467 = vlaneseq
    %v468 = vshrl.u32 %v467, 7
    %v469 = vsub.s32 0, %v468
    %v470 = vrot.slane %v465, %v469
    %v471 = vlaneseq
    %v472 = vshrl.u32 %v471, 7
    %v473 = vsub.s32 1, %v472
    %v474 = vrot.slane %v465, %v473
    %vm477 = vcmask 130048
    %v479 = vsel %vm477, %v369, 0
    %v482 = vsel %vm477, %v374, 0
    %v485 = vsel %vm477, %v379, 0
    %v488 = vsel %vm477, %v384, 0
    %v491 = vsel %vm477, %v389, 0
    %v494 = vsel %vm477, %v394, 0
    %v497 = vsel %vm477, %v399, 0
    %v500 = vsel %vm477, %v404, 0
    %v503 = vsel %vm477, %v409, 0
    %v506 = vsel %vm477, %v414, 0
    %v509 = vsel %vm477, %v419, 0
    %v512 = vsel %vm477, %v424, 0
    %v515 = vsel %vm477, %v429, 0
    %v518 = vsel %vm477, %v434, 0
    %v521 = vsel %vm477, %v439, 0
    %v524 = vsel %vm477, %v444, 0
    %526 = vmatprep.subr.mxu0 0.0
    %527 = vmatpush1.msra.mxu0 0.0
    %528 = vmatprep.subr.mxu0 0.0
    %529 = vmatpush1.msra.mxu0 0.0
    %530 = vmatprep.subr.mxu0 0.0
    %531 = vmatpush1.msra.mxu0 0.0
    %532 = vmatprep.subr.mxu0 0.0
    %533 = vmatpush1.msra.mxu0 0.0
    %534 = vmatprep.subr.mxu0 0.0
    %535 = vmatpush1.msra.mxu0 0.0
    %536 = vmatprep.subr.mxu0 0.0
    %537 = vmatpush1.msra.mxu0 0.0
    %538 = vmatprep.subr.mxu0 0.0
    %539 = vmatpush1.msra.mxu0 0.0
    %540 = vmatprep.subr.mxu0 0.0
    %541 = vmatpush1.msra.mxu0 0.0
    %542 = vmatprep.subr.mxu0 0.0
    %543 = vmatpush1.msra.mxu0 0.0
    %544 = vmatprep.subr.mxu0 0.0
    %545 = vmatpush1.msra.mxu0 0.0
    %546 = vmatprep.subr.mxu0 0.0
    %547 = vmatpush1.msra.mxu0 0.0
    %548 = vmatprep.subr.mxu0 0.0
    %549 = vmatpush1.msra.mxu0 0.0
    %550 = vmatprep.subr.mxu0 0.0
    %551 = vmatpush1.msra.mxu0 0.0
    %552 = vmatprep.subr.mxu0 0.0
    %553 = vmatpush1.msra.mxu0 0.0
    %554 = vmatprep.subr.mxu0 %v464
    %555 = vmatpush1.msra.mxu0 %v463
    %556 = vmatprep.subr.mxu0 %v462
    %557 = vmatpush1.msra.mxu0 %v461
    %558 = vmatprep.subr.mxu0 0.0
    %559 = vmatpush2.msra.mxu0 0.0
    %560 = vmatprep.subr.mxu0 0.0
    %561 = vmatpush2.msra.mxu0 0.0
    %562 = vmatprep.subr.mxu0 0.0
    %563 = vmatpush2.msra.mxu0 0.0
    %564 = vmatprep.subr.mxu0 0.0
    %565 = vmatpush2.msra.mxu0 0.0
    %566 = vmatprep.subr.mxu0 0.0
    %567 = vmatpush2.msra.mxu0 0.0
    %568 = vmatprep.subr.mxu0 0.0
    %569 = vmatpush2.msra.mxu0 0.0
    %570 = vmatprep.subr.mxu0 0.0
    %571 = vmatpush2.msra.mxu0 0.0
    %572 = vmatprep.subr.mxu0 0.0
    %573 = vmatpush2.msra.mxu0 0.0
    %574 = vmatprep.subr.mxu0 0.0
    %575 = vmatpush2.msra.mxu0 0.0
    %576 = vmatprep.subr.mxu0 0.0
    %577 = vmatpush2.msra.mxu0 0.0
    %578 = vmatprep.subr.mxu0 0.0
    %579 = vmatpush2.msra.mxu0 0.0
    %580 = vmatprep.subr.mxu0 0.0
    %581 = vmatpush2.msra.mxu0 0.0
    %582 = vmatprep.subr.mxu0 0.0
    %583 = vmatpush2.msra.mxu0 0.0
    %584 = vmatprep.subr.mxu0 0.0
    %585 = vmatpush2.msra.mxu0 0.0
    %586 = vmatprep.subr.mxu0 0.0
    %587 = vmatpush2.msra.mxu0 0.0
    %588 = vmatprep.subr.mxu0 0.0
    %589 = vmatpush2.msra.mxu0 0.0
    %590 = vmatprep.mubr.f32.mxu0 0.0
    %591 = vmatmul.mubr.f32.gmra.mxu0 %v479
    %v592 = vpop.f32.mrf.mxu0
    %v593 = vadd.f32 %v470, %v592
    %v594 = vpop.f32.mrf.mxu0
    %v595 = vadd.f32 %v474, %v594
    %596 = vmatprep.mubr.f32.mxu0 0.0
    %597 = vmatmul.mubr.f32.gmra.mxu0 %v482
    %v598 = vpop.f32.mrf.mxu0
    %v599 = vadd.f32 %v470, %v598
    %v600 = vpop.f32.mrf.mxu0
    %v601 = vadd.f32 %v474, %v600
    %602 = vmatprep.mubr.f32.mxu0 0.0
    %603 = vmatmul.mubr.f32.gmra.mxu0 %v485
    %v604 = vpop.f32.mrf.mxu0
    %v605 = vadd.f32 %v470, %v604
    %v606 = vpop.f32.mrf.mxu0
    %v607 = vadd.f32 %v474, %v606
    %608 = vmatprep.mubr.f32.mxu0 0.0
    %609 = vmatmul.mubr.f32.gmra.mxu0 %v488
    %v610 = vpop.f32.mrf.mxu0
    %v611 = vadd.f32 %v470, %v610
    %v612 = vpop.f32.mrf.mxu0
    %v613 = vadd.f32 %v474, %v612
    %614 = vmatprep.mubr.f32.mxu0 0.0
    %615 = vmatmul.mubr.f32.gmra.mxu0 %v491
    %v616 = vpop.f32.mrf.mxu0
    %v617 = vadd.f32 %v470, %v616
    %v618 = vpop.f32.mrf.mxu0
    %v619 = vadd.f32 %v474, %v618
    %620 = vmatprep.mubr.f32.mxu0 0.0
    %621 = vmatmul.mubr.f32.gmra.mxu0 %v494
    %v622 = vpop.f32.mrf.mxu0
    %v623 = vadd.f32 %v470, %v622
    %v624 = vpop.f32.mrf.mxu0
    %v625 = vadd.f32 %v474, %v624
    %626 = vmatprep.mubr.f32.mxu0 0.0
    %627 = vmatmul.mubr.f32.gmra.mxu0 %v497
    %v628 = vpop.f32.mrf.mxu0
    %v629 = vadd.f32 %v470, %v628
    %v630 = vpop.f32.mrf.mxu0
    %v631 = vadd.f32 %v474, %v630
    %632 = vmatprep.mubr.f32.mxu0 0.0
    %633 = vmatmul.mubr.f32.gmra.mxu0 %v500
    %v634 = vpop.f32.mrf.mxu0
    %v635 = vadd.f32 %v470, %v634
    %v636 = vpop.f32.mrf.mxu0
    %v637 = vadd.f32 %v474, %v636
    %638 = vmatprep.mubr.f32.mxu0 0.0
    %639 = vmatmul.mubr.f32.gmra.mxu0 %v503
    %v640 = vpop.f32.mrf.mxu0
    %v641 = vadd.f32 %v470, %v640
    %v642 = vpop.f32.mrf.mxu0
    %v643 = vadd.f32 %v474, %v642
    %644 = vmatprep.mubr.f32.mxu0 0.0
    %645 = vmatmul.mubr.f32.gmra.mxu0 %v506
    %v646 = vpop.f32.mrf.mxu0
    %v647 = vadd.f32 %v470, %v646
    %v648 = vpop.f32.mrf.mxu0
    %v649 = vadd.f32 %v474, %v648
    %650 = vmatprep.mubr.f32.mxu0 0.0
    %651 = vmatmul.mubr.f32.gmra.mxu0 %v509
    %v652 = vpop.f32.mrf.mxu0
    %v653 = vadd.f32 %v470, %v652
    %v654 = vpop.f32.mrf.mxu0
    %v655 = vadd.f32 %v474, %v654
    %656 = vmatprep.mubr.f32.mxu0 0.0
    %657 = vmatmul.mubr.f32.gmra.mxu0 %v512
    %v658 = vpop.f32.mrf.mxu0
    %v659 = vadd.f32 %v470, %v658
    %v660 = vpop.f32.mrf.mxu0
    %v661 = vadd.f32 %v474, %v660
    %662 = vmatprep.mubr.f32.mxu0 0.0
    %663 = vmatmul.mubr.f32.gmra.mxu0 %v515
    %v664 = vpop.f32.mrf.mxu0
    %v665 = vadd.f32 %v470, %v664
    %v666 = vpop.f32.mrf.mxu0
    %v667 = vadd.f32 %v474, %v666
    %668 = vmatprep.mubr.f32.mxu0 0.0
    %669 = vmatmul.mubr.f32.gmra.mxu0 %v518
    %v670 = vpop.f32.mrf.mxu0
    %v671 = vadd.f32 %v470, %v670
    %v672 = vpop.f32.mrf.mxu0
    %v673 = vadd.f32 %v474, %v672
    %674 = vmatprep.mubr.f32.mxu0 0.0
    %675 = vmatmul.mubr.f32.gmra.mxu0 %v521
    %v676 = vpop.f32.mrf.mxu0
    %v677 = vadd.f32 %v470, %v676
    %v678 = vpop.f32.mrf.mxu0
    %v679 = vadd.f32 %v474, %v678
    %680 = vmatprep.mubr.f32.mxu0 0.0
    %681 = vmatmul.mubr.f32.gmra.mxu0 %v524
    %v682 = vpop.f32.mrf.mxu0
    %v683 = vadd.f32 %v470, %v682
    %v684 = vpop.f32.mrf.mxu0
    %v685 = vadd.f32 %v474, %v684
    %686 = vdwg.mxu0
    %687 = vst [vmem:[#allocation2] sm:$0xff] %v593
    %688 = vst [vmem:[#allocation2 + $0x8] sm:$0xff] %v595
    %689 = vst [vmem:[#allocation2 + $0x10] sm:$0xff] %v599
    %690 = vst [vmem:[#allocation2 + $0x18] sm:$0xff] %v601
    %691 = vst [vmem:[#allocation2 + $0x20] sm:$0xff] %v605
    %692 = vst [vmem:[#allocation2 + $0x28] sm:$0xff] %v607
    %693 = vst [vmem:[#allocation2 + $0x30] sm:$0xff] %v611
    %694 = vst [vmem:[#allocation2 + $0x38] sm:$0xff] %v613
    %695 = vst [vmem:[#allocation2 + $0x40] sm:$0xff] %v617
    %696 = vst [vmem:[#allocation2 + $0x48] sm:$0xff] %v619
    %697 = vst [vmem:[#allocation2 + $0x50] sm:$0xff] %v623
    %698 = vst [vmem:[#allocation2 + $0x58] sm:$0xff] %v625
    %699 = vst [vmem:[#allocation2 + $0x60] sm:$0xff] %v629
    %700 = vst [vmem:[#allocation2 + $0x68] sm:$0xff] %v631
    %701 = vst [vmem:[#allocation2 + $0x70] sm:$0xff] %v635
    %702 = vst [vmem:[#allocation2 + $0x78] sm:$0xff] %v637
    %703 = vst [vmem:[#allocation2 + $0x80] sm:$0xff] %v641
    %704 = vst [vmem:[#allocation2 + $0x88] sm:$0xff] %v643
    %705 = vst [vmem:[#allocation2 + $0x90] sm:$0xff] %v647
    %706 = vst [vmem:[#allocation2 + $0x98] sm:$0xff] %v649
    %707 = vst [vmem:[#allocation2 + $0xa0] sm:$0xff] %v653
    %708 = vst [vmem:[#allocation2 + $0xa8] sm:$0xff] %v655
    %709 = vst [vmem:[#allocation2 + $0xb0] sm:$0xff] %v659
    %710 = vst [vmem:[#allocation2 + $0xb8] sm:$0xff] %v661
    %711 = vst [vmem:[#allocation2 + $0xc0] sm:$0xff] %v665
    %712 = vst [vmem:[#allocation2 + $0xc8] sm:$0xff] %v667
    %713 = vst [vmem:[#allocation2 + $0xd0] sm:$0xff] %v671
    %714 = vst [vmem:[#allocation2 + $0xd8] sm:$0xff] %v673
    %715 = vst [vmem:[#allocation2 + $0xe0] sm:$0xff] %v677
    %716 = vst [vmem:[#allocation2 + $0xe8] sm:$0xff] %v679
    %717 = vst [vmem:[#allocation2 + $0xf0] sm:$0xff] %v683
    %718 = vst [vmem:[#allocation2 + $0xf8] sm:$0xff] %v685
    %v719 = vld [vmem:[%s4] sm:$0xff]
    %v720 = vld [vmem:[%s4 + $0x8] sm:$0xff]
    %v721 = vld [vmem:[%s4 + $0x10] sm:$0xff]
    %v722 = vld [vmem:[%s4 + $0x18] sm:$0xff]
    %v723 = vld [vmem:[%s4 + $0x20] sm:$0xff]
    %v724 = vld [vmem:[%s4 + $0x28] sm:$0xff]
    %v725 = vld [vmem:[%s4 + $0x30] sm:$0xff]
    %v726 = vld [vmem:[%s4 + $0x38] sm:$0xff]
    %v727 = vld [vmem:[#allocation2] sm:$0xff]
    %v728 = vld [vmem:[#allocation2 + $0xf8] sm:$0xff]
    %v729 = vmul.f32 %v459, 0.0
    %v730 = vmul.f32 %v460, 0.0
    %vm731 = vcmask 523264
    %v733 = vsel %vm731, %v729, 0
    %v736 = vsel %vm731, %v730, 0
    %738 = vmatprep.subr.mxu0 0.0
    %739 = vmatpush1.msra.mxu0 0.0
    %740 = vmatprep.subr.mxu0 0.0
    %741 = vmatpush1.msra.mxu0 0.0
    %742 = vmatprep.subr.mxu0 0.0
    %743 = vmatpush1.msra.mxu0 0.0
    %744 = vmatprep.subr.mxu0 0.0
    %745 = vmatpush1.msra.mxu0 0.0
    %746 = vmatprep.subr.mxu0 0.0
    %747 = vmatpush1.msra.mxu0 0.0
    %748 = vmatprep.subr.mxu0 0.0
    %749 = vmatpush1.msra.mxu0 0.0
    %750 = vmatprep.subr.mxu0 0.0
    %751 = vmatpush1.msra.mxu0 0.0
    %752 = vmatprep.subr.mxu0 0.0
    %753 = vmatpush1.msra.mxu0 0.0
    %754 = vmatprep.subr.mxu0 0.0
    %755 = vmatpush1.msra.mxu0 %v726
    %756 = vmatprep.subr.mxu0 0.0
    %757 = vmatpush1.msra.mxu0 %v725
    %758 = vmatprep.subr.mxu0 0.0
    %759 = vmatpush1.msra.mxu0 %v724
    %760 = vmatprep.subr.mxu0 0.0
    %761 = vmatpush1.msra.mxu0 %v723
    %762 = vmatprep.subr.mxu0 0.0
    %763 = vmatpush1.msra.mxu0 %v722
    %764 = vmatprep.subr.mxu0 0.0
    %765 = vmatpush1.msra.mxu0 %v721
    %766 = vmatprep.subr.mxu0 0.0
    %767 = vmatpush1.msra.mxu0 %v720
    %768 = vmatprep.subr.mxu0 0.0
    %769 = vmatpush1.msra.mxu0 %v719
    %770 = vmatprep.subr.mxu0 0.0
    %771 = vmatpush2.msra.mxu0 0.0
    %772 = vmatprep.subr.mxu0 0.0
    %773 = vmatpush2.msra.mxu0 0.0
    %774 = vmatprep.subr.mxu0 0.0
    %775 = vmatpush2.msra.mxu0 0.0
    %776 = vmatprep.subr.mxu0 0.0
    %777 = vmatpush2.msra.mxu0 0.0
    %778 = vmatprep.subr.mxu0 0.0
    %779 = vmatpush2.msra.mxu0 0.0
    %780 = vmatprep.subr.mxu0 0.0
    %781 = vmatpush2.msra.mxu0 0.0
    %782 = vmatprep.subr.mxu0 0.0
    %783 = vmatpush2.msra.mxu0 0.0
    %784 = vmatprep.subr.mxu0 0.0
    %785 = vmatpush2.msra.mxu0 0.0
    %786 = vmatprep.subr.mxu0 0.0
    %787 = vmatpush2.msra.mxu0 0.0
    %788 = vmatprep.subr.mxu0 0.0
    %789 = vmatpush2.msra.mxu0 0.0
    %790 = vmatprep.subr.mxu0 0.0
    %791 = vmatpush2.msra.mxu0 0.0
    %792 = vmatprep.subr.mxu0 0.0
    %793 = vmatpush2.msra.mxu0 0.0
    %794 = vmatprep.subr.mxu0 0.0
    %795 = vmatpush2.msra.mxu0 0.0
    %796 = vmatprep.subr.mxu0 0.0
    %797 = vmatpush2.msra.mxu0 0.0
    %798 = vmatprep.subr.mxu0 0.0
    %799 = vmatpush2.msra.mxu0 0.0
    %800 = vmatprep.subr.mxu0 0.0
    %801 = vmatpush2.msra.mxu0 0.0
    %802 = vmatprep.mubr.f32.mxu0 0.0
    %803 = vmatmul.mubr.f32.gmra.mxu0 %v733
    %v804 = vpop.f32.mrf.mxu0
    %v805 = vadd.f32 0.0, %v804
    %v806 = vpop.f32.mrf.mxu0
    %807 = vmatprep.mubr.f32.mxu0 0.0
    %808 = vmatmul.mubr.f32.gmra.mxu0 %v736
    %v809 = vpop.f32.mrf.mxu0
    %v810 = vadd.f32 0.0, %v809
    %v811 = vpop.f32.mrf.mxu0
    %812 = vdwg.mxu0
    %v813 = vadd.f32 %v727, %v805
    %v814 = vadd.f32 %v728, %v810
    %v815 = vxor.u32 %v813, 2147483648
    %v816 = vxor.u32 %v814, 2147483648
    %v817 = vmul.f32 %v815, 1.442695
    %v818 = vpow.pop %v817
    %v819 = vmul.f32 %v816, 1.442695
    %v820 = vpow.pop %v819
    %v821 = vadd.f32 %v818, 1.0
    %v822 = vadd.f32 %v820, 1.0
    %v823 = vrcp.pop %v821
    %v824 = vmul.f32 1.0, %v823
    %v825 = vrcp.pop %v822
    %v826 = vmul.f32 1.0, %v825
    %v827 = vtanh.pop %v813
    %v828 = vtanh.pop %v814
    %v829 = vmul.f32 %v824, 0.0
    %v830 = vmul.f32 %v826, 0.0
    %833 = vrot.lane.b32.xlu0 %v827, 64
    %v834 = vpop.permute.xlu0 %833
    %835 = vrot.lane.b32.xlu0 %v828, 64
    %v836 = vpop.permute.xlu0 %835
    %v839 = vmul.f32 %v824, %v834
    %v840 = vmul.f32 %v826, %v836
    %843 = vrot.lane.b32.xlu0 %v839, 32
    %v844 = vpop.permute.xlu0 %843
    %845 = vrot.lane.b32.xlu0 %v840, 32
    %v846 = vpop.permute.xlu0 %845
    %v849 = vadd.f32 %v829, %v844
    %v850 = vadd.f32 %v830, %v846
    %v851 = vtanh.pop %v849
    %v852 = vtanh.pop %v850
    %855 = vrot.lane.b32.xlu0 %v851, 64
    %v856 = vpop.permute.xlu0 %855
    %857 = vrot.lane.b32.xlu0 %v852, 64
    %v858 = vpop.permute.xlu0 %857
    %v861 = vmul.f32 %v824, %v856
    %v862 = vmul.f32 %v826, %v858
    %864 = vrot.lane.b32.xlu0 %v861, 32
    %v865 = vpop.permute.xlu0 %864
    %vm867 = vcmask 261120
    %868 = vst.msk [vmem:[#allocation3] sm:$0xff] %vm867, %v865
    %870 = vrot.lane.b32.xlu0 %v862, 64
    %v871 = vpop.permute.xlu0 %870
    %vm873 = vcmask 523520
    %874 = vst.msk [vmem:[#allocation3 + $0x78] sm:$0xff] %vm873, %v871
    %v875 = vld [vmem:[#allocation2 + $0x10] sm:$0xff]
    %v876 = vld [vmem:[#allocation2 + $0xe8] sm:$0xff]
    %877 = vrot.lane.b32.xlu0 %v862, 32
    %v878 = vpop.permute.xlu0 %877
    %880 = vrot.lane.b32.xlu0 %v861, 64
    %v881 = vpop.permute.xlu0 %880
    %v883 = vsel %vm867, %v865, %v881
    %v884 = vsel %vm867, %v878, %v871
    %v885 = vmul.f32 %v883, %v459
    %v886 = vmul.f32 %v884, %v460
    %v888 = vsel %vm731, %v885, 0
    %v891 = vsel %vm731, %v886, 0
    %893 = vmatprep.subr.mxu0 0.0
    %894 = vmatpush1.msra.mxu0 0.0
    %895 = vmatprep.subr.mxu0 0.0
    %896 = vmatpush1.msra.mxu0 0.0
    %897 = vmatprep.subr.mxu0 0.0
    %898 = vmatpush1.msra.mxu0 0.0
    %899 = vmatprep.subr.mxu0 0.0
    %900 = vmatpush1.msra.mxu0 0.0
    %901 = vmatprep.subr.mxu0 0.0
    %902 = vmatpush1.msra.mxu0 0.0
    %903 = vmatprep.subr.mxu0 0.0
    %904 = vmatpush1.msra.mxu0 0.0
    %905 = vmatprep.subr.mxu0 0.0
    %906 = vmatpush1.msra.mxu0 0.0
    %907 = vmatprep.subr.mxu0 0.0
    %908 = vmatpush1.msra.mxu0 0.0
    %909 = vmatprep.subr.mxu0 0.0
    %910 = vmatpush1.msra.mxu0 %v726
    %911 = vmatprep.subr.mxu0 0.0
    %912 = vmatpush1.msra.mxu0 %v725
    %913 = vmatprep.subr.mxu0 0.0
    %914 = vmatpush1.msra.mxu0 %v724
    %915 = vmatprep.subr.mxu0 0.0
    %916 = vmatpush1.msra.mxu0 %v723
    %917 = vmatprep.subr.mxu0 0.0
    %918 = vmatpush1.msra.mxu0 %v722
    %919 = vmatprep.subr.mxu0 0.0
    %920 = vmatpush1.msra.mxu0 %v721
    %921 = vmatprep.subr.mxu0 0.0
    %922 = vmatpush1.msra.mxu0 %v720
    %923 = vmatprep.subr.mxu0 0.0
    %924 = vmatpush1.msra.mxu0 %v719
    %925 = vmatprep.subr.mxu0 0.0
    %926 = vmatpush2.msra.mxu0 0.0
    %927 = vmatprep.subr.mxu0 0.0
    %928 = vmatpush2.msra.mxu0 0.0
    %929 = vmatprep.subr.mxu0 0.0
    %930 = vmatpush2.msra.mxu0 0.0
    %931 = vmatprep.subr.mxu0 0.0
    %932 = vmatpush2.msra.mxu0 0.0
    %933 = vmatprep.subr.mxu0 0.0
    %934 = vmatpush2.msra.mxu0 0.0
    %935 = vmatprep.subr.mxu0 0.0
    %936 = vmatpush2.msra.mxu0 0.0
    %937 = vmatprep.subr.mxu0 0.0
    %938 = vmatpush2.msra.mxu0 0.0
    %939 = vmatprep.subr.mxu0 0.0
    %940 = vmatpush2.msra.mxu0 0.0
    %941 = vmatprep.subr.mxu0 0.0
    %942 = vmatpush2.msra.mxu0 0.0
    %943 = vmatprep.subr.mxu0 0.0
    %944 = vmatpush2.msra.mxu0 0.0
    %945 = vmatprep.subr.mxu0 0.0
    %946 = vmatpush2.msra.mxu0 0.0
    %947 = vmatprep.subr.mxu0 0.0
    %948 = vmatpush2.msra.mxu0 0.0
    %949 = vmatprep.subr.mxu0 0.0
    %950 = vmatpush2.msra.mxu0 0.0
    %951 = vmatprep.subr.mxu0 0.0
    %952 = vmatpush2.msra.mxu0 0.0
    %953 = vmatprep.subr.mxu0 0.0
    %954 = vmatpush2.msra.mxu0 0.0
    %955 = vmatprep.subr.mxu0 0.0
    %956 = vmatpush2.msra.mxu0 0.0
    %957 = vmatprep.mubr.f32.mxu0 0.0
    %958 = vmatmul.mubr.f32.gmra.mxu0 %v888
    %v959 = vpop.f32.mrf.mxu0
    %v960 = vadd.f32 0.0, %v959
    %v961 = vpop.f32.mrf.mxu0
    %962 = vmatprep.mubr.f32.mxu0 0.0
    %963 = vmatmul.mubr.f32.gmra.mxu0 %v891
    %v964 = vpop.f32.mrf.mxu0
    %v965 = vadd.f32 0.0, %v964
    %v966 = vpop.f32.mrf.mxu0
    %967 = vdwg.mxu0
    %v968 = vadd.f32 %v875, %v960
    %v969 = vadd.f32 %v876, %v965
    %v970 = vxor.u32 %v968, 2147483648
    %v971 = vxor.u32 %v969, 2147483648
    %v972 = vmul.f32 %v970, 1.442695
    %v973 = vpow.pop %v972
    %v974 = vmul.f32 %v971, 1.442695
    %v975 = vpow.pop %v974
    %v976 = vadd.f32 %v973, 1.0
    %v977 = vadd.f32 %v975, 1.0
    %v978 = vrcp.pop %v976
    %v979 = vmul.f32 1.0, %v978
    %v980 = vrcp.pop %v977
    %v981 = vmul.f32 1.0, %v980
    %v982 = vtanh.pop %v968
    %v983 = vtanh.pop %v969
    %v984 = vmul.f32 %v979, %v849
    %v985 = vmul.f32 %v981, %v850
    %988 = vrot.lane.b32.xlu0 %v982, 64
    %v989 = vpop.permute.xlu0 %988
    %990 = vrot.lane.b32.xlu0 %v983, 64
    %v991 = vpop.permute.xlu0 %990
    %v994 = vmul.f32 %v979, %v989
    %v995 = vmul.f32 %v981, %v991
    %998 = vrot.lane.b32.xlu0 %v994, 32
    %v999 = vpop.permute.xlu0 %998
    %1000 = vrot.lane.b32.xlu0 %v995, 32
    %v1001 = vpop.permute.xlu0 %1000
    %v1004 = vadd.f32 %v984, %v999
    %v1005 = vadd.f32 %v985, %v1001
    %v1006 = vtanh.pop %v1004
    %v1007 = vtanh.pop %v1005
    %1010 = vrot.lane.b32.xlu0 %v1006, 64
    %v1011 = vpop.permute.xlu0 %1010
    %1012 = vrot.lane.b32.xlu0 %v1007, 64
    %v1013 = vpop.permute.xlu0 %1012
    %v1016 = vmul.f32 %v979, %v1011
    %v1017 = vmul.f32 %v981, %v1013
    %1019 = vrot.lane.b32.xlu0 %v1016, 32
    %v1020 = vpop.permute.xlu0 %1019
    %1022 = vst.msk [vmem:[#allocation3 + $0x8] sm:$0xff] %vm867, %v1020
    %1024 = vrot.lane.b32.xlu0 %v1017, 64
    %v1025 = vpop.permute.xlu0 %1024
    %1027 = vst.msk [vmem:[#allocation3 + $0x70] sm:$0xff] %vm873, %v1025
    %v1028 = vld [vmem:[#allocation2 + $0x20] sm:$0xff]
    %v1029 = vld [vmem:[#allocation2 + $0xd8] sm:$0xff]
    %1030 = vrot.lane.b32.xlu0 %v1017, 32
    %v1031 = vpop.permute.xlu0 %1030
    %1033 = vrot.lane.b32.xlu0 %v1016, 64
    %v1034 = vpop.permute.xlu0 %1033
    %v1036 = vsel %vm867, %v1020, %v1034
    %v1037 = vsel %vm867, %v1031, %v1025
    %v1038 = vmul.f32 %v1036, %v459
    %v1039 = vmul.f32 %v1037, %v460
    %v1041 = vsel %vm731, %v1038, 0
    %v1044 = vsel %vm731, %v1039, 0
    %1046 = vmatprep.subr.mxu0 0.0
    %1047 = vmatpush1.msra.mxu0 0.0
    %1048 = vmatprep.subr.mxu0 0.0
    %1049 = vmatpush1.msra.mxu0 0.0
    %1050 = vmatprep.subr.mxu0 0.0
    %1051 = vmatpush1.msra.mxu0 0.0
    %1052 = vmatprep.subr.mxu0 0.0
    %1053 = vmatpush1.msra.mxu0 0.0
    %1054 = vmatprep.subr.mxu0 0.0
    %1055 = vmatpush1.msra.mxu0 0.0
    %1056 = vmatprep.subr.mxu0 0.0
    %1057 = vmatpush1.msra.mxu0 0.0
    %1058 = vmatprep.subr.mxu0 0.0
    %1059 = vmatpush1.msra.mxu0 0.0
    %1060 = vmatprep.subr.mxu0 0.0
    %1061 = vmatpush1.msra.mxu0 0.0
    %1062 = vmatprep.subr.mxu0 0.0
    %1063 = vmatpush1.msra.mxu0 %v726
    %1064 = vmatprep.subr.mxu0 0.0
    %1065 = vmatpush1.msra.mxu0 %v725
    %1066 = vmatprep.subr.mxu0 0.0
    %1067 = vmatpush1.msra.mxu0 %v724
    %1068 = vmatprep.subr.mxu0 0.0
    %1069 = vmatpush1.msra.mxu0 %v723
    %1070 = vmatprep.subr.mxu0 0.0
    %1071 = vmatpush1.msra.mxu0 %v722
    %1072 = vmatprep.subr.mxu0 0.0
    %1073 = vmatpush1.msra.mxu0 %v721
    %1074 = vmatprep.subr.mxu0 0.0
    %1075 = vmatpush1.msra.mxu0 %v720
    %1076 = vmatprep.subr.mxu0 0.0
    %1077 = vmatpush1.msra.mxu0 %v719
    %1078 = vmatprep.subr.mxu0 0.0
    %1079 = vmatpush2.msra.mxu0 0.0
    %1080 = vmatprep.subr.mxu0 0.0
    %1081 = vmatpush2.msra.mxu0 0.0
    %1082 = vmatprep.subr.mxu0 0.0
    %1083 = vmatpush2.msra.mxu0 0.0
    %1084 = vmatprep.subr.mxu0 0.0
    %1085 = vmatpush2.msra.mxu0 0.0
    %1086 = vmatprep.subr.mxu0 0.0
    %1087 = vmatpush2.msra.mxu0 0.0
    %1088 = vmatprep.subr.mxu0 0.0
    %1089 = vmatpush2.msra.mxu0 0.0
    %1090 = vmatprep.subr.mxu0 0.0
    %1091 = vmatpush2.msra.mxu0 0.0
    %1092 = vmatprep.subr.mxu0 0.0
    %1093 = vmatpush2.msra.mxu0 0.0
    %1094 = vmatprep.subr.mxu0 0.0
    %1095 = vmatpush2.msra.mxu0 0.0
    %1096 = vmatprep.subr.mxu0 0.0
    %1097 = vmatpush2.msra.mxu0 0.0
    %1098 = vmatprep.subr.mxu0 0.0
    %1099 = vmatpush2.msra.mxu0 0.0
    %1100 = vmatprep.subr.mxu0 0.0
    %1101 = vmatpush2.msra.mxu0 0.0
    %1102 = vmatprep.subr.mxu0 0.0
    %1103 = vmatpush2.msra.mxu0 0.0
    %1104 = vmatprep.subr.mxu0 0.0
    %1105 = vmatpush2.msra.mxu0 0.0
    %1106 = vmatprep.subr.mxu0 0.0
    %1107 = vmatpush2.msra.mxu0 0.0
    %1108 = vmatprep.subr.mxu0 0.0
    %1109 = vmatpush2.msra.mxu0 0.0
    %1110 = vmatprep.mubr.f32.mxu0 0.0
    %1111 = vmatmul.mubr.f32.gmra.mxu0 %v1041
    %v1112 = vpop.f32.mrf.mxu0
    %v1113 = vadd.f32 0.0, %v1112
    %v1114 = vpop.f32.mrf.mxu0
    %1115 = vmatprep.mubr.f32.mxu0 0.0
    %1116 = vmatmul.mubr.f32.gmra.mxu0 %v1044
    %v1117 = vpop.f32.mrf.mxu0
    %v1118 = vadd.f32 0.0, %v1117
    %v1119 = vpop.f32.mrf.mxu0
    %1120 = vdwg.mxu0
    %v1121 = vadd.f32 %v1028, %v1113
    %v1122 = vadd.f32 %v1029, %v1118
    %v1123 = vxor.u32 %v1121, 2147483648
    %v1124 = vxor.u32 %v1122, 2147483648
    %v1125 = vmul.f32 %v1123, 1.442695
    %v1126 = vpow.pop %v1125
    %v1127 = vmul.f32 %v1124, 1.442695
    %v1128 = vpow.pop %v1127
    %v1129 = vadd.f32 %v1126, 1.0
    %v1130 = vadd.f32 %v1128, 1.0
    %v1131 = vrcp.pop %v1129
    %v1132 = vmul.f32 1.0, %v1131
    %v1133 = vrcp.pop %v1130
    %v1134 = vmul.f32 1.0, %v1133
    %v1135 = vtanh.pop %v1121
    %v1136 = vtanh.pop %v1122
    %v1137 = vmul.f32 %v1132, %v1004
    %v1138 = vmul.f32 %v1134, %v1005
    %1141 = vrot.lane.b32.xlu0 %v1135, 64
    %v1142 = vpop.permute.xlu0 %1141
    %1143 = vrot.lane.b32.xlu0 %v1136, 64
    %v1144 = vpop.permute.xlu0 %1143
    %v1147 = vmul.f32 %v1132, %v1142
    %v1148 = vmul.f32 %v1134, %v1144
    %1151 = vrot.lane.b32.xlu0 %v1147, 32
    %v1152 = vpop.permute.xlu0 %1151
    %1153 = vrot.lane.b32.xlu0 %v1148, 32
    %v1154 = vpop.permute.xlu0 %1153
    %v1157 = vadd.f32 %v1137, %v1152
    %v1158 = vadd.f32 %v1138, %v1154
    %v1159 = vtanh.pop %v1157
    %v1160 = vtanh.pop %v1158
    %1163 = vrot.lane.b32.xlu0 %v1159, 64
    %v1164 = vpop.permute.xlu0 %1163
    %1165 = vrot.lane.b32.xlu0 %v1160, 64
    %v1166 = vpop.permute.xlu0 %1165
    %v1169 = vmul.f32 %v1132, %v1164
    %v1170 = vmul.f32 %v1134, %v1166
    %1172 = vrot.lane.b32.xlu0 %v1169, 32
    %v1173 = vpop.permute.xlu0 %1172
    %1175 = vst.msk [vmem:[#allocation3 + $0x10] sm:$0xff] %vm867, %v1173
    %1177 = vrot.lane.b32.xlu0 %v1170, 64
    %v1178 = vpop.permute.xlu0 %1177
    %1180 = vst.msk [vmem:[#allocation3 + $0x68] sm:$0xff] %vm873, %v1178
    %v1181 = vld [vmem:[#allocation2 + $0x30] sm:$0xff]
    %v1182 = vld [vmem:[#allocation2 + $0xc8] sm:$0xff]
    %1183 = vrot.lane.b32.xlu0 %v1170, 32
    %v1184 = vpop.permute.xlu0 %1183
    %1186 = vrot.lane.b32.xlu0 %v1169, 64
    %v1187 = vpop.permute.xlu0 %1186
    %v1189 = vsel %vm867, %v1173, %v1187
    %v1190 = vsel %vm867, %v1184, %v1178
    %v1191 = vmul.f32 %v1189, %v459
    %v1192 = vmul.f32 %v1190, %v460
    %v1194 = vsel %vm731, %v1191, 0
    %v1197 = vsel %vm731, %v1192, 0
    %1199 = vmatprep.subr.mxu0 0.0
    %1200 = vmatpush1.msra.mxu0 0.0
    %1201 = vmatprep.subr.mxu0 0.0
    %1202 = vmatpush1.msra.mxu0 0.0
    %1203 = vmatprep.subr.mxu0 0.0
    %1204 = vmatpush1.msra.mxu0 0.0
    %1205 = vmatprep.subr.mxu0 0.0
    %1206 = vmatpush1.msra.mxu0 0.0
    %1207 = vmatprep.subr.mxu0 0.0
    %1208 = vmatpush1.msra.mxu0 0.0
    %1209 = vmatprep.subr.mxu0 0.0
    %1210 = vmatpush1.msra.mxu0 0.0
    %1211 = vmatprep.subr.mxu0 0.0
    %1212 = vmatpush1.msra.mxu0 0.0
    %1213 = vmatprep.subr.mxu0 0.0
    %1214 = vmatpush1.msra.mxu0 0.0
    %1215 = vmatprep.subr.mxu0 0.0
    %1216 = vmatpush1.msra.mxu0 %v726
    %1217 = vmatprep.subr.mxu0 0.0
    %1218 = vmatpush1.msra.mxu0 %v725
    %1219 = vmatprep.subr.mxu0 0.0
    %1220 = vmatpush1.msra.mxu0 %v724
    %1221 = vmatprep.subr.mxu0 0.0
    %1222 = vmatpush1.msra.mxu0 %v723
    %1223 = vmatprep.subr.mxu0 0.0
    %1224 = vmatpush1.msra.mxu0 %v722
    %1225 = vmatprep.subr.mxu0 0.0
    %1226 = vmatpush1.msra.mxu0 %v721
    %1227 = vmatprep.subr.mxu0 0.0
    %1228 = vmatpush1.msra.mxu0 %v720
    %1229 = vmatprep.subr.mxu0 0.0
    %1230 = vmatpush1.msra.mxu0 %v719
    %1231 = vmatprep.subr.mxu0 0.0
    %1232 = vmatpush2.msra.mxu0 0.0
    %1233 = vmatprep.subr.mxu0 0.0
    %1234 = vmatpush2.msra.mxu0 0.0
    %1235 = vmatprep.subr.mxu0 0.0
    %1236 = vmatpush2.msra.mxu0 0.0
    %1237 = vmatprep.subr.mxu0 0.0
    %1238 = vmatpush2.msra.mxu0 0.0
    %1239 = vmatprep.subr.mxu0 0.0
    %1240 = vmatpush2.msra.mxu0 0.0
    %1241 = vmatprep.subr.mxu0 0.0
    %1242 = vmatpush2.msra.mxu0 0.0
    %1243 = vmatprep.subr.mxu0 0.0
    %1244 = vmatpush2.msra.mxu0 0.0
    %1245 = vmatprep.subr.mxu0 0.0
    %1246 = vmatpush2.msra.mxu0 0.0
    %1247 = vmatprep.subr.mxu0 0.0
    %1248 = vmatpush2.msra.mxu0 0.0
    %1249 = vmatprep.subr.mxu0 0.0
    %1250 = vmatpush2.msra.mxu0 0.0
    %1251 = vmatprep.subr.mxu0 0.0
    %1252 = vmatpush2.msra.mxu0 0.0
    %1253 = vmatprep.subr.mxu0 0.0
    %1254 = vmatpush2.msra.mxu0 0.0
    %1255 = vmatprep.subr.mxu0 0.0
    %1256 = vmatpush2.msra.mxu0 0.0
    %1257 = vmatprep.subr.mxu0 0.0
    %1258 = vmatpush2.msra.mxu0 0.0
    %1259 = vmatprep.subr.mxu0 0.0
    %1260 = vmatpush2.msra.mxu0 0.0
    %1261 = vmatprep.subr.mxu0 0.0
    %1262 = vmatpush2.msra.mxu0 0.0
    %1263 = vmatprep.mubr.f32.mxu0 0.0
    %1264 = vmatmul.mubr.f32.gmra.mxu0 %v1194
    %v1265 = vpop.f32.mrf.mxu0
    %v1266 = vadd.f32 0.0, %v1265
    %v1267 = vpop.f32.mrf.mxu0
    %1268 = vmatprep.mubr.f32.mxu0 0.0
    %1269 = vmatmul.mubr.f32.gmra.mxu0 %v1197
    %v1270 = vpop.f32.mrf.mxu0
    %v1271 = vadd.f32 0.0, %v1270
    %v1272 = vpop.f32.mrf.mxu0
    %1273 = vdwg.mxu0
    %v1274 = vadd.f32 %v1181, %v1266
    %v1275 = vadd.f32 %v1182, %v1271
    %v1276 = vxor.u32 %v1274, 2147483648
    %v1277 = vxor.u32 %v1275, 2147483648
    %v1278 = vmul.f32 %v1276, 1.442695
    %v1279 = vpow.pop %v1278
    %v1280 = vmul.f32 %v1277, 1.442695
    %v1281 = vpow.pop %v1280
    %v1282 = vadd.f32 %v1279, 1.0
    %v1283 = vadd.f32 %v1281, 1.0
    %v1284 = vrcp.pop %v1282
    %v1285 = vmul.f32 1.0, %v1284
    %v1286 = vrcp.pop %v1283
    %v1287 = vmul.f32 1.0, %v1286
    %v1288 = vtanh.pop %v1274
    %v1289 = vtanh.pop %v1275
    %v1290 = vmul.f32 %v1285, %v1157
    %v1291 = vmul.f32 %v1287, %v1158
    %1294 = vrot.lane.b32.xlu0 %v1288, 64
    %v1295 = vpop.permute.xlu0 %1294
    %1296 = vrot.lane.b32.xlu0 %v1289, 64
    %v1297 = vpop.permute.xlu0 %1296
    %v1300 = vmul.f32 %v1285, %v1295
    %v1301 = vmul.f32 %v1287, %v1297
    %1304 = vrot.lane.b32.xlu0 %v1300, 32
    %v1305 = vpop.permute.xlu0 %1304
    %1306 = vrot.lane.b32.xlu0 %v1301, 32
    %v1307 = vpop.permute.xlu0 %1306
    %v1310 = vadd.f32 %v1290, %v1305
    %v1311 = vadd.f32 %v1291, %v1307
    %v1312 = vtanh.pop %v1310
    %v1313 = vtanh.pop %v1311
    %1316 = vrot.lane.b32.xlu0 %v1312, 64
    %v1317 = vpop.permute.xlu0 %1316
    %1318 = vrot.lane.b32.xlu0 %v1313, 64
    %v1319 = vpop.permute.xlu0 %1318
    %v1322 = vmul.f32 %v1285, %v1317
    %v1323 = vmul.f32 %v1287, %v1319
    %1325 = vrot.lane.b32.xlu0 %v1322, 32
    %v1326 = vpop.permute.xlu0 %1325
    %1328 = vst.msk [vmem:[#allocation3 + $0x18] sm:$0xff] %vm867, %v1326
    %1330 = vrot.lane.b32.xlu0 %v1323, 64
    %v1331 = vpop.permute.xlu0 %1330
    %1333 = vst.msk [vmem:[#allocation3 + $0x60] sm:$0xff] %vm873, %v1331
    %v1334 = vld [vmem:[#allocation2 + $0x40] sm:$0xff]
    %v1335 = vld [vmem:[#allocation2 + $0xb8] sm:$0xff]
    %1336 = vrot.lane.b32.xlu0 %v1323, 32
    %v1337 = vpop.permute.xlu0 %1336
    %1339 = vrot.lane.b32.xlu0 %v1322, 64
    %v1340 = vpop.permute.xlu0 %1339
    %v1342 = vsel %vm867, %v1326, %v1340
    %v1343 = vsel %vm867, %v1337, %v1331
    %v1344 = vmul.f32 %v1342, %v459
    %v1345 = vmul.f32 %v1343, %v460
    %v1347 = vsel %vm731, %v1344, 0
    %v1350 = vsel %vm731, %v1345, 0
    %1352 = vmatprep.subr.mxu0 0.0
    %1353 = vmatpush1.msra.mxu0 0.0
    %1354 = vmatprep.subr.mxu0 0.0
    %1355 = vmatpush1.msra.mxu0 0.0
    %1356 = vmatprep.subr.mxu0 0.0
    %1357 = vmatpush1.msra.mxu0 0.0
    %1358 = vmatprep.subr.mxu0 0.0
    %1359 = vmatpush1.msra.mxu0 0.0
    %1360 = vmatprep.subr.mxu0 0.0
    %1361 = vmatpush1.msra.mxu0 0.0
    %1362 = vmatprep.subr.mxu0 0.0
    %1363 = vmatpush1.msra.mxu0 0.0
    %1364 = vmatprep.subr.mxu0 0.0
    %1365 = vmatpush1.msra.mxu0 0.0
    %1366 = vmatprep.subr.mxu0 0.0
    %1367 = vmatpush1.msra.mxu0 0.0
    %1368 = vmatprep.subr.mxu0 0.0
    %1369 = vmatpush1.msra.mxu0 %v726
    %1370 = vmatprep.subr.mxu0 0.0
    %1371 = vmatpush1.msra.mxu0 %v725
    %1372 = vmatprep.subr.mxu0 0.0
    %1373 = vmatpush1.msra.mxu0 %v724
    %1374 = vmatprep.subr.mxu0 0.0
    %1375 = vmatpush1.msra.mxu0 %v723
    %1376 = vmatprep.subr.mxu0 0.0
    %1377 = vmatpush1.msra.mxu0 %v722
    %1378 = vmatprep.subr.mxu0 0.0
    %1379 = vmatpush1.msra.mxu0 %v721
    %1380 = vmatprep.subr.mxu0 0.0
    %1381 = vmatpush1.msra.mxu0 %v720
    %1382 = vmatprep.subr.mxu0 0.0
    %1383 = vmatpush1.msra.mxu0 %v719
    %1384 = vmatprep.subr.mxu0 0.0
    %1385 = vmatpush2.msra.mxu0 0.0
    %1386 = vmatprep.subr.mxu0 0.0
    %1387 = vmatpush2.msra.mxu0 0.0
    %1388 = vmatprep.subr.mxu0 0.0
    %1389 = vmatpush2.msra.mxu0 0.0
    %1390 = vmatprep.subr.mxu0 0.0
    %1391 = vmatpush2.msra.mxu0 0.0
    %1392 = vmatprep.subr.mxu0 0.0
    %1393 = vmatpush2.msra.mxu0 0.0
    %1394 = vmatprep.subr.mxu0 0.0
    %1395 = vmatpush2.msra.mxu0 0.0
    %1396 = vmatprep.subr.mxu0 0.0
    %1397 = vmatpush2.msra.mxu0 0.0
    %1398 = vmatprep.subr.mxu0 0.0
    %1399 = vmatpush2.msra.mxu0 0.0
    %1400 = vmatprep.subr.mxu0 0.0
    %1401 = vmatpush2.msra.mxu0 0.0
    %1402 = vmatprep.subr.mxu0 0.0
    %1403 = vmatpush2.msra.mxu0 0.0
    %1404 = vmatprep.subr.mxu0 0.0
    %1405 = vmatpush2.msra.mxu0 0.0
    %1406 = vmatprep.subr.mxu0 0.0
    %1407 = vmatpush2.msra.mxu0 0.0
    %1408 = vmatprep.subr.mxu0 0.0
    %1409 = vmatpush2.msra.mxu0 0.0
    %1410 = vmatprep.subr.mxu0 0.0
    %1411 = vmatpush2.msra.mxu0 0.0
    %1412 = vmatprep.subr.mxu0 0.0
    %1413 = vmatpush2.msra.mxu0 0.0
    %1414 = vmatprep.subr.mxu0 0.0
    %1415 = vmatpush2.msra.mxu0 0.0
    %1416 = vmatprep.mubr.f32.mxu0 0.0
    %1417 = vmatmul.mubr.f32.gmra.mxu0 %v1347
    %v1418 = vpop.f32.mrf.mxu0
    %v1419 = vadd.f32 0.0, %v1418
    %v1420 = vpop.f32.mrf.mxu0
    %1421 = vmatprep.mubr.f32.mxu0 0.0
    %1422 = vmatmul.mubr.f32.gmra.mxu0 %v1350
    %v1423 = vpop.f32.mrf.mxu0
    %v1424 = vadd.f32 0.0, %v1423
    %v1425 = vpop.f32.mrf.mxu0
    %1426 = vdwg.mxu0
    %v1427 = vadd.f32 %v1334, %v1419
    %v1428 = vadd.f32 %v1335, %v1424
    %v1429 = vxor.u32 %v1427, 2147483648
    %v1430 = vxor.u32 %v1428, 2147483648
    %v1431 = vmul.f32 %v1429, 1.442695
    %v1432 = vpow.pop %v1431
    %v1433 = vmul.f32 %v1430, 1.442695
    %v1434 = vpow.pop %v1433
    %v1435 = vadd.f32 %v1432, 1.0
    %v1436 = vadd.f32 %v1434, 1.0
    %v1437 = vrcp.pop %v1435
    %v1438 = vmul.f32 1.0, %v1437
    %v1439 = vrcp.pop %v1436
    %v1440 = vmul.f32 1.0, %v1439
    %v1441 = vtanh.pop %v1427
    %v1442 = vtanh.pop %v1428
    %v1443 = vmul.f32 %v1438, %v1310
    %v1444 = vmul.f32 %v1440, %v1311
    %1447 = vrot.lane.b32.xlu0 %v1441, 64
    %v1448 = vpop.permute.xlu0 %1447
    %1449 = vrot.lane.b32.xlu0 %v1442, 64
    %v1450 = vpop.permute.xlu0 %1449
    %v1453 = vmul.f32 %v1438, %v1448
    %v1454 = vmul.f32 %v1440, %v1450
    %1457 = vrot.lane.b32.xlu0 %v1453, 32
    %v1458 = vpop.permute.xlu0 %1457
    %1459 = vrot.lane.b32.xlu0 %v1454, 32
    %v1460 = vpop.permute.xlu0 %1459
    %v1463 = vadd.f32 %v1443, %v1458
    %v1464 = vadd.f32 %v1444, %v1460
    %v1465 = vtanh.pop %v1463
    %v1466 = vtanh.pop %v1464
    %1469 = vrot.lane.b32.xlu0 %v1465, 64
    %v1470 = vpop.permute.xlu0 %1469
    %1471 = vrot.lane.b32.xlu0 %v1466, 64
    %v1472 = vpop.permute.xlu0 %1471
    %v1475 = vmul.f32 %v1438, %v1470
    %v1476 = vmul.f32 %v1440, %v1472
    %1478 = vrot.lane.b32.xlu0 %v1475, 32
    %v1479 = vpop.permute.xlu0 %1478
    %1481 = vst.msk [vmem:[#allocation3 + $0x20] sm:$0xff] %vm867, %v1479
    %1483 = vrot.lane.b32.xlu0 %v1476, 64
    %v1484 = vpop.permute.xlu0 %1483
    %1486 = vst.msk [vmem:[#allocation3 + $0x58] sm:$0xff] %vm873, %v1484
    %v1487 = vld [vmem:[#allocation2 + $0x50] sm:$0xff]
    %v1488 = vld [vmem:[#allocation2 + $0xa8] sm:$0xff]
    %1489 = vrot.lane.b32.xlu0 %v1476, 32
    %v1490 = vpop.permute.xlu0 %1489
    %1492 = vrot.lane.b32.xlu0 %v1475, 64
    %v1493 = vpop.permute.xlu0 %1492
    %v1495 = vsel %vm867, %v1479, %v1493
    %v1496 = vsel %vm867, %v1490, %v1484
    %v1497 = vmul.f32 %v1495, %v459
    %v1498 = vmul.f32 %v1496, %v460
    %v1500 = vsel %vm731, %v1497, 0
    %v1503 = vsel %vm731, %v1498, 0
    %1505 = vmatprep.subr.mxu0 0.0
    %1506 = vmatpush1.msra.mxu0 0.0
    %1507 = vmatprep.subr.mxu0 0.0
    %1508 = vmatpush1.msra.mxu0 0.0
    %1509 = vmatprep.subr.mxu0 0.0
    %1510 = vmatpush1.msra.mxu0 0.0
    %1511 = vmatprep.subr.mxu0 0.0
    %1512 = vmatpush1.msra.mxu0 0.0
    %1513 = vmatprep.subr.mxu0 0.0
    %1514 = vmatpush1.msra.mxu0 0.0
    %1515 = vmatprep.subr.mxu0 0.0
    %1516 = vmatpush1.msra.mxu0 0.0
    %1517 = vmatprep.subr.mxu0 0.0
    %1518 = vmatpush1.msra.mxu0 0.0
    %1519 = vmatprep.subr.mxu0 0.0
    %1520 = vmatpush1.msra.mxu0 0.0
    %1521 = vmatprep.subr.mxu0 0.0
    %1522 = vmatpush1.msra.mxu0 %v726
    %1523 = vmatprep.subr.mxu0 0.0
    %1524 = vmatpush1.msra.mxu0 %v725
    %1525 = vmatprep.subr.mxu0 0.0
    %1526 = vmatpush1.msra.mxu0 %v724
    %1527 = vmatprep.subr.mxu0 0.0
    %1528 = vmatpush1.msra.mxu0 %v723
    %1529 = vmatprep.subr.mxu0 0.0
    %1530 = vmatpush1.msra.mxu0 %v722
    %1531 = vmatprep.subr.mxu0 0.0
    %1532 = vmatpush1.msra.mxu0 %v721
    %1533 = vmatprep.subr.mxu0 0.0
    %1534 = vmatpush1.msra.mxu0 %v720
    %1535 = vmatprep.subr.mxu0 0.0
    %1536 = vmatpush1.msra.mxu0 %v719
    %1537 = vmatprep.subr.mxu0 0.0
    %1538 = vmatpush2.msra.mxu0 0.0
    %1539 = vmatprep.subr.mxu0 0.0
    %1540 = vmatpush2.msra.mxu0 0.0
    %1541 = vmatprep.subr.mxu0 0.0
    %1542 = vmatpush2.msra.mxu0 0.0
    %1543 = vmatprep.subr.mxu0 0.0
    %1544 = vmatpush2.msra.mxu0 0.0
    %1545 = vmatprep.subr.mxu0 0.0
    %1546 = vmatpush2.msra.mxu0 0.0
    %1547 = vmatprep.subr.mxu0 0.0
    %1548 = vmatpush2.msra.mxu0 0.0
    %1549 = vmatprep.subr.mxu0 0.0
    %1550 = vmatpush2.msra.mxu0 0.0
    %1551 = vmatprep.subr.mxu0 0.0
    %1552 = vmatpush2.msra.mxu0 0.0
    %1553 = vmatprep.subr.mxu0 0.0
    %1554 = vmatpush2.msra.mxu0 0.0
    %1555 = vmatprep.subr.mxu0 0.0
    %1556 = vmatpush2.msra.mxu0 0.0
    %1557 = vmatprep.subr.mxu0 0.0
    %1558 = vmatpush2.msra.mxu0 0.0
    %1559 = vmatprep.subr.mxu0 0.0
    %1560 = vmatpush2.msra.mxu0 0.0
    %1561 = vmatprep.subr.mxu0 0.0
    %1562 = vmatpush2.msra.mxu0 0.0
    %1563 = vmatprep.subr.mxu0 0.0
    %1564 = vmatpush2.msra.mxu0 0.0
    %1565 = vmatprep.subr.mxu0 0.0
    %1566 = vmatpush2.msra.mxu0 0.0
    %1567 = vmatprep.subr.mxu0 0.0
    %1568 = vmatpush2.msra.mxu0 0.0
    %1569 = vmatprep.mubr.f32.mxu0 0.0
    %1570 = vmatmul.mubr.f32.gmra.mxu0 %v1500
    %v1571 = vpop.f32.mrf.mxu0
    %v1572 = vadd.f32 0.0, %v1571
    %v1573 = vpop.f32.mrf.mxu0
    %1574 = vmatprep.mubr.f32.mxu0 0.0
    %1575 = vmatmul.mubr.f32.gmra.mxu0 %v1503
    %v1576 = vpop.f32.mrf.mxu0
    %v1577 = vadd.f32 0.0, %v1576
    %v1578 = vpop.f32.mrf.mxu0
    %1579 = vdwg.mxu0
    %v1580 = vadd.f32 %v1487, %v1572
    %v1581 = vadd.f32 %v1488, %v1577
    %v1582 = vxor.u32 %v1580, 2147483648
    %v1583 = vxor.u32 %v1581, 2147483648
    %v1584 = vmul.f32 %v1582, 1.442695
    %v1585 = vpow.pop %v1584
    %v1586 = vmul.f32 %v1583, 1.442695
    %v1587 = vpow.pop %v1586
    %v1588 = vadd.f32 %v1585, 1.0
    %v1589 = vadd.f32 %v1587, 1.0
    %v1590 = vrcp.pop %v1588
    %v1591 = vmul.f32 1.0, %v1590
    %v1592 = vrcp.pop %v1589
    %v1593 = vmul.f32 1.0, %v1592
    %v1594 = vtanh.pop %v1580
    %v1595 = vtanh.pop %v1581
    %v1596 = vmul.f32 %v1591, %v1463
    %v1597 = vmul.f32 %v1593, %v1464
    %1600 = vrot.lane.b32.xlu0 %v1594, 64
    %v1601 = vpop.permute.xlu0 %1600
    %1602 = vrot.lane.b32.xlu0 %v1595, 64
    %v1603 = vpop.permute.xlu0 %1602
    %v1606 = vmul.f32 %v1591, %v1601
    %v1607 = vmul.f32 %v1593, %v1603
    %1610 = vrot.lane.b32.xlu0 %v1606, 32
    %v1611 = vpop.permute.xlu0 %1610
    %1612 = vrot.lane.b32.xlu0 %v1607, 32
    %v1613 = vpop.permute.xlu0 %1612
    %v1616 = vadd.f32 %v1596, %v1611
    %v1617 = vadd.f32 %v1597, %v1613
    %v1618 = vtanh.pop %v1616
    %v1619 = vtanh.pop %v1617
    %1622 = vrot.lane.b32.xlu0 %v1618, 64
    %v1623 = vpop.permute.xlu0 %1622
    %1624 = vrot.lane.b32.xlu0 %v1619, 64
    %v1625 = vpop.permute.xlu0 %1624
    %v1628 = vmul.f32 %v1591, %v1623
    %v1629 = vmul.f32 %v1593, %v1625
    %1631 = vrot.lane.b32.xlu0 %v1628, 32
    %v1632 = vpop.permute.xlu0 %1631
    %1634 = vst.msk [vmem:[#allocation3 + $0x28] sm:$0xff] %vm867, %v1632
    %1636 = vrot.lane.b32.xlu0 %v1629, 64
    %v1637 = vpop.permute.xlu0 %1636
    %1639 = vst.msk [vmem:[#allocation3 + $0x50] sm:$0xff] %vm873, %v1637
    %v1640 = vld [vmem:[#allocation2 + $0x60] sm:$0xff]
    %v1641 = vld [vmem:[#allocation2 + $0x98] sm:$0xff]
    %1642 = vrot.lane.b32.xlu0 %v1629, 32
    %v1643 = vpop.permute.xlu0 %1642
    %1645 = vrot.lane.b32.xlu0 %v1628, 64
    %v1646 = vpop.permute.xlu0 %1645
    %v1648 = vsel %vm867, %v1632, %v1646
    %v1649 = vsel %vm867, %v1643, %v1637
    %v1650 = vmul.f32 %v1648, %v459
    %v1651 = vmul.f32 %v1649, %v460
    %v1653 = vsel %vm731, %v1650, 0
    %v1656 = vsel %vm731, %v1651, 0
    %1658 = vmatprep.subr.mxu0 0.0
    %1659 = vmatpush1.msra.mxu0 0.0
    %1660 = vmatprep.subr.mxu0 0.0
    %1661 = vmatpush1.msra.mxu0 0.0
    %1662 = vmatprep.subr.mxu0 0.0
    %1663 = vmatpush1.msra.mxu0 0.0
    %1664 = vmatprep.subr.mxu0 0.0
    %1665 = vmatpush1.msra.mxu0 0.0
    %1666 = vmatprep.subr.mxu0 0.0
    %1667 = vmatpush1.msra.mxu0 0.0
    %1668 = vmatprep.subr.mxu0 0.0
    %1669 = vmatpush1.msra.mxu0 0.0
    %1670 = vmatprep.subr.mxu0 0.0
    %1671 = vmatpush1.msra.mxu0 0.0
    %1672 = vmatprep.subr.mxu0 0.0
    %1673 = vmatpush1.msra.mxu0 0.0
    %1674 = vmatprep.subr.mxu0 0.0
    %1675 = vmatpush1.msra.mxu0 %v726
    %1676 = vmatprep.subr.mxu0 0.0
    %1677 = vmatpush1.msra.mxu0 %v725
    %1678 = vmatprep.subr.mxu0 0.0
    %1679 = vmatpush1.msra.mxu0 %v724
    %1680 = vmatprep.subr.mxu0 0.0
    %1681 = vmatpush1.msra.mxu0 %v723
    %1682 = vmatprep.subr.mxu0 0.0
    %1683 = vmatpush1.msra.mxu0 %v722
    %1684 = vmatprep.subr.mxu0 0.0
    %1685 = vmatpush1.msra.mxu0 %v721
    %1686 = vmatprep.subr.mxu0 0.0
    %1687 = vmatpush1.msra.mxu0 %v720
    %1688 = vmatprep.subr.mxu0 0.0
    %1689 = vmatpush1.msra.mxu0 %v719
    %1690 = vmatprep.subr.mxu0 0.0
    %1691 = vmatpush2.msra.mxu0 0.0
    %1692 = vmatprep.subr.mxu0 0.0
    %1693 = vmatpush2.msra.mxu0 0.0
    %1694 = vmatprep.subr.mxu0 0.0
    %1695 = vmatpush2.msra.mxu0 0.0
    %1696 = vmatprep.subr.mxu0 0.0
    %1697 = vmatpush2.msra.mxu0 0.0
    %1698 = vmatprep.subr.mxu0 0.0
    %1699 = vmatpush2.msra.mxu0 0.0
    %1700 = vmatprep.subr.mxu0 0.0
    %1701 = vmatpush2.msra.mxu0 0.0
    %1702 = vmatprep.subr.mxu0 0.0
    %1703 = vmatpush2.msra.mxu0 0.0
    %1704 = vmatprep.subr.mxu0 0.0
    %1705 = vmatpush2.msra.mxu0 0.0
    %1706 = vmatprep.subr.mxu0 0.0
    %1707 = vmatpush2.msra.mxu0 0.0
    %1708 = vmatprep.subr.mxu0 0.0
    %1709 = vmatpush2.msra.mxu0 0.0
    %1710 = vmatprep.subr.mxu0 0.0
    %1711 = vmatpush2.msra.mxu0 0.0
    %1712 = vmatprep.subr.mxu0 0.0
    %1713 = vmatpush2.msra.mxu0 0.0
    %1714 = vmatprep.subr.mxu0 0.0
    %1715 = vmatpush2.msra.mxu0 0.0
    %1716 = vmatprep.subr.mxu0 0.0
    %1717 = vmatpush2.msra.mxu0 0.0
    %1718 = vmatprep.subr.mxu0 0.0
    %1719 = vmatpush2.msra.mxu0 0.0
    %1720 = vmatprep.subr.mxu0 0.0
    %1721 = vmatpush2.msra.mxu0 0.0
    %1722 = vmatprep.mubr.f32.mxu0 0.0
    %1723 = vmatmul.mubr.f32.gmra.mxu0 %v1653
    %v1724 = vpop.f32.mrf.mxu0
    %v1725 = vadd.f32 0.0, %v1724
    %v1726 = vpop.f32.mrf.mxu0
    %1727 = vmatprep.mubr.f32.mxu0 0.0
    %1728 = vmatmul.mubr.f32.gmra.mxu0 %v1656
    %v1729 = vpop.f32.mrf.mxu0
    %v1730 = vadd.f32 0.0, %v1729
    %v1731 = vpop.f32.mrf.mxu0
    %1732 = vdwg.mxu0
    %v1733 = vadd.f32 %v1640, %v1725
    %v1734 = vadd.f32 %v1641, %v1730
    %v1735 = vxor.u32 %v1733, 2147483648
    %v1736 = vxor.u32 %v1734, 2147483648
    %v1737 = vmul.f32 %v1735, 1.442695
    %v1738 = vpow.pop %v1737
    %v1739 = vmul.f32 %v1736, 1.442695
    %v1740 = vpow.pop %v1739
    %v1741 = vadd.f32 %v1738, 1.0
    %v1742 = vadd.f32 %v1740, 1.0
    %v1743 = vrcp.pop %v1741
    %v1744 = vmul.f32 1.0, %v1743
    %v1745 = vrcp.pop %v1742
    %v1746 = vmul.f32 1.0, %v1745
    %v1747 = vtanh.pop %v1733
    %v1748 = vtanh.pop %v1734
    %v1749 = vmul.f32 %v1744, %v1616
    %v1750 = vmul.f32 %v1746, %v1617
    %1753 = vrot.lane.b32.xlu0 %v1747, 64
    %v1754 = vpop.permute.xlu0 %1753
    %1755 = vrot.lane.b32.xlu0 %v1748, 64
    %v1756 = vpop.permute.xlu0 %1755
    %v1759 = vmul.f32 %v1744, %v1754
    %v1760 = vmul.f32 %v1746, %v1756
    %1763 = vrot.lane.b32.xlu0 %v1759, 32
    %v1764 = vpop.permute.xlu0 %1763
    %1765 = vrot.lane.b32.xlu0 %v1760, 32
    %v1766 = vpop.permute.xlu0 %1765
    %v1769 = vadd.f32 %v1749, %v1764
    %v1770 = vadd.f32 %v1750, %v1766
    %v1771 = vtanh.pop %v1769
    %v1772 = vtanh.pop %v1770
    %1775 = vrot.lane.b32.xlu0 %v1771, 64
    %v1776 = vpop.permute.xlu0 %1775
    %1777 = vrot.lane.b32.xlu0 %v1772, 64
    %v1778 = vpop.permute.xlu0 %1777
    %v1781 = vmul.f32 %v1744, %v1776
    %v1782 = vmul.f32 %v1746, %v1778
    %1784 = vrot.lane.b32.xlu0 %v1781, 32
    %v1785 = vpop.permute.xlu0 %1784
    %1787 = vst.msk [vmem:[#allocation3 + $0x30] sm:$0xff] %vm867, %v1785
    %1789 = vrot.lane.b32.xlu0 %v1782, 64
    %v1790 = vpop.permute.xlu0 %1789
    %1792 = vst.msk [vmem:[#allocation3 + $0x48] sm:$0xff] %vm873, %v1790
    %v1793 = vld [vmem:[#allocation2 + $0x70] sm:$0xff]
    %v1794 = vld [vmem:[#allocation2 + $0x88] sm:$0xff]
    %1795 = vrot.lane.b32.xlu0 %v1782, 32
    %v1796 = vpop.permute.xlu0 %1795
    %1798 = vrot.lane.b32.xlu0 %v1781, 64
    %v1799 = vpop.permute.xlu0 %1798
    %v1801 = vsel %vm867, %v1785, %v1799
    %v1802 = vsel %vm867, %v1796, %v1790
    %v1803 = vmul.f32 %v1801, %v459
    %v1804 = vmul.f32 %v1802, %v460
    %v1806 = vsel %vm731, %v1803, 0
    %v1809 = vsel %vm731, %v1804, 0
    %1811 = vmatprep.subr.mxu0 0.0
    %1812 = vmatpush1.msra.mxu0 0.0
    %1813 = vmatprep.subr.mxu0 0.0
    %1814 = vmatpush1.msra.mxu0 0.0
    %1815 = vmatprep.subr.mxu0 0.0
    %1816 = vmatpush1.msra.mxu0 0.0
    %1817 = vmatprep.subr.mxu0 0.0
    %1818 = vmatpush1.msra.mxu0 0.0
    %1819 = vmatprep.subr.mxu0 0.0
    %1820 = vmatpush1.msra.mxu0 0.0
    %1821 = vmatprep.subr.mxu0 0.0
    %1822 = vmatpush1.msra.mxu0 0.0
    %1823 = vmatprep.subr.mxu0 0.0
    %1824 = vmatpush1.msra.mxu0 0.0
    %1825 = vmatprep.subr.mxu0 0.0
    %1826 = vmatpush1.msra.mxu0 0.0
    %1827 = vmatprep.subr.mxu0 0.0
    %1828 = vmatpush1.msra.mxu0 %v726
    %1829 = vmatprep.subr.mxu0 0.0
    %1830 = vmatpush1.msra.mxu0 %v725
    %1831 = vmatprep.subr.mxu0 0.0
    %1832 = vmatpush1.msra.mxu0 %v724
    %1833 = vmatprep.subr.mxu0 0.0
    %1834 = vmatpush1.msra.mxu0 %v723
    %1835 = vmatprep.subr.mxu0 0.0
    %1836 = vmatpush1.msra.mxu0 %v722
    %1837 = vmatprep.subr.mxu0 0.0
    %1838 = vmatpush1.msra.mxu0 %v721
    %1839 = vmatprep.subr.mxu0 0.0
    %1840 = vmatpush1.msra.mxu0 %v720
    %1841 = vmatprep.subr.mxu0 0.0
    %1842 = vmatpush1.msra.mxu0 %v719
    %1843 = vmatprep.subr.mxu0 0.0
    %1844 = vmatpush2.msra.mxu0 0.0
    %1845 = vmatprep.subr.mxu0 0.0
    %1846 = vmatpush2.msra.mxu0 0.0
    %1847 = vmatprep.subr.mxu0 0.0
    %1848 = vmatpush2.msra.mxu0 0.0
    %1849 = vmatprep.subr.mxu0 0.0
    %1850 = vmatpush2.msra.mxu0 0.0
    %1851 = vmatprep.subr.mxu0 0.0
    %1852 = vmatpush2.msra.mxu0 0.0
    %1853 = vmatprep.subr.mxu0 0.0
    %1854 = vmatpush2.msra.mxu0 0.0
    %1855 = vmatprep.subr.mxu0 0.0
    %1856 = vmatpush2.msra.mxu0 0.0
    %1857 = vmatprep.subr.mxu0 0.0
    %1858 = vmatpush2.msra.mxu0 0.0
    %1859 = vmatprep.subr.mxu0 0.0
    %1860 = vmatpush2.msra.mxu0 0.0
    %1861 = vmatprep.subr.mxu0 0.0
    %1862 = vmatpush2.msra.mxu0 0.0
    %1863 = vmatprep.subr.mxu0 0.0
    %1864 = vmatpush2.msra.mxu0 0.0
    %1865 = vmatprep.subr.mxu0 0.0
    %1866 = vmatpush2.msra.mxu0 0.0
    %1867 = vmatprep.subr.mxu0 0.0
    %1868 = vmatpush2.msra.mxu0 0.0
    %1869 = vmatprep.subr.mxu0 0.0
    %1870 = vmatpush2.msra.mxu0 0.0
    %1871 = vmatprep.subr.mxu0 0.0
    %1872 = vmatpush2.msra.mxu0 0.0
    %1873 = vmatprep.subr.mxu0 0.0
    %1874 = vmatpush2.msra.mxu0 0.0
    %1875 = vmatprep.mubr.f32.mxu0 0.0
    %1876 = vmatmul.mubr.f32.gmra.mxu0 %v1806
    %v1877 = vpop.f32.mrf.mxu0
    %v1878 = vadd.f32 0.0, %v1877
    %v1879 = vpop.f32.mrf.mxu0
    %1880 = vmatprep.mubr.f32.mxu0 0.0
    %1881 = vmatmul.mubr.f32.gmra.mxu0 %v1809
    %v1882 = vpop.f32.mrf.mxu0
    %v1883 = vadd.f32 0.0, %v1882
    %v1884 = vpop.f32.mrf.mxu0
    %1885 = vdwg.mxu0
    %v1886 = vadd.f32 %v1793, %v1878
    %v1887 = vadd.f32 %v1794, %v1883
    %v1888 = vxor.u32 %v1886, 2147483648
    %v1889 = vxor.u32 %v1887, 2147483648
    %v1890 = vmul.f32 %v1888, 1.442695
    %v1891 = vpow.pop %v1890
    %v1892 = vmul.f32 %v1889, 1.442695
    %v1893 = vpow.pop %v1892
    %v1894 = vadd.f32 %v1891, 1.0
    %v1895 = vadd.f32 %v1893, 1.0
    %v1896 = vrcp.pop %v1894
    %v1897 = vmul.f32 1.0, %v1896
    %v1898 = vrcp.pop %v1895
    %v1899 = vmul.f32 1.0, %v1898
    %v1900 = vtanh.pop %v1886
    %v1901 = vtanh.pop %v1887
    %v1902 = vmul.f32 %v1897, %v1769
    %v1903 = vmul.f32 %v1899, %v1770
    %1906 = vrot.lane.b32.xlu0 %v1900, 64
    %v1907 = vpop.permute.xlu0 %1906
    %1908 = vrot.lane.b32.xlu0 %v1901, 64
    %v1909 = vpop.permute.xlu0 %1908
    %v1912 = vmul.f32 %v1897, %v1907
    %v1913 = vmul.f32 %v1899, %v1909
    %1916 = vrot.lane.b32.xlu0 %v1912, 32
    %v1917 = vpop.permute.xlu0 %1916
    %1918 = vrot.lane.b32.xlu0 %v1913, 32
    %v1919 = vpop.permute.xlu0 %1918
    %v1922 = vadd.f32 %v1902, %v1917
    %v1923 = vadd.f32 %v1903, %v1919
    %v1924 = vtanh.pop %v1922
    %v1925 = vtanh.pop %v1923
    %1928 = vrot.lane.b32.xlu0 %v1924, 64
    %v1929 = vpop.permute.xlu0 %1928
    %1930 = vrot.lane.b32.xlu0 %v1925, 64
    %v1931 = vpop.permute.xlu0 %1930
    %v1934 = vmul.f32 %v1897, %v1929
    %v1935 = vmul.f32 %v1899, %v1931
    %1937 = vrot.lane.b32.xlu0 %v1934, 32
    %v1938 = vpop.permute.xlu0 %1937
    %1940 = vst.msk [vmem:[#allocation3 + $0x38] sm:$0xff] %vm867, %v1938
    %1942 = vrot.lane.b32.xlu0 %v1935, 64
    %v1943 = vpop.permute.xlu0 %1942
    %1945 = vst.msk [vmem:[#allocation3 + $0x40] sm:$0xff] %vm873, %v1943
    %v1946 = vld [vmem:[#allocation2 + $0x80] sm:$0xff]
    %v1947 = vld [vmem:[#allocation2 + $0x78] sm:$0xff]
    %1948 = vrot.lane.b32.xlu0 %v1935, 32
    %v1949 = vpop.permute.xlu0 %1948
    %1951 = vrot.lane.b32.xlu0 %v1934, 64
    %v1952 = vpop.permute.xlu0 %1951
    %v1954 = vsel %vm867, %v1938, %v1952
    %v1955 = vsel %vm867, %v1949, %v1943
    %v1956 = vmul.f32 %v1954, %v459
    %v1957 = vmul.f32 %v1955, %v460
    %v1959 = vsel %vm731, %v1956, 0
    %v1962 = vsel %vm731, %v1957, 0
    %1964 = vmatprep.subr.mxu0 0.0
    %1965 = vmatpush1.msra.mxu0 0.0
    %1966 = vmatprep.subr.mxu0 0.0
    %1967 = vmatpush1.msra.mxu0 0.0
    %1968 = vmatprep.subr.mxu0 0.0
    %1969 = vmatpush1.msra.mxu0 0.0
    %1970 = vmatprep.subr.mxu0 0.0
    %1971 = vmatpush1.msra.mxu0 0.0
    %1972 = vmatprep.subr.mxu0 0.0
    %1973 = vmatpush1.msra.mxu0 0.0
    %1974 = vmatprep.subr.mxu0 0.0
    %1975 = vmatpush1.msra.mxu0 0.0
    %1976 = vmatprep.subr.mxu0 0.0
    %1977 = vmatpush1.msra.mxu0 0.0
    %1978 = vmatprep.subr.mxu0 0.0
    %1979 = vmatpush1.msra.mxu0 0.0
    %1980 = vmatprep.subr.mxu0 0.0
    %1981 = vmatpush1.msra.mxu0 %v726
    %1982 = vmatprep.subr.mxu0 0.0
    %1983 = vmatpush1.msra.mxu0 %v725
    %1984 = vmatprep.subr.mxu0 0.0
    %1985 = vmatpush1.msra.mxu0 %v724
    %1986 = vmatprep.subr.mxu0 0.0
    %1987 = vmatpush1.msra.mxu0 %v723
    %1988 = vmatprep.subr.mxu0 0.0
    %1989 = vmatpush1.msra.mxu0 %v722
    %1990 = vmatprep.subr.mxu0 0.0
    %1991 = vmatpush1.msra.mxu0 %v721
    %1992 = vmatprep.subr.mxu0 0.0
    %1993 = vmatpush1.msra.mxu0 %v720
    %1994 = vmatprep.subr.mxu0 0.0
    %1995 = vmatpush1.msra.mxu0 %v719
    %1996 = vmatprep.subr.mxu0 0.0
    %1997 = vmatpush2.msra.mxu0 0.0
    %1998 = vmatprep.subr.mxu0 0.0
    %1999 = vmatpush2.msra.mxu0 0.0
    %2000 = vmatprep.subr.mxu0 0.0
    %2001 = vmatpush2.msra.mxu0 0.0
    %2002 = vmatprep.subr.mxu0 0.0
    %2003 = vmatpush2.msra.mxu0 0.0
    %2004 = vmatprep.subr.mxu0 0.0
    %2005 = vmatpush2.msra.mxu0 0.0
    %2006 = vmatprep.subr.mxu0 0.0
    %2007 = vmatpush2.msra.mxu0 0.0
    %2008 = vmatprep.subr.mxu0 0.0
    %2009 = vmatpush2.msra.mxu0 0.0
    %2010 = vmatprep.subr.mxu0 0.0
    %2011 = vmatpush2.msra.mxu0 0.0
    %2012 = vmatprep.subr.mxu0 0.0
    %2013 = vmatpush2.msra.mxu0 0.0
    %2014 = vmatprep.subr.mxu0 0.0
    %2015 = vmatpush2.msra.mxu0 0.0
    %2016 = vmatprep.subr.mxu0 0.0
    %2017 = vmatpush2.msra.mxu0 0.0
    %2018 = vmatprep.subr.mxu0 0.0
    %2019 = vmatpush2.msra.mxu0 0.0
    %2020 = vmatprep.subr.mxu0 0.0
    %2021 = vmatpush2.msra.mxu0 0.0
    %2022 = vmatprep.subr.mxu0 0.0
    %2023 = vmatpush2.msra.mxu0 0.0
    %2024 = vmatprep.subr.mxu0 0.0
    %2025 = vmatpush2.msra.mxu0 0.0
    %2026 = vmatprep.subr.mxu0 0.0
    %2027 = vmatpush2.msra.mxu0 0.0
    %2028 = vmatprep.mubr.f32.mxu0 0.0
    %2029 = vmatmul.mubr.f32.gmra.mxu0 %v1959
    %v2030 = vpop.f32.mrf.mxu0
    %v2031 = vadd.f32 0.0, %v2030
    %v2032 = vpop.f32.mrf.mxu0
    %2033 = vmatprep.mubr.f32.mxu0 0.0
    %2034 = vmatmul.mubr.f32.gmra.mxu0 %v1962
    %v2035 = vpop.f32.mrf.mxu0
    %v2036 = vadd.f32 0.0, %v2035
    %v2037 = vpop.f32.mrf.mxu0
    %2038 = vdwg.mxu0
    %v2039 = vadd.f32 %v1946, %v2031
    %v2040 = vadd.f32 %v1947, %v2036
    %v2041 = vxor.u32 %v2039, 2147483648
    %v2042 = vxor.u32 %v2040, 2147483648
    %v2043 = vmul.f32 %v2041, 1.442695
    %v2044 = vpow.pop %v2043
    %v2045 = vmul.f32 %v2042, 1.442695
    %v2046 = vpow.pop %v2045
    %v2047 = vadd.f32 %v2044, 1.0
    %v2048 = vadd.f32 %v2046, 1.0
    %v2049 = vrcp.pop %v2047
    %v2050 = vmul.f32 1.0, %v2049
    %v2051 = vrcp.pop %v2048
    %v2052 = vmul.f32 1.0, %v2051
    %v2053 = vtanh.pop %v2039
    %v2054 = vtanh.pop %v2040
    %v2055 = vmul.f32 %v2050, %v1922
    %v2056 = vmul.f32 %v2052, %v1923
    %2059 = vrot.lane.b32.xlu0 %v2053, 64
    %v2060 = vpop.permute.xlu0 %2059
    %2061 = vrot.lane.b32.xlu0 %v2054, 64
    %v2062 = vpop.permute.xlu0 %2061
    %v2065 = vmul.f32 %v2050, %v2060
    %v2066 = vmul.f32 %v2052, %v2062
    %2069 = vrot.lane.b32.xlu0 %v2065, 32
    %v2070 = vpop.permute.xlu0 %2069
    %2071 = vrot.lane.b32.xlu0 %v2066, 32
    %v2072 = vpop.permute.xlu0 %2071
    %v2075 = vadd.f32 %v2055, %v2070
    %v2076 = vadd.f32 %v2056, %v2072
    %v2077 = vtanh.pop %v2075
    %v2078 = vtanh.pop %v2076
    %2081 = vrot.lane.b32.xlu0 %v2077, 64
    %v2082 = vpop.permute.xlu0 %2081
    %2083 = vrot.lane.b32.xlu0 %v2078, 64
    %v2084 = vpop.permute.xlu0 %2083
    %v2087 = vmul.f32 %v2050, %v2082
    %v2088 = vmul.f32 %v2052, %v2084
    %2090 = vrot.lane.b32.xlu0 %v2087, 32
    %v2091 = vpop.permute.xlu0 %2090
    %2093 = vst.msk [vmem:[#allocation3 + $0x40] sm:$0xff] %vm867, %v2091
    %2095 = vrot.lane.b32.xlu0 %v2088, 64
    %v2096 = vpop.permute.xlu0 %2095
    %2098 = vst.msk [vmem:[#allocation3 + $0x38] sm:$0xff] %vm873, %v2096
    %v2099 = vld [vmem:[#allocation2 + $0x90] sm:$0xff]
    %v2100 = vld [vmem:[#allocation2 + $0x68] sm:$0xff]
    %2101 = vrot.lane.b32.xlu0 %v2088, 32
    %v2102 = vpop.permute.xlu0 %2101
    %2104 = vrot.lane.b32.xlu0 %v2087, 64
    %v2105 = vpop.permute.xlu0 %2104
    %v2107 = vsel %vm867, %v2091, %v2105
    %v2108 = vsel %vm867, %v2102, %v2096
    %v2109 = vmul.f32 %v2107, %v459
    %v2110 = vmul.f32 %v2108, %v460
    %v2112 = vsel %vm731, %v2109, 0
    %v2115 = vsel %vm731, %v2110, 0
    %2117 = vmatprep.subr.mxu0 0.0
    %2118 = vmatpush1.msra.mxu0 0.0
    %2119 = vmatprep.subr.mxu0 0.0
    %2120 = vmatpush1.msra.mxu0 0.0
    %2121 = vmatprep.subr.mxu0 0.0
    %2122 = vmatpush1.msra.mxu0 0.0
    %2123 = vmatprep.subr.mxu0 0.0
    %2124 = vmatpush1.msra.mxu0 0.0
    %2125 = vmatprep.subr.mxu0 0.0
    %2126 = vmatpush1.msra.mxu0 0.0
    %2127 = vmatprep.subr.mxu0 0.0
    %2128 = vmatpush1.msra.mxu0 0.0
    %2129 = vmatprep.subr.mxu0 0.0
    %2130 = vmatpush1.msra.mxu0 0.0
    %2131 = vmatprep.subr.mxu0 0.0
    %2132 = vmatpush1.msra.mxu0 0.0
    %2133 = vmatprep.subr.mxu0 0.0
    %2134 = vmatpush1.msra.mxu0 %v726
    %2135 = vmatprep.subr.mxu0 0.0
    %2136 = vmatpush1.msra.mxu0 %v725
    %2137 = vmatprep.subr.mxu0 0.0
    %2138 = vmatpush1.msra.mxu0 %v724
    %2139 = vmatprep.subr.mxu0 0.0
    %2140 = vmatpush1.msra.mxu0 %v723
    %2141 = vmatprep.subr.mxu0 0.0
    %2142 = vmatpush1.msra.mxu0 %v722
    %2143 = vmatprep.subr.mxu0 0.0
    %2144 = vmatpush1.msra.mxu0 %v721
    %2145 = vmatprep.subr.mxu0 0.0
    %2146 = vmatpush1.msra.mxu0 %v720
    %2147 = vmatprep.subr.mxu0 0.0
    %2148 = vmatpush1.msra.mxu0 %v719
    %2149 = vmatprep.subr.mxu0 0.0
    %2150 = vmatpush2.msra.mxu0 0.0
    %2151 = vmatprep.subr.mxu0 0.0
    %2152 = vmatpush2.msra.mxu0 0.0
    %2153 = vmatprep.subr.mxu0 0.0
    %2154 = vmatpush2.msra.mxu0 0.0
    %2155 = vmatprep.subr.mxu0 0.0
    %2156 = vmatpush2.msra.mxu0 0.0
    %2157 = vmatprep.subr.mxu0 0.0
    %2158 = vmatpush2.msra.mxu0 0.0
    %2159 = vmatprep.subr.mxu0 0.0
    %2160 = vmatpush2.msra.mxu0 0.0
    %2161 = vmatprep.subr.mxu0 0.0
    %2162 = vmatpush2.msra.mxu0 0.0
    %2163 = vmatprep.subr.mxu0 0.0
    %2164 = vmatpush2.msra.mxu0 0.0
    %2165 = vmatprep.subr.mxu0 0.0
    %2166 = vmatpush2.msra.mxu0 0.0
    %2167 = vmatprep.subr.mxu0 0.0
    %2168 = vmatpush2.msra.mxu0 0.0
    %2169 = vmatprep.subr.mxu0 0.0
    %2170 = vmatpush2.msra.mxu0 0.0
    %2171 = vmatprep.subr.mxu0 0.0
    %2172 = vmatpush2.msra.mxu0 0.0
    %2173 = vmatprep.subr.mxu0 0.0
    %2174 = vmatpush2.msra.mxu0 0.0
    %2175 = vmatprep.subr.mxu0 0.0
    %2176 = vmatpush2.msra.mxu0 0.0
    %2177 = vmatprep.subr.mxu0 0.0
    %2178 = vmatpush2.msra.mxu0 0.0
    %2179 = vmatprep.subr.mxu0 0.0
    %2180 = vmatpush2.msra.mxu0 0.0
    %2181 = vmatprep.mubr.f32.mxu0 0.0
    %2182 = vmatmul.mubr.f32.gmra.mxu0 %v2112
    %v2183 = vpop.f32.mrf.mxu0
    %v2184 = vadd.f32 0.0, %v2183
    %v2185 = vpop.f32.mrf.mxu0
    %2186 = vmatprep.mubr.f32.mxu0 0.0
    %2187 = vmatmul.mubr.f32.gmra.mxu0 %v2115
    %v2188 = vpop.f32.mrf.mxu0
    %v2189 = vadd.f32 0.0, %v2188
    %v2190 = vpop.f32.mrf.mxu0
    %2191 = vdwg.mxu0
    %v2192 = vadd.f32 %v2099, %v2184
    %v2193 = vadd.f32 %v2100, %v2189
    %v2194 = vxor.u32 %v2192, 2147483648
    %v2195 = vxor.u32 %v2193, 2147483648
    %v2196 = vmul.f32 %v2194, 1.442695
    %v2197 = vpow.pop %v2196
    %v2198 = vmul.f32 %v2195, 1.442695
    %v2199 = vpow.pop %v2198
    %v2200 = vadd.f32 %v2197, 1.0
    %v2201 = vadd.f32 %v2199, 1.0
    %v2202 = vrcp.pop %v2200
    %v2203 = vmul.f32 1.0, %v2202
    %v2204 = vrcp.pop %v2201
    %v2205 = vmul.f32 1.0, %v2204
    %v2206 = vtanh.pop %v2192
    %v2207 = vtanh.pop %v2193
    %v2208 = vmul.f32 %v2203, %v2075
    %v2209 = vmul.f32 %v2205, %v2076
    %2212 = vrot.lane.b32.xlu0 %v2206, 64
    %v2213 = vpop.permute.xlu0 %2212
    %2214 = vrot.lane.b32.xlu0 %v2207, 64
    %v2215 = vpop.permute.xlu0 %2214
    %v2218 = vmul.f32 %v2203, %v2213
    %v2219 = vmul.f32 %v2205, %v2215
    %2222 = vrot.lane.b32.xlu0 %v2218, 32
    %v2223 = vpop.permute.xlu0 %2222
    %2224 = vrot.lane.b32.xlu0 %v2219, 32
    %v2225 = vpop.permute.xlu0 %2224
    %v2228 = vadd.f32 %v2208, %v2223
    %v2229 = vadd.f32 %v2209, %v2225
    %v2230 = vtanh.pop %v2228
    %v2231 = vtanh.pop %v2229
    %2234 = vrot.lane.b32.xlu0 %v2230, 64
    %v2235 = vpop.permute.xlu0 %2234
    %2236 = vrot.lane.b32.xlu0 %v2231, 64
    %v2237 = vpop.permute.xlu0 %2236
    %v2240 = vmul.f32 %v2203, %v2235
    %v2241 = vmul.f32 %v2205, %v2237
    %2243 = vrot.lane.b32.xlu0 %v2240, 32
    %v2244 = vpop.permute.xlu0 %2243
    %2246 = vst.msk [vmem:[#allocation3 + $0x48] sm:$0xff] %vm867, %v2244
    %2248 = vrot.lane.b32.xlu0 %v2241, 64
    %v2249 = vpop.permute.xlu0 %2248
    %2251 = vst.msk [vmem:[#allocation3 + $0x30] sm:$0xff] %vm873, %v2249
    %v2252 = vld [vmem:[#allocation2 + $0xa0] sm:$0xff]
    %v2253 = vld [vmem:[#allocation2 + $0x58] sm:$0xff]
    %2254 = vrot.lane.b32.xlu0 %v2241, 32
    %v2255 = vpop.permute.xlu0 %2254
    %2257 = vrot.lane.b32.xlu0 %v2240, 64
    %v2258 = vpop.permute.xlu0 %2257
    %v2260 = vsel %vm867, %v2244, %v2258
    %v2261 = vsel %vm867, %v2255, %v2249
    %v2262 = vmul.f32 %v2260, %v459
    %v2263 = vmul.f32 %v2261, %v460
    %v2265 = vsel %vm731, %v2262, 0
    %v2268 = vsel %vm731, %v2263, 0
    %2270 = vmatprep.subr.mxu0 0.0
    %2271 = vmatpush1.msra.mxu0 0.0
    %2272 = vmatprep.subr.mxu0 0.0
    %2273 = vmatpush1.msra.mxu0 0.0
    %2274 = vmatprep.subr.mxu0 0.0
    %2275 = vmatpush1.msra.mxu0 0.0
    %2276 = vmatprep.subr.mxu0 0.0
    %2277 = vmatpush1.msra.mxu0 0.0
    %2278 = vmatprep.subr.mxu0 0.0
    %2279 = vmatpush1.msra.mxu0 0.0
    %2280 = vmatprep.subr.mxu0 0.0
    %2281 = vmatpush1.msra.mxu0 0.0
    %2282 = vmatprep.subr.mxu0 0.0
    %2283 = vmatpush1.msra.mxu0 0.0
    %2284 = vmatprep.subr.mxu0 0.0
    %2285 = vmatpush1.msra.mxu0 0.0
    %2286 = vmatprep.subr.mxu0 0.0
    %2287 = vmatpush1.msra.mxu0 %v726
    %2288 = vmatprep.subr.mxu0 0.0
    %2289 = vmatpush1.msra.mxu0 %v725
    %2290 = vmatprep.subr.mxu0 0.0
    %2291 = vmatpush1.msra.mxu0 %v724
    %2292 = vmatprep.subr.mxu0 0.0
    %2293 = vmatpush1.msra.mxu0 %v723
    %2294 = vmatprep.subr.mxu0 0.0
    %2295 = vmatpush1.msra.mxu0 %v722
    %2296 = vmatprep.subr.mxu0 0.0
    %2297 = vmatpush1.msra.mxu0 %v721
    %2298 = vmatprep.subr.mxu0 0.0
    %2299 = vmatpush1.msra.mxu0 %v720
    %2300 = vmatprep.subr.mxu0 0.0
    %2301 = vmatpush1.msra.mxu0 %v719
    %2302 = vmatprep.subr.mxu0 0.0
    %2303 = vmatpush2.msra.mxu0 0.0
    %2304 = vmatprep.subr.mxu0 0.0
    %2305 = vmatpush2.msra.mxu0 0.0
    %2306 = vmatprep.subr.mxu0 0.0
    %2307 = vmatpush2.msra.mxu0 0.0
    %2308 = vmatprep.subr.mxu0 0.0
    %2309 = vmatpush2.msra.mxu0 0.0
    %2310 = vmatprep.subr.mxu0 0.0
    %2311 = vmatpush2.msra.mxu0 0.0
    %2312 = vmatprep.subr.mxu0 0.0
    %2313 = vmatpush2.msra.mxu0 0.0
    %2314 = vmatprep.subr.mxu0 0.0
    %2315 = vmatpush2.msra.mxu0 0.0
    %2316 = vmatprep.subr.mxu0 0.0
    %2317 = vmatpush2.msra.mxu0 0.0
    %2318 = vmatprep.subr.mxu0 0.0
    %2319 = vmatpush2.msra.mxu0 0.0
    %2320 = vmatprep.subr.mxu0 0.0
    %2321 = vmatpush2.msra.mxu0 0.0
    %2322 = vmatprep.subr.mxu0 0.0
    %2323 = vmatpush2.msra.mxu0 0.0
    %2324 = vmatprep.subr.mxu0 0.0
    %2325 = vmatpush2.msra.mxu0 0.0
    %2326 = vmatprep.subr.mxu0 0.0
    %2327 = vmatpush2.msra.mxu0 0.0
    %2328 = vmatprep.subr.mxu0 0.0
    %2329 = vmatpush2.msra.mxu0 0.0
    %2330 = vmatprep.subr.mxu0 0.0
    %2331 = vmatpush2.msra.mxu0 0.0
    %2332 = vmatprep.subr.mxu0 0.0
    %2333 = vmatpush2.msra.mxu0 0.0
    %2334 = vmatprep.mubr.f32.mxu0 0.0
    %2335 = vmatmul.mubr.f32.gmra.mxu0 %v2265
    %v2336 = vpop.f32.mrf.mxu0
    %v2337 = vadd.f32 0.0, %v2336
    %v2338 = vpop.f32.mrf.mxu0
    %2339 = vmatprep.mubr.f32.mxu0 0.0
    %2340 = vmatmul.mubr.f32.gmra.mxu0 %v2268
    %v2341 = vpop.f32.mrf.mxu0
    %v2342 = vadd.f32 0.0, %v2341
    %v2343 = vpop.f32.mrf.mxu0
    %2344 = vdwg.mxu0
    %v2345 = vadd.f32 %v2252, %v2337
    %v2346 = vadd.f32 %v2253, %v2342
    %v2347 = vxor.u32 %v2345, 2147483648
    %v2348 = vxor.u32 %v2346, 2147483648
    %v2349 = vmul.f32 %v2347, 1.442695
    %v2350 = vpow.pop %v2349
    %v2351 = vmul.f32 %v2348, 1.442695
    %v2352 = vpow.pop %v2351
    %v2353 = vadd.f32 %v2350, 1.0
    %v2354 = vadd.f32 %v2352, 1.0
    %v2355 = vrcp.pop %v2353
    %v2356 = vmul.f32 1.0, %v2355
    %v2357 = vrcp.pop %v2354
    %v2358 = vmul.f32 1.0, %v2357
    %v2359 = vtanh.pop %v2345
    %v2360 = vtanh.pop %v2346
    %v2361 = vmul.f32 %v2356, %v2228
    %v2362 = vmul.f32 %v2358, %v2229
    %2365 = vrot.lane.b32.xlu0 %v2359, 64
    %v2366 = vpop.permute.xlu0 %2365
    %2367 = vrot.lane.b32.xlu0 %v2360, 64
    %v2368 = vpop.permute.xlu0 %2367
    %v2371 = vmul.f32 %v2356, %v2366
    %v2372 = vmul.f32 %v2358, %v2368
    %2375 = vrot.lane.b32.xlu0 %v2371, 32
    %v2376 = vpop.permute.xlu0 %2375
    %2377 = vrot.lane.b32.xlu0 %v2372, 32
    %v2378 = vpop.permute.xlu0 %2377
    %v2381 = vadd.f32 %v2361, %v2376
    %v2382 = vadd.f32 %v2362, %v2378
    %v2383 = vtanh.pop %v2381
    %v2384 = vtanh.pop %v2382
    %2387 = vrot.lane.b32.xlu0 %v2383, 64
    %v2388 = vpop.permute.xlu0 %2387
    %2389 = vrot.lane.b32.xlu0 %v2384, 64
    %v2390 = vpop.permute.xlu0 %2389
    %v2393 = vmul.f32 %v2356, %v2388
    %v2394 = vmul.f32 %v2358, %v2390
    %2396 = vrot.lane.b32.xlu0 %v2393, 32
    %v2397 = vpop.permute.xlu0 %2396
    %2399 = vst.msk [vmem:[#allocation3 + $0x50] sm:$0xff] %vm867, %v2397
    %2401 = vrot.lane.b32.xlu0 %v2394, 64
    %v2402 = vpop.permute.xlu0 %2401
    %2404 = vst.msk [vmem:[#allocation3 + $0x28] sm:$0xff] %vm873, %v2402
    %v2405 = vld [vmem:[#allocation2 + $0xb0] sm:$0xff]
    %v2406 = vld [vmem:[#allocation2 + $0x48] sm:$0xff]
    %2407 = vrot.lane.b32.xlu0 %v2394, 32
    %v2408 = vpop.permute.xlu0 %2407
    %2410 = vrot.lane.b32.xlu0 %v2393, 64
    %v2411 = vpop.permute.xlu0 %2410
    %v2413 = vsel %vm867, %v2397, %v2411
    %v2414 = vsel %vm867, %v2408, %v2402
    %v2415 = vmul.f32 %v2413, %v459
    %v2416 = vmul.f32 %v2414, %v460
    %v2418 = vsel %vm731, %v2415, 0
    %v2421 = vsel %vm731, %v2416, 0
    %2423 = vmatprep.subr.mxu0 0.0
    %2424 = vmatpush1.msra.mxu0 0.0
    %2425 = vmatprep.subr.mxu0 0.0
    %2426 = vmatpush1.msra.mxu0 0.0
    %2427 = vmatprep.subr.mxu0 0.0
    %2428 = vmatpush1.msra.mxu0 0.0
    %2429 = vmatprep.subr.mxu0 0.0
    %2430 = vmatpush1.msra.mxu0 0.0
    %2431 = vmatprep.subr.mxu0 0.0
    %2432 = vmatpush1.msra.mxu0 0.0
    %2433 = vmatprep.subr.mxu0 0.0
    %2434 = vmatpush1.msra.mxu0 0.0
    %2435 = vmatprep.subr.mxu0 0.0
    %2436 = vmatpush1.msra.mxu0 0.0
    %2437 = vmatprep.subr.mxu0 0.0
    %2438 = vmatpush1.msra.mxu0 0.0
    %2439 = vmatprep.subr.mxu0 0.0
    %2440 = vmatpush1.msra.mxu0 %v726
    %2441 = vmatprep.subr.mxu0 0.0
    %2442 = vmatpush1.msra.mxu0 %v725
    %2443 = vmatprep.subr.mxu0 0.0
    %2444 = vmatpush1.msra.mxu0 %v724
    %2445 = vmatprep.subr.mxu0 0.0
    %2446 = vmatpush1.msra.mxu0 %v723
    %2447 = vmatprep.subr.mxu0 0.0
    %2448 = vmatpush1.msra.mxu0 %v722
    %2449 = vmatprep.subr.mxu0 0.0
    %2450 = vmatpush1.msra.mxu0 %v721
    %2451 = vmatprep.subr.mxu0 0.0
    %2452 = vmatpush1.msra.mxu0 %v720
    %2453 = vmatprep.subr.mxu0 0.0
    %2454 = vmatpush1.msra.mxu0 %v719
    %2455 = vmatprep.subr.mxu0 0.0
    %2456 = vmatpush2.msra.mxu0 0.0
    %2457 = vmatprep.subr.mxu0 0.0
    %2458 = vmatpush2.msra.mxu0 0.0
    %2459 = vmatprep.subr.mxu0 0.0
    %2460 = vmatpush2.msra.mxu0 0.0
    %2461 = vmatprep.subr.mxu0 0.0
    %2462 = vmatpush2.msra.mxu0 0.0
    %2463 = vmatprep.subr.mxu0 0.0
    %2464 = vmatpush2.msra.mxu0 0.0
    %2465 = vmatprep.subr.mxu0 0.0
    %2466 = vmatpush2.msra.mxu0 0.0
    %2467 = vmatprep.subr.mxu0 0.0
    %2468 = vmatpush2.msra.mxu0 0.0
    %2469 = vmatprep.subr.mxu0 0.0
    %2470 = vmatpush2.msra.mxu0 0.0
    %2471 = vmatprep.subr.mxu0 0.0
    %2472 = vmatpush2.msra.mxu0 0.0
    %2473 = vmatprep.subr.mxu0 0.0
    %2474 = vmatpush2.msra.mxu0 0.0
    %2475 = vmatprep.subr.mxu0 0.0
    %2476 = vmatpush2.msra.mxu0 0.0
    %2477 = vmatprep.subr.mxu0 0.0
    %2478 = vmatpush2.msra.mxu0 0.0
    %2479 = vmatprep.subr.mxu0 0.0
    %2480 = vmatpush2.msra.mxu0 0.0
    %2481 = vmatprep.subr.mxu0 0.0
    %2482 = vmatpush2.msra.mxu0 0.0
    %2483 = vmatprep.subr.mxu0 0.0
    %2484 = vmatpush2.msra.mxu0 0.0
    %2485 = vmatprep.subr.mxu0 0.0
    %2486 = vmatpush2.msra.mxu0 0.0
    %2487 = vmatprep.mubr.f32.mxu0 0.0
    %2488 = vmatmul.mubr.f32.gmra.mxu0 %v2418
    %v2489 = vpop.f32.mrf.mxu0
    %v2490 = vadd.f32 0.0, %v2489
    %v2491 = vpop.f32.mrf.mxu0
    %2492 = vmatprep.mubr.f32.mxu0 0.0
    %2493 = vmatmul.mubr.f32.gmra.mxu0 %v2421
    %v2494 = vpop.f32.mrf.mxu0
    %v2495 = vadd.f32 0.0, %v2494
    %v2496 = vpop.f32.mrf.mxu0
    %2497 = vdwg.mxu0
    %v2498 = vadd.f32 %v2405, %v2490
    %v2499 = vadd.f32 %v2406, %v2495
    %v2500 = vxor.u32 %v2498, 2147483648
    %v2501 = vxor.u32 %v2499, 2147483648
    %v2502 = vmul.f32 %v2500, 1.442695
    %v2503 = vpow.pop %v2502
    %v2504 = vmul.f32 %v2501, 1.442695
    %v2505 = vpow.pop %v2504
    %v2506 = vadd.f32 %v2503, 1.0
    %v2507 = vadd.f32 %v2505, 1.0
    %v2508 = vrcp.pop %v2506
    %v2509 = vmul.f32 1.0, %v2508
    %v2510 = vrcp.pop %v2507
    %v2511 = vmul.f32 1.0, %v2510
    %v2512 = vtanh.pop %v2498
    %v2513 = vtanh.pop %v2499
    %v2514 = vmul.f32 %v2509, %v2381
    %v2515 = vmul.f32 %v2511, %v2382
    %2518 = vrot.lane.b32.xlu0 %v2512, 64
    %v2519 = vpop.permute.xlu0 %2518
    %2520 = vrot.lane.b32.xlu0 %v2513, 64
    %v2521 = vpop.permute.xlu0 %2520
    %v2524 = vmul.f32 %v2509, %v2519
    %v2525 = vmul.f32 %v2511, %v2521
    %2528 = vrot.lane.b32.xlu0 %v2524, 32
    %v2529 = vpop.permute.xlu0 %2528
    %2530 = vrot.lane.b32.xlu0 %v2525, 32
    %v2531 = vpop.permute.xlu0 %2530
    %v2534 = vadd.f32 %v2514, %v2529
    %v2535 = vadd.f32 %v2515, %v2531
    %v2536 = vtanh.pop %v2534
    %v2537 = vtanh.pop %v2535
    %2540 = vrot.lane.b32.xlu0 %v2536, 64
    %v2541 = vpop.permute.xlu0 %2540
    %2542 = vrot.lane.b32.xlu0 %v2537, 64
    %v2543 = vpop.permute.xlu0 %2542
    %v2546 = vmul.f32 %v2509, %v2541
    %v2547 = vmul.f32 %v2511, %v2543
    %2549 = vrot.lane.b32.xlu0 %v2546, 32
    %v2550 = vpop.permute.xlu0 %2549
    %2552 = vst.msk [vmem:[#allocation3 + $0x58] sm:$0xff] %vm867, %v2550
    %2554 = vrot.lane.b32.xlu0 %v2547, 64
    %v2555 = vpop.permute.xlu0 %2554
    %2557 = vst.msk [vmem:[#allocation3 + $0x20] sm:$0xff] %vm873, %v2555
    %v2558 = vld [vmem:[#allocation2 + $0xc0] sm:$0xff]
    %v2559 = vld [vmem:[#allocation2 + $0x38] sm:$0xff]
    %2560 = vrot.lane.b32.xlu0 %v2547, 32
    %v2561 = vpop.permute.xlu0 %2560
    %2563 = vrot.lane.b32.xlu0 %v2546, 64
    %v2564 = vpop.permute.xlu0 %2563
    %v2566 = vsel %vm867, %v2550, %v2564
    %v2567 = vsel %vm867, %v2561, %v2555
    %v2568 = vmul.f32 %v2566, %v459
    %v2569 = vmul.f32 %v2567, %v460
    %v2571 = vsel %vm731, %v2568, 0
    %v2574 = vsel %vm731, %v2569, 0
    %2576 = vmatprep.subr.mxu0 0.0
    %2577 = vmatpush1.msra.mxu0 0.0
    %2578 = vmatprep.subr.mxu0 0.0
    %2579 = vmatpush1.msra.mxu0 0.0
    %2580 = vmatprep.subr.mxu0 0.0
    %2581 = vmatpush1.msra.mxu0 0.0
    %2582 = vmatprep.subr.mxu0 0.0
    %2583 = vmatpush1.msra.mxu0 0.0
    %2584 = vmatprep.subr.mxu0 0.0
    %2585 = vmatpush1.msra.mxu0 0.0
    %2586 = vmatprep.subr.mxu0 0.0
    %2587 = vmatpush1.msra.mxu0 0.0
    %2588 = vmatprep.subr.mxu0 0.0
    %2589 = vmatpush1.msra.mxu0 0.0
    %2590 = vmatprep.subr.mxu0 0.0
    %2591 = vmatpush1.msra.mxu0 0.0
    %2592 = vmatprep.subr.mxu0 0.0
    %2593 = vmatpush1.msra.mxu0 %v726
    %2594 = vmatprep.subr.mxu0 0.0
    %2595 = vmatpush1.msra.mxu0 %v725
    %2596 = vmatprep.subr.mxu0 0.0
    %2597 = vmatpush1.msra.mxu0 %v724
    %2598 = vmatprep.subr.mxu0 0.0
    %2599 = vmatpush1.msra.mxu0 %v723
    %2600 = vmatprep.subr.mxu0 0.0
    %2601 = vmatpush1.msra.mxu0 %v722
    %2602 = vmatprep.subr.mxu0 0.0
    %2603 = vmatpush1.msra.mxu0 %v721
    %2604 = vmatprep.subr.mxu0 0.0
    %2605 = vmatpush1.msra.mxu0 %v720
    %2606 = vmatprep.subr.mxu0 0.0
    %2607 = vmatpush1.msra.mxu0 %v719
    %2608 = vmatprep.subr.mxu0 0.0
    %2609 = vmatpush2.msra.mxu0 0.0
    %2610 = vmatprep.subr.mxu0 0.0
    %2611 = vmatpush2.msra.mxu0 0.0
    %2612 = vmatprep.subr.mxu0 0.0
    %2613 = vmatpush2.msra.mxu0 0.0
    %2614 = vmatprep.subr.mxu0 0.0
    %2615 = vmatpush2.msra.mxu0 0.0
    %2616 = vmatprep.subr.mxu0 0.0
    %2617 = vmatpush2.msra.mxu0 0.0
    %2618 = vmatprep.subr.mxu0 0.0
    %2619 = vmatpush2.msra.mxu0 0.0
    %2620 = vmatprep.subr.mxu0 0.0
    %2621 = vmatpush2.msra.mxu0 0.0
    %2622 = vmatprep.subr.mxu0 0.0
    %2623 = vmatpush2.msra.mxu0 0.0
    %2624 = vmatprep.subr.mxu0 0.0
    %2625 = vmatpush2.msra.mxu0 0.0
    %2626 = vmatprep.subr.mxu0 0.0
    %2627 = vmatpush2.msra.mxu0 0.0
    %2628 = vmatprep.subr.mxu0 0.0
    %2629 = vmatpush2.msra.mxu0 0.0
    %2630 = vmatprep.subr.mxu0 0.0
    %2631 = vmatpush2.msra.mxu0 0.0
    %2632 = vmatprep.subr.mxu0 0.0
    %2633 = vmatpush2.msra.mxu0 0.0
    %2634 = vmatprep.subr.mxu0 0.0
    %2635 = vmatpush2.msra.mxu0 0.0
    %2636 = vmatprep.subr.mxu0 0.0
    %2637 = vmatpush2.msra.mxu0 0.0
    %2638 = vmatprep.subr.mxu0 0.0
    %2639 = vmatpush2.msra.mxu0 0.0
    %2640 = vmatprep.mubr.f32.mxu0 0.0
    %2641 = vmatmul.mubr.f32.gmra.mxu0 %v2571
    %v2642 = vpop.f32.mrf.mxu0
    %v2643 = vadd.f32 0.0, %v2642
    %v2644 = vpop.f32.mrf.mxu0
    %2645 = vmatprep.mubr.f32.mxu0 0.0
    %2646 = vmatmul.mubr.f32.gmra.mxu0 %v2574
    %v2647 = vpop.f32.mrf.mxu0
    %v2648 = vadd.f32 0.0, %v2647
    %v2649 = vpop.f32.mrf.mxu0
    %2650 = vdwg.mxu0
    %v2651 = vadd.f32 %v2558, %v2643
    %v2652 = vadd.f32 %v2559, %v2648
    %v2653 = vxor.u32 %v2651, 2147483648
    %v2654 = vxor.u32 %v2652, 2147483648
    %v2655 = vmul.f32 %v2653, 1.442695
    %v2656 = vpow.pop %v2655
    %v2657 = vmul.f32 %v2654, 1.442695
    %v2658 = vpow.pop %v2657
    %v2659 = vadd.f32 %v2656, 1.0
    %v2660 = vadd.f32 %v2658, 1.0
    %v2661 = vrcp.pop %v2659
    %v2662 = vmul.f32 1.0, %v2661
    %v2663 = vrcp.pop %v2660
    %v2664 = vmul.f32 1.0, %v2663
    %v2665 = vtanh.pop %v2651
    %v2666 = vtanh.pop %v2652
    %v2667 = vmul.f32 %v2662, %v2534
    %v2668 = vmul.f32 %v2664, %v2535
    %2671 = vrot.lane.b32.xlu0 %v2665, 64
    %v2672 = vpop.permute.xlu0 %2671
    %2673 = vrot.lane.b32.xlu0 %v2666, 64
    %v2674 = vpop.permute.xlu0 %2673
    %v2677 = vmul.f32 %v2662, %v2672
    %v2678 = vmul.f32 %v2664, %v2674
    %2681 = vrot.lane.b32.xlu0 %v2677, 32
    %v2682 = vpop.permute.xlu0 %2681
    %2683 = vrot.lane.b32.xlu0 %v2678, 32
    %v2684 = vpop.permute.xlu0 %2683
    %v2687 = vadd.f32 %v2667, %v2682
    %v2688 = vadd.f32 %v2668, %v2684
    %v2689 = vtanh.pop %v2687
    %v2690 = vtanh.pop %v2688
    %2693 = vrot.lane.b32.xlu0 %v2689, 64
    %v2694 = vpop.permute.xlu0 %2693
    %2695 = vrot.lane.b32.xlu0 %v2690, 64
    %v2696 = vpop.permute.xlu0 %2695
    %v2699 = vmul.f32 %v2662, %v2694
    %v2700 = vmul.f32 %v2664, %v2696
    %2702 = vrot.lane.b32.xlu0 %v2699, 32
    %v2703 = vpop.permute.xlu0 %2702
    %2705 = vst.msk [vmem:[#allocation3 + $0x60] sm:$0xff] %vm867, %v2703
    %2707 = vrot.lane.b32.xlu0 %v2700, 64
    %v2708 = vpop.permute.xlu0 %2707
    %2710 = vst.msk [vmem:[#allocation3 + $0x18] sm:$0xff] %vm873, %v2708
    %v2711 = vld [vmem:[#allocation2 + $0xd0] sm:$0xff]
    %v2712 = vld [vmem:[#allocation2 + $0x28] sm:$0xff]
    %2713 = vrot.lane.b32.xlu0 %v2700, 32
    %v2714 = vpop.permute.xlu0 %2713
    %2716 = vrot.lane.b32.xlu0 %v2699, 64
    %v2717 = vpop.permute.xlu0 %2716
    %v2719 = vsel %vm867, %v2703, %v2717
    %v2720 = vsel %vm867, %v2714, %v2708
    %v2721 = vmul.f32 %v2719, %v459
    %v2722 = vmul.f32 %v2720, %v460
    %v2724 = vsel %vm731, %v2721, 0
    %v2727 = vsel %vm731, %v2722, 0
    %2729 = vmatprep.subr.mxu0 0.0
    %2730 = vmatpush1.msra.mxu0 0.0
    %2731 = vmatprep.subr.mxu0 0.0
    %2732 = vmatpush1.msra.mxu0 0.0
    %2733 = vmatprep.subr.mxu0 0.0
    %2734 = vmatpush1.msra.mxu0 0.0
    %2735 = vmatprep.subr.mxu0 0.0
    %2736 = vmatpush1.msra.mxu0 0.0
    %2737 = vmatprep.subr.mxu0 0.0
    %2738 = vmatpush1.msra.mxu0 0.0
    %2739 = vmatprep.subr.mxu0 0.0
    %2740 = vmatpush1.msra.mxu0 0.0
    %2741 = vmatprep.subr.mxu0 0.0
    %2742 = vmatpush1.msra.mxu0 0.0
    %2743 = vmatprep.subr.mxu0 0.0
    %2744 = vmatpush1.msra.mxu0 0.0
    %2745 = vmatprep.subr.mxu0 0.0
    %2746 = vmatpush1.msra.mxu0 %v726
    %2747 = vmatprep.subr.mxu0 0.0
    %2748 = vmatpush1.msra.mxu0 %v725
    %2749 = vmatprep.subr.mxu0 0.0
    %2750 = vmatpush1.msra.mxu0 %v724
    %2751 = vmatprep.subr.mxu0 0.0
    %2752 = vmatpush1.msra.mxu0 %v723
    %2753 = vmatprep.subr.mxu0 0.0
    %2754 = vmatpush1.msra.mxu0 %v722
    %2755 = vmatprep.subr.mxu0 0.0
    %2756 = vmatpush1.msra.mxu0 %v721
    %2757 = vmatprep.subr.mxu0 0.0
    %2758 = vmatpush1.msra.mxu0 %v720
    %2759 = vmatprep.subr.mxu0 0.0
    %2760 = vmatpush1.msra.mxu0 %v719
    %2761 = vmatprep.subr.mxu0 0.0
    %2762 = vmatpush2.msra.mxu0 0.0
    %2763 = vmatprep.subr.mxu0 0.0
    %2764 = vmatpush2.msra.mxu0 0.0
    %2765 = vmatprep.subr.mxu0 0.0
    %2766 = vmatpush2.msra.mxu0 0.0
    %2767 = vmatprep.subr.mxu0 0.0
    %2768 = vmatpush2.msra.mxu0 0.0
    %2769 = vmatprep.subr.mxu0 0.0
    %2770 = vmatpush2.msra.mxu0 0.0
    %2771 = vmatprep.subr.mxu0 0.0
    %2772 = vmatpush2.msra.mxu0 0.0
    %2773 = vmatprep.subr.mxu0 0.0
    %2774 = vmatpush2.msra.mxu0 0.0
    %2775 = vmatprep.subr.mxu0 0.0
    %2776 = vmatpush2.msra.mxu0 0.0
    %2777 = vmatprep.subr.mxu0 0.0
    %2778 = vmatpush2.msra.mxu0 0.0
    %2779 = vmatprep.subr.mxu0 0.0
    %2780 = vmatpush2.msra.mxu0 0.0
    %2781 = vmatprep.subr.mxu0 0.0
    %2782 = vmatpush2.msra.mxu0 0.0
    %2783 = vmatprep.subr.mxu0 0.0
    %2784 = vmatpush2.msra.mxu0 0.0
    %2785 = vmatprep.subr.mxu0 0.0
    %2786 = vmatpush2.msra.mxu0 0.0
    %2787 = vmatprep.subr.mxu0 0.0
    %2788 = vmatpush2.msra.mxu0 0.0
    %2789 = vmatprep.subr.mxu0 0.0
    %2790 = vmatpush2.msra.mxu0 0.0
    %2791 = vmatprep.subr.mxu0 0.0
    %2792 = vmatpush2.msra.mxu0 0.0
    %2793 = vmatprep.mubr.f32.mxu0 0.0
    %2794 = vmatmul.mubr.f32.gmra.mxu0 %v2724
    %v2795 = vpop.f32.mrf.mxu0
    %v2796 = vadd.f32 0.0, %v2795
    %v2797 = vpop.f32.mrf.mxu0
    %2798 = vmatprep.mubr.f32.mxu0 0.0
    %2799 = vmatmul.mubr.f32.gmra.mxu0 %v2727
    %v2800 = vpop.f32.mrf.mxu0
    %v2801 = vadd.f32 0.0, %v2800
    %v2802 = vpop.f32.mrf.mxu0
    %2803 = vdwg.mxu0
    %v2804 = vadd.f32 %v2711, %v2796
    %v2805 = vadd.f32 %v2712, %v2801
    %v2806 = vxor.u32 %v2804, 2147483648
    %v2807 = vxor.u32 %v2805, 2147483648
    %v2808 = vmul.f32 %v2806, 1.442695
    %v2809 = vpow.pop %v2808
    %v2810 = vmul.f32 %v2807, 1.442695
    %v2811 = vpow.pop %v2810
    %v2812 = vadd.f32 %v2809, 1.0
    %v2813 = vadd.f32 %v2811, 1.0
    %v2814 = vrcp.pop %v2812
    %v2815 = vmul.f32 1.0, %v2814
    %v2816 = vrcp.pop %v2813
    %v2817 = vmul.f32 1.0, %v2816
    %v2818 = vtanh.pop %v2804
    %v2819 = vtanh.pop %v2805
    %v2820 = vmul.f32 %v2815, %v2687
    %v2821 = vmul.f32 %v2817, %v2688
    %2824 = vrot.lane.b32.xlu0 %v2818, 64
    %v2825 = vpop.permute.xlu0 %2824
    %2826 = vrot.lane.b32.xlu0 %v2819, 64
    %v2827 = vpop.permute.xlu0 %2826
    %v2830 = vmul.f32 %v2815, %v2825
    %v2831 = vmul.f32 %v2817, %v2827
    %2834 = vrot.lane.b32.xlu0 %v2830, 32
    %v2835 = vpop.permute.xlu0 %2834
    %2836 = vrot.lane.b32.xlu0 %v2831, 32
    %v2837 = vpop.permute.xlu0 %2836
    %v2840 = vadd.f32 %v2820, %v2835
    %v2841 = vadd.f32 %v2821, %v2837
    %v2842 = vtanh.pop %v2840
    %v2843 = vtanh.pop %v2841
    %2846 = vrot.lane.b32.xlu0 %v2842, 64
    %v2847 = vpop.permute.xlu0 %2846
    %2848 = vrot.lane.b32.xlu0 %v2843, 64
    %v2849 = vpop.permute.xlu0 %2848
    %v2852 = vmul.f32 %v2815, %v2847
    %v2853 = vmul.f32 %v2817, %v2849
    %2855 = vrot.lane.b32.xlu0 %v2852, 32
    %v2856 = vpop.permute.xlu0 %2855
    %2858 = vst.msk [vmem:[#allocation3 + $0x68] sm:$0xff] %vm867, %v2856
    %2860 = vrot.lane.b32.xlu0 %v2853, 64
    %v2861 = vpop.permute.xlu0 %2860
    %2863 = vst.msk [vmem:[#allocation3 + $0x10] sm:$0xff] %vm873, %v2861
    %v2864 = vld [vmem:[#allocation2 + $0xe0] sm:$0xff]
    %v2865 = vld [vmem:[#allocation2 + $0x18] sm:$0xff]
    %2866 = vrot.lane.b32.xlu0 %v2853, 32
    %v2867 = vpop.permute.xlu0 %2866
    %2869 = vrot.lane.b32.xlu0 %v2852, 64
    %v2870 = vpop.permute.xlu0 %2869
    %v2872 = vsel %vm867, %v2856, %v2870
    %v2873 = vsel %vm867, %v2867, %v2861
    %v2874 = vmul.f32 %v2872, %v459
    %v2875 = vmul.f32 %v2873, %v460
    %v2877 = vsel %vm731, %v2874, 0
    %v2880 = vsel %vm731, %v2875, 0
    %2882 = vmatprep.subr.mxu0 0.0
    %2883 = vmatpush1.msra.mxu0 0.0
    %2884 = vmatprep.subr.mxu0 0.0
    %2885 = vmatpush1.msra.mxu0 0.0
    %2886 = vmatprep.subr.mxu0 0.0
    %2887 = vmatpush1.msra.mxu0 0.0
    %2888 = vmatprep.subr.mxu0 0.0
    %2889 = vmatpush1.msra.mxu0 0.0
    %2890 = vmatprep.subr.mxu0 0.0
    %2891 = vmatpush1.msra.mxu0 0.0
    %2892 = vmatprep.subr.mxu0 0.0
    %2893 = vmatpush1.msra.mxu0 0.0
    %2894 = vmatprep.subr.mxu0 0.0
    %2895 = vmatpush1.msra.mxu0 0.0
    %2896 = vmatprep.subr.mxu0 0.0
    %2897 = vmatpush1.msra.mxu0 0.0
    %2898 = vmatprep.subr.mxu0 0.0
    %2899 = vmatpush1.msra.mxu0 %v726
    %2900 = vmatprep.subr.mxu0 0.0
    %2901 = vmatpush1.msra.mxu0 %v725
    %2902 = vmatprep.subr.mxu0 0.0
    %2903 = vmatpush1.msra.mxu0 %v724
    %2904 = vmatprep.subr.mxu0 0.0
    %2905 = vmatpush1.msra.mxu0 %v723
    %2906 = vmatprep.subr.mxu0 0.0
    %2907 = vmatpush1.msra.mxu0 %v722
    %2908 = vmatprep.subr.mxu0 0.0
    %2909 = vmatpush1.msra.mxu0 %v721
    %2910 = vmatprep.subr.mxu0 0.0
    %2911 = vmatpush1.msra.mxu0 %v720
    %2912 = vmatprep.subr.mxu0 0.0
    %2913 = vmatpush1.msra.mxu0 %v719
    %2914 = vmatprep.subr.mxu0 0.0
    %2915 = vmatpush2.msra.mxu0 0.0
    %2916 = vmatprep.subr.mxu0 0.0
    %2917 = vmatpush2.msra.mxu0 0.0
    %2918 = vmatprep.subr.mxu0 0.0
    %2919 = vmatpush2.msra.mxu0 0.0
    %2920 = vmatprep.subr.mxu0 0.0
    %2921 = vmatpush2.msra.mxu0 0.0
    %2922 = vmatprep.subr.mxu0 0.0
    %2923 = vmatpush2.msra.mxu0 0.0
    %2924 = vmatprep.subr.mxu0 0.0
    %2925 = vmatpush2.msra.mxu0 0.0
    %2926 = vmatprep.subr.mxu0 0.0
    %2927 = vmatpush2.msra.mxu0 0.0
    %2928 = vmatprep.subr.mxu0 0.0
    %2929 = vmatpush2.msra.mxu0 0.0
    %2930 = vmatprep.subr.mxu0 0.0
    %2931 = vmatpush2.msra.mxu0 0.0
    %2932 = vmatprep.subr.mxu0 0.0
    %2933 = vmatpush2.msra.mxu0 0.0
    %2934 = vmatprep.subr.mxu0 0.0
    %2935 = vmatpush2.msra.mxu0 0.0
    %2936 = vmatprep.subr.mxu0 0.0
    %2937 = vmatpush2.msra.mxu0 0.0
    %2938 = vmatprep.subr.mxu0 0.0
    %2939 = vmatpush2.msra.mxu0 0.0
    %2940 = vmatprep.subr.mxu0 0.0
    %2941 = vmatpush2.msra.mxu0 0.0
    %2942 = vmatprep.subr.mxu0 0.0
    %2943 = vmatpush2.msra.mxu0 0.0
    %2944 = vmatprep.subr.mxu0 0.0
    %2945 = vmatpush2.msra.mxu0 0.0
    %2946 = vmatprep.mubr.f32.mxu0 0.0
    %2947 = vmatmul.mubr.f32.gmra.mxu0 %v2877
    %v2948 = vpop.f32.mrf.mxu0
    %v2949 = vadd.f32 0.0, %v2948
    %v2950 = vpop.f32.mrf.mxu0
    %2951 = vmatprep.mubr.f32.mxu0 0.0
    %2952 = vmatmul.mubr.f32.gmra.mxu0 %v2880
    %v2953 = vpop.f32.mrf.mxu0
    %v2954 = vadd.f32 0.0, %v2953
    %v2955 = vpop.f32.mrf.mxu0
    %2956 = vdwg.mxu0
    %v2957 = vadd.f32 %v2864, %v2949
    %v2958 = vadd.f32 %v2865, %v2954
    %v2959 = vxor.u32 %v2957, 2147483648
    %v2960 = vxor.u32 %v2958, 2147483648
    %v2961 = vmul.f32 %v2959, 1.442695
    %v2962 = vpow.pop %v2961
    %v2963 = vmul.f32 %v2960, 1.442695
    %v2964 = vpow.pop %v2963
    %v2965 = vadd.f32 %v2962, 1.0
    %v2966 = vadd.f32 %v2964, 1.0
    %v2967 = vrcp.pop %v2965
    %v2968 = vmul.f32 1.0, %v2967
    %v2969 = vrcp.pop %v2966
    %v2970 = vmul.f32 1.0, %v2969
    %v2971 = vtanh.pop %v2957
    %v2972 = vtanh.pop %v2958
    %v2973 = vmul.f32 %v2968, %v2840
    %v2974 = vmul.f32 %v2970, %v2841
    %2977 = vrot.lane.b32.xlu0 %v2971, 64
    %v2978 = vpop.permute.xlu0 %2977
    %2979 = vrot.lane.b32.xlu0 %v2972, 64
    %v2980 = vpop.permute.xlu0 %2979
    %v2983 = vmul.f32 %v2968, %v2978
    %v2984 = vmul.f32 %v2970, %v2980
    %2987 = vrot.lane.b32.xlu0 %v2983, 32
    %v2988 = vpop.permute.xlu0 %2987
    %2989 = vrot.lane.b32.xlu0 %v2984, 32
    %v2990 = vpop.permute.xlu0 %2989
    %v2993 = vadd.f32 %v2973, %v2988
    %v2994 = vadd.f32 %v2974, %v2990
    %v2995 = vtanh.pop %v2993
    %v2996 = vtanh.pop %v2994
    %2999 = vrot.lane.b32.xlu0 %v2995, 64
    %v3000 = vpop.permute.xlu0 %2999
    %3001 = vrot.lane.b32.xlu0 %v2996, 64
    %v3002 = vpop.permute.xlu0 %3001
    %v3005 = vmul.f32 %v2968, %v3000
    %v3006 = vmul.f32 %v2970, %v3002
    %3008 = vrot.lane.b32.xlu0 %v3005, 32
    %v3009 = vpop.permute.xlu0 %3008
    %3011 = vst.msk [vmem:[#allocation3 + $0x70] sm:$0xff] %vm867, %v3009
    %3013 = vrot.lane.b32.xlu0 %v3006, 64
    %v3014 = vpop.permute.xlu0 %3013
    %3016 = vst.msk [vmem:[#allocation3 + $0x8] sm:$0xff] %vm873, %v3014
    %v3017 = vld [vmem:[#allocation2 + $0xf0] sm:$0xff]
    %v3018 = vld [vmem:[#allocation2 + $0x8] sm:$0xff]
    %3019 = vrot.lane.b32.xlu0 %v3006, 32
    %v3020 = vpop.permute.xlu0 %3019
    %3022 = vrot.lane.b32.xlu0 %v3005, 64
    %v3023 = vpop.permute.xlu0 %3022
    %v3025 = vsel %vm867, %v3009, %v3023
    %v3026 = vsel %vm867, %v3020, %v3014
    %v3027 = vmul.f32 %v3025, %v459
    %v3028 = vmul.f32 %v3026, %v460
    %v3030 = vsel %vm731, %v3027, 0
    %v3033 = vsel %vm731, %v3028, 0
    %3035 = vmatprep.subr.mxu0 0.0
    %3036 = vmatpush1.msra.mxu0 0.0
    %3037 = vmatprep.subr.mxu0 0.0
    %3038 = vmatpush1.msra.mxu0 0.0
    %3039 = vmatprep.subr.mxu0 0.0
    %3040 = vmatpush1.msra.mxu0 0.0
    %3041 = vmatprep.subr.mxu0 0.0
    %3042 = vmatpush1.msra.mxu0 0.0
    %3043 = vmatprep.subr.mxu0 0.0
    %3044 = vmatpush1.msra.mxu0 0.0
    %3045 = vmatprep.subr.mxu0 0.0
    %3046 = vmatpush1.msra.mxu0 0.0
    %3047 = vmatprep.subr.mxu0 0.0
    %3048 = vmatpush1.msra.mxu0 0.0
    %3049 = vmatprep.subr.mxu0 0.0
    %3050 = vmatpush1.msra.mxu0 0.0
    %3051 = vmatprep.subr.mxu0 0.0
    %3052 = vmatpush1.msra.mxu0 %v726
    %3053 = vmatprep.subr.mxu0 0.0
    %3054 = vmatpush1.msra.mxu0 %v725
    %3055 = vmatprep.subr.mxu0 0.0
    %3056 = vmatpush1.msra.mxu0 %v724
    %3057 = vmatprep.subr.mxu0 0.0
    %3058 = vmatpush1.msra.mxu0 %v723
    %3059 = vmatprep.subr.mxu0 0.0
    %3060 = vmatpush1.msra.mxu0 %v722
    %3061 = vmatprep.subr.mxu0 0.0
    %3062 = vmatpush1.msra.mxu0 %v721
    %3063 = vmatprep.subr.mxu0 0.0
    %3064 = vmatpush1.msra.mxu0 %v720
    %3065 = vmatprep.subr.mxu0 0.0
    %3066 = vmatpush1.msra.mxu0 %v719
    %3067 = vmatprep.subr.mxu0 0.0
    %3068 = vmatpush2.msra.mxu0 0.0
    %3069 = vmatprep.subr.mxu0 0.0
    %3070 = vmatpush2.msra.mxu0 0.0
    %3071 = vmatprep.subr.mxu0 0.0
    %3072 = vmatpush2.msra.mxu0 0.0
    %3073 = vmatprep.subr.mxu0 0.0
    %3074 = vmatpush2.msra.mxu0 0.0
    %3075 = vmatprep.subr.mxu0 0.0
    %3076 = vmatpush2.msra.mxu0 0.0
    %3077 = vmatprep.subr.mxu0 0.0
    %3078 = vmatpush2.msra.mxu0 0.0
    %3079 = vmatprep.subr.mxu0 0.0
    %3080 = vmatpush2.msra.mxu0 0.0
    %3081 = vmatprep.subr.mxu0 0.0
    %3082 = vmatpush2.msra.mxu0 0.0
    %3083 = vmatprep.subr.mxu0 0.0
    %3084 = vmatpush2.msra.mxu0 0.0
    %3085 = vmatprep.subr.mxu0 0.0
    %3086 = vmatpush2.msra.mxu0 0.0
    %3087 = vmatprep.subr.mxu0 0.0
    %3088 = vmatpush2.msra.mxu0 0.0
    %3089 = vmatprep.subr.mxu0 0.0
    %3090 = vmatpush2.msra.mxu0 0.0
    %3091 = vmatprep.subr.mxu0 0.0
    %3092 = vmatpush2.msra.mxu0 0.0
    %3093 = vmatprep.subr.mxu0 0.0
    %3094 = vmatpush2.msra.mxu0 0.0
    %3095 = vmatprep.subr.mxu0 0.0
    %3096 = vmatpush2.msra.mxu0 0.0
    %3097 = vmatprep.subr.mxu0 0.0
    %3098 = vmatpush2.msra.mxu0 0.0
    %3099 = vmatprep.mubr.f32.mxu0 0.0
    %3100 = vmatmul.mubr.f32.gmra.mxu0 %v3030
    %v3101 = vpop.f32.mrf.mxu0
    %v3102 = vadd.f32 0.0, %v3101
    %v3103 = vpop.f32.mrf.mxu0
    %3104 = vmatprep.mubr.f32.mxu0 0.0
    %3105 = vmatmul.mubr.f32.gmra.mxu0 %v3033
    %v3106 = vpop.f32.mrf.mxu0
    %v3107 = vadd.f32 0.0, %v3106
    %v3108 = vpop.f32.mrf.mxu0
    %3109 = vdwg.mxu0
    %v3110 = vadd.f32 %v3017, %v3102
    %v3111 = vadd.f32 %v3018, %v3107
    %v3112 = vxor.u32 %v3110, 2147483648
    %v3113 = vxor.u32 %v3111, 2147483648
    %v3114 = vmul.f32 %v3112, 1.442695
    %v3115 = vpow.pop %v3114
    %v3116 = vmul.f32 %v3113, 1.442695
    %v3117 = vpow.pop %v3116
    %v3118 = vadd.f32 %v3115, 1.0
    %v3119 = vadd.f32 %v3117, 1.0
    %v3120 = vrcp.pop %v3118
    %v3121 = vmul.f32 1.0, %v3120
    %v3122 = vrcp.pop %v3119
    %v3123 = vmul.f32 1.0, %v3122
    %v3124 = vtanh.pop %v3110
    %v3125 = vtanh.pop %v3111
    %v3126 = vmul.f32 %v3121, %v2993
    %v3127 = vmul.f32 %v3123, %v2994
    %3130 = vrot.lane.b32.xlu0 %v3124, 64
    %v3131 = vpop.permute.xlu0 %3130
    %3132 = vrot.lane.b32.xlu0 %v3125, 64
    %v3133 = vpop.permute.xlu0 %3132
    %v3136 = vmul.f32 %v3121, %v3131
    %v3137 = vmul.f32 %v3123, %v3133
    %3140 = vrot.lane.b32.xlu0 %v3136, 32
    %v3141 = vpop.permute.xlu0 %3140
    %3142 = vrot.lane.b32.xlu0 %v3137, 32
    %v3143 = vpop.permute.xlu0 %3142
    %v3146 = vadd.f32 %v3126, %v3141
    %v3147 = vadd.f32 %v3127, %v3143
    %v3148 = vtanh.pop %v3146
    %v3149 = vtanh.pop %v3147
    %3152 = vrot.lane.b32.xlu0 %v3148, 64
    %v3153 = vpop.permute.xlu0 %3152
    %3154 = vrot.lane.b32.xlu0 %v3149, 64
    %v3155 = vpop.permute.xlu0 %3154
    %v3158 = vmul.f32 %v3121, %v3153
    %v3159 = vmul.f32 %v3123, %v3155
    %3161 = vrot.lane.b32.xlu0 %v3158, 32
    %v3162 = vpop.permute.xlu0 %3161
    %3164 = vst.msk [vmem:[#allocation3 + $0x78] sm:$0xff] %vm867, %v3162
    %3166 = vrot.lane.b32.xlu0 %v3159, 64
    %v3167 = vpop.permute.xlu0 %3166
    %3169 = vst.msk [vmem:[#allocation3] sm:$0xff] %vm873, %v3167
    %v3170 = vld [vmem:[#allocation3] sm:$0xff]
    %v3171 = vld [vmem:[#allocation3 + $0x8] sm:$0xff]
    %v3172 = vld [vmem:[#allocation3 + $0x10] sm:$0xff]
    %v3173 = vld [vmem:[#allocation3 + $0x18] sm:$0xff]
    %v3174 = vld [vmem:[#allocation3 + $0x20] sm:$0xff]
    %v3175 = vld [vmem:[#allocation3 + $0x28] sm:$0xff]
    %v3176 = vld [vmem:[#allocation3 + $0x30] sm:$0xff]
    %v3177 = vld [vmem:[#allocation3 + $0x38] sm:$0xff]
    %v3178 = vld [vmem:[#allocation3 + $0x40] sm:$0xff]
    %v3179 = vld [vmem:[#allocation3 + $0x48] sm:$0xff]
    %v3180 = vld [vmem:[#allocation3 + $0x50] sm:$0xff]
    %v3181 = vld [vmem:[#allocation3 + $0x58] sm:$0xff]
    %v3182 = vld [vmem:[#allocation3 + $0x60] sm:$0xff]
    %v3183 = vld [vmem:[#allocation3 + $0x68] sm:$0xff]
    %v3184 = vld [vmem:[#allocation3 + $0x70] sm:$0xff]
    %v3185 = vld [vmem:[#allocation3 + $0x78] sm:$0xff]
    %v3186 = vld [vmem:[%s5] sm:$0xff]
    %v3187 = vld [vmem:[%s5 + $0x8] sm:$0xff]
    %v3188 = vld [vmem:[%s5 + $0x10] sm:$0xff]
    %v3189 = vld [vmem:[%s5 + $0x18] sm:$0xff]
    %v3190 = vld [vmem:[%s5 + $0x20] sm:$0xff]
    %v3191 = vld [vmem:[%s5 + $0x28] sm:$0xff]
    %v3192 = vld [vmem:[%s5 + $0x30] sm:$0xff]
    %v3193 = vld [vmem:[%s5 + $0x38] sm:$0xff]
    %v3194 = vld [vmem:[%s5 + $0x40] sm:$0xff]
    %v3195 = vld [vmem:[%s5 + $0x48] sm:$0xff]
    %v3196 = vld [vmem:[%s5 + $0x50] sm:$0xff]
    %v3197 = vld [vmem:[%s5 + $0x58] sm:$0xff]
    %v3198 = vld [vmem:[%s5 + $0x60] sm:$0xff]
    %v3199 = vld [vmem:[%s5 + $0x68] sm:$0xff]
    %v3200 = vld [vmem:[%s5 + $0x70] sm:$0xff]
    %v3201 = vld [vmem:[%s5 + $0x78] sm:$0xff]
    %v3202 = vld [vmem:[#allocation10] sm:$0x3]
    %v3204 = vlaneseq
    %v3205 = vshrl.u32 %v3204, 7
    %v3206 = vsub.s32 0, %v3205
    %v3207 = vrot.slane %v3202, %v3206
    %v3208 = vlaneseq
    %v3209 = vshrl.u32 %v3208, 7
    %v3210 = vsub.s32 1, %v3209
    %v3211 = vrot.slane %v3202, %v3210
    %v3215 = vsel %vm731, %v3170, 0
    %v3218 = vsel %vm731, %v3171, 0
    %v3221 = vsel %vm731, %v3172, 0
    %v3224 = vsel %vm731, %v3173, 0
    %v3227 = vsel %vm731, %v3174, 0
    %v3230 = vsel %vm731, %v3175, 0
    %v3233 = vsel %vm731, %v3176, 0
    %v3236 = vsel %vm731, %v3177, 0
    %v3239 = vsel %vm731, %v3178, 0
    %v3242 = vsel %vm731, %v3179, 0
    %v3245 = vsel %vm731, %v3180, 0
    %v3248 = vsel %vm731, %v3181, 0
    %v3251 = vsel %vm731, %v3182, 0
    %v3254 = vsel %vm731, %v3183, 0
    %v3257 = vsel %vm731, %v3184, 0
    %v3260 = vsel %vm731, %v3185, 0
    %3262 = vmatprep.subr.mxu0 0.0
    %3263 = vmatpush1.msra.mxu0 0.0
    %3264 = vmatprep.subr.mxu0 0.0
    %3265 = vmatpush1.msra.mxu0 0.0
    %3266 = vmatprep.subr.mxu0 0.0
    %3267 = vmatpush1.msra.mxu0 0.0
    %3268 = vmatprep.subr.mxu0 0.0
    %3269 = vmatpush1.msra.mxu0 0.0
    %3270 = vmatprep.subr.mxu0 0.0
    %3271 = vmatpush1.msra.mxu0 0.0
    %3272 = vmatprep.subr.mxu0 0.0
    %3273 = vmatpush1.msra.mxu0 0.0
    %3274 = vmatprep.subr.mxu0 0.0
    %3275 = vmatpush1.msra.mxu0 0.0
    %3276 = vmatprep.subr.mxu0 0.0
    %3277 = vmatpush1.msra.mxu0 0.0
    %3278 = vmatprep.subr.mxu0 %v3201
    %3279 = vmatpush1.msra.mxu0 %v3200
    %3280 = vmatprep.subr.mxu0 %v3199
    %3281 = vmatpush1.msra.mxu0 %v3198
    %3282 = vmatprep.subr.mxu0 %v3197
    %3283 = vmatpush1.msra.mxu0 %v3196
    %3284 = vmatprep.subr.mxu0 %v3195
    %3285 = vmatpush1.msra.mxu0 %v3194
    %3286 = vmatprep.subr.mxu0 %v3193
    %3287 = vmatpush1.msra.mxu0 %v3192
    %3288 = vmatprep.subr.mxu0 %v3191
    %3289 = vmatpush1.msra.mxu0 %v3190
    %3290 = vmatprep.subr.mxu0 %v3189
    %3291 = vmatpush1.msra.mxu0 %v3188
    %3292 = vmatprep.subr.mxu0 %v3187
    %3293 = vmatpush1.msra.mxu0 %v3186
    %3294 = vmatprep.subr.mxu0 0.0
    %3295 = vmatpush2.msra.mxu0 0.0
    %3296 = vmatprep.subr.mxu0 0.0
    %3297 = vmatpush2.msra.mxu0 0.0
    %3298 = vmatprep.subr.mxu0 0.0
    %3299 = vmatpush2.msra.mxu0 0.0
    %3300 = vmatprep.subr.mxu0 0.0
    %3301 = vmatpush2.msra.mxu0 0.0
    %3302 = vmatprep.subr.mxu0 0.0
    %3303 = vmatpush2.msra.mxu0 0.0
    %3304 = vmatprep.subr.mxu0 0.0
    %3305 = vmatpush2.msra.mxu0 0.0
    %3306 = vmatprep.subr.mxu0 0.0
    %3307 = vmatpush2.msra.mxu0 0.0
    %3308 = vmatprep.subr.mxu0 0.0
    %3309 = vmatpush2.msra.mxu0 0.0
    %3310 = vmatprep.subr.mxu0 0.0
    %3311 = vmatpush2.msra.mxu0 0.0
    %3312 = vmatprep.subr.mxu0 0.0
    %3313 = vmatpush2.msra.mxu0 0.0
    %3314 = vmatprep.subr.mxu0 0.0
    %3315 = vmatpush2.msra.mxu0 0.0
    %3316 = vmatprep.subr.mxu0 0.0
    %3317 = vmatpush2.msra.mxu0 0.0
    %3318 = vmatprep.subr.mxu0 0.0
    %3319 = vmatpush2.msra.mxu0 0.0
    %3320 = vmatprep.subr.mxu0 0.0
    %3321 = vmatpush2.msra.mxu0 0.0
    %3322 = vmatprep.subr.mxu0 0.0
    %3323 = vmatpush2.msra.mxu0 0.0
    %3324 = vmatprep.subr.mxu0 0.0
    %3325 = vmatpush2.msra.mxu0 0.0
    %3326 = vmatprep.mubr.f32.mxu0 0.0
    %3327 = vmatmul.mubr.f32.gmra.mxu0 %v3215
    %v3328 = vpop.f32.mrf.mxu0
    %v3329 = vadd.f32 %v3207, %v3328
    %v3330 = vpop.f32.mrf.mxu0
    %v3331 = vadd.f32 %v3211, %v3330
    %3332 = vmatprep.mubr.f32.mxu0 0.0
    %3333 = vmatmul.mubr.f32.gmra.mxu0 %v3218
    %v3334 = vpop.f32.mrf.mxu0
    %v3335 = vadd.f32 %v3207, %v3334
    %v3336 = vpop.f32.mrf.mxu0
    %v3337 = vadd.f32 %v3211, %v3336
    %3338 = vmatprep.mubr.f32.mxu0 0.0
    %3339 = vmatmul.mubr.f32.gmra.mxu0 %v3221
    %v3340 = vpop.f32.mrf.mxu0
    %v3341 = vadd.f32 %v3207, %v3340
    %v3342 = vpop.f32.mrf.mxu0
    %v3343 = vadd.f32 %v3211, %v3342
    %3344 = vmatprep.mubr.f32.mxu0 0.0
    %3345 = vmatmul.mubr.f32.gmra.mxu0 %v3224
    %v3346 = vpop.f32.mrf.mxu0
    %v3347 = vadd.f32 %v3207, %v3346
    %v3348 = vpop.f32.mrf.mxu0
    %v3349 = vadd.f32 %v3211, %v3348
    %3350 = vmatprep.mubr.f32.mxu0 0.0
    %3351 = vmatmul.mubr.f32.gmra.mxu0 %v3227
    %v3352 = vpop.f32.mrf.mxu0
    %v3353 = vadd.f32 %v3207, %v3352
    %v3354 = vpop.f32.mrf.mxu0
    %v3355 = vadd.f32 %v3211, %v3354
    %3356 = vmatprep.mubr.f32.mxu0 0.0
    %3357 = vmatmul.mubr.f32.gmra.mxu0 %v3230
    %v3358 = vpop.f32.mrf.mxu0
    %v3359 = vadd.f32 %v3207, %v3358
    %v3360 = vpop.f32.mrf.mxu0
    %v3361 = vadd.f32 %v3211, %v3360
    %3362 = vmatprep.mubr.f32.mxu0 0.0
    %3363 = vmatmul.mubr.f32.gmra.mxu0 %v3233
    %v3364 = vpop.f32.mrf.mxu0
    %v3365 = vadd.f32 %v3207, %v3364
    %v3366 = vpop.f32.mrf.mxu0
    %v3367 = vadd.f32 %v3211, %v3366
    %3368 = vmatprep.mubr.f32.mxu0 0.0
    %3369 = vmatmul.mubr.f32.gmra.mxu0 %v3236
    %v3370 = vpop.f32.mrf.mxu0
    %v3371 = vadd.f32 %v3207, %v3370
    %v3372 = vpop.f32.mrf.mxu0
    %v3373 = vadd.f32 %v3211, %v3372
    %3374 = vmatprep.mubr.f32.mxu0 0.0
    %3375 = vmatmul.mubr.f32.gmra.mxu0 %v3239
    %v3376 = vpop.f32.mrf.mxu0
    %v3377 = vadd.f32 %v3207, %v3376
    %v3378 = vpop.f32.mrf.mxu0
    %v3379 = vadd.f32 %v3211, %v3378
    %3380 = vmatprep.mubr.f32.mxu0 0.0
    %3381 = vmatmul.mubr.f32.gmra.mxu0 %v3242
    %v3382 = vpop.f32.mrf.mxu0
    %v3383 = vadd.f32 %v3207, %v3382
    %v3384 = vpop.f32.mrf.mxu0
    %v3385 = vadd.f32 %v3211, %v3384
    %3386 = vmatprep.mubr.f32.mxu0 0.0
    %3387 = vmatmul.mubr.f32.gmra.mxu0 %v3245
    %v3388 = vpop.f32.mrf.mxu0
    %v3389 = vadd.f32 %v3207, %v3388
    %v3390 = vpop.f32.mrf.mxu0
    %v3391 = vadd.f32 %v3211, %v3390
    %3392 = vmatprep.mubr.f32.mxu0 0.0
    %3393 = vmatmul.mubr.f32.gmra.mxu0 %v3248
    %v3394 = vpop.f32.mrf.mxu0
    %v3395 = vadd.f32 %v3207, %v3394
    %v3396 = vpop.f32.mrf.mxu0
    %v3397 = vadd.f32 %v3211, %v3396
    %3398 = vmatprep.mubr.f32.mxu0 0.0
    %3399 = vmatmul.mubr.f32.gmra.mxu0 %v3251
    %v3400 = vpop.f32.mrf.mxu0
    %v3401 = vadd.f32 %v3207, %v3400
    %v3402 = vpop.f32.mrf.mxu0
    %v3403 = vadd.f32 %v3211, %v3402
    %3404 = vmatprep.mubr.f32.mxu0 0.0
    %3405 = vmatmul.mubr.f32.gmra.mxu0 %v3254
    %v3406 = vpop.f32.mrf.mxu0
    %v3407 = vadd.f32 %v3207, %v3406
    %v3408 = vpop.f32.mrf.mxu0
    %v3409 = vadd.f32 %v3211, %v3408
    %3410 = vmatprep.mubr.f32.mxu0 0.0
    %3411 = vmatmul.mubr.f32.gmra.mxu0 %v3257
    %v3412 = vpop.f32.mrf.mxu0
    %v3413 = vadd.f32 %v3207, %v3412
    %v3414 = vpop.f32.mrf.mxu0
    %v3415 = vadd.f32 %v3211, %v3414
    %3416 = vmatprep.mubr.f32.mxu0 0.0
    %3417 = vmatmul.mubr.f32.gmra.mxu0 %v3260
    %v3418 = vpop.f32.mrf.mxu0
    %v3419 = vadd.f32 %v3207, %v3418
    %v3420 = vpop.f32.mrf.mxu0
    %v3421 = vadd.f32 %v3211, %v3420
    %3422 = vdwg.mxu0
    %3423 = vst [vmem:[#allocation2] sm:$0xff] %v3329
    %3424 = vst [vmem:[#allocation2 + $0x8] sm:$0xff] %v3331
    %3425 = vst [vmem:[#allocation2 + $0x10] sm:$0xff] %v3335
    %3426 = vst [vmem:[#allocation2 + $0x18] sm:$0xff] %v3337
    %3427 = vst [vmem:[#allocation2 + $0x20] sm:$0xff] %v3341
    %3428 = vst [vmem:[#allocation2 + $0x28] sm:$0xff] %v3343
    %3429 = vst [vmem:[#allocation2 + $0x30] sm:$0xff] %v3347
    %3430 = vst [vmem:[#allocation2 + $0x38] sm:$0xff] %v3349
    %3431 = vst [vmem:[#allocation2 + $0x40] sm:$0xff] %v3353
    %3432 = vst [vmem:[#allocation2 + $0x48] sm:$0xff] %v3355
    %3433 = vst [vmem:[#allocation2 + $0x50] sm:$0xff] %v3359
    %3434 = vst [vmem:[#allocation2 + $0x58] sm:$0xff] %v3361
    %3435 = vst [vmem:[#allocation2 + $0x60] sm:$0xff] %v3365
    %3436 = vst [vmem:[#allocation2 + $0x68] sm:$0xff] %v3367
    %3437 = vst [vmem:[#allocation2 + $0x70] sm:$0xff] %v3371
    %3438 = vst [vmem:[#allocation2 + $0x78] sm:$0xff] %v3373
    %3439 = vst [vmem:[#allocation2 + $0x80] sm:$0xff] %v3377
    %3440 = vst [vmem:[#allocation2 + $0x88] sm:$0xff] %v3379
    %3441 = vst [vmem:[#allocation2 + $0x90] sm:$0xff] %v3383
    %3442 = vst [vmem:[#allocation2 + $0x98] sm:$0xff] %v3385
    %3443 = vst [vmem:[#allocation2 + $0xa0] sm:$0xff] %v3389
    %3444 = vst [vmem:[#allocation2 + $0xa8] sm:$0xff] %v3391
    %3445 = vst [vmem:[#allocation2 + $0xb0] sm:$0xff] %v3395
    %3446 = vst [vmem:[#allocation2 + $0xb8] sm:$0xff] %v3397
    %3447 = vst [vmem:[#allocation2 + $0xc0] sm:$0xff] %v3401
    %3448 = vst [vmem:[#allocation2 + $0xc8] sm:$0xff] %v3403
    %3449 = vst [vmem:[#allocation2 + $0xd0] sm:$0xff] %v3407
    %3450 = vst [vmem:[#allocation2 + $0xd8] sm:$0xff] %v3409
    %3451 = vst [vmem:[#allocation2 + $0xe0] sm:$0xff] %v3413
    %3452 = vst [vmem:[#allocation2 + $0xe8] sm:$0xff] %v3415
    %3453 = vst [vmem:[#allocation2 + $0xf0] sm:$0xff] %v3419
    %3454 = vst [vmem:[#allocation2 + $0xf8] sm:$0xff] %v3421
    %v3455 = vld [vmem:[%s7] sm:$0xff]
    %v3456 = vld [vmem:[%s7 + $0x8] sm:$0xff]
    %v3457 = vld [vmem:[%s7 + $0x10] sm:$0xff]
    %v3458 = vld [vmem:[%s7 + $0x18] sm:$0xff]
    %v3459 = vld [vmem:[%s7 + $0x20] sm:$0xff]
    %v3460 = vld [vmem:[%s7 + $0x28] sm:$0xff]
    %v3461 = vld [vmem:[%s7 + $0x30] sm:$0xff]
    %v3462 = vld [vmem:[%s7 + $0x38] sm:$0xff]
    %v3463 = vld [vmem:[#allocation2] sm:$0xff]
    %v3464 = vld [vmem:[#allocation2 + $0xf8] sm:$0xff]
    %3465 = vmatprep.subr.mxu0 0.0
    %3466 = vmatpush1.msra.mxu0 0.0
    %3467 = vmatprep.subr.mxu0 0.0
    %3468 = vmatpush1.msra.mxu0 0.0
    %3469 = vmatprep.subr.mxu0 0.0
    %3470 = vmatpush1.msra.mxu0 0.0
    %3471 = vmatprep.subr.mxu0 0.0
    %3472 = vmatpush1.msra.mxu0 0.0
    %3473 = vmatprep.subr.mxu0 0.0
    %3474 = vmatpush1.msra.mxu0 0.0
    %3475 = vmatprep.subr.mxu0 0.0
    %3476 = vmatpush1.msra.mxu0 0.0
    %3477 = vmatprep.subr.mxu0 0.0
    %3478 = vmatpush1.msra.mxu0 0.0
    %3479 = vmatprep.subr.mxu0 0.0
    %3480 = vmatpush1.msra.mxu0 0.0
    %3481 = vmatprep.subr.mxu0 0.0
    %3482 = vmatpush1.msra.mxu0 %v3462
    %3483 = vmatprep.subr.mxu0 0.0
    %3484 = vmatpush1.msra.mxu0 %v3461
    %3485 = vmatprep.subr.mxu0 0.0
    %3486 = vmatpush1.msra.mxu0 %v3460
    %3487 = vmatprep.subr.mxu0 0.0
    %3488 = vmatpush1.msra.mxu0 %v3459
    %3489 = vmatprep.subr.mxu0 0.0
    %3490 = vmatpush1.msra.mxu0 %v3458
    %3491 = vmatprep.subr.mxu0 0.0
    %3492 = vmatpush1.msra.mxu0 %v3457
    %3493 = vmatprep.subr.mxu0 0.0
    %3494 = vmatpush1.msra.mxu0 %v3456
    %3495 = vmatprep.subr.mxu0 0.0
    %3496 = vmatpush1.msra.mxu0 %v3455
    %3497 = vmatprep.subr.mxu0 0.0
    %3498 = vmatpush2.msra.mxu0 0.0
    %3499 = vmatprep.subr.mxu0 0.0
    %3500 = vmatpush2.msra.mxu0 0.0
    %3501 = vmatprep.subr.mxu0 0.0
    %3502 = vmatpush2.msra.mxu0 0.0
    %3503 = vmatprep.subr.mxu0 0.0
    %3504 = vmatpush2.msra.mxu0 0.0
    %3505 = vmatprep.subr.mxu0 0.0
    %3506 = vmatpush2.msra.mxu0 0.0
    %3507 = vmatprep.subr.mxu0 0.0
    %3508 = vmatpush2.msra.mxu0 0.0
    %3509 = vmatprep.subr.mxu0 0.0
    %3510 = vmatpush2.msra.mxu0 0.0
    %3511 = vmatprep.subr.mxu0 0.0
    %3512 = vmatpush2.msra.mxu0 0.0
    %3513 = vmatprep.subr.mxu0 0.0
    %3514 = vmatpush2.msra.mxu0 0.0
    %3515 = vmatprep.subr.mxu0 0.0
    %3516 = vmatpush2.msra.mxu0 0.0
    %3517 = vmatprep.subr.mxu0 0.0
    %3518 = vmatpush2.msra.mxu0 0.0
    %3519 = vmatprep.subr.mxu0 0.0
    %3520 = vmatpush2.msra.mxu0 0.0
    %3521 = vmatprep.subr.mxu0 0.0
    %3522 = vmatpush2.msra.mxu0 0.0
    %3523 = vmatprep.subr.mxu0 0.0
    %3524 = vmatpush2.msra.mxu0 0.0
    %3525 = vmatprep.subr.mxu0 0.0
    %3526 = vmatpush2.msra.mxu0 0.0
    %3527 = vmatprep.subr.mxu0 0.0
    %3528 = vmatpush2.msra.mxu0 0.0
    %3529 = vmatprep.mubr.f32.mxu0 0.0
    %3530 = vmatmul.mubr.f32.gmra.mxu0 %v733
    %v3531 = vpop.f32.mrf.mxu0
    %v3532 = vadd.f32 0.0, %v3531
    %v3533 = vpop.f32.mrf.mxu0
    %3534 = vmatprep.mubr.f32.mxu0 0.0
    %3535 = vmatmul.mubr.f32.gmra.mxu0 %v736
    %v3536 = vpop.f32.mrf.mxu0
    %v3537 = vadd.f32 0.0, %v3536
    %v3538 = vpop.f32.mrf.mxu0
    %3539 = vdwg.mxu0
    %v3540 = vadd.f32 %v3463, %v3532
    %v3541 = vadd.f32 %v3464, %v3537
    %v3542 = vxor.u32 %v3540, 2147483648
    %v3543 = vxor.u32 %v3541, 2147483648
    %v3544 = vmul.f32 %v3542, 1.442695
    %v3545 = vpow.pop %v3544
    %v3546 = vmul.f32 %v3543, 1.442695
    %v3547 = vpow.pop %v3546
    %v3548 = vadd.f32 %v3545, 1.0
    %v3549 = vadd.f32 %v3547, 1.0
    %v3550 = vrcp.pop %v3548
    %v3551 = vmul.f32 1.0, %v3550
    %v3552 = vrcp.pop %v3549
    %v3553 = vmul.f32 1.0, %v3552
    %v3554 = vtanh.pop %v3540
    %v3555 = vtanh.pop %v3541
    %v3556 = vmul.f32 %v3551, 0.0
    %v3557 = vmul.f32 %v3553, 0.0
    %3560 = vrot.lane.b32.xlu0 %v3554, 64
    %v3561 = vpop.permute.xlu0 %3560
    %3562 = vrot.lane.b32.xlu0 %v3555, 64
    %v3563 = vpop.permute.xlu0 %3562
    %v3566 = vmul.f32 %v3551, %v3561
    %v3567 = vmul.f32 %v3553, %v3563
    %3570 = vrot.lane.b32.xlu0 %v3566, 32
    %v3571 = vpop.permute.xlu0 %3570
    %3572 = vrot.lane.b32.xlu0 %v3567, 32
    %v3573 = vpop.permute.xlu0 %3572
    %v3576 = vadd.f32 %v3556, %v3571
    %v3577 = vadd.f32 %v3557, %v3573
    %v3578 = vtanh.pop %v3576
    %v3579 = vtanh.pop %v3577
    %3582 = vrot.lane.b32.xlu0 %v3578, 64
    %v3583 = vpop.permute.xlu0 %3582
    %3584 = vrot.lane.b32.xlu0 %v3579, 64
    %v3585 = vpop.permute.xlu0 %3584
    %v3588 = vmul.f32 %v3551, %v3583
    %v3589 = vmul.f32 %v3553, %v3585
    %v3590 = vld [vmem:[#allocation2 + $0x10] sm:$0xff]
    %v3591 = vld [vmem:[#allocation2 + $0xe8] sm:$0xff]
    %3594 = vrot.lane.b32.xlu0 %v3588, 32
    %v3595 = vpop.permute.xlu0 %3594
    %3596 = vrot.lane.b32.xlu0 %v3589, 32
    %v3597 = vpop.permute.xlu0 %3596
    %3600 = vrot.lane.b32.xlu0 %v3588, 64
    %v3601 = vpop.permute.xlu0 %3600
    %3602 = vrot.lane.b32.xlu0 %v3589, 64
    %v3603 = vpop.permute.xlu0 %3602
    %v3606 = vsel %vm867, %v3595, %v3601
    %v3607 = vsel %vm867, %v3597, %v3603
    %v3608 = vmul.f32 %v3606, %v459
    %v3609 = vmul.f32 %v3607, %v460
    %v3611 = vsel %vm731, %v3608, 0
    %v3614 = vsel %vm731, %v3609, 0
    %3616 = vmatprep.subr.mxu0 0.0
    %3617 = vmatpush1.msra.mxu0 0.0
    %3618 = vmatprep.subr.mxu0 0.0
    %3619 = vmatpush1.msra.mxu0 0.0
    %3620 = vmatprep.subr.mxu0 0.0
    %3621 = vmatpush1.msra.mxu0 0.0
    %3622 = vmatprep.subr.mxu0 0.0
    %3623 = vmatpush1.msra.mxu0 0.0
    %3624 = vmatprep.subr.mxu0 0.0
    %3625 = vmatpush1.msra.mxu0 0.0
    %3626 = vmatprep.subr.mxu0 0.0
    %3627 = vmatpush1.msra.mxu0 0.0
    %3628 = vmatprep.subr.mxu0 0.0
    %3629 = vmatpush1.msra.mxu0 0.0
    %3630 = vmatprep.subr.mxu0 0.0
    %3631 = vmatpush1.msra.mxu0 0.0
    %3632 = vmatprep.subr.mxu0 0.0
    %3633 = vmatpush1.msra.mxu0 %v3462
    %3634 = vmatprep.subr.mxu0 0.0
    %3635 = vmatpush1.msra.mxu0 %v3461
    %3636 = vmatprep.subr.mxu0 0.0
    %3637 = vmatpush1.msra.mxu0 %v3460
    %3638 = vmatprep.subr.mxu0 0.0
    %3639 = vmatpush1.msra.mxu0 %v3459
    %3640 = vmatprep.subr.mxu0 0.0
    %3641 = vmatpush1.msra.mxu0 %v3458
    %3642 = vmatprep.subr.mxu0 0.0
    %3643 = vmatpush1.msra.mxu0 %v3457
    %3644 = vmatprep.subr.mxu0 0.0
    %3645 = vmatpush1.msra.mxu0 %v3456
    %3646 = vmatprep.subr.mxu0 0.0
    %3647 = vmatpush1.msra.mxu0 %v3455
    %3648 = vmatprep.subr.mxu0 0.0
    %3649 = vmatpush2.msra.mxu0 0.0
    %3650 = vmatprep.subr.mxu0 0.0
    %3651 = vmatpush2.msra.mxu0 0.0
    %3652 = vmatprep.subr.mxu0 0.0
    %3653 = vmatpush2.msra.mxu0 0.0
    %3654 = vmatprep.subr.mxu0 0.0
    %3655 = vmatpush2.msra.mxu0 0.0
    %3656 = vmatprep.subr.mxu0 0.0
    %3657 = vmatpush2.msra.mxu0 0.0
    %3658 = vmatprep.subr.mxu0 0.0
    %3659 = vmatpush2.msra.mxu0 0.0
    %3660 = vmatprep.subr.mxu0 0.0
    %3661 = vmatpush2.msra.mxu0 0.0
    %3662 = vmatprep.subr.mxu0 0.0
    %3663 = vmatpush2.msra.mxu0 0.0
    %3664 = vmatprep.subr.mxu0 0.0
    %3665 = vmatpush2.msra.mxu0 0.0
    %3666 = vmatprep.subr.mxu0 0.0
    %3667 = vmatpush2.msra.mxu0 0.0
    %3668 = vmatprep.subr.mxu0 0.0
    %3669 = vmatpush2.msra.mxu0 0.0
    %3670 = vmatprep.subr.mxu0 0.0
    %3671 = vmatpush2.msra.mxu0 0.0
    %3672 = vmatprep.subr.mxu0 0.0
    %3673 = vmatpush2.msra.mxu0 0.0
    %3674 = vmatprep.subr.mxu0 0.0
    %3675 = vmatpush2.msra.mxu0 0.0
    %3676 = vmatprep.subr.mxu0 0.0
    %3677 = vmatpush2.msra.mxu0 0.0
    %3678 = vmatprep.subr.mxu0 0.0
    %3679 = vmatpush2.msra.mxu0 0.0
    %3680 = vmatprep.mubr.f32.mxu0 0.0
    %3681 = vmatmul.mubr.f32.gmra.mxu0 %v3611
    %v3682 = vpop.f32.mrf.mxu0
    %v3683 = vadd.f32 0.0, %v3682
    %v3684 = vpop.f32.mrf.mxu0
    %3685 = vmatprep.mubr.f32.mxu0 0.0
    %3686 = vmatmul.mubr.f32.gmra.mxu0 %v3614
    %v3687 = vpop.f32.mrf.mxu0
    %v3688 = vadd.f32 0.0, %v3687
    %v3689 = vpop.f32.mrf.mxu0
    %3690 = vdwg.mxu0
    %v3691 = vadd.f32 %v3590, %v3683
    %v3692 = vadd.f32 %v3591, %v3688
    %v3693 = vxor.u32 %v3691, 2147483648
    %v3694 = vxor.u32 %v3692, 2147483648
    %v3695 = vmul.f32 %v3693, 1.442695
    %v3696 = vpow.pop %v3695
    %v3697 = vmul.f32 %v3694, 1.442695
    %v3698 = vpow.pop %v3697
    %v3699 = vadd.f32 %v3696, 1.0
    %v3700 = vadd.f32 %v3698, 1.0
    %v3701 = vrcp.pop %v3699
    %v3702 = vmul.f32 1.0, %v3701
    %v3703 = vrcp.pop %v3700
    %v3704 = vmul.f32 1.0, %v3703
    %v3705 = vtanh.pop %v3691
    %v3706 = vtanh.pop %v3692
    %v3707 = vmul.f32 %v3702, %v3576
    %v3708 = vmul.f32 %v3704, %v3577
    %3711 = vrot.lane.b32.xlu0 %v3705, 64
    %v3712 = vpop.permute.xlu0 %3711
    %3713 = vrot.lane.b32.xlu0 %v3706, 64
    %v3714 = vpop.permute.xlu0 %3713
    %v3717 = vmul.f32 %v3702, %v3712
    %v3718 = vmul.f32 %v3704, %v3714
    %3721 = vrot.lane.b32.xlu0 %v3717, 32
    %v3722 = vpop.permute.xlu0 %3721
    %3723 = vrot.lane.b32.xlu0 %v3718, 32
    %v3724 = vpop.permute.xlu0 %3723
    %v3727 = vadd.f32 %v3707, %v3722
    %v3728 = vadd.f32 %v3708, %v3724
    %v3729 = vtanh.pop %v3727
    %v3730 = vtanh.pop %v3728
    %3733 = vrot.lane.b32.xlu0 %v3729, 64
    %v3734 = vpop.permute.xlu0 %3733
    %3735 = vrot.lane.b32.xlu0 %v3730, 64
    %v3736 = vpop.permute.xlu0 %3735
    %v3739 = vmul.f32 %v3702, %v3734
    %v3740 = vmul.f32 %v3704, %v3736
    %v3741 = vld [vmem:[#allocation2 + $0x20] sm:$0xff]
    %v3742 = vld [vmem:[#allocation2 + $0xd8] sm:$0xff]
    %3745 = vrot.lane.b32.xlu0 %v3739, 32
    %v3746 = vpop.permute.xlu0 %3745
    %3747 = vrot.lane.b32.xlu0 %v3740, 32
    %v3748 = vpop.permute.xlu0 %3747
    %3751 = vrot.lane.b32.xlu0 %v3739, 64
    %v3752 = vpop.permute.xlu0 %3751
    %3753 = vrot.lane.b32.xlu0 %v3740, 64
    %v3754 = vpop.permute.xlu0 %3753
    %v3757 = vsel %vm867, %v3746, %v3752
    %v3758 = vsel %vm867, %v3748, %v3754
    %v3759 = vmul.f32 %v3757, %v459
    %v3760 = vmul.f32 %v3758, %v460
    %v3762 = vsel %vm731, %v3759, 0
    %v3765 = vsel %vm731, %v3760, 0
    %3767 = vmatprep.subr.mxu0 0.0
    %3768 = vmatpush1.msra.mxu0 0.0
    %3769 = vmatprep.subr.mxu0 0.0
    %3770 = vmatpush1.msra.mxu0 0.0
    %3771 = vmatprep.subr.mxu0 0.0
    %3772 = vmatpush1.msra.mxu0 0.0
    %3773 = vmatprep.subr.mxu0 0.0
    %3774 = vmatpush1.msra.mxu0 0.0
    %3775 = vmatprep.subr.mxu0 0.0
    %3776 = vmatpush1.msra.mxu0 0.0
    %3777 = vmatprep.subr.mxu0 0.0
    %3778 = vmatpush1.msra.mxu0 0.0
    %3779 = vmatprep.subr.mxu0 0.0
    %3780 = vmatpush1.msra.mxu0 0.0
    %3781 = vmatprep.subr.mxu0 0.0
    %3782 = vmatpush1.msra.mxu0 0.0
    %3783 = vmatprep.subr.mxu0 0.0
    %3784 = vmatpush1.msra.mxu0 %v3462
    %3785 = vmatprep.subr.mxu0 0.0
    %3786 = vmatpush1.msra.mxu0 %v3461
    %3787 = vmatprep.subr.mxu0 0.0
    %3788 = vmatpush1.msra.mxu0 %v3460
    %3789 = vmatprep.subr.mxu0 0.0
    %3790 = vmatpush1.msra.mxu0 %v3459
    %3791 = vmatprep.subr.mxu0 0.0
    %3792 = vmatpush1.msra.mxu0 %v3458
    %3793 = vmatprep.subr.mxu0 0.0
    %3794 = vmatpush1.msra.mxu0 %v3457
    %3795 = vmatprep.subr.mxu0 0.0
    %3796 = vmatpush1.msra.mxu0 %v3456
    %3797 = vmatprep.subr.mxu0 0.0
    %3798 = vmatpush1.msra.mxu0 %v3455
    %3799 = vmatprep.subr.mxu0 0.0
    %3800 = vmatpush2.msra.mxu0 0.0
    %3801 = vmatprep.subr.mxu0 0.0
    %3802 = vmatpush2.msra.mxu0 0.0
    %3803 = vmatprep.subr.mxu0 0.0
    %3804 = vmatpush2.msra.mxu0 0.0
    %3805 = vmatprep.subr.mxu0 0.0
    %3806 = vmatpush2.msra.mxu0 0.0
    %3807 = vmatprep.subr.mxu0 0.0
    %3808 = vmatpush2.msra.mxu0 0.0
    %3809 = vmatprep.subr.mxu0 0.0
    %3810 = vmatpush2.msra.mxu0 0.0
    %3811 = vmatprep.subr.mxu0 0.0
    %3812 = vmatpush2.msra.mxu0 0.0
    %3813 = vmatprep.subr.mxu0 0.0
    %3814 = vmatpush2.msra.mxu0 0.0
    %3815 = vmatprep.subr.mxu0 0.0
    %3816 = vmatpush2.msra.mxu0 0.0
    %3817 = vmatprep.subr.mxu0 0.0
    %3818 = vmatpush2.msra.mxu0 0.0
    %3819 = vmatprep.subr.mxu0 0.0
    %3820 = vmatpush2.msra.mxu0 0.0
    %3821 = vmatprep.subr.mxu0 0.0
    %3822 = vmatpush2.msra.mxu0 0.0
    %3823 = vmatprep.subr.mxu0 0.0
    %3824 = vmatpush2.msra.mxu0 0.0
    %3825 = vmatprep.subr.mxu0 0.0
    %3826 = vmatpush2.msra.mxu0 0.0
    %3827 = vmatprep.subr.mxu0 0.0
    %3828 = vmatpush2.msra.mxu0 0.0
    %3829 = vmatprep.subr.mxu0 0.0
    %3830 = vmatpush2.msra.mxu0 0.0
    %3831 = vmatprep.mubr.f32.mxu0 0.0
    %3832 = vmatmul.mubr.f32.gmra.mxu0 %v3762
    %v3833 = vpop.f32.mrf.mxu0
    %v3834 = vadd.f32 0.0, %v3833
    %v3835 = vpop.f32.mrf.mxu0
    %3836 = vmatprep.mubr.f32.mxu0 0.0
    %3837 = vmatmul.mubr.f32.gmra.mxu0 %v3765
    %v3838 = vpop.f32.mrf.mxu0
    %v3839 = vadd.f32 0.0, %v3838
    %v3840 = vpop.f32.mrf.mxu0
    %3841 = vdwg.mxu0
    %v3842 = vadd.f32 %v3741, %v3834
    %v3843 = vadd.f32 %v3742, %v3839
    %v3844 = vxor.u32 %v3842, 2147483648
    %v3845 = vxor.u32 %v3843, 2147483648
    %v3846 = vmul.f32 %v3844, 1.442695
    %v3847 = vpow.pop %v3846
    %v3848 = vmul.f32 %v3845, 1.442695
    %v3849 = vpow.pop %v3848
    %v3850 = vadd.f32 %v3847, 1.0
    %v3851 = vadd.f32 %v3849, 1.0
    %v3852 = vrcp.pop %v3850
    %v3853 = vmul.f32 1.0, %v3852
    %v3854 = vrcp.pop %v3851
    %v3855 = vmul.f32 1.0, %v3854
    %v3856 = vtanh.pop %v3842
    %v3857 = vtanh.pop %v3843
    %v3858 = vmul.f32 %v3853, %v3727
    %v3859 = vmul.f32 %v3855, %v3728
    %3862 = vrot.lane.b32.xlu0 %v3856, 64
    %v3863 = vpop.permute.xlu0 %3862
    %3864 = vrot.lane.b32.xlu0 %v3857, 64
    %v3865 = vpop.permute.xlu0 %3864
    %v3868 = vmul.f32 %v3853, %v3863
    %v3869 = vmul.f32 %v3855, %v3865
    %3872 = vrot.lane.b32.xlu0 %v3868, 32
    %v3873 = vpop.permute.xlu0 %3872
    %3874 = vrot.lane.b32.xlu0 %v3869, 32
    %v3875 = vpop.permute.xlu0 %3874
    %v3878 = vadd.f32 %v3858, %v3873
    %v3879 = vadd.f32 %v3859, %v3875
    %v3880 = vtanh.pop %v3878
    %v3881 = vtanh.pop %v3879
    %3884 = vrot.lane.b32.xlu0 %v3880, 64
    %v3885 = vpop.permute.xlu0 %3884
    %3886 = vrot.lane.b32.xlu0 %v3881, 64
    %v3887 = vpop.permute.xlu0 %3886
    %v3890 = vmul.f32 %v3853, %v3885
    %v3891 = vmul.f32 %v3855, %v3887
    %v3892 = vld [vmem:[#allocation2 + $0x30] sm:$0xff]
    %v3893 = vld [vmem:[#allocation2 + $0xc8] sm:$0xff]
    %3896 = vrot.lane.b32.xlu0 %v3890, 32
    %v3897 = vpop.permute.xlu0 %3896
    %3898 = vrot.lane.b32.xlu0 %v3891, 32
    %v3899 = vpop.permute.xlu0 %3898
    %3902 = vrot.lane.b32.xlu0 %v3890, 64
    %v3903 = vpop.permute.xlu0 %3902
    %3904 = vrot.lane.b32.xlu0 %v3891, 64
    %v3905 = vpop.permute.xlu0 %3904
    %v3908 = vsel %vm867, %v3897, %v3903
    %v3909 = vsel %vm867, %v3899, %v3905
    %v3910 = vmul.f32 %v3908, %v459
    %v3911 = vmul.f32 %v3909, %v460
    %v3913 = vsel %vm731, %v3910, 0
    %v3916 = vsel %vm731, %v3911, 0
    %3918 = vmatprep.subr.mxu0 0.0
    %3919 = vmatpush1.msra.mxu0 0.0
    %3920 = vmatprep.subr.mxu0 0.0
    %3921 = vmatpush1.msra.mxu0 0.0
    %3922 = vmatprep.subr.mxu0 0.0
    %3923 = vmatpush1.msra.mxu0 0.0
    %3924 = vmatprep.subr.mxu0 0.0
    %3925 = vmatpush1.msra.mxu0 0.0
    %3926 = vmatprep.subr.mxu0 0.0
    %3927 = vmatpush1.msra.mxu0 0.0
    %3928 = vmatprep.subr.mxu0 0.0
    %3929 = vmatpush1.msra.mxu0 0.0
    %3930 = vmatprep.subr.mxu0 0.0
    %3931 = vmatpush1.msra.mxu0 0.0
    %3932 = vmatprep.subr.mxu0 0.0
    %3933 = vmatpush1.msra.mxu0 0.0
    %3934 = vmatprep.subr.mxu0 0.0
    %3935 = vmatpush1.msra.mxu0 %v3462
    %3936 = vmatprep.subr.mxu0 0.0
    %3937 = vmatpush1.msra.mxu0 %v3461
    %3938 = vmatprep.subr.mxu0 0.0
    %3939 = vmatpush1.msra.mxu0 %v3460
    %3940 = vmatprep.subr.mxu0 0.0
    %3941 = vmatpush1.msra.mxu0 %v3459
    %3942 = vmatprep.subr.mxu0 0.0
    %3943 = vmatpush1.msra.mxu0 %v3458
    %3944 = vmatprep.subr.mxu0 0.0
    %3945 = vmatpush1.msra.mxu0 %v3457
    %3946 = vmatprep.subr.mxu0 0.0
    %3947 = vmatpush1.msra.mxu0 %v3456
    %3948 = vmatprep.subr.mxu0 0.0
    %3949 = vmatpush1.msra.mxu0 %v3455
    %3950 = vmatprep.subr.mxu0 0.0
    %3951 = vmatpush2.msra.mxu0 0.0
    %3952 = vmatprep.subr.mxu0 0.0
    %3953 = vmatpush2.msra.mxu0 0.0
    %3954 = vmatprep.subr.mxu0 0.0
    %3955 = vmatpush2.msra.mxu0 0.0
    %3956 = vmatprep.subr.mxu0 0.0
    %3957 = vmatpush2.msra.mxu0 0.0
    %3958 = vmatprep.subr.mxu0 0.0
    %3959 = vmatpush2.msra.mxu0 0.0
    %3960 = vmatprep.subr.mxu0 0.0
    %3961 = vmatpush2.msra.mxu0 0.0
    %3962 = vmatprep.subr.mxu0 0.0
    %3963 = vmatpush2.msra.mxu0 0.0
    %3964 = vmatprep.subr.mxu0 0.0
    %3965 = vmatpush2.msra.mxu0 0.0
    %3966 = vmatprep.subr.mxu0 0.0
    %3967 = vmatpush2.msra.mxu0 0.0
    %3968 = vmatprep.subr.mxu0 0.0
    %3969 = vmatpush2.msra.mxu0 0.0
    %3970 = vmatprep.subr.mxu0 0.0
    %3971 = vmatpush2.msra.mxu0 0.0
    %3972 = vmatprep.subr.mxu0 0.0
    %3973 = vmatpush2.msra.mxu0 0.0
    %3974 = vmatprep.subr.mxu0 0.0
    %3975 = vmatpush2.msra.mxu0 0.0
    %3976 = vmatprep.subr.mxu0 0.0
    %3977 = vmatpush2.msra.mxu0 0.0
    %3978 = vmatprep.subr.mxu0 0.0
    %3979 = vmatpush2.msra.mxu0 0.0
    %3980 = vmatprep.subr.mxu0 0.0
    %3981 = vmatpush2.msra.mxu0 0.0
    %3982 = vmatprep.mubr.f32.mxu0 0.0
    %3983 = vmatmul.mubr.f32.gmra.mxu0 %v3913
    %v3984 = vpop.f32.mrf.mxu0
    %v3985 = vadd.f32 0.0, %v3984
    %v3986 = vpop.f32.mrf.mxu0
    %3987 = vmatprep.mubr.f32.mxu0 0.0
    %3988 = vmatmul.mubr.f32.gmra.mxu0 %v3916
    %v3989 = vpop.f32.mrf.mxu0
    %v3990 = vadd.f32 0.0, %v3989
    %v3991 = vpop.f32.mrf.mxu0
    %3992 = vdwg.mxu0
    %v3993 = vadd.f32 %v3892, %v3985
    %v3994 = vadd.f32 %v3893, %v3990
    %v3995 = vxor.u32 %v3993, 2147483648
    %v3996 = vxor.u32 %v3994, 2147483648
    %v3997 = vmul.f32 %v3995, 1.442695
    %v3998 = vpow.pop %v3997
    %v3999 = vmul.f32 %v3996, 1.442695
    %v4000 = vpow.pop %v3999
    %v4001 = vadd.f32 %v3998, 1.0
    %v4002 = vadd.f32 %v4000, 1.0
    %v4003 = vrcp.pop %v4001
    %v4004 = vmul.f32 1.0, %v4003
    %v4005 = vrcp.pop %v4002
    %v4006 = vmul.f32 1.0, %v4005
    %v4007 = vtanh.pop %v3993
    %v4008 = vtanh.pop %v3994
    %v4009 = vmul.f32 %v4004, %v3878
    %v4010 = vmul.f32 %v4006, %v3879
    %4013 = vrot.lane.b32.xlu0 %v4007, 64
    %v4014 = vpop.permute.xlu0 %4013
    %4015 = vrot.lane.b32.xlu0 %v4008, 64
    %v4016 = vpop.permute.xlu0 %4015
    %v4019 = vmul.f32 %v4004, %v4014
    %v4020 = vmul.f32 %v4006, %v4016
    %4023 = vrot.lane.b32.xlu0 %v4019, 32
    %v4024 = vpop.permute.xlu0 %4023
    %4025 = vrot.lane.b32.xlu0 %v4020, 32
    %v4026 = vpop.permute.xlu0 %4025
    %v4029 = vadd.f32 %v4009, %v4024
    %v4030 = vadd.f32 %v4010, %v4026
    %v4031 = vtanh.pop %v4029
    %v4032 = vtanh.pop %v4030
    %4035 = vrot.lane.b32.xlu0 %v4031, 64
    %v4036 = vpop.permute.xlu0 %4035
    %4037 = vrot.lane.b32.xlu0 %v4032, 64
    %v4038 = vpop.permute.xlu0 %4037
    %v4041 = vmul.f32 %v4004, %v4036
    %v4042 = vmul.f32 %v4006, %v4038
    %v4043 = vld [vmem:[#allocation2 + $0x40] sm:$0xff]
    %v4044 = vld [vmem:[#allocation2 + $0xb8] sm:$0xff]
    %4047 = vrot.lane.b32.xlu0 %v4041, 32
    %v4048 = vpop.permute.xlu0 %4047
    %4049 = vrot.lane.b32.xlu0 %v4042, 32
    %v4050 = vpop.permute.xlu0 %4049
    %4053 = vrot.lane.b32.xlu0 %v4041, 64
    %v4054 = vpop.permute.xlu0 %4053
    %4055 = vrot.lane.b32.xlu0 %v4042, 64
    %v4056 = vpop.permute.xlu0 %4055
    %v4059 = vsel %vm867, %v4048, %v4054
    %v4060 = vsel %vm867, %v4050, %v4056
    %v4061 = vmul.f32 %v4059, %v459
    %v4062 = vmul.f32 %v4060, %v460
    %v4064 = vsel %vm731, %v4061, 0
    %v4067 = vsel %vm731, %v4062, 0
    %4069 = vmatprep.subr.mxu0 0.0
    %4070 = vmatpush1.msra.mxu0 0.0
    %4071 = vmatprep.subr.mxu0 0.0
    %4072 = vmatpush1.msra.mxu0 0.0
    %4073 = vmatprep.subr.mxu0 0.0
    %4074 = vmatpush1.msra.mxu0 0.0
    %4075 = vmatprep.subr.mxu0 0.0
    %4076 = vmatpush1.msra.mxu0 0.0
    %4077 = vmatprep.subr.mxu0 0.0
    %4078 = vmatpush1.msra.mxu0 0.0
    %4079 = vmatprep.subr.mxu0 0.0
    %4080 = vmatpush1.msra.mxu0 0.0
    %4081 = vmatprep.subr.mxu0 0.0
    %4082 = vmatpush1.msra.mxu0 0.0
    %4083 = vmatprep.subr.mxu0 0.0
    %4084 = vmatpush1.msra.mxu0 0.0
    %4085 = vmatprep.subr.mxu0 0.0
    %4086 = vmatpush1.msra.mxu0 %v3462
    %4087 = vmatprep.subr.mxu0 0.0
    %4088 = vmatpush1.msra.mxu0 %v3461
    %4089 = vmatprep.subr.mxu0 0.0
    %4090 = vmatpush1.msra.mxu0 %v3460
    %4091 = vmatprep.subr.mxu0 0.0
    %4092 = vmatpush1.msra.mxu0 %v3459
    %4093 = vmatprep.subr.mxu0 0.0
    %4094 = vmatpush1.msra.mxu0 %v3458
    %4095 = vmatprep.subr.mxu0 0.0
    %4096 = vmatpush1.msra.mxu0 %v3457
    %4097 = vmatprep.subr.mxu0 0.0
    %4098 = vmatpush1.msra.mxu0 %v3456
    %4099 = vmatprep.subr.mxu0 0.0
    %4100 = vmatpush1.msra.mxu0 %v3455
    %4101 = vmatprep.subr.mxu0 0.0
    %4102 = vmatpush2.msra.mxu0 0.0
    %4103 = vmatprep.subr.mxu0 0.0
    %4104 = vmatpush2.msra.mxu0 0.0
    %4105 = vmatprep.subr.mxu0 0.0
    %4106 = vmatpush2.msra.mxu0 0.0
    %4107 = vmatprep.subr.mxu0 0.0
    %4108 = vmatpush2.msra.mxu0 0.0
    %4109 = vmatprep.subr.mxu0 0.0
    %4110 = vmatpush2.msra.mxu0 0.0
    %4111 = vmatprep.subr.mxu0 0.0
    %4112 = vmatpush2.msra.mxu0 0.0
    %4113 = vmatprep.subr.mxu0 0.0
    %4114 = vmatpush2.msra.mxu0 0.0
    %4115 = vmatprep.subr.mxu0 0.0
    %4116 = vmatpush2.msra.mxu0 0.0
    %4117 = vmatprep.subr.mxu0 0.0
    %4118 = vmatpush2.msra.mxu0 0.0
    %4119 = vmatprep.subr.mxu0 0.0
    %4120 = vmatpush2.msra.mxu0 0.0
    %4121 = vmatprep.subr.mxu0 0.0
    %4122 = vmatpush2.msra.mxu0 0.0
    %4123 = vmatprep.subr.mxu0 0.0
    %4124 = vmatpush2.msra.mxu0 0.0
    %4125 = vmatprep.subr.mxu0 0.0
    %4126 = vmatpush2.msra.mxu0 0.0
    %4127 = vmatprep.subr.mxu0 0.0
    %4128 = vmatpush2.msra.mxu0 0.0
    %4129 = vmatprep.subr.mxu0 0.0
    %4130 = vmatpush2.msra.mxu0 0.0
    %4131 = vmatprep.subr.mxu0 0.0
    %4132 = vmatpush2.msra.mxu0 0.0
    %4133 = vmatprep.mubr.f32.mxu0 0.0
    %4134 = vmatmul.mubr.f32.gmra.mxu0 %v4064
    %v4135 = vpop.f32.mrf.mxu0
    %v4136 = vadd.f32 0.0, %v4135
    %v4137 = vpop.f32.mrf.mxu0
    %4138 = vmatprep.mubr.f32.mxu0 0.0
    %4139 = vmatmul.mubr.f32.gmra.mxu0 %v4067
    %v4140 = vpop.f32.mrf.mxu0
    %v4141 = vadd.f32 0.0, %v4140
    %v4142 = vpop.f32.mrf.mxu0
    %4143 = vdwg.mxu0
    %v4144 = vadd.f32 %v4043, %v4136
    %v4145 = vadd.f32 %v4044, %v4141
    %v4146 = vxor.u32 %v4144, 2147483648
    %v4147 = vxor.u32 %v4145, 2147483648
    %v4148 = vmul.f32 %v4146, 1.442695
    %v4149 = vpow.pop %v4148
    %v4150 = vmul.f32 %v4147, 1.442695
    %v4151 = vpow.pop %v4150
    %v4152 = vadd.f32 %v4149, 1.0
    %v4153 = vadd.f32 %v4151, 1.0
    %v4154 = vrcp.pop %v4152
    %v4155 = vmul.f32 1.0, %v4154
    %v4156 = vrcp.pop %v4153
    %v4157 = vmul.f32 1.0, %v4156
    %v4158 = vtanh.pop %v4144
    %v4159 = vtanh.pop %v4145
    %v4160 = vmul.f32 %v4155, %v4029
    %v4161 = vmul.f32 %v4157, %v4030
    %4164 = vrot.lane.b32.xlu0 %v4158, 64
    %v4165 = vpop.permute.xlu0 %4164
    %4166 = vrot.lane.b32.xlu0 %v4159, 64
    %v4167 = vpop.permute.xlu0 %4166
    %v4170 = vmul.f32 %v4155, %v4165
    %v4171 = vmul.f32 %v4157, %v4167
    %4174 = vrot.lane.b32.xlu0 %v4170, 32
    %v4175 = vpop.permute.xlu0 %4174
    %4176 = vrot.lane.b32.xlu0 %v4171, 32
    %v4177 = vpop.permute.xlu0 %4176
    %v4180 = vadd.f32 %v4160, %v4175
    %v4181 = vadd.f32 %v4161, %v4177
    %v4182 = vtanh.pop %v4180
    %v4183 = vtanh.pop %v4181
    %4186 = vrot.lane.b32.xlu0 %v4182, 64
    %v4187 = vpop.permute.xlu0 %4186
    %4188 = vrot.lane.b32.xlu0 %v4183, 64
    %v4189 = vpop.permute.xlu0 %4188
    %v4192 = vmul.f32 %v4155, %v4187
    %v4193 = vmul.f32 %v4157, %v4189
    %v4194 = vld [vmem:[#allocation2 + $0x50] sm:$0xff]
    %v4195 = vld [vmem:[#allocation2 + $0xa8] sm:$0xff]
    %4198 = vrot.lane.b32.xlu0 %v4192, 32
    %v4199 = vpop.permute.xlu0 %4198
    %4200 = vrot.lane.b32.xlu0 %v4193, 32
    %v4201 = vpop.permute.xlu0 %4200
    %4204 = vrot.lane.b32.xlu0 %v4192, 64
    %v4205 = vpop.permute.xlu0 %4204
    %4206 = vrot.lane.b32.xlu0 %v4193, 64
    %v4207 = vpop.permute.xlu0 %4206
    %v4210 = vsel %vm867, %v4199, %v4205
    %v4211 = vsel %vm867, %v4201, %v4207
    %v4212 = vmul.f32 %v4210, %v459
    %v4213 = vmul.f32 %v4211, %v460
    %v4215 = vsel %vm731, %v4212, 0
    %v4218 = vsel %vm731, %v4213, 0
    %4220 = vmatprep.subr.mxu0 0.0
    %4221 = vmatpush1.msra.mxu0 0.0
    %4222 = vmatprep.subr.mxu0 0.0
    %4223 = vmatpush1.msra.mxu0 0.0
    %4224 = vmatprep.subr.mxu0 0.0
    %4225 = vmatpush1.msra.mxu0 0.0
    %4226 = vmatprep.subr.mxu0 0.0
    %4227 = vmatpush1.msra.mxu0 0.0
    %4228 = vmatprep.subr.mxu0 0.0
    %4229 = vmatpush1.msra.mxu0 0.0
    %4230 = vmatprep.subr.mxu0 0.0
    %4231 = vmatpush1.msra.mxu0 0.0
    %4232 = vmatprep.subr.mxu0 0.0
    %4233 = vmatpush1.msra.mxu0 0.0
    %4234 = vmatprep.subr.mxu0 0.0
    %4235 = vmatpush1.msra.mxu0 0.0
    %4236 = vmatprep.subr.mxu0 0.0
    %4237 = vmatpush1.msra.mxu0 %v3462
    %4238 = vmatprep.subr.mxu0 0.0
    %4239 = vmatpush1.msra.mxu0 %v3461
    %4240 = vmatprep.subr.mxu0 0.0
    %4241 = vmatpush1.msra.mxu0 %v3460
    %4242 = vmatprep.subr.mxu0 0.0
    %4243 = vmatpush1.msra.mxu0 %v3459
    %4244 = vmatprep.subr.mxu0 0.0
    %4245 = vmatpush1.msra.mxu0 %v3458
    %4246 = vmatprep.subr.mxu0 0.0
    %4247 = vmatpush1.msra.mxu0 %v3457
    %4248 = vmatprep.subr.mxu0 0.0
    %4249 = vmatpush1.msra.mxu0 %v3456
    %4250 = vmatprep.subr.mxu0 0.0
    %4251 = vmatpush1.msra.mxu0 %v3455
    %4252 = vmatprep.subr.mxu0 0.0
    %4253 = vmatpush2.msra.mxu0 0.0
    %4254 = vmatprep.subr.mxu0 0.0
    %4255 = vmatpush2.msra.mxu0 0.0
    %4256 = vmatprep.subr.mxu0 0.0
    %4257 = vmatpush2.msra.mxu0 0.0
    %4258 = vmatprep.subr.mxu0 0.0
    %4259 = vmatpush2.msra.mxu0 0.0
    %4260 = vmatprep.subr.mxu0 0.0
    %4261 = vmatpush2.msra.mxu0 0.0
    %4262 = vmatprep.subr.mxu0 0.0
    %4263 = vmatpush2.msra.mxu0 0.0
    %4264 = vmatprep.subr.mxu0 0.0
    %4265 = vmatpush2.msra.mxu0 0.0
    %4266 = vmatprep.subr.mxu0 0.0
    %4267 = vmatpush2.msra.mxu0 0.0
    %4268 = vmatprep.subr.mxu0 0.0
    %4269 = vmatpush2.msra.mxu0 0.0
    %4270 = vmatprep.subr.mxu0 0.0
    %4271 = vmatpush2.msra.mxu0 0.0
    %4272 = vmatprep.subr.mxu0 0.0
    %4273 = vmatpush2.msra.mxu0 0.0
    %4274 = vmatprep.subr.mxu0 0.0
    %4275 = vmatpush2.msra.mxu0 0.0
    %4276 = vmatprep.subr.mxu0 0.0
    %4277 = vmatpush2.msra.mxu0 0.0
    %4278 = vmatprep.subr.mxu0 0.0
    %4279 = vmatpush2.msra.mxu0 0.0
    %4280 = vmatprep.subr.mxu0 0.0
    %4281 = vmatpush2.msra.mxu0 0.0
    %4282 = vmatprep.subr.mxu0 0.0
    %4283 = vmatpush2.msra.mxu0 0.0
    %4284 = vmatprep.mubr.f32.mxu0 0.0
    %4285 = vmatmul.mubr.f32.gmra.mxu0 %v4215
    %v4286 = vpop.f32.mrf.mxu0
    %v4287 = vadd.f32 0.0, %v4286
    %v4288 = vpop.f32.mrf.mxu0
    %4289 = vmatprep.mubr.f32.mxu0 0.0
    %4290 = vmatmul.mubr.f32.gmra.mxu0 %v4218
    %v4291 = vpop.f32.mrf.mxu0
    %v4292 = vadd.f32 0.0, %v4291
    %v4293 = vpop.f32.mrf.mxu0
    %4294 = vdwg.mxu0
    %v4295 = vadd.f32 %v4194, %v4287
    %v4296 = vadd.f32 %v4195, %v4292
    %v4297 = vxor.u32 %v4295, 2147483648
    %v4298 = vxor.u32 %v4296, 2147483648
    %v4299 = vmul.f32 %v4297, 1.442695
    %v4300 = vpow.pop %v4299
    %v4301 = vmul.f32 %v4298, 1.442695
    %v4302 = vpow.pop %v4301
    %v4303 = vadd.f32 %v4300, 1.0
    %v4304 = vadd.f32 %v4302, 1.0
    %v4305 = vrcp.pop %v4303
    %v4306 = vmul.f32 1.0, %v4305
    %v4307 = vrcp.pop %v4304
    %v4308 = vmul.f32 1.0, %v4307
    %v4309 = vtanh.pop %v4295
    %v4310 = vtanh.pop %v4296
    %v4311 = vmul.f32 %v4306, %v4180
    %v4312 = vmul.f32 %v4308, %v4181
    %4315 = vrot.lane.b32.xlu0 %v4309, 64
    %v4316 = vpop.permute.xlu0 %4315
    %4317 = vrot.lane.b32.xlu0 %v4310, 64
    %v4318 = vpop.permute.xlu0 %4317
    %v4321 = vmul.f32 %v4306, %v4316
    %v4322 = vmul.f32 %v4308, %v4318
    %4325 = vrot.lane.b32.xlu0 %v4321, 32
    %v4326 = vpop.permute.xlu0 %4325
    %4327 = vrot.lane.b32.xlu0 %v4322, 32
    %v4328 = vpop.permute.xlu0 %4327
    %v4331 = vadd.f32 %v4311, %v4326
    %v4332 = vadd.f32 %v4312, %v4328
    %v4333 = vtanh.pop %v4331
    %v4334 = vtanh.pop %v4332
    %4337 = vrot.lane.b32.xlu0 %v4333, 64
    %v4338 = vpop.permute.xlu0 %4337
    %4339 = vrot.lane.b32.xlu0 %v4334, 64
    %v4340 = vpop.permute.xlu0 %4339
    %v4343 = vmul.f32 %v4306, %v4338
    %v4344 = vmul.f32 %v4308, %v4340
    %v4345 = vld [vmem:[#allocation2 + $0x60] sm:$0xff]
    %v4346 = vld [vmem:[#allocation2 + $0x98] sm:$0xff]
    %4349 = vrot.lane.b32.xlu0 %v4343, 32
    %v4350 = vpop.permute.xlu0 %4349
    %4351 = vrot.lane.b32.xlu0 %v4344, 32
    %v4352 = vpop.permute.xlu0 %4351
    %4355 = vrot.lane.b32.xlu0 %v4343, 64
    %v4356 = vpop.permute.xlu0 %4355
    %4357 = vrot.lane.b32.xlu0 %v4344, 64
    %v4358 = vpop.permute.xlu0 %4357
    %v4361 = vsel %vm867, %v4350, %v4356
    %v4362 = vsel %vm867, %v4352, %v4358
    %v4363 = vmul.f32 %v4361, %v459
    %v4364 = vmul.f32 %v4362, %v460
    %v4366 = vsel %vm731, %v4363, 0
    %v4369 = vsel %vm731, %v4364, 0
    %4371 = vmatprep.subr.mxu0 0.0
    %4372 = vmatpush1.msra.mxu0 0.0
    %4373 = vmatprep.subr.mxu0 0.0
    %4374 = vmatpush1.msra.mxu0 0.0
    %4375 = vmatprep.subr.mxu0 0.0
    %4376 = vmatpush1.msra.mxu0 0.0
    %4377 = vmatprep.subr.mxu0 0.0
    %4378 = vmatpush1.msra.mxu0 0.0
    %4379 = vmatprep.subr.mxu0 0.0
    %4380 = vmatpush1.msra.mxu0 0.0
    %4381 = vmatprep.subr.mxu0 0.0
    %4382 = vmatpush1.msra.mxu0 0.0
    %4383 = vmatprep.subr.mxu0 0.0
    %4384 = vmatpush1.msra.mxu0 0.0
    %4385 = vmatprep.subr.mxu0 0.0
    %4386 = vmatpush1.msra.mxu0 0.0
    %4387 = vmatprep.subr.mxu0 0.0
    %4388 = vmatpush1.msra.mxu0 %v3462
    %4389 = vmatprep.subr.mxu0 0.0
    %4390 = vmatpush1.msra.mxu0 %v3461
    %4391 = vmatprep.subr.mxu0 0.0
    %4392 = vmatpush1.msra.mxu0 %v3460
    %4393 = vmatprep.subr.mxu0 0.0
    %4394 = vmatpush1.msra.mxu0 %v3459
    %4395 = vmatprep.subr.mxu0 0.0
    %4396 = vmatpush1.msra.mxu0 %v3458
    %4397 = vmatprep.subr.mxu0 0.0
    %4398 = vmatpush1.msra.mxu0 %v3457
    %4399 = vmatprep.subr.mxu0 0.0
    %4400 = vmatpush1.msra.mxu0 %v3456
    %4401 = vmatprep.subr.mxu0 0.0
    %4402 = vmatpush1.msra.mxu0 %v3455
    %4403 = vmatprep.subr.mxu0 0.0
    %4404 = vmatpush2.msra.mxu0 0.0
    %4405 = vmatprep.subr.mxu0 0.0
    %4406 = vmatpush2.msra.mxu0 0.0
    %4407 = vmatprep.subr.mxu0 0.0
    %4408 = vmatpush2.msra.mxu0 0.0
    %4409 = vmatprep.subr.mxu0 0.0
    %4410 = vmatpush2.msra.mxu0 0.0
    %4411 = vmatprep.subr.mxu0 0.0
    %4412 = vmatpush2.msra.mxu0 0.0
    %4413 = vmatprep.subr.mxu0 0.0
    %4414 = vmatpush2.msra.mxu0 0.0
    %4415 = vmatprep.subr.mxu0 0.0
    %4416 = vmatpush2.msra.mxu0 0.0
    %4417 = vmatprep.subr.mxu0 0.0
    %4418 = vmatpush2.msra.mxu0 0.0
    %4419 = vmatprep.subr.mxu0 0.0
    %4420 = vmatpush2.msra.mxu0 0.0
    %4421 = vmatprep.subr.mxu0 0.0
    %4422 = vmatpush2.msra.mxu0 0.0
    %4423 = vmatprep.subr.mxu0 0.0
    %4424 = vmatpush2.msra.mxu0 0.0
    %4425 = vmatprep.subr.mxu0 0.0
    %4426 = vmatpush2.msra.mxu0 0.0
    %4427 = vmatprep.subr.mxu0 0.0
    %4428 = vmatpush2.msra.mxu0 0.0
    %4429 = vmatprep.subr.mxu0 0.0
    %4430 = vmatpush2.msra.mxu0 0.0
    %4431 = vmatprep.subr.mxu0 0.0
    %4432 = vmatpush2.msra.mxu0 0.0
    %4433 = vmatprep.subr.mxu0 0.0
    %4434 = vmatpush2.msra.mxu0 0.0
    %4435 = vmatprep.mubr.f32.mxu0 0.0
    %4436 = vmatmul.mubr.f32.gmra.mxu0 %v4366
    %v4437 = vpop.f32.mrf.mxu0
    %v4438 = vadd.f32 0.0, %v4437
    %v4439 = vpop.f32.mrf.mxu0
    %4440 = vmatprep.mubr.f32.mxu0 0.0
    %4441 = vmatmul.mubr.f32.gmra.mxu0 %v4369
    %v4442 = vpop.f32.mrf.mxu0
    %v4443 = vadd.f32 0.0, %v4442
    %v4444 = vpop.f32.mrf.mxu0
    %4445 = vdwg.mxu0
    %v4446 = vadd.f32 %v4345, %v4438
    %v4447 = vadd.f32 %v4346, %v4443
    %v4448 = vxor.u32 %v4446, 2147483648
    %v4449 = vxor.u32 %v4447, 2147483648
    %v4450 = vmul.f32 %v4448, 1.442695
    %v4451 = vpow.pop %v4450
    %v4452 = vmul.f32 %v4449, 1.442695
    %v4453 = vpow.pop %v4452
    %v4454 = vadd.f32 %v4451, 1.0
    %v4455 = vadd.f32 %v4453, 1.0
    %v4456 = vrcp.pop %v4454
    %v4457 = vmul.f32 1.0, %v4456
    %v4458 = vrcp.pop %v4455
    %v4459 = vmul.f32 1.0, %v4458
    %v4460 = vtanh.pop %v4446
    %v4461 = vtanh.pop %v4447
    %v4462 = vmul.f32 %v4457, %v4331
    %v4463 = vmul.f32 %v4459, %v4332
    %4466 = vrot.lane.b32.xlu0 %v4460, 64
    %v4467 = vpop.permute.xlu0 %4466
    %4468 = vrot.lane.b32.xlu0 %v4461, 64
    %v4469 = vpop.permute.xlu0 %4468
    %v4472 = vmul.f32 %v4457, %v4467
    %v4473 = vmul.f32 %v4459, %v4469
    %4476 = vrot.lane.b32.xlu0 %v4472, 32
    %v4477 = vpop.permute.xlu0 %4476
    %4478 = vrot.lane.b32.xlu0 %v4473, 32
    %v4479 = vpop.permute.xlu0 %4478
    %v4482 = vadd.f32 %v4462, %v4477
    %v4483 = vadd.f32 %v4463, %v4479
    %v4484 = vtanh.pop %v4482
    %v4485 = vtanh.pop %v4483
    %4488 = vrot.lane.b32.xlu0 %v4484, 64
    %v4489 = vpop.permute.xlu0 %4488
    %4490 = vrot.lane.b32.xlu0 %v4485, 64
    %v4491 = vpop.permute.xlu0 %4490
    %v4494 = vmul.f32 %v4457, %v4489
    %v4495 = vmul.f32 %v4459, %v4491
    %v4496 = vld [vmem:[#allocation2 + $0x70] sm:$0xff]
    %v4497 = vld [vmem:[#allocation2 + $0x88] sm:$0xff]
    %4500 = vrot.lane.b32.xlu0 %v4494, 32
    %v4501 = vpop.permute.xlu0 %4500
    %4502 = vrot.lane.b32.xlu0 %v4495, 32
    %v4503 = vpop.permute.xlu0 %4502
    %4506 = vrot.lane.b32.xlu0 %v4494, 64
    %v4507 = vpop.permute.xlu0 %4506
    %4508 = vrot.lane.b32.xlu0 %v4495, 64
    %v4509 = vpop.permute.xlu0 %4508
    %v4512 = vsel %vm867, %v4501, %v4507
    %v4513 = vsel %vm867, %v4503, %v4509
    %v4514 = vmul.f32 %v4512, %v459
    %v4515 = vmul.f32 %v4513, %v460
    %v4517 = vsel %vm731, %v4514, 0
    %v4520 = vsel %vm731, %v4515, 0
    %4522 = vmatprep.subr.mxu0 0.0
    %4523 = vmatpush1.msra.mxu0 0.0
    %4524 = vmatprep.subr.mxu0 0.0
    %4525 = vmatpush1.msra.mxu0 0.0
    %4526 = vmatprep.subr.mxu0 0.0
    %4527 = vmatpush1.msra.mxu0 0.0
    %4528 = vmatprep.subr.mxu0 0.0
    %4529 = vmatpush1.msra.mxu0 0.0
    %4530 = vmatprep.subr.mxu0 0.0
    %4531 = vmatpush1.msra.mxu0 0.0
    %4532 = vmatprep.subr.mxu0 0.0
    %4533 = vmatpush1.msra.mxu0 0.0
    %4534 = vmatprep.subr.mxu0 0.0
    %4535 = vmatpush1.msra.mxu0 0.0
    %4536 = vmatprep.subr.mxu0 0.0
    %4537 = vmatpush1.msra.mxu0 0.0
    %4538 = vmatprep.subr.mxu0 0.0
    %4539 = vmatpush1.msra.mxu0 %v3462
    %4540 = vmatprep.subr.mxu0 0.0
    %4541 = vmatpush1.msra.mxu0 %v3461
    %4542 = vmatprep.subr.mxu0 0.0
    %4543 = vmatpush1.msra.mxu0 %v3460
    %4544 = vmatprep.subr.mxu0 0.0
    %4545 = vmatpush1.msra.mxu0 %v3459
    %4546 = vmatprep.subr.mxu0 0.0
    %4547 = vmatpush1.msra.mxu0 %v3458
    %4548 = vmatprep.subr.mxu0 0.0
    %4549 = vmatpush1.msra.mxu0 %v3457
    %4550 = vmatprep.subr.mxu0 0.0
    %4551 = vmatpush1.msra.mxu0 %v3456
    %4552 = vmatprep.subr.mxu0 0.0
    %4553 = vmatpush1.msra.mxu0 %v3455
    %4554 = vmatprep.subr.mxu0 0.0
    %4555 = vmatpush2.msra.mxu0 0.0
    %4556 = vmatprep.subr.mxu0 0.0
    %4557 = vmatpush2.msra.mxu0 0.0
    %4558 = vmatprep.subr.mxu0 0.0
    %4559 = vmatpush2.msra.mxu0 0.0
    %4560 = vmatprep.subr.mxu0 0.0
    %4561 = vmatpush2.msra.mxu0 0.0
    %4562 = vmatprep.subr.mxu0 0.0
    %4563 = vmatpush2.msra.mxu0 0.0
    %4564 = vmatprep.subr.mxu0 0.0
    %4565 = vmatpush2.msra.mxu0 0.0
    %4566 = vmatprep.subr.mxu0 0.0
    %4567 = vmatpush2.msra.mxu0 0.0
    %4568 = vmatprep.subr.mxu0 0.0
    %4569 = vmatpush2.msra.mxu0 0.0
    %4570 = vmatprep.subr.mxu0 0.0
    %4571 = vmatpush2.msra.mxu0 0.0
    %4572 = vmatprep.subr.mxu0 0.0
    %4573 = vmatpush2.msra.mxu0 0.0
    %4574 = vmatprep.subr.mxu0 0.0
    %4575 = vmatpush2.msra.mxu0 0.0
    %4576 = vmatprep.subr.mxu0 0.0
    %4577 = vmatpush2.msra.mxu0 0.0
    %4578 = vmatprep.subr.mxu0 0.0
    %4579 = vmatpush2.msra.mxu0 0.0
    %4580 = vmatprep.subr.mxu0 0.0
    %4581 = vmatpush2.msra.mxu0 0.0
    %4582 = vmatprep.subr.mxu0 0.0
    %4583 = vmatpush2.msra.mxu0 0.0
    %4584 = vmatprep.subr.mxu0 0.0
    %4585 = vmatpush2.msra.mxu0 0.0
    %4586 = vmatprep.mubr.f32.mxu0 0.0
    %4587 = vmatmul.mubr.f32.gmra.mxu0 %v4517
    %v4588 = vpop.f32.mrf.mxu0
    %v4589 = vadd.f32 0.0, %v4588
    %v4590 = vpop.f32.mrf.mxu0
    %4591 = vmatprep.mubr.f32.mxu0 0.0
    %4592 = vmatmul.mubr.f32.gmra.mxu0 %v4520
    %v4593 = vpop.f32.mrf.mxu0
    %v4594 = vadd.f32 0.0, %v4593
    %v4595 = vpop.f32.mrf.mxu0
    %4596 = vdwg.mxu0
    %v4597 = vadd.f32 %v4496, %v4589
    %v4598 = vadd.f32 %v4497, %v4594
    %v4599 = vxor.u32 %v4597, 2147483648
    %v4600 = vxor.u32 %v4598, 2147483648
    %v4601 = vmul.f32 %v4599, 1.442695
    %v4602 = vpow.pop %v4601
    %v4603 = vmul.f32 %v4600, 1.442695
    %v4604 = vpow.pop %v4603
    %v4605 = vadd.f32 %v4602, 1.0
    %v4606 = vadd.f32 %v4604, 1.0
    %v4607 = vrcp.pop %v4605
    %v4608 = vmul.f32 1.0, %v4607
    %v4609 = vrcp.pop %v4606
    %v4610 = vmul.f32 1.0, %v4609
    %v4611 = vtanh.pop %v4597
    %v4612 = vtanh.pop %v4598
    %v4613 = vmul.f32 %v4608, %v4482
    %v4614 = vmul.f32 %v4610, %v4483
    %4617 = vrot.lane.b32.xlu0 %v4611, 64
    %v4618 = vpop.permute.xlu0 %4617
    %4619 = vrot.lane.b32.xlu0 %v4612, 64
    %v4620 = vpop.permute.xlu0 %4619
    %v4623 = vmul.f32 %v4608, %v4618
    %v4624 = vmul.f32 %v4610, %v4620
    %4627 = vrot.lane.b32.xlu0 %v4623, 32
    %v4628 = vpop.permute.xlu0 %4627
    %4629 = vrot.lane.b32.xlu0 %v4624, 32
    %v4630 = vpop.permute.xlu0 %4629
    %v4633 = vadd.f32 %v4613, %v4628
    %v4634 = vadd.f32 %v4614, %v4630
    %v4635 = vtanh.pop %v4633
    %v4636 = vtanh.pop %v4634
    %4639 = vrot.lane.b32.xlu0 %v4635, 64
    %v4640 = vpop.permute.xlu0 %4639
    %4641 = vrot.lane.b32.xlu0 %v4636, 64
    %v4642 = vpop.permute.xlu0 %4641
    %v4645 = vmul.f32 %v4608, %v4640
    %v4646 = vmul.f32 %v4610, %v4642
    %v4647 = vld [vmem:[#allocation2 + $0x80] sm:$0xff]
    %v4648 = vld [vmem:[#allocation2 + $0x78] sm:$0xff]
    %4651 = vrot.lane.b32.xlu0 %v4645, 32
    %v4652 = vpop.permute.xlu0 %4651
    %4653 = vrot.lane.b32.xlu0 %v4646, 32
    %v4654 = vpop.permute.xlu0 %4653
    %4657 = vrot.lane.b32.xlu0 %v4645, 64
    %v4658 = vpop.permute.xlu0 %4657
    %4659 = vrot.lane.b32.xlu0 %v4646, 64
    %v4660 = vpop.permute.xlu0 %4659
    %v4663 = vsel %vm867, %v4652, %v4658
    %v4664 = vsel %vm867, %v4654, %v4660
    %v4665 = vmul.f32 %v4663, %v459
    %v4666 = vmul.f32 %v4664, %v460
    %v4668 = vsel %vm731, %v4665, 0
    %v4671 = vsel %vm731, %v4666, 0
    %4673 = vmatprep.subr.mxu0 0.0
    %4674 = vmatpush1.msra.mxu0 0.0
    %4675 = vmatprep.subr.mxu0 0.0
    %4676 = vmatpush1.msra.mxu0 0.0
    %4677 = vmatprep.subr.mxu0 0.0
    %4678 = vmatpush1.msra.mxu0 0.0
    %4679 = vmatprep.subr.mxu0 0.0
    %4680 = vmatpush1.msra.mxu0 0.0
    %4681 = vmatprep.subr.mxu0 0.0
    %4682 = vmatpush1.msra.mxu0 0.0
    %4683 = vmatprep.subr.mxu0 0.0
    %4684 = vmatpush1.msra.mxu0 0.0
    %4685 = vmatprep.subr.mxu0 0.0
    %4686 = vmatpush1.msra.mxu0 0.0
    %4687 = vmatprep.subr.mxu0 0.0
    %4688 = vmatpush1.msra.mxu0 0.0
    %4689 = vmatprep.subr.mxu0 0.0
    %4690 = vmatpush1.msra.mxu0 %v3462
    %4691 = vmatprep.subr.mxu0 0.0
    %4692 = vmatpush1.msra.mxu0 %v3461
    %4693 = vmatprep.subr.mxu0 0.0
    %4694 = vmatpush1.msra.mxu0 %v3460
    %4695 = vmatprep.subr.mxu0 0.0
    %4696 = vmatpush1.msra.mxu0 %v3459
    %4697 = vmatprep.subr.mxu0 0.0
    %4698 = vmatpush1.msra.mxu0 %v3458
    %4699 = vmatprep.subr.mxu0 0.0
    %4700 = vmatpush1.msra.mxu0 %v3457
    %4701 = vmatprep.subr.mxu0 0.0
    %4702 = vmatpush1.msra.mxu0 %v3456
    %4703 = vmatprep.subr.mxu0 0.0
    %4704 = vmatpush1.msra.mxu0 %v3455
    %4705 = vmatprep.subr.mxu0 0.0
    %4706 = vmatpush2.msra.mxu0 0.0
    %4707 = vmatprep.subr.mxu0 0.0
    %4708 = vmatpush2.msra.mxu0 0.0
    %4709 = vmatprep.subr.mxu0 0.0
    %4710 = vmatpush2.msra.mxu0 0.0
    %4711 = vmatprep.subr.mxu0 0.0
    %4712 = vmatpush2.msra.mxu0 0.0
    %4713 = vmatprep.subr.mxu0 0.0
    %4714 = vmatpush2.msra.mxu0 0.0
    %4715 = vmatprep.subr.mxu0 0.0
    %4716 = vmatpush2.msra.mxu0 0.0
    %4717 = vmatprep.subr.mxu0 0.0
    %4718 = vmatpush2.msra.mxu0 0.0
    %4719 = vmatprep.subr.mxu0 0.0
    %4720 = vmatpush2.msra.mxu0 0.0
    %4721 = vmatprep.subr.mxu0 0.0
    %4722 = vmatpush2.msra.mxu0 0.0
    %4723 = vmatprep.subr.mxu0 0.0
    %4724 = vmatpush2.msra.mxu0 0.0
    %4725 = vmatprep.subr.mxu0 0.0
    %4726 = vmatpush2.msra.mxu0 0.0
    %4727 = vmatprep.subr.mxu0 0.0
    %4728 = vmatpush2.msra.mxu0 0.0
    %4729 = vmatprep.subr.mxu0 0.0
    %4730 = vmatpush2.msra.mxu0 0.0
    %4731 = vmatprep.subr.mxu0 0.0
    %4732 = vmatpush2.msra.mxu0 0.0
    %4733 = vmatprep.subr.mxu0 0.0
    %4734 = vmatpush2.msra.mxu0 0.0
    %4735 = vmatprep.subr.mxu0 0.0
    %4736 = vmatpush2.msra.mxu0 0.0
    %4737 = vmatprep.mubr.f32.mxu0 0.0
    %4738 = vmatmul.mubr.f32.gmra.mxu0 %v4668
    %v4739 = vpop.f32.mrf.mxu0
    %v4740 = vadd.f32 0.0, %v4739
    %v4741 = vpop.f32.mrf.mxu0
    %4742 = vmatprep.mubr.f32.mxu0 0.0
    %4743 = vmatmul.mubr.f32.gmra.mxu0 %v4671
    %v4744 = vpop.f32.mrf.mxu0
    %v4745 = vadd.f32 0.0, %v4744
    %v4746 = vpop.f32.mrf.mxu0
    %4747 = vdwg.mxu0
    %v4748 = vadd.f32 %v4647, %v4740
    %v4749 = vadd.f32 %v4648, %v4745
    %v4750 = vxor.u32 %v4748, 2147483648
    %v4751 = vxor.u32 %v4749, 2147483648
    %v4752 = vmul.f32 %v4750, 1.442695
    %v4753 = vpow.pop %v4752
    %v4754 = vmul.f32 %v4751, 1.442695
    %v4755 = vpow.pop %v4754
    %v4756 = vadd.f32 %v4753, 1.0
    %v4757 = vadd.f32 %v4755, 1.0
    %v4758 = vrcp.pop %v4756
    %v4759 = vmul.f32 1.0, %v4758
    %v4760 = vrcp.pop %v4757
    %v4761 = vmul.f32 1.0, %v4760
    %v4762 = vtanh.pop %v4748
    %v4763 = vtanh.pop %v4749
    %v4764 = vmul.f32 %v4759, %v4633
    %v4765 = vmul.f32 %v4761, %v4634
    %4768 = vrot.lane.b32.xlu0 %v4762, 64
    %v4769 = vpop.permute.xlu0 %4768
    %4770 = vrot.lane.b32.xlu0 %v4763, 64
    %v4771 = vpop.permute.xlu0 %4770
    %v4774 = vmul.f32 %v4759, %v4769
    %v4775 = vmul.f32 %v4761, %v4771
    %4778 = vrot.lane.b32.xlu0 %v4774, 32
    %v4779 = vpop.permute.xlu0 %4778
    %4780 = vrot.lane.b32.xlu0 %v4775, 32
    %v4781 = vpop.permute.xlu0 %4780
    %v4784 = vadd.f32 %v4764, %v4779
    %v4785 = vadd.f32 %v4765, %v4781
    %v4786 = vtanh.pop %v4784
    %v4787 = vtanh.pop %v4785
    %4790 = vrot.lane.b32.xlu0 %v4786, 64
    %v4791 = vpop.permute.xlu0 %4790
    %4792 = vrot.lane.b32.xlu0 %v4787, 64
    %v4793 = vpop.permute.xlu0 %4792
    %v4796 = vmul.f32 %v4759, %v4791
    %v4797 = vmul.f32 %v4761, %v4793
    %v4798 = vld [vmem:[#allocation2 + $0x90] sm:$0xff]
    %v4799 = vld [vmem:[#allocation2 + $0x68] sm:$0xff]
    %4802 = vrot.lane.b32.xlu0 %v4796, 32
    %v4803 = vpop.permute.xlu0 %4802
    %4804 = vrot.lane.b32.xlu0 %v4797, 32
    %v4805 = vpop.permute.xlu0 %4804
    %4808 = vrot.lane.b32.xlu0 %v4796, 64
    %v4809 = vpop.permute.xlu0 %4808
    %4810 = vrot.lane.b32.xlu0 %v4797, 64
    %v4811 = vpop.permute.xlu0 %4810
    %v4814 = vsel %vm867, %v4803, %v4809
    %v4815 = vsel %vm867, %v4805, %v4811
    %v4816 = vmul.f32 %v4814, %v459
    %v4817 = vmul.f32 %v4815, %v460
    %v4819 = vsel %vm731, %v4816, 0
    %v4822 = vsel %vm731, %v4817, 0
    %4824 = vmatprep.subr.mxu0 0.0
    %4825 = vmatpush1.msra.mxu0 0.0
    %4826 = vmatprep.subr.mxu0 0.0
    %4827 = vmatpush1.msra.mxu0 0.0
    %4828 = vmatprep.subr.mxu0 0.0
    %4829 = vmatpush1.msra.mxu0 0.0
    %4830 = vmatprep.subr.mxu0 0.0
    %4831 = vmatpush1.msra.mxu0 0.0
    %4832 = vmatprep.subr.mxu0 0.0
    %4833 = vmatpush1.msra.mxu0 0.0
    %4834 = vmatprep.subr.mxu0 0.0
    %4835 = vmatpush1.msra.mxu0 0.0
    %4836 = vmatprep.subr.mxu0 0.0
    %4837 = vmatpush1.msra.mxu0 0.0
    %4838 = vmatprep.subr.mxu0 0.0
    %4839 = vmatpush1.msra.mxu0 0.0
    %4840 = vmatprep.subr.mxu0 0.0
    %4841 = vmatpush1.msra.mxu0 %v3462
    %4842 = vmatprep.subr.mxu0 0.0
    %4843 = vmatpush1.msra.mxu0 %v3461
    %4844 = vmatprep.subr.mxu0 0.0
    %4845 = vmatpush1.msra.mxu0 %v3460
    %4846 = vmatprep.subr.mxu0 0.0
    %4847 = vmatpush1.msra.mxu0 %v3459
    %4848 = vmatprep.subr.mxu0 0.0
    %4849 = vmatpush1.msra.mxu0 %v3458
    %4850 = vmatprep.subr.mxu0 0.0
    %4851 = vmatpush1.msra.mxu0 %v3457
    %4852 = vmatprep.subr.mxu0 0.0
    %4853 = vmatpush1.msra.mxu0 %v3456
    %4854 = vmatprep.subr.mxu0 0.0
    %4855 = vmatpush1.msra.mxu0 %v3455
    %4856 = vmatprep.subr.mxu0 0.0
    %4857 = vmatpush2.msra.mxu0 0.0
    %4858 = vmatprep.subr.mxu0 0.0
    %4859 = vmatpush2.msra.mxu0 0.0
    %4860 = vmatprep.subr.mxu0 0.0
    %4861 = vmatpush2.msra.mxu0 0.0
    %4862 = vmatprep.subr.mxu0 0.0
    %4863 = vmatpush2.msra.mxu0 0.0
    %4864 = vmatprep.subr.mxu0 0.0
    %4865 = vmatpush2.msra.mxu0 0.0
    %4866 = vmatprep.subr.mxu0 0.0
    %4867 = vmatpush2.msra.mxu0 0.0
    %4868 = vmatprep.subr.mxu0 0.0
    %4869 = vmatpush2.msra.mxu0 0.0
    %4870 = vmatprep.subr.mxu0 0.0
    %4871 = vmatpush2.msra.mxu0 0.0
    %4872 = vmatprep.subr.mxu0 0.0
    %4873 = vmatpush2.msra.mxu0 0.0
    %4874 = vmatprep.subr.mxu0 0.0
    %4875 = vmatpush2.msra.mxu0 0.0
    %4876 = vmatprep.subr.mxu0 0.0
    %4877 = vmatpush2.msra.mxu0 0.0
    %4878 = vmatprep.subr.mxu0 0.0
    %4879 = vmatpush2.msra.mxu0 0.0
    %4880 = vmatprep.subr.mxu0 0.0
    %4881 = vmatpush2.msra.mxu0 0.0
    %4882 = vmatprep.subr.mxu0 0.0
    %4883 = vmatpush2.msra.mxu0 0.0
    %4884 = vmatprep.subr.mxu0 0.0
    %4885 = vmatpush2.msra.mxu0 0.0
    %4886 = vmatprep.subr.mxu0 0.0
    %4887 = vmatpush2.msra.mxu0 0.0
    %4888 = vmatprep.mubr.f32.mxu0 0.0
    %4889 = vmatmul.mubr.f32.gmra.mxu0 %v4819
    %v4890 = vpop.f32.mrf.mxu0
    %v4891 = vadd.f32 0.0, %v4890
    %v4892 = vpop.f32.mrf.mxu0
    %4893 = vmatprep.mubr.f32.mxu0 0.0
    %4894 = vmatmul.mubr.f32.gmra.mxu0 %v4822
    %v4895 = vpop.f32.mrf.mxu0
    %v4896 = vadd.f32 0.0, %v4895
    %v4897 = vpop.f32.mrf.mxu0
    %4898 = vdwg.mxu0
    %v4899 = vadd.f32 %v4798, %v4891
    %v4900 = vadd.f32 %v4799, %v4896
    %v4901 = vxor.u32 %v4899, 2147483648
    %v4902 = vxor.u32 %v4900, 2147483648
    %v4903 = vmul.f32 %v4901, 1.442695
    %v4904 = vpow.pop %v4903
    %v4905 = vmul.f32 %v4902, 1.442695
    %v4906 = vpow.pop %v4905
    %v4907 = vadd.f32 %v4904, 1.0
    %v4908 = vadd.f32 %v4906, 1.0
    %v4909 = vrcp.pop %v4907
    %v4910 = vmul.f32 1.0, %v4909
    %v4911 = vrcp.pop %v4908
    %v4912 = vmul.f32 1.0, %v4911
    %v4913 = vtanh.pop %v4899
    %v4914 = vtanh.pop %v4900
    %v4915 = vmul.f32 %v4910, %v4784
    %v4916 = vmul.f32 %v4912, %v4785
    %4919 = vrot.lane.b32.xlu0 %v4913, 64
    %v4920 = vpop.permute.xlu0 %4919
    %4921 = vrot.lane.b32.xlu0 %v4914, 64
    %v4922 = vpop.permute.xlu0 %4921
    %v4925 = vmul.f32 %v4910, %v4920
    %v4926 = vmul.f32 %v4912, %v4922
    %4929 = vrot.lane.b32.xlu0 %v4925, 32
    %v4930 = vpop.permute.xlu0 %4929
    %4931 = vrot.lane.b32.xlu0 %v4926, 32
    %v4932 = vpop.permute.xlu0 %4931
    %v4935 = vadd.f32 %v4915, %v4930
    %v4936 = vadd.f32 %v4916, %v4932
    %v4937 = vtanh.pop %v4935
    %v4938 = vtanh.pop %v4936
    %4941 = vrot.lane.b32.xlu0 %v4937, 64
    %v4942 = vpop.permute.xlu0 %4941
    %4943 = vrot.lane.b32.xlu0 %v4938, 64
    %v4944 = vpop.permute.xlu0 %4943
    %v4947 = vmul.f32 %v4910, %v4942
    %v4948 = vmul.f32 %v4912, %v4944
    %v4949 = vld [vmem:[#allocation2 + $0xa0] sm:$0xff]
    %v4950 = vld [vmem:[#allocation2 + $0x58] sm:$0xff]
    %4953 = vrot.lane.b32.xlu0 %v4947, 32
    %v4954 = vpop.permute.xlu0 %4953
    %4955 = vrot.lane.b32.xlu0 %v4948, 32
    %v4956 = vpop.permute.xlu0 %4955
    %4959 = vrot.lane.b32.xlu0 %v4947, 64
    %v4960 = vpop.permute.xlu0 %4959
    %4961 = vrot.lane.b32.xlu0 %v4948, 64
    %v4962 = vpop.permute.xlu0 %4961
    %v4965 = vsel %vm867, %v4954, %v4960
    %v4966 = vsel %vm867, %v4956, %v4962
    %v4967 = vmul.f32 %v4965, %v459
    %v4968 = vmul.f32 %v4966, %v460
    %v4970 = vsel %vm731, %v4967, 0
    %v4973 = vsel %vm731, %v4968, 0
    %4975 = vmatprep.subr.mxu0 0.0
    %4976 = vmatpush1.msra.mxu0 0.0
    %4977 = vmatprep.subr.mxu0 0.0
    %4978 = vmatpush1.msra.mxu0 0.0
    %4979 = vmatprep.subr.mxu0 0.0
    %4980 = vmatpush1.msra.mxu0 0.0
    %4981 = vmatprep.subr.mxu0 0.0
    %4982 = vmatpush1.msra.mxu0 0.0
    %4983 = vmatprep.subr.mxu0 0.0
    %4984 = vmatpush1.msra.mxu0 0.0
    %4985 = vmatprep.subr.mxu0 0.0
    %4986 = vmatpush1.msra.mxu0 0.0
    %4987 = vmatprep.subr.mxu0 0.0
    %4988 = vmatpush1.msra.mxu0 0.0
    %4989 = vmatprep.subr.mxu0 0.0
    %4990 = vmatpush1.msra.mxu0 0.0
    %4991 = vmatprep.subr.mxu0 0.0
    %4992 = vmatpush1.msra.mxu0 %v3462
    %4993 = vmatprep.subr.mxu0 0.0
    %4994 = vmatpush1.msra.mxu0 %v3461
    %4995 = vmatprep.subr.mxu0 0.0
    %4996 = vmatpush1.msra.mxu0 %v3460
    %4997 = vmatprep.subr.mxu0 0.0
    %4998 = vmatpush1.msra.mxu0 %v3459
    %4999 = vmatprep.subr.mxu0 0.0
    %5000 = vmatpush1.msra.mxu0 %v3458
    %5001 = vmatprep.subr.mxu0 0.0
    %5002 = vmatpush1.msra.mxu0 %v3457
    %5003 = vmatprep.subr.mxu0 0.0
    %5004 = vmatpush1.msra.mxu0 %v3456
    %5005 = vmatprep.subr.mxu0 0.0
    %5006 = vmatpush1.msra.mxu0 %v3455
    %5007 = vmatprep.subr.mxu0 0.0
    %5008 = vmatpush2.msra.mxu0 0.0
    %5009 = vmatprep.subr.mxu0 0.0
    %5010 = vmatpush2.msra.mxu0 0.0
    %5011 = vmatprep.subr.mxu0 0.0
    %5012 = vmatpush2.msra.mxu0 0.0
    %5013 = vmatprep.subr.mxu0 0.0
    %5014 = vmatpush2.msra.mxu0 0.0
    %5015 = vmatprep.subr.mxu0 0.0
    %5016 = vmatpush2.msra.mxu0 0.0
    %5017 = vmatprep.subr.mxu0 0.0
    %5018 = vmatpush2.msra.mxu0 0.0
    %5019 = vmatprep.subr.mxu0 0.0
    %5020 = vmatpush2.msra.mxu0 0.0
    %5021 = vmatprep.subr.mxu0 0.0
    %5022 = vmatpush2.msra.mxu0 0.0
    %5023 = vmatprep.subr.mxu0 0.0
    %5024 = vmatpush2.msra.mxu0 0.0
    %5025 = vmatprep.subr.mxu0 0.0
    %5026 = vmatpush2.msra.mxu0 0.0
    %5027 = vmatprep.subr.mxu0 0.0
    %5028 = vmatpush2.msra.mxu0 0.0
    %5029 = vmatprep.subr.mxu0 0.0
    %5030 = vmatpush2.msra.mxu0 0.0
    %5031 = vmatprep.subr.mxu0 0.0
    %5032 = vmatpush2.msra.mxu0 0.0
    %5033 = vmatprep.subr.mxu0 0.0
    %5034 = vmatpush2.msra.mxu0 0.0
    %5035 = vmatprep.subr.mxu0 0.0
    %5036 = vmatpush2.msra.mxu0 0.0
    %5037 = vmatprep.subr.mxu0 0.0
    %5038 = vmatpush2.msra.mxu0 0.0
    %5039 = vmatprep.mubr.f32.mxu0 0.0
    %5040 = vmatmul.mubr.f32.gmra.mxu0 %v4970
    %v5041 = vpop.f32.mrf.mxu0
    %v5042 = vadd.f32 0.0, %v5041
    %v5043 = vpop.f32.mrf.mxu0
    %5044 = vmatprep.mubr.f32.mxu0 0.0
    %5045 = vmatmul.mubr.f32.gmra.mxu0 %v4973
    %v5046 = vpop.f32.mrf.mxu0
    %v5047 = vadd.f32 0.0, %v5046
    %v5048 = vpop.f32.mrf.mxu0
    %5049 = vdwg.mxu0
    %v5050 = vadd.f32 %v4949, %v5042
    %v5051 = vadd.f32 %v4950, %v5047
    %v5052 = vxor.u32 %v5050, 2147483648
    %v5053 = vxor.u32 %v5051, 2147483648
    %v5054 = vmul.f32 %v5052, 1.442695
    %v5055 = vpow.pop %v5054
    %v5056 = vmul.f32 %v5053, 1.442695
    %v5057 = vpow.pop %v5056
    %v5058 = vadd.f32 %v5055, 1.0
    %v5059 = vadd.f32 %v5057, 1.0
    %v5060 = vrcp.pop %v5058
    %v5061 = vmul.f32 1.0, %v5060
    %v5062 = vrcp.pop %v5059
    %v5063 = vmul.f32 1.0, %v5062
    %v5064 = vtanh.pop %v5050
    %v5065 = vtanh.pop %v5051
    %v5066 = vmul.f32 %v5061, %v4935
    %v5067 = vmul.f32 %v5063, %v4936
    %5070 = vrot.lane.b32.xlu0 %v5064, 64
    %v5071 = vpop.permute.xlu0 %5070
    %5072 = vrot.lane.b32.xlu0 %v5065, 64
    %v5073 = vpop.permute.xlu0 %5072
    %v5076 = vmul.f32 %v5061, %v5071
    %v5077 = vmul.f32 %v5063, %v5073
    %5080 = vrot.lane.b32.xlu0 %v5076, 32
    %v5081 = vpop.permute.xlu0 %5080
    %5082 = vrot.lane.b32.xlu0 %v5077, 32
    %v5083 = vpop.permute.xlu0 %5082
    %v5086 = vadd.f32 %v5066, %v5081
    %v5087 = vadd.f32 %v5067, %v5083
    %v5088 = vtanh.pop %v5086
    %v5089 = vtanh.pop %v5087
    %5092 = vrot.lane.b32.xlu0 %v5088, 64
    %v5093 = vpop.permute.xlu0 %5092
    %5094 = vrot.lane.b32.xlu0 %v5089, 64
    %v5095 = vpop.permute.xlu0 %5094
    %v5098 = vmul.f32 %v5061, %v5093
    %v5099 = vmul.f32 %v5063, %v5095
    %v5100 = vld [vmem:[#allocation2 + $0xb0] sm:$0xff]
    %v5101 = vld [vmem:[#allocation2 + $0x48] sm:$0xff]
    %5104 = vrot.lane.b32.xlu0 %v5098, 32
    %v5105 = vpop.permute.xlu0 %5104
    %5106 = vrot.lane.b32.xlu0 %v5099, 32
    %v5107 = vpop.permute.xlu0 %5106
    %5110 = vrot.lane.b32.xlu0 %v5098, 64
    %v5111 = vpop.permute.xlu0 %5110
    %5112 = vrot.lane.b32.xlu0 %v5099, 64
    %v5113 = vpop.permute.xlu0 %5112
    %v5116 = vsel %vm867, %v5105, %v5111
    %v5117 = vsel %vm867, %v5107, %v5113
    %v5118 = vmul.f32 %v5116, %v459
    %v5119 = vmul.f32 %v5117, %v460
    %v5121 = vsel %vm731, %v5118, 0
    %v5124 = vsel %vm731, %v5119, 0
    %5126 = vmatprep.subr.mxu0 0.0
    %5127 = vmatpush1.msra.mxu0 0.0
    %5128 = vmatprep.subr.mxu0 0.0
    %5129 = vmatpush1.msra.mxu0 0.0
    %5130 = vmatprep.subr.mxu0 0.0
    %5131 = vmatpush1.msra.mxu0 0.0
    %5132 = vmatprep.subr.mxu0 0.0
    %5133 = vmatpush1.msra.mxu0 0.0
    %5134 = vmatprep.subr.mxu0 0.0
    %5135 = vmatpush1.msra.mxu0 0.0
    %5136 = vmatprep.subr.mxu0 0.0
    %5137 = vmatpush1.msra.mxu0 0.0
    %5138 = vmatprep.subr.mxu0 0.0
    %5139 = vmatpush1.msra.mxu0 0.0
    %5140 = vmatprep.subr.mxu0 0.0
    %5141 = vmatpush1.msra.mxu0 0.0
    %5142 = vmatprep.subr.mxu0 0.0
    %5143 = vmatpush1.msra.mxu0 %v3462
    %5144 = vmatprep.subr.mxu0 0.0
    %5145 = vmatpush1.msra.mxu0 %v3461
    %5146 = vmatprep.subr.mxu0 0.0
    %5147 = vmatpush1.msra.mxu0 %v3460
    %5148 = vmatprep.subr.mxu0 0.0
    %5149 = vmatpush1.msra.mxu0 %v3459
    %5150 = vmatprep.subr.mxu0 0.0
    %5151 = vmatpush1.msra.mxu0 %v3458
    %5152 = vmatprep.subr.mxu0 0.0
    %5153 = vmatpush1.msra.mxu0 %v3457
    %5154 = vmatprep.subr.mxu0 0.0
    %5155 = vmatpush1.msra.mxu0 %v3456
    %5156 = vmatprep.subr.mxu0 0.0
    %5157 = vmatpush1.msra.mxu0 %v3455
    %5158 = vmatprep.subr.mxu0 0.0
    %5159 = vmatpush2.msra.mxu0 0.0
    %5160 = vmatprep.subr.mxu0 0.0
    %5161 = vmatpush2.msra.mxu0 0.0
    %5162 = vmatprep.subr.mxu0 0.0
    %5163 = vmatpush2.msra.mxu0 0.0
    %5164 = vmatprep.subr.mxu0 0.0
    %5165 = vmatpush2.msra.mxu0 0.0
    %5166 = vmatprep.subr.mxu0 0.0
    %5167 = vmatpush2.msra.mxu0 0.0
    %5168 = vmatprep.subr.mxu0 0.0
    %5169 = vmatpush2.msra.mxu0 0.0
    %5170 = vmatprep.subr.mxu0 0.0
    %5171 = vmatpush2.msra.mxu0 0.0
    %5172 = vmatprep.subr.mxu0 0.0
    %5173 = vmatpush2.msra.mxu0 0.0
    %5174 = vmatprep.subr.mxu0 0.0
    %5175 = vmatpush2.msra.mxu0 0.0
    %5176 = vmatprep.subr.mxu0 0.0
    %5177 = vmatpush2.msra.mxu0 0.0
    %5178 = vmatprep.subr.mxu0 0.0
    %5179 = vmatpush2.msra.mxu0 0.0
    %5180 = vmatprep.subr.mxu0 0.0
    %5181 = vmatpush2.msra.mxu0 0.0
    %5182 = vmatprep.subr.mxu0 0.0
    %5183 = vmatpush2.msra.mxu0 0.0
    %5184 = vmatprep.subr.mxu0 0.0
    %5185 = vmatpush2.msra.mxu0 0.0
    %5186 = vmatprep.subr.mxu0 0.0
    %5187 = vmatpush2.msra.mxu0 0.0
    %5188 = vmatprep.subr.mxu0 0.0
    %5189 = vmatpush2.msra.mxu0 0.0
    %5190 = vmatprep.mubr.f32.mxu0 0.0
    %5191 = vmatmul.mubr.f32.gmra.mxu0 %v5121
    %v5192 = vpop.f32.mrf.mxu0
    %v5193 = vadd.f32 0.0, %v5192
    %v5194 = vpop.f32.mrf.mxu0
    %5195 = vmatprep.mubr.f32.mxu0 0.0
    %5196 = vmatmul.mubr.f32.gmra.mxu0 %v5124
    %v5197 = vpop.f32.mrf.mxu0
    %v5198 = vadd.f32 0.0, %v5197
    %v5199 = vpop.f32.mrf.mxu0
    %5200 = vdwg.mxu0
    %v5201 = vadd.f32 %v5100, %v5193
    %v5202 = vadd.f32 %v5101, %v5198
    %v5203 = vxor.u32 %v5201, 2147483648
    %v5204 = vxor.u32 %v5202, 2147483648
    %v5205 = vmul.f32 %v5203, 1.442695
    %v5206 = vpow.pop %v5205
    %v5207 = vmul.f32 %v5204, 1.442695
    %v5208 = vpow.pop %v5207
    %v5209 = vadd.f32 %v5206, 1.0
    %v5210 = vadd.f32 %v5208, 1.0
    %v5211 = vrcp.pop %v5209
    %v5212 = vmul.f32 1.0, %v5211
    %v5213 = vrcp.pop %v5210
    %v5214 = vmul.f32 1.0, %v5213
    %v5215 = vtanh.pop %v5201
    %v5216 = vtanh.pop %v5202
    %v5217 = vmul.f32 %v5212, %v5086
    %v5218 = vmul.f32 %v5214, %v5087
    %5221 = vrot.lane.b32.xlu0 %v5215, 64
    %v5222 = vpop.permute.xlu0 %5221
    %5223 = vrot.lane.b32.xlu0 %v5216, 64
    %v5224 = vpop.permute.xlu0 %5223
    %v5227 = vmul.f32 %v5212, %v5222
    %v5228 = vmul.f32 %v5214, %v5224
    %5231 = vrot.lane.b32.xlu0 %v5227, 32
    %v5232 = vpop.permute.xlu0 %5231
    %5233 = vrot.lane.b32.xlu0 %v5228, 32
    %v5234 = vpop.permute.xlu0 %5233
    %v5237 = vadd.f32 %v5217, %v5232
    %v5238 = vadd.f32 %v5218, %v5234
    %v5239 = vtanh.pop %v5237
    %v5240 = vtanh.pop %v5238
    %5243 = vrot.lane.b32.xlu0 %v5239, 64
    %v5244 = vpop.permute.xlu0 %5243
    %5245 = vrot.lane.b32.xlu0 %v5240, 64
    %v5246 = vpop.permute.xlu0 %5245
    %v5249 = vmul.f32 %v5212, %v5244
    %v5250 = vmul.f32 %v5214, %v5246
    %v5251 = vld [vmem:[#allocation2 + $0xc0] sm:$0xff]
    %v5252 = vld [vmem:[#allocation2 + $0x38] sm:$0xff]
    %5255 = vrot.lane.b32.xlu0 %v5249, 32
    %v5256 = vpop.permute.xlu0 %5255
    %5257 = vrot.lane.b32.xlu0 %v5250, 32
    %v5258 = vpop.permute.xlu0 %5257
    %5261 = vrot.lane.b32.xlu0 %v5249, 64
    %v5262 = vpop.permute.xlu0 %5261
    %5263 = vrot.lane.b32.xlu0 %v5250, 64
    %v5264 = vpop.permute.xlu0 %5263
    %v5267 = vsel %vm867, %v5256, %v5262
    %v5268 = vsel %vm867, %v5258, %v5264
    %v5269 = vmul.f32 %v5267, %v459
    %v5270 = vmul.f32 %v5268, %v460
    %v5272 = vsel %vm731, %v5269, 0
    %v5275 = vsel %vm731, %v5270, 0
    %5277 = vmatprep.subr.mxu0 0.0
    %5278 = vmatpush1.msra.mxu0 0.0
    %5279 = vmatprep.subr.mxu0 0.0
    %5280 = vmatpush1.msra.mxu0 0.0
    %5281 = vmatprep.subr.mxu0 0.0
    %5282 = vmatpush1.msra.mxu0 0.0
    %5283 = vmatprep.subr.mxu0 0.0
    %5284 = vmatpush1.msra.mxu0 0.0
    %5285 = vmatprep.subr.mxu0 0.0
    %5286 = vmatpush1.msra.mxu0 0.0
    %5287 = vmatprep.subr.mxu0 0.0
    %5288 = vmatpush1.msra.mxu0 0.0
    %5289 = vmatprep.subr.mxu0 0.0
    %5290 = vmatpush1.msra.mxu0 0.0
    %5291 = vmatprep.subr.mxu0 0.0
    %5292 = vmatpush1.msra.mxu0 0.0
    %5293 = vmatprep.subr.mxu0 0.0
    %5294 = vmatpush1.msra.mxu0 %v3462
    %5295 = vmatprep.subr.mxu0 0.0
    %5296 = vmatpush1.msra.mxu0 %v3461
    %5297 = vmatprep.subr.mxu0 0.0
    %5298 = vmatpush1.msra.mxu0 %v3460
    %5299 = vmatprep.subr.mxu0 0.0
    %5300 = vmatpush1.msra.mxu0 %v3459
    %5301 = vmatprep.subr.mxu0 0.0
    %5302 = vmatpush1.msra.mxu0 %v3458
    %5303 = vmatprep.subr.mxu0 0.0
    %5304 = vmatpush1.msra.mxu0 %v3457
    %5305 = vmatprep.subr.mxu0 0.0
    %5306 = vmatpush1.msra.mxu0 %v3456
    %5307 = vmatprep.subr.mxu0 0.0
    %5308 = vmatpush1.msra.mxu0 %v3455
    %5309 = vmatprep.subr.mxu0 0.0
    %5310 = vmatpush2.msra.mxu0 0.0
    %5311 = vmatprep.subr.mxu0 0.0
    %5312 = vmatpush2.msra.mxu0 0.0
    %5313 = vmatprep.subr.mxu0 0.0
    %5314 = vmatpush2.msra.mxu0 0.0
    %5315 = vmatprep.subr.mxu0 0.0
    %5316 = vmatpush2.msra.mxu0 0.0
    %5317 = vmatprep.subr.mxu0 0.0
    %5318 = vmatpush2.msra.mxu0 0.0
    %5319 = vmatprep.subr.mxu0 0.0
    %5320 = vmatpush2.msra.mxu0 0.0
    %5321 = vmatprep.subr.mxu0 0.0
    %5322 = vmatpush2.msra.mxu0 0.0
    %5323 = vmatprep.subr.mxu0 0.0
    %5324 = vmatpush2.msra.mxu0 0.0
    %5325 = vmatprep.subr.mxu0 0.0
    %5326 = vmatpush2.msra.mxu0 0.0
    %5327 = vmatprep.subr.mxu0 0.0
    %5328 = vmatpush2.msra.mxu0 0.0
    %5329 = vmatprep.subr.mxu0 0.0
    %5330 = vmatpush2.msra.mxu0 0.0
    %5331 = vmatprep.subr.mxu0 0.0
    %5332 = vmatpush2.msra.mxu0 0.0
    %5333 = vmatprep.subr.mxu0 0.0
    %5334 = vmatpush2.msra.mxu0 0.0
    %5335 = vmatprep.subr.mxu0 0.0
    %5336 = vmatpush2.msra.mxu0 0.0
    %5337 = vmatprep.subr.mxu0 0.0
    %5338 = vmatpush2.msra.mxu0 0.0
    %5339 = vmatprep.subr.mxu0 0.0
    %5340 = vmatpush2.msra.mxu0 0.0
    %5341 = vmatprep.mubr.f32.mxu0 0.0
    %5342 = vmatmul.mubr.f32.gmra.mxu0 %v5272
    %v5343 = vpop.f32.mrf.mxu0
    %v5344 = vadd.f32 0.0, %v5343
    %v5345 = vpop.f32.mrf.mxu0
    %5346 = vmatprep.mubr.f32.mxu0 0.0
    %5347 = vmatmul.mubr.f32.gmra.mxu0 %v5275
    %v5348 = vpop.f32.mrf.mxu0
    %v5349 = vadd.f32 0.0, %v5348
    %v5350 = vpop.f32.mrf.mxu0
    %5351 = vdwg.mxu0
    %v5352 = vadd.f32 %v5251, %v5344
    %v5353 = vadd.f32 %v5252, %v5349
    %v5354 = vxor.u32 %v5352, 2147483648
    %v5355 = vxor.u32 %v5353, 2147483648
    %v5356 = vmul.f32 %v5354, 1.442695
    %v5357 = vpow.pop %v5356
    %v5358 = vmul.f32 %v5355, 1.442695
    %v5359 = vpow.pop %v5358
    %v5360 = vadd.f32 %v5357, 1.0
    %v5361 = vadd.f32 %v5359, 1.0
    %v5362 = vrcp.pop %v5360
    %v5363 = vmul.f32 1.0, %v5362
    %v5364 = vrcp.pop %v5361
    %v5365 = vmul.f32 1.0, %v5364
    %v5366 = vtanh.pop %v5352
    %v5367 = vtanh.pop %v5353
    %v5368 = vmul.f32 %v5363, %v5237
    %v5369 = vmul.f32 %v5365, %v5238
    %5372 = vrot.lane.b32.xlu0 %v5366, 64
    %v5373 = vpop.permute.xlu0 %5372
    %5374 = vrot.lane.b32.xlu0 %v5367, 64
    %v5375 = vpop.permute.xlu0 %5374
    %v5378 = vmul.f32 %v5363, %v5373
    %v5379 = vmul.f32 %v5365, %v5375
    %5382 = vrot.lane.b32.xlu0 %v5378, 32
    %v5383 = vpop.permute.xlu0 %5382
    %5384 = vrot.lane.b32.xlu0 %v5379, 32
    %v5385 = vpop.permute.xlu0 %5384
    %v5388 = vadd.f32 %v5368, %v5383
    %v5389 = vadd.f32 %v5369, %v5385
    %v5390 = vtanh.pop %v5388
    %v5391 = vtanh.pop %v5389
    %5394 = vrot.lane.b32.xlu0 %v5390, 64
    %v5395 = vpop.permute.xlu0 %5394
    %5396 = vrot.lane.b32.xlu0 %v5391, 64
    %v5397 = vpop.permute.xlu0 %5396
    %v5400 = vmul.f32 %v5363, %v5395
    %v5401 = vmul.f32 %v5365, %v5397
    %v5402 = vld [vmem:[#allocation2 + $0xd0] sm:$0xff]
    %v5403 = vld [vmem:[#allocation2 + $0x28] sm:$0xff]
    %5406 = vrot.lane.b32.xlu0 %v5400, 32
    %v5407 = vpop.permute.xlu0 %5406
    %5408 = vrot.lane.b32.xlu0 %v5401, 32
    %v5409 = vpop.permute.xlu0 %5408
    %5412 = vrot.lane.b32.xlu0 %v5400, 64
    %v5413 = vpop.permute.xlu0 %5412
    %5414 = vrot.lane.b32.xlu0 %v5401, 64
    %v5415 = vpop.permute.xlu0 %5414
    %v5418 = vsel %vm867, %v5407, %v5413
    %v5419 = vsel %vm867, %v5409, %v5415
    %v5420 = vmul.f32 %v5418, %v459
    %v5421 = vmul.f32 %v5419, %v460
    %v5423 = vsel %vm731, %v5420, 0
    %v5426 = vsel %vm731, %v5421, 0
    %5428 = vmatprep.subr.mxu0 0.0
    %5429 = vmatpush1.msra.mxu0 0.0
    %5430 = vmatprep.subr.mxu0 0.0
    %5431 = vmatpush1.msra.mxu0 0.0
    %5432 = vmatprep.subr.mxu0 0.0
    %5433 = vmatpush1.msra.mxu0 0.0
    %5434 = vmatprep.subr.mxu0 0.0
    %5435 = vmatpush1.msra.mxu0 0.0
    %5436 = vmatprep.subr.mxu0 0.0
    %5437 = vmatpush1.msra.mxu0 0.0
    %5438 = vmatprep.subr.mxu0 0.0
    %5439 = vmatpush1.msra.mxu0 0.0
    %5440 = vmatprep.subr.mxu0 0.0
    %5441 = vmatpush1.msra.mxu0 0.0
    %5442 = vmatprep.subr.mxu0 0.0
    %5443 = vmatpush1.msra.mxu0 0.0
    %5444 = vmatprep.subr.mxu0 0.0
    %5445 = vmatpush1.msra.mxu0 %v3462
    %5446 = vmatprep.subr.mxu0 0.0
    %5447 = vmatpush1.msra.mxu0 %v3461
    %5448 = vmatprep.subr.mxu0 0.0
    %5449 = vmatpush1.msra.mxu0 %v3460
    %5450 = vmatprep.subr.mxu0 0.0
    %5451 = vmatpush1.msra.mxu0 %v3459
    %5452 = vmatprep.subr.mxu0 0.0
    %5453 = vmatpush1.msra.mxu0 %v3458
    %5454 = vmatprep.subr.mxu0 0.0
    %5455 = vmatpush1.msra.mxu0 %v3457
    %5456 = vmatprep.subr.mxu0 0.0
    %5457 = vmatpush1.msra.mxu0 %v3456
    %5458 = vmatprep.subr.mxu0 0.0
    %5459 = vmatpush1.msra.mxu0 %v3455
    %5460 = vmatprep.subr.mxu0 0.0
    %5461 = vmatpush2.msra.mxu0 0.0
    %5462 = vmatprep.subr.mxu0 0.0
    %5463 = vmatpush2.msra.mxu0 0.0
    %5464 = vmatprep.subr.mxu0 0.0
    %5465 = vmatpush2.msra.mxu0 0.0
    %5466 = vmatprep.subr.mxu0 0.0
    %5467 = vmatpush2.msra.mxu0 0.0
    %5468 = vmatprep.subr.mxu0 0.0
    %5469 = vmatpush2.msra.mxu0 0.0
    %5470 = vmatprep.subr.mxu0 0.0
    %5471 = vmatpush2.msra.mxu0 0.0
    %5472 = vmatprep.subr.mxu0 0.0
    %5473 = vmatpush2.msra.mxu0 0.0
    %5474 = vmatprep.subr.mxu0 0.0
    %5475 = vmatpush2.msra.mxu0 0.0
    %5476 = vmatprep.subr.mxu0 0.0
    %5477 = vmatpush2.msra.mxu0 0.0
    %5478 = vmatprep.subr.mxu0 0.0
    %5479 = vmatpush2.msra.mxu0 0.0
    %5480 = vmatprep.subr.mxu0 0.0
    %5481 = vmatpush2.msra.mxu0 0.0
    %5482 = vmatprep.subr.mxu0 0.0
    %5483 = vmatpush2.msra.mxu0 0.0
    %5484 = vmatprep.subr.mxu0 0.0
    %5485 = vmatpush2.msra.mxu0 0.0
    %5486 = vmatprep.subr.mxu0 0.0
    %5487 = vmatpush2.msra.mxu0 0.0
    %5488 = vmatprep.subr.mxu0 0.0
    %5489 = vmatpush2.msra.mxu0 0.0
    %5490 = vmatprep.subr.mxu0 0.0
    %5491 = vmatpush2.msra.mxu0 0.0
    %5492 = vmatprep.mubr.f32.mxu0 0.0
    %5493 = vmatmul.mubr.f32.gmra.mxu0 %v5423
    %v5494 = vpop.f32.mrf.mxu0
    %v5495 = vadd.f32 0.0, %v5494
    %v5496 = vpop.f32.mrf.mxu0
    %5497 = vmatprep.mubr.f32.mxu0 0.0
    %5498 = vmatmul.mubr.f32.gmra.mxu0 %v5426
    %v5499 = vpop.f32.mrf.mxu0
    %v5500 = vadd.f32 0.0, %v5499
    %v5501 = vpop.f32.mrf.mxu0
    %5502 = vdwg.mxu0
    %v5503 = vadd.f32 %v5402, %v5495
    %v5504 = vadd.f32 %v5403, %v5500
    %v5505 = vxor.u32 %v5503, 2147483648
    %v5506 = vxor.u32 %v5504, 2147483648
    %v5507 = vmul.f32 %v5505, 1.442695
    %v5508 = vpow.pop %v5507
    %v5509 = vmul.f32 %v5506, 1.442695
    %v5510 = vpow.pop %v5509
    %v5511 = vadd.f32 %v5508, 1.0
    %v5512 = vadd.f32 %v5510, 1.0
    %v5513 = vrcp.pop %v5511
    %v5514 = vmul.f32 1.0, %v5513
    %v5515 = vrcp.pop %v5512
    %v5516 = vmul.f32 1.0, %v5515
    %v5517 = vtanh.pop %v5503
    %v5518 = vtanh.pop %v5504
    %v5519 = vmul.f32 %v5514, %v5388
    %v5520 = vmul.f32 %v5516, %v5389
    %5523 = vrot.lane.b32.xlu0 %v5517, 64
    %v5524 = vpop.permute.xlu0 %5523
    %5525 = vrot.lane.b32.xlu0 %v5518, 64
    %v5526 = vpop.permute.xlu0 %5525
    %v5529 = vmul.f32 %v5514, %v5524
    %v5530 = vmul.f32 %v5516, %v5526
    %5533 = vrot.lane.b32.xlu0 %v5529, 32
    %v5534 = vpop.permute.xlu0 %5533
    %5535 = vrot.lane.b32.xlu0 %v5530, 32
    %v5536 = vpop.permute.xlu0 %5535
    %v5539 = vadd.f32 %v5519, %v5534
    %v5540 = vadd.f32 %v5520, %v5536
    %v5541 = vtanh.pop %v5539
    %v5542 = vtanh.pop %v5540
    %5545 = vrot.lane.b32.xlu0 %v5541, 64
    %v5546 = vpop.permute.xlu0 %5545
    %5547 = vrot.lane.b32.xlu0 %v5542, 64
    %v5548 = vpop.permute.xlu0 %5547
    %v5551 = vmul.f32 %v5514, %v5546
    %v5552 = vmul.f32 %v5516, %v5548
    %v5553 = vld [vmem:[#allocation2 + $0xe0] sm:$0xff]
    %v5554 = vld [vmem:[#allocation2 + $0x18] sm:$0xff]
    %5557 = vrot.lane.b32.xlu0 %v5551, 32
    %v5558 = vpop.permute.xlu0 %5557
    %5559 = vrot.lane.b32.xlu0 %v5552, 32
    %v5560 = vpop.permute.xlu0 %5559
    %5563 = vrot.lane.b32.xlu0 %v5551, 64
    %v5564 = vpop.permute.xlu0 %5563
    %5565 = vrot.lane.b32.xlu0 %v5552, 64
    %v5566 = vpop.permute.xlu0 %5565
    %v5569 = vsel %vm867, %v5558, %v5564
    %v5570 = vsel %vm867, %v5560, %v5566
    %v5571 = vmul.f32 %v5569, %v459
    %v5572 = vmul.f32 %v5570, %v460
    %v5574 = vsel %vm731, %v5571, 0
    %v5577 = vsel %vm731, %v5572, 0
    %5579 = vmatprep.subr.mxu0 0.0
    %5580 = vmatpush1.msra.mxu0 0.0
    %5581 = vmatprep.subr.mxu0 0.0
    %5582 = vmatpush1.msra.mxu0 0.0
    %5583 = vmatprep.subr.mxu0 0.0
    %5584 = vmatpush1.msra.mxu0 0.0
    %5585 = vmatprep.subr.mxu0 0.0
    %5586 = vmatpush1.msra.mxu0 0.0
    %5587 = vmatprep.subr.mxu0 0.0
    %5588 = vmatpush1.msra.mxu0 0.0
    %5589 = vmatprep.subr.mxu0 0.0
    %5590 = vmatpush1.msra.mxu0 0.0
    %5591 = vmatprep.subr.mxu0 0.0
    %5592 = vmatpush1.msra.mxu0 0.0
    %5593 = vmatprep.subr.mxu0 0.0
    %5594 = vmatpush1.msra.mxu0 0.0
    %5595 = vmatprep.subr.mxu0 0.0
    %5596 = vmatpush1.msra.mxu0 %v3462
    %5597 = vmatprep.subr.mxu0 0.0
    %5598 = vmatpush1.msra.mxu0 %v3461
    %5599 = vmatprep.subr.mxu0 0.0
    %5600 = vmatpush1.msra.mxu0 %v3460
    %5601 = vmatprep.subr.mxu0 0.0
    %5602 = vmatpush1.msra.mxu0 %v3459
    %5603 = vmatprep.subr.mxu0 0.0
    %5604 = vmatpush1.msra.mxu0 %v3458
    %5605 = vmatprep.subr.mxu0 0.0
    %5606 = vmatpush1.msra.mxu0 %v3457
    %5607 = vmatprep.subr.mxu0 0.0
    %5608 = vmatpush1.msra.mxu0 %v3456
    %5609 = vmatprep.subr.mxu0 0.0
    %5610 = vmatpush1.msra.mxu0 %v3455
    %5611 = vmatprep.subr.mxu0 0.0
    %5612 = vmatpush2.msra.mxu0 0.0
    %5613 = vmatprep.subr.mxu0 0.0
    %5614 = vmatpush2.msra.mxu0 0.0
    %5615 = vmatprep.subr.mxu0 0.0
    %5616 = vmatpush2.msra.mxu0 0.0
    %5617 = vmatprep.subr.mxu0 0.0
    %5618 = vmatpush2.msra.mxu0 0.0
    %5619 = vmatprep.subr.mxu0 0.0
    %5620 = vmatpush2.msra.mxu0 0.0
    %5621 = vmatprep.subr.mxu0 0.0
    %5622 = vmatpush2.msra.mxu0 0.0
    %5623 = vmatprep.subr.mxu0 0.0
    %5624 = vmatpush2.msra.mxu0 0.0
    %5625 = vmatprep.subr.mxu0 0.0
    %5626 = vmatpush2.msra.mxu0 0.0
    %5627 = vmatprep.subr.mxu0 0.0
    %5628 = vmatpush2.msra.mxu0 0.0
    %5629 = vmatprep.subr.mxu0 0.0
    %5630 = vmatpush2.msra.mxu0 0.0
    %5631 = vmatprep.subr.mxu0 0.0
    %5632 = vmatpush2.msra.mxu0 0.0
    %5633 = vmatprep.subr.mxu0 0.0
    %5634 = vmatpush2.msra.mxu0 0.0
    %5635 = vmatprep.subr.mxu0 0.0
    %5636 = vmatpush2.msra.mxu0 0.0
    %5637 = vmatprep.subr.mxu0 0.0
    %5638 = vmatpush2.msra.mxu0 0.0
    %5639 = vmatprep.subr.mxu0 0.0
    %5640 = vmatpush2.msra.mxu0 0.0
    %5641 = vmatprep.subr.mxu0 0.0
    %5642 = vmatpush2.msra.mxu0 0.0
    %5643 = vmatprep.mubr.f32.mxu0 0.0
    %5644 = vmatmul.mubr.f32.gmra.mxu0 %v5574
    %v5645 = vpop.f32.mrf.mxu0
    %v5646 = vadd.f32 0.0, %v5645
    %v5647 = vpop.f32.mrf.mxu0
    %5648 = vmatprep.mubr.f32.mxu0 0.0
    %5649 = vmatmul.mubr.f32.gmra.mxu0 %v5577
    %v5650 = vpop.f32.mrf.mxu0
    %v5651 = vadd.f32 0.0, %v5650
    %v5652 = vpop.f32.mrf.mxu0
    %5653 = vdwg.mxu0
    %v5654 = vadd.f32 %v5553, %v5646
    %v5655 = vadd.f32 %v5554, %v5651
    %v5656 = vxor.u32 %v5654, 2147483648
    %v5657 = vxor.u32 %v5655, 2147483648
    %v5658 = vmul.f32 %v5656, 1.442695
    %v5659 = vpow.pop %v5658
    %v5660 = vmul.f32 %v5657, 1.442695
    %v5661 = vpow.pop %v5660
    %v5662 = vadd.f32 %v5659, 1.0
    %v5663 = vadd.f32 %v5661, 1.0
    %v5664 = vrcp.pop %v5662
    %v5665 = vmul.f32 1.0, %v5664
    %v5666 = vrcp.pop %v5663
    %v5667 = vmul.f32 1.0, %v5666
    %v5668 = vtanh.pop %v5654
    %v5669 = vtanh.pop %v5655
    %v5670 = vmul.f32 %v5665, %v5539
    %v5671 = vmul.f32 %v5667, %v5540
    %5674 = vrot.lane.b32.xlu0 %v5668, 64
    %v5675 = vpop.permute.xlu0 %5674
    %5676 = vrot.lane.b32.xlu0 %v5669, 64
    %v5677 = vpop.permute.xlu0 %5676
    %v5680 = vmul.f32 %v5665, %v5675
    %v5681 = vmul.f32 %v5667, %v5677
    %5684 = vrot.lane.b32.xlu0 %v5680, 32
    %v5685 = vpop.permute.xlu0 %5684
    %5686 = vrot.lane.b32.xlu0 %v5681, 32
    %v5687 = vpop.permute.xlu0 %5686
    %v5690 = vadd.f32 %v5670, %v5685
    %v5691 = vadd.f32 %v5671, %v5687
    %v5692 = vtanh.pop %v5690
    %v5693 = vtanh.pop %v5691
    %5696 = vrot.lane.b32.xlu0 %v5692, 64
    %v5697 = vpop.permute.xlu0 %5696
    %5698 = vrot.lane.b32.xlu0 %v5693, 64
    %v5699 = vpop.permute.xlu0 %5698
    %v5702 = vmul.f32 %v5665, %v5697
    %v5703 = vmul.f32 %v5667, %v5699
    %v5704 = vld [vmem:[#allocation2 + $0xf0] sm:$0xff]
    %5707 = vrot.lane.b32.xlu0 %v5702, 32
    %v5708 = vpop.permute.xlu0 %5707
    %5709 = vrot.lane.b32.xlu0 %v5703, 32
    %v5710 = vpop.permute.xlu0 %5709
    %5713 = vrot.lane.b32.xlu0 %v5702, 64
    %v5714 = vpop.permute.xlu0 %5713
    %5715 = vrot.lane.b32.xlu0 %v5703, 64
    %v5716 = vpop.permute.xlu0 %5715
    %v5719 = vsel %vm867, %v5708, %v5714
    %v5720 = vsel %vm867, %v5710, %v5716
    %v5721 = vmul.f32 %v5719, %v459
    %v5722 = vmul.f32 %v5720, %v460
    %v5724 = vsel %vm731, %v5721, 0
    %v5727 = vsel %vm731, %v5722, 0
    %5729 = vmatprep.subr.mxu0 0.0
    %5730 = vmatpush1.msra.mxu0 0.0
    %5731 = vmatprep.subr.mxu0 0.0
    %5732 = vmatpush1.msra.mxu0 0.0
    %5733 = vmatprep.subr.mxu0 0.0
    %5734 = vmatpush1.msra.mxu0 0.0
    %5735 = vmatprep.subr.mxu0 0.0
    %5736 = vmatpush1.msra.mxu0 0.0
    %5737 = vmatprep.subr.mxu0 0.0
    %5738 = vmatpush1.msra.mxu0 0.0
    %5739 = vmatprep.subr.mxu0 0.0
    %5740 = vmatpush1.msra.mxu0 0.0
    %5741 = vmatprep.subr.mxu0 0.0
    %5742 = vmatpush1.msra.mxu0 0.0
    %5743 = vmatprep.subr.mxu0 0.0
    %5744 = vmatpush1.msra.mxu0 0.0
    %5745 = vmatprep.subr.mxu0 0.0
    %5746 = vmatpush1.msra.mxu0 %v3462
    %5747 = vmatprep.subr.mxu0 0.0
    %5748 = vmatpush1.msra.mxu0 %v3461
    %5749 = vmatprep.subr.mxu0 0.0
    %5750 = vmatpush1.msra.mxu0 %v3460
    %5751 = vmatprep.subr.mxu0 0.0
    %5752 = vmatpush1.msra.mxu0 %v3459
    %5753 = vmatprep.subr.mxu0 0.0
    %5754 = vmatpush1.msra.mxu0 %v3458
    %5755 = vmatprep.subr.mxu0 0.0
    %5756 = vmatpush1.msra.mxu0 %v3457
    %5757 = vmatprep.subr.mxu0 0.0
    %5758 = vmatpush1.msra.mxu0 %v3456
    %5759 = vmatprep.subr.mxu0 0.0
    %5760 = vmatpush1.msra.mxu0 %v3455
    %5761 = vmatprep.subr.mxu0 0.0
    %5762 = vmatpush2.msra.mxu0 0.0
    %5763 = vmatprep.subr.mxu0 0.0
    %5764 = vmatpush2.msra.mxu0 0.0
    %5765 = vmatprep.subr.mxu0 0.0
    %5766 = vmatpush2.msra.mxu0 0.0
    %5767 = vmatprep.subr.mxu0 0.0
    %5768 = vmatpush2.msra.mxu0 0.0
    %5769 = vmatprep.subr.mxu0 0.0
    %5770 = vmatpush2.msra.mxu0 0.0
    %5771 = vmatprep.subr.mxu0 0.0
    %5772 = vmatpush2.msra.mxu0 0.0
    %5773 = vmatprep.subr.mxu0 0.0
    %5774 = vmatpush2.msra.mxu0 0.0
    %5775 = vmatprep.subr.mxu0 0.0
    %5776 = vmatpush2.msra.mxu0 0.0
    %5777 = vmatprep.subr.mxu0 0.0
    %5778 = vmatpush2.msra.mxu0 0.0
    %5779 = vmatprep.subr.mxu0 0.0
    %5780 = vmatpush2.msra.mxu0 0.0
    %5781 = vmatprep.subr.mxu0 0.0
    %5782 = vmatpush2.msra.mxu0 0.0
    %5783 = vmatprep.subr.mxu0 0.0
    %5784 = vmatpush2.msra.mxu0 0.0
    %5785 = vmatprep.subr.mxu0 0.0
    %5786 = vmatpush2.msra.mxu0 0.0
    %5787 = vmatprep.subr.mxu0 0.0
    %5788 = vmatpush2.msra.mxu0 0.0
    %5789 = vmatprep.subr.mxu0 0.0
    %5790 = vmatpush2.msra.mxu0 0.0
    %5791 = vmatprep.subr.mxu0 0.0
    %5792 = vmatpush2.msra.mxu0 0.0
    %5793 = vmatprep.mubr.f32.mxu0 0.0
    %5794 = vmatmul.mubr.f32.gmra.mxu0 %v5724
    %v5795 = vpop.f32.mrf.mxu0
    %v5796 = vadd.f32 0.0, %v5795
    %v5797 = vpop.f32.mrf.mxu0
    %5798 = vmatprep.mubr.f32.mxu0 0.0
    %5799 = vmatmul.mubr.f32.gmra.mxu0 %v5727
    %v5800 = vpop.f32.mrf.mxu0
    %v5801 = vpop.f32.mrf.mxu0
    %5802 = vdwg.mxu0
    %v5803 = vadd.f32 %v5704, %v5796
    %v5804 = vxor.u32 %v5803, 2147483648
    %v5805 = vmul.f32 %v5804, 1.442695
    %v5806 = vpow.pop %v5805
    %v5807 = vadd.f32 %v5806, 1.0
    %v5808 = vrcp.pop %v5807
    %v5809 = vmul.f32 1.0, %v5808
    %v5810 = vtanh.pop %v5803
    %v5811 = vmul.f32 %v5809, %v5690
    %5813 = vrot.lane.b32.xlu0 %v5810, 64
    %v5814 = vpop.permute.xlu0 %5813
    %v5816 = vmul.f32 %v5809, %v5814
    %5818 = vrot.lane.b32.xlu0 %v5816, 32
    %v5819 = vpop.permute.xlu0 %5818
    %v5821 = vadd.f32 %v5811, %v5819
    %v5822 = vtanh.pop %v5821
    %5824 = vrot.lane.b32.xlu0 %v5822, 64
    %v5825 = vpop.permute.xlu0 %5824
    %v5827 = vmul.f32 %v5809, %v5825
    %5829 = vrot.lane.b32.xlu0 %v5827, 32
    %v5830 = vpop.permute.xlu0 %5829
    %v5832 = vsel %vm867, %v5830, %v3603
    %v5833 = vld [vmem:[%s8] sm:$0x1]
    %v5835 = vlaneseq
    %v5836 = vshrl.u32 %v5835, 7
    %v5837 = vsub.s32 0, %v5836
    %v5838 = vrot.slane %v5833, %v5837
    %v5840 = vmul.f32 %v5832, %v5838
    %v5841 = vld [vmem:[%s9] sm:$0x1]
    %v5843 = vlaneseq
    %v5844 = vshrl.u32 %v5843, 7
    %v5845 = vsub.s32 0, %v5844
    %v5846 = vrot.slane %v5841, %v5845
    %v5848 = vadd.f32 %v5840, %v5846
    %v5849 = vsel %vm731, %v5848, 0.0
    %5850 = vadd.xlane.f32.xlu0 %v5849
    %v5851 = vpop.xlane.xlu0 %5850
    %v5852 = vrcp.pop 64.0
    %v5853 = vmul.f32 %v5851, %v5852
    %v5854 = vsub.f32 %v5848, %v5853
    %v5855 = vmul.f32 %v5854, %v5854
    %v5856 = vsel %vm731, %v5855, 0.0
    %5857 = vadd.xlane.f32.xlu0 %v5856
    %v5858 = vpop.xlane.xlu0 %5857
    %v5859 = vmul.f32 %v5858, %v5852
    %v5860 = vadd.f32 %v5859, 1e-05
    %v5861 = vrsqrt.pop %v5860
    %v5862 = vmul.f32 %v5854, %v5861
    %v5863 = vld [vmem:[#allocation12] sm:$0x1]
    %v5865 = vlaneseq
    %v5866 = vshrl.u32 %v5865, 7
    %v5867 = vsub.s32 0, %v5866
    %v5868 = vrot.slane %v5863, %v5867
    %v5870 = vmul.f32 %v5862, %v5868
    %v5871 = vld [vmem:[#allocation13] sm:$0x1]
    %v5873 = vlaneseq
    %v5874 = vshrl.u32 %v5873, 7
    %v5875 = vsub.s32 0, %v5874
    %v5876 = vrot.slane %v5871, %v5875
    %v5878 = vadd.f32 %v5870, %v5876
    %v5879 = vld [vmem:[%s12] sm:$0xff]
    %v5880 = vld [vmem:[%s12 + $0x8] sm:$0xff]
    %v5881 = vld [vmem:[%s12 + $0x10] sm:$0xff]
    %v5882 = vld [vmem:[%s12 + $0x18] sm:$0xff]
    %v5883 = vld [vmem:[%s12 + $0x20] sm:$0xff]
    %v5884 = vld [vmem:[%s12 + $0x28] sm:$0xff]
    %v5885 = vld [vmem:[%s12 + $0x30] sm:$0xff]
    %v5886 = vld [vmem:[%s12 + $0x38] sm:$0xff]
    %v5887 = vld [vmem:[#allocation15] sm:$0x1]
    %v5889 = vlaneseq
    %v5890 = vshrl.u32 %v5889, 7
    %v5891 = vsub.s32 0, %v5890
    %v5892 = vrot.slane %v5887, %v5891
    %v5895 = vsel %vm731, %v5878, 0
    %5897 = vmatprep.subr.mxu0 0.0
    %5898 = vmatpush1.msra.mxu0 0.0
    %5899 = vmatprep.subr.mxu0 0.0
    %5900 = vmatpush1.msra.mxu0 0.0
    %5901 = vmatprep.subr.mxu0 0.0
    %5902 = vmatpush1.msra.mxu0 0.0
    %5903 = vmatprep.subr.mxu0 0.0
    %5904 = vmatpush1.msra.mxu0 0.0
    %5905 = vmatprep.subr.mxu0 0.0
    %5906 = vmatpush1.msra.mxu0 0.0
    %5907 = vmatprep.subr.mxu0 0.0
    %5908 = vmatpush1.msra.mxu0 0.0
    %5909 = vmatprep.subr.mxu0 0.0
    %5910 = vmatpush1.msra.mxu0 0.0
    %5911 = vmatprep.subr.mxu0 0.0
    %5912 = vmatpush1.msra.mxu0 0.0
    %5913 = vmatprep.subr.mxu0 0.0
    %5914 = vmatpush1.msra.mxu0 %v5886
    %5915 = vmatprep.subr.mxu0 0.0
    %5916 = vmatpush1.msra.mxu0 %v5885
    %5917 = vmatprep.subr.mxu0 0.0
    %5918 = vmatpush1.msra.mxu0 %v5884
    %5919 = vmatprep.subr.mxu0 0.0
    %5920 = vmatpush1.msra.mxu0 %v5883
    %5921 = vmatprep.subr.mxu0 0.0
    %5922 = vmatpush1.msra.mxu0 %v5882
    %5923 = vmatprep.subr.mxu0 0.0
    %5924 = vmatpush1.msra.mxu0 %v5881
    %5925 = vmatprep.subr.mxu0 0.0
    %5926 = vmatpush1.msra.mxu0 %v5880
    %5927 = vmatprep.subr.mxu0 0.0
    %5928 = vmatpush1.msra.mxu0 %v5879
    %5929 = vmatprep.subr.mxu0 0.0
    %5930 = vmatpush2.msra.mxu0 0.0
    %5931 = vmatprep.subr.mxu0 0.0
    %5932 = vmatpush2.msra.mxu0 0.0
    %5933 = vmatprep.subr.mxu0 0.0
    %5934 = vmatpush2.msra.mxu0 0.0
    %5935 = vmatprep.subr.mxu0 0.0
    %5936 = vmatpush2.msra.mxu0 0.0
    %5937 = vmatprep.subr.mxu0 0.0
    %5938 = vmatpush2.msra.mxu0 0.0
    %5939 = vmatprep.subr.mxu0 0.0
    %5940 = vmatpush2.msra.mxu0 0.0
    %5941 = vmatprep.subr.mxu0 0.0
    %5942 = vmatpush2.msra.mxu0 0.0
    %5943 = vmatprep.subr.mxu0 0.0
    %5944 = vmatpush2.msra.mxu0 0.0
    %5945 = vmatprep.subr.mxu0 0.0
    %5946 = vmatpush2.msra.mxu0 0.0
    %5947 = vmatprep.subr.mxu0 0.0
    %5948 = vmatpush2.msra.mxu0 0.0
    %5949 = vmatprep.subr.mxu0 0.0
    %5950 = vmatpush2.msra.mxu0 0.0
    %5951 = vmatprep.subr.mxu0 0.0
    %5952 = vmatpush2.msra.mxu0 0.0
    %5953 = vmatprep.subr.mxu0 0.0
    %5954 = vmatpush2.msra.mxu0 0.0
    %5955 = vmatprep.subr.mxu0 0.0
    %5956 = vmatpush2.msra.mxu0 0.0
    %5957 = vmatprep.subr.mxu0 0.0
    %5958 = vmatpush2.msra.mxu0 0.0
    %5959 = vmatprep.subr.mxu0 0.0
    %5960 = vmatpush2.msra.mxu0 0.0
    %5961 = vmatprep.mubr.f32.mxu0 0.0
    %5962 = vmatmul.mubr.f32.gmra.mxu0 %v5895
    %v5963 = vpop.f32.mrf.mxu0
    %v5964 = vadd.f32 %v5892, %v5963
    %v5965 = vpop.f32.mrf.mxu0
    %5966 = vdwg.mxu0
    %vm5967 = vcmask 80896
    %5968 = vst.msk [vmem:[#allocation16] sm:$0xff] %vm5967, %v5964
    // Predicated region
    $region86: #{description_writer_forward.1} parent=1 // pred_check
      _
    $region87: #{description_writer_forward.1} parent=1 // pred_check_branch
      %5970 = sbr.rel (0) target = $region89
    $region88: #{description_writer_forward.1} parent=1 // pred_region
      %s5972 = ssub.s32 128, 128
      %5973 = vsyncadd [#allocation6], %s5972
      %s5975 = sshll.u32 [#allocation16], 4
      %s5976 = int_to_ptr.vmem [resolvable:$true] %s5975
      %5978 = dma.vmem_to_hbm [thread:$0]  %s5976, 128, %s14, [#allocation6]
    $region89: #{description_writer_forward.1} parent=1 // pred_fallthru
      _
    // Predicated region
    $region90: #{description_writer_forward.1} parent=1 // pred_check
      _
    $region91: #{description_writer_forward.1} parent=1 // pred_check_branch
      %5980 = sbr.rel (0) target = $region93
    $region92: #{description_writer_forward.1} parent=1 // pred_region
      %5981 = dma.done [#allocation6], 128
    $region93: #{description_writer_forward.1} parent=1 // pred_fallthru
      _
    %5982 = vsyncpa [#allocation5], 1
    %5983 = vsyncpa [#allocation8], 1
    %5984 = vsyncpa [#allocation11], 1
    %5985 = vsyncpa [#allocation14], 1
    %5986 = vsyncpa [#allocation6], 1

</llo_original>
